<compile_context>
chip_gen: v7x
topology: tpu7x:2x2x1
jax: 0.10.0
libtpu: 0.0.40
codegen_flags: <defaults>
</compile_context>

<pallas_src>
import functools

import jax
import jax.numpy as jnp
from jax.experimental import pallas as pl
from jax.experimental.pallas import tpu as pltpu


# ----------------------------- small helpers -------------------------------

_CompilerParams = getattr(pltpu, "CompilerParams", None)


def _cparams(n_axes):
    if _CompilerParams is None:
        return None
    return _CompilerParams(dimension_semantics=("parallel",) * n_axes)


def _round_up(n, m):
    return ((n + m - 1) // m) * m


def _row_tile(M, tmax=512):
    """Pick (padded_rows, row_tile).  Single full-array block when it fits."""
    Mp8 = _round_up(M, 8)
    if Mp8 <= tmax:
        return Mp8, Mp8
    tcap = max(16, (tmax // 16) * 16)
    # prefer a reasonably-large tile that exactly divides the 8-padded rows
    for tm in range(tcap, 127, -16):
        if Mp8 % tm == 0:
            return Mp8, tm
    # otherwise: least padding, largest tile on ties
    best_tm, best_mp = tcap, _round_up(M, tcap)
    for tm in range(tcap, 127, -16):
        Mp = _round_up(M, tm)
        if Mp < best_mp:
            best_mp, best_tm = Mp, tm
    return best_mp, best_tm


def _pad_rows(x, Mp):
    M = x.shape[0]
    if Mp == M:
        return x
    return jnp.pad(x, ((0, Mp - M),) + ((0, 0),) * (x.ndim - 1))


# ----------------------------- Pallas kernels ------------------------------

def _gemm_kernel(x_ref, *rest, act, ln, res):
    """GEMM with optional fused LayerNorm prologue, GELU, residual epilogue."""
    i = 0
    if ln:
        g_ref, bln_ref = rest[0], rest[1]
        i = 2
    w_ref, b_ref = rest[i], rest[i + 1]
    i += 2
    r_ref = rest[i] if res else None
    o_ref = rest[-1]

    x = x_ref[...]
    if ln:
        x = x.astype(jnp.float32)
        mu = jnp.mean(x, axis=-1, keepdims=True)
        var = jnp.mean((x - mu) * (x - mu), axis=-1, keepdims=True)
        x = (x - mu) * jax.lax.rsqrt(var + 1e-5) * g_ref[...] + bln_ref[...]
    y = jnp.dot(x.astype(jnp.bfloat16), w_ref[...],
                preferred_element_type=jnp.float32) + b_ref[...]
    if act == "gelu":
        # exact (erf-based) GELU, matching torch.nn.GELU default
        y = 0.5 * y * (1.0 + jax.lax.erf(y * 0.7071067811865476))
    if res:
        y = y + r_ref[...].astype(jnp.float32)
    o_ref[...] = y.astype(o_ref.dtype)


def _layernorm_kernel(x_ref, g_ref, b_ref, o_ref):
    x = x_ref[...].astype(jnp.float32)
    mu = jnp.mean(x, axis=-1, keepdims=True)
    var = jnp.mean((x - mu) * (x - mu), axis=-1, keepdims=True)
    y = (x - mu) * jax.lax.rsqrt(var + 1e-5) * g_ref[...] + b_ref[...]
    o_ref[...] = y.astype(o_ref.dtype)


def _attention_kernel(q_ref, k_ref, v_ref, o_ref, *, heads, dim_head, scale):
    # Lane-dense layout: q tile (tq, heads*dim_head), full K/V (Nk, heads*dh).
    # One (batch, q-tile) pair per grid step; heads split via static lane
    # slices, per-head MXU dots, exact softmax in f32.
    q = q_ref[0]
    k = k_ref[0]
    v = v_ref[0]
    outs = []
    for h in range(heads):
        lo = h * dim_head
        hi = lo + dim_head
        qh = q[:, lo:hi].astype(jnp.bfloat16)
        kh = k[:, lo:hi].astype(jnp.bfloat16)
        vh = v[:, lo:hi].astype(jnp.bfloat16)
        s = jax.lax.dot_general(qh, kh, (((1,), (1,)), ((), ())),
                                preferred_element_type=jnp.float32) * scale
        s = s - jnp.max(s, axis=-1, keepdims=True)
        e = jnp.exp(s)
        p = e / jnp.sum(e, axis=-1, keepdims=True)
        outs.append(jnp.dot(p.astype(jnp.bfloat16), vh,
                            preferred_element_type=jnp.float32))
    out = outs[0] if heads == 1 else jnp.concatenate(outs, axis=-1)
    o_ref[0] = out.astype(o_ref.dtype)


# ----------------------------- kernel wrappers ------------------------------

def gemm(x, w, b, *, ln=None, act=None, residual=None,
         out_dtype=jnp.float32, tmax=512):
    """y = [LN](x) @ w + b [+ GELU] [+ residual], row-tiled & pipelined."""
    M, K = x.shape
    N = w.shape[1]
    Mp, tm = _row_tile(M, tmax)
    xp = _pad_rows(x, Mp)

    args = [xp]
    in_specs = [pl.BlockSpec((tm, K), lambda i: (i, 0))]
    if ln is not None:
        g, bln = ln
        args += [g.reshape(1, K).astype(jnp.float32),
                 bln.reshape(1, K).astype(jnp.float32)]
        in_specs += [pl.BlockSpec((1, K), lambda i: (0, 0)),
                     pl.BlockSpec((1, K), lambda i: (0, 0))]
    args += [w.astype(jnp.bfloat16), b.reshape(1, N).astype(jnp.float32)]
    in_specs += [pl.BlockSpec((K, N), lambda i: (0, 0)),
                 pl.BlockSpec((1, N), lambda i: (0, 0))]
    if residual is not None:
        args.append(_pad_rows(residual, Mp))
        in_specs.append(pl.BlockSpec((tm, N), lambda i: (i, 0)))

    kern = functools.partial(_gemm_kernel, act=act, ln=ln is not None,
                             res=residual is not None)
    y = pl.pallas_call(
        kern,
        out_shape=jax.ShapeDtypeStruct((Mp, N), out_dtype),
        grid=(Mp // tm,),
        in_specs=in_specs,
        out_specs=pl.BlockSpec((tm, N), lambda i: (i, 0)),
        compiler_params=_cparams(1),
    )(*args)
    return y[:M] if Mp != M else y


def layernorm(x, p, out_dtype=jnp.float32, tmax=1024):
    shape = x.shape
    D = shape[-1]
    x2 = x.reshape(-1, D)
    M = x2.shape[0]
    Mp, tm = _row_tile(M, tmax)
    xp = _pad_rows(x2, Mp)
    y = pl.pallas_call(
        _layernorm_kernel,
        out_shape=jax.ShapeDtypeStruct((Mp, D), out_dtype),
        grid=(Mp // tm,),
        in_specs=[pl.BlockSpec((tm, D), lambda i: (i, 0)),
                  pl.BlockSpec((1, D), lambda i: (0, 0)),
                  pl.BlockSpec((1, D), lambda i: (0, 0))],
        out_specs=pl.BlockSpec((tm, D), lambda i: (i, 0)),
        compiler_params=_cparams(1),
    )(xp, p["g"].reshape(1, D).astype(jnp.float32),
      p["b"].reshape(1, D).astype(jnp.float32))
    y = y[:M] if Mp != M else y
    return y.reshape(shape[:-1] + (D,))


def attention(q, k, v, scale, heads, dim_head, out_dtype=jnp.float32,
              tq_max=256):
    """q, k, v: (B, N, heads*dim_head) lane-dense; out same layout."""
    B, Nq, inner = q.shape
    Nk = k.shape[1]
    Nqp, tq = _row_tile(Nq, tq_max)
    qp = q if Nqp == Nq else jnp.pad(q, ((0, 0), (0, Nqp - Nq), (0, 0)))
    kern = functools.partial(_attention_kernel, heads=heads,
                             dim_head=dim_head, scale=scale)
    out = pl.pallas_call(
        kern,
        out_shape=jax.ShapeDtypeStruct((B, Nqp, inner), out_dtype),
        grid=(B, Nqp // tq),
        in_specs=[pl.BlockSpec((1, tq, inner), lambda b, i: (b, i, 0)),
                  pl.BlockSpec((1, Nk, inner), lambda b, i: (b, 0, 0)),
                  pl.BlockSpec((1, Nk, inner), lambda b, i: (b, 0, 0))],
        out_specs=pl.BlockSpec((1, tq, inner), lambda b, i: (b, i, 0)),
        compiler_params=_cparams(2),
    )(qp, k, v)
    return out[:, :Nq] if Nqp != Nq else out


# ----------------------------- conv helpers (glue + Pallas GEMM) ------------

def _im2col_taps(x, k, stride, pad):
    # x: NHWC
    B, H, W, C = x.shape
    xp = jnp.pad(x, ((0, 0), (pad, pad), (pad, pad), (0, 0)))
    Ho = (H + 2 * pad - k) // stride + 1
    Wo = (W + 2 * pad - k) // stride + 1
    taps = [xp[:, kh:kh + stride * Ho:stride, kw:kw + stride * Wo:stride, :]
            for kh in range(k) for kw in range(k)]
    return taps, Ho, Wo


def conv2d(x, w, b, stride, pad, out_dtype=jnp.float32):
    # w in torch layout (Cout, Cin, K, K); x NHWC.  im2col + M-tiled GEMM.
    Cout, Cin, K, _ = w.shape
    B = x.shape[0]
    taps, Ho, Wo = _im2col_taps(x, K, stride, pad)
    M = B * Ho * Wo
    patches = jnp.concatenate([t.reshape(M, Cin) for t in taps], axis=1)
    w2 = jnp.transpose(w, (2, 3, 1, 0)).reshape(K * K * Cin, Cout)
    y = gemm(patches, w2.astype(jnp.bfloat16), b, out_dtype=out_dtype)
    return y.reshape(B, Ho, Wo, Cout)


def _fold_sepconv_full(p):
    """Fold depthwise conv + dw bias + eval BatchNorm + pointwise conv into
    a single im2col GEMM weight (KK*C, inner) and bias (inner,)."""
    s = p["bn_g"] * jax.lax.rsqrt(p["bn_v"] + 1e-5)          # (C,)
    wpw = p["pw_w"][:, :, 0, 0]                              # (inner, C)
    w2 = (wpw * s[None, :]).T                                # (C, inner) BN-folded
    b2 = p["pw_b"] + wpw @ ((p["dw_b"] - p["bn_m"]) * s + p["bn_b"])
    C = p["dw_w"].shape[0]
    K = p["dw_w"].shape[2]
    dw = p["dw_w"][:, 0].reshape(C, K * K)                   # (C, KK) kh-major
    wf = dw.T[:, :, None] * w2[None, :, :]                   # (KK, C, inner)
    return wf.reshape(K * K * C, -1), b2


def _fold_qkv(pq, pk, pv):
    ws, bs = [], []
    for p in (pq, pk, pv):
        wf, bf = _fold_sepconv_full(p)
        ws.append(wf)
        bs.append(bf)
    w = jnp.concatenate(ws, axis=1).astype(jnp.bfloat16)     # (KK*C, 3*inner)
    b = jnp.concatenate(bs)                                  # (3*inner,)
    return w, b


def fused_qkv_sepconv(xi, pq, pk, pv, out_dtype=jnp.bfloat16):
    """q/k/v SepConv2d (stride 1) as ONE folded, lane-dense GEMM."""
    B, Himg, Wimg, C = xi.shape
    K = pq["dw_w"].shape[2]
    pad = (K - 1) // 2                   # (kernel_size - stride) // 2, stride=1
    taps, Ho, Wo = _im2col_taps(xi, K, 1, pad)
    M = B * Ho * Wo
    patches = jnp.concatenate([t.reshape(M, C) for t in taps], axis=1)
    w, b = _fold_qkv(pq, pk, pv)
    y = gemm(patches, w, b, out_dtype=out_dtype, tmax=512)
    return y.reshape(B, Ho * Wo, -1)


# ----------------------------- model blocks --------------------------------

def feed_forward_prenorm(x, ln, p1, p2):
    """PreNorm(FeedForward) + residual: LN fused into fc1, GELU fused,
    residual fused into the fc2 epilogue; hidden activation in bf16."""
    B, N, D = x.shape
    x2 = x.reshape(B * N, D)
    h = gemm(x2, p1["w"], p1["b"], ln=(ln["g"], ln["b"]), act="gelu",
             out_dtype=jnp.bfloat16)
    y = gemm(h, p2["w"], p2["b"], residual=x2, out_dtype=jnp.float32)
    return y.reshape(B, N, D)


def conv_attention(h, p, heads, dim_head, img_size, last_stage, residual):
    """ConvAttention on the LN'd tokens h; residual fused where possible."""
    B, N, dim = h.shape
    inner = heads * dim_head
    scale = float(dim_head) ** -0.5

    if last_stage:
        cls = h[:, 0:1, :]                      # (B, 1, dim), dim == inner here
        xs = h[:, 1:, :]
    else:
        xs = h
    xi = xs.reshape(B, img_size, img_size, dim)                 # NHWC map

    qkv = fused_qkv_sepconv(xi, p["to_q"], p["to_k"], p["to_v"])  # (B,HW,3*inner)
    q = qkv[..., 0:inner]
    k = qkv[..., inner:2 * inner]
    v = qkv[..., 2 * inner:3 * inner]
    if last_stage:
        cls_b = cls.astype(qkv.dtype)
        q = jnp.concatenate([cls_b, q], axis=1)
        k = jnp.concatenate([cls_b, k], axis=1)
        v = jnp.concatenate([cls_b, v], axis=1)

    has_proj = p["to_out"] is not None
    out_dtype = jnp.bfloat16 if has_proj else jnp.float32
    out = attention(q, k, v, scale, heads, dim_head, out_dtype=out_dtype)
    Nq = out.shape[1]

    if has_proj:
        y = gemm(out.reshape(B * Nq, inner), p["to_out"]["w"], p["to_out"]["b"],
                 residual=residual.reshape(B * Nq, dim), out_dtype=jnp.float32)
        return y.reshape(B, Nq, dim)
    return out.astype(jnp.float32) + residual


def transformer(x, layers, heads, dim_head, img_size, last_stage):
    for lp in layers:
        h = layernorm(x, lp["attn_ln"], out_dtype=jnp.bfloat16)
        x = conv_attention(h, lp["attn"], heads, dim_head, img_size,
                           last_stage, residual=x)
        x = feed_forward_prenorm(x, lp["ff_ln"], lp["ff_w1"], lp["ff_w2"])
    return x


# ----------------------------- parameter init ------------------------------

def init_linear(key, din, dout, std=0.02):
    w = jax.random.normal(key, (din, dout), jnp.float32) * std
    return {"w": w.astype(jnp.bfloat16),           # pre-cast GEMM weight
            "b": jnp.zeros((dout,), jnp.float32)}


def init_conv(key, cin, cout, k, std=0.02):
    return {"w": jax.random.normal(key, (cout, cin, k, k), jnp.float32) * std,
            "b": jnp.zeros((cout,), jnp.float32)}


def init_ln(dim):
    return {"g": jnp.ones((dim,), jnp.float32), "b": jnp.zeros((dim,), jnp.float32)}


def init_sepconv(key, cin, cout, k=3):
    k1, k2 = jax.random.split(key)
    return {
        "dw_w": jax.random.normal(k1, (cin, 1, k, k), jnp.float32) * 0.02,
        "dw_b": jnp.zeros((cin,), jnp.float32),
        "bn_g": jnp.ones((cin,), jnp.float32),
        "bn_b": jnp.zeros((cin,), jnp.float32),
        "bn_m": jnp.zeros((cin,), jnp.float32),
        "bn_v": jnp.ones((cin,), jnp.float32),
        "pw_w": jax.random.normal(k2, (cout, cin, 1, 1), jnp.float32) * 0.02,
        "pw_b": jnp.zeros((cout,), jnp.float32),
    }


def init_attention(key, dim, heads, dim_head):
    inner = heads * dim_head
    project_out = not (heads == 1 and dim_head == dim)
    kq, kk, kv, ko = jax.random.split(key, 4)
    return {
        "to_q": init_sepconv(kq, dim, inner),
        "to_k": init_sepconv(kk, dim, inner),
        "to_v": init_sepconv(kv, dim, inner),
        "to_out": init_linear(ko, inner, dim) if project_out else None,
    }


def init_transformer(key, dim, depth, heads, dim_head, mlp_dim):
    layers = []
    for _ in range(depth):
        key, ka, kf1, kf2 = jax.random.split(key, 4)
        layers.append({
            "attn_ln": init_ln(dim),
            "attn": init_attention(ka, dim, heads, dim_head),
            "ff_ln": init_ln(dim),
            "ff_w1": init_linear(kf1, dim, mlp_dim),
            "ff_w2": init_linear(kf2, mlp_dim, dim),
        })
    return layers


def init_cvt(key, image_size, in_channels, num_classes, dim=8,
             kernels=(7, 3, 3), strides=(4, 2, 2), heads=(1, 3, 6),
             depth=(1, 1, 2), scale_dim=4):
    dim_head = dim                      # ConvAttention(dim_head=self.dim)
    dim1 = dim
    dim2 = (heads[1] // heads[0]) * dim1
    dim3 = (heads[2] // heads[1]) * dim2
    k = jax.random.split(key, 8)
    params = {
        "s1_conv": init_conv(k[0], in_channels, dim1, kernels[0]),
        "s1_ln": init_ln(dim1),
        "s1_tf": init_transformer(k[1], dim1, depth[0], heads[0], dim_head, dim1 * scale_dim),
        # TODO(synk): the provided source's stage2_conv_embed omits the Rearrange/LayerNorm
        # of the reference CvT; we add only the mandatory 'b c h w -> b (h w) c'
        # rearrange (no LayerNorm) to match the given Sequential.
        "s2_conv": init_conv(k[2], dim1, dim2, kernels[1]),
        "s2_tf": init_transformer(k[3], dim2, depth[1], heads[1], dim_head, dim2 * scale_dim),
        "s3_conv": init_conv(k[4], dim2, dim3, kernels[2]),
        "s3_ln": init_ln(dim3),
        "s3_tf": init_transformer(k[5], dim3, depth[2], heads[2], dim_head, dim3 * scale_dim),
        "cls_token": jax.random.normal(k[6], (1, 1, dim3), jnp.float32),
        "head_ln": init_ln(dim3),
        "head_fc": init_linear(k[7], dim3, num_classes),
    }
    cfg = {"image_size": image_size, "heads": heads, "dim_head": dim_head,
           "strides": strides, "pool": "cls"}
    return params, cfg


def make_forward(cfg):
    image_size = cfg["image_size"]
    heads = cfg["heads"]
    dim_head = cfg["dim_head"]
    strides = cfg["strides"]
    s1, s2, s3 = image_size // 4, image_size // 8, image_size // 16

    def forward(params, img):
        # img: (B, C, H, W) — PyTorch NCHW; convert to NHWC internally.
        x = jnp.transpose(img, (0, 2, 3, 1)).astype(jnp.float32)
        B = x.shape[0]

        # stage 1: conv embed (k=7, s=4, p=2) -> tokens -> LN -> transformer
        x = conv2d(x, params["s1_conv"]["w"], params["s1_conv"]["b"], strides[0], 2)
        x = x.reshape(B, s1 * s1, -1)
        x = layernorm(x, params["s1_ln"])
        x = transformer(x, params["s1_tf"], heads[0], dim_head, s1, False)
        x = x.reshape(B, s1, s1, -1)          # back to spatial map (NHWC)

        # stage 2: conv embed (k=3, s=2, p=1) -> tokens -> transformer
        x = conv2d(x, params["s2_conv"]["w"], params["s2_conv"]["b"], strides[1], 1)
        x = x.reshape(B, s2 * s2, -1)
        x = transformer(x, params["s2_tf"], heads[1], dim_head, s2, False)
        x = x.reshape(B, s2, s2, -1)

        # stage 3: conv embed -> tokens -> LN -> cls token -> transformer
        x = conv2d(x, params["s3_conv"]["w"], params["s3_conv"]["b"], strides[2], 1)
        x = x.reshape(B, s3 * s3, -1)
        x = layernorm(x, params["s3_ln"])
        cls = jnp.broadcast_to(params["cls_token"], (B, 1, x.shape[-1]))
        x = jnp.concatenate([cls, x], axis=1)
        x = transformer(x, params["s3_tf"], heads[2], dim_head, s3, True)

        # pooling ('cls') + mlp head (LayerNorm fused into the classifier GEMM)
        x = x[:, 0]
        x = gemm(x, params["head_fc"]["w"], params["head_fc"]["b"],
                 ln=(params["head_ln"]["g"], params["head_ln"]["b"]),
                 out_dtype=jnp.float32)
        return x

    return jax.jit(forward)


# ----------------------------- main -----------------------------------------

if __name__ == "__main__":
    key = jax.random.PRNGKey(0)
    kp, kx = jax.random.split(key)
    # small config: image 32x32, 3 channels, dim=8, heads (1,3,6) -> dims (8,24,48)
    params, cfg = init_cvt(kp, image_size=32, in_channels=3, num_classes=10,
                           dim=8, heads=(1, 3, 6), depth=(1, 1, 2))
    img = jax.random.normal(kx, (2, 3, 32, 32), jnp.float32)
    fwd = make_forward(cfg)
    out = jax.block_until_ready(fwd(params, img))
    assert out.shape == (2, 10) and out.dtype == jnp.float32
    print("KERNEL_OK")
</pallas_src>

<mosaic_0001>
module attributes {stable_mosaic.version = 11 : i64} {
  func.func @_gemm_kernel(%arg0: i32, %arg1: memref<128x147xf32, #tpu.memory_space<vmem>>, %arg2: memref<147x8xbf16, #tpu.memory_space<vmem>>, %arg3: memref<1x8xf32, #tpu.memory_space<vmem>>, %arg4: memref<128x8xf32, #tpu.memory_space<vmem>>) attributes {dimension_semantics = [#tpu.dimension_semantics<parallel>], iteration_bounds = array<i64: 1>, scalar_prefetch = 0 : i64, scratch_operands = 0 : i64, tpu.core_type = #tpu.core_type<tc>, window_params = [{transform_indices = @transform_0, window_bounds = array<i64: 128, 147>}, {pipeline_mode = #tpu.pipeline_mode<synchronous>, transform_indices = @transform_1, window_bounds = array<i64: 147, 8>}, {pipeline_mode = #tpu.pipeline_mode<synchronous>, transform_indices = @transform_2, window_bounds = array<i64: 1, 8>}, {transform_indices = @transform_3, window_bounds = array<i64: 128, 8>}]} {
    %c0 = arith.constant 0 : index
    %c0_0 = arith.constant 0 : index
    %0 = vector.load %arg1[%c0, %c0_0] : memref<128x147xf32, #tpu.memory_space<vmem>>, vector<128x147xf32>
    %1 = arith.truncf %0 : vector<128x147xf32> to vector<128x147xbf16>
    %c0_1 = arith.constant 0 : index
    %c0_2 = arith.constant 0 : index
    %2 = vector.load %arg2[%c0_1, %c0_2] : memref<147x8xbf16, #tpu.memory_space<vmem>>, vector<147x8xbf16>
    %cst = arith.constant dense<0.000000e+00> : vector<128x8xf32>
    %3 = tpu.matmul %1, %2, %cst {dimension_numbers = #tpu.dot_dimension_numbers<[1], [0], [0], [1], [0, 0, 1, 1], [], []>} : vector<128x147xbf16>, vector<147x8xbf16>, vector<128x8xf32> -> vector<128x8xf32>
    %c0_3 = arith.constant 0 : index
    %c0_4 = arith.constant 0 : index
    %4 = vector.load %arg3[%c0_3, %c0_4] : memref<1x8xf32, #tpu.memory_space<vmem>>, vector<1x8xf32>
    %5 = vector.broadcast %4 : vector<1x8xf32> to vector<128x8xf32>
    %6 = arith.addf %3, %5 : vector<128x8xf32>
    %c0_5 = arith.constant 0 : index
    %c0_6 = arith.constant 0 : index
    %7 = vector.load %arg4[%c0_5, %c0_6] : memref<128x8xf32, #tpu.memory_space<vmem>>, vector<128x8xf32>
    tpu.vector_store %arg4[%c0_5, %c0_6], %6 {strides = array<i32>} : memref<128x8xf32, #tpu.memory_space<vmem>>, vector<128x8xf32>,
    return
  }
  func.func @transform_0(%arg0: i32) -> (i32, i32) {
    %c0_i32 = arith.constant 0 : i32
    %c0_i32_0 = arith.constant 0 : i32
    return %arg0, %c0_i32 : i32, i32
  }
  func.func @transform_1(%arg0: i32) -> (i32, i32) {
    %c0_i32 = arith.constant 0 : i32
    %c0_i32_0 = arith.constant 0 : i32
    %c0_i32_1 = arith.constant 0 : i32
    return %c0_i32, %c0_i32_0 : i32, i32
  }
  func.func @transform_2(%arg0: i32) -> (i32, i32) {
    %c0_i32 = arith.constant 0 : i32
    %c0_i32_0 = arith.constant 0 : i32
    %c0_i32_1 = arith.constant 0 : i32
    return %c0_i32, %c0_i32_0 : i32, i32
  }
  func.func @transform_3(%arg0: i32) -> (i32, i32) {
    %c0_i32 = arith.constant 0 : i32
    %c0_i32_0 = arith.constant 0 : i32
    return %arg0, %c0_i32 : i32, i32
  }
}

module attributes {stable_mosaic.version = 11 : i64} {
  func.func @_layernorm_kernel(%arg0: i32, %arg1: memref<128x8xf32, #tpu.memory_space<vmem>>, %arg2: memref<1x8xf32, #tpu.memory_space<vmem>>, %arg3: memref<1x8xf32, #tpu.memory_space<vmem>>, %arg4: memref<128x8xbf16, #tpu.memory_space<vmem>>) attributes {dimension_semantics = [#tpu.dimension_semantics<parallel>], iteration_bounds = array<i64: 1>, scalar_prefetch = 0 : i64, scratch_operands = 0 : i64, tpu.core_type = #tpu.core_type<tc>, window_params = [{transform_indices = @transform_0, window_bounds = array<i64: 128, 8>}, {pipeline_mode = #tpu.pipeline_mode<synchronous>, transform_indices = @transform_1, window_bounds = array<i64: 1, 8>}, {pipeline_mode = #tpu.pipeline_mode<synchronous>, transform_indices = @transform_2, window_bounds = array<i64: 1, 8>}, {transform_indices = @transform_3, window_bounds = array<i64: 128, 8>}]} {
    %c0 = arith.constant 0 : index
    %c0_0 = arith.constant 0 : index
    %0 = vector.load %arg1[%c0, %c0_0] : memref<128x8xf32, #tpu.memory_space<vmem>>, vector<128x8xf32>
    %cst = arith.constant dense<0.000000e+00> : vector<128xf32>
    %1 = vector.multi_reduction <add>, %0, %cst [1] : vector<128x8xf32> to vector<128xf32>
    %2 = vector.shape_cast %1 : vector<128xf32> to vector<128x1xf32>
    %cst_1 = arith.constant 8.000000e+00 : f32
    %3 = vector.broadcast %cst_1 : f32 to vector<128x1xf32>
    %4 = arith.divf %2, %3 : vector<128x1xf32>
    %5 = vector.broadcast %4 : vector<128x1xf32> to vector<128x8xf32>
    %6 = arith.subf %0, %5 : vector<128x8xf32>
    %7 = vector.broadcast %4 : vector<128x1xf32> to vector<128x8xf32>
    %8 = arith.subf %0, %7 : vector<128x8xf32>
    %9 = arith.mulf %6, %8 : vector<128x8xf32>
    %cst_2 = arith.constant dense<0.000000e+00> : vector<128xf32>
    %10 = vector.multi_reduction <add>, %9, %cst_2 [1] : vector<128x8xf32> to vector<128xf32>
    %11 = vector.shape_cast %10 : vector<128xf32> to vector<128x1xf32>
    %cst_3 = arith.constant 8.000000e+00 : f32
    %12 = vector.broadcast %cst_3 : f32 to vector<128x1xf32>
    %13 = arith.divf %11, %12 : vector<128x1xf32>
    %14 = vector.broadcast %4 : vector<128x1xf32> to vector<128x8xf32>
    %15 = arith.subf %0, %14 : vector<128x8xf32>
    %cst_4 = arith.constant 9.99999974E-6 : f32
    %16 = vector.broadcast %cst_4 : f32 to vector<128x1xf32>
    %17 = arith.addf %13, %16 : vector<128x1xf32>
    %18 = math.rsqrt %17 : vector<128x1xf32>
    %19 = vector.broadcast %18 : vector<128x1xf32> to vector<128x8xf32>
    %20 = arith.mulf %15, %19 : vector<128x8xf32>
    %c0_5 = arith.constant 0 : index
    %c0_6 = arith.constant 0 : index
    %21 = vector.load %arg2[%c0_5, %c0_6] : memref<1x8xf32, #tpu.memory_space<vmem>>, vector<1x8xf32>
    %22 = vector.broadcast %21 : vector<1x8xf32> to vector<128x8xf32>
    %23 = arith.mulf %20, %22 : vector<128x8xf32>
    %c0_7 = arith.constant 0 : index
    %c0_8 = arith.constant 0 : index
    %24 = vector.load %arg3[%c0_7, %c0_8] : memref<1x8xf32, #tpu.memory_space<vmem>>, vector<1x8xf32>
    %25 = vector.broadcast %24 : vector<1x8xf32> to vector<128x8xf32>
    %26 = arith.addf %23, %25 : vector<128x8xf32>
    %27 = arith.truncf %26 : vector<128x8xf32> to vector<128x8xbf16>
    %c0_9 = arith.constant 0 : index
    %c0_10 = arith.constant 0 : index
    %28 = vector.load %arg4[%c0_9, %c0_10] : memref<128x8xbf16, #tpu.memory_space<vmem>>, vector<128x8xbf16>
    tpu.vector_store %arg4[%c0_9, %c0_10], %27 {strides = array<i32>} : memref<128x8xbf16, #tpu.memory_space<vmem>>, vector<128x8xbf16>,
    return
  }
  func.func @transform_0(%arg0: i32) -> (i32, i32) {
    %c0_i32 = arith.constant 0 : i32
    %c0_i32_0 = arith.constant 0 : i32
    return %arg0, %c0_i32 : i32, i32
  }
  func.func @transform_1(%arg0: i32) -> (i32, i32) {
    %c0_i32 = arith.constant 0 : i32
    %c0_i32_0 = arith.constant 0 : i32
    %c0_i32_1 = arith.constant 0 : i32
    return %c0_i32, %c0_i32_0 : i32, i32
  }
  func.func @transform_2(%arg0: i32) -> (i32, i32) {
    %c0_i32 = arith.constant 0 : i32
    %c0_i32_0 = arith.constant 0 : i32
    %c0_i32_1 = arith.constant 0 : i32
    return %c0_i32, %c0_i32_0 : i32, i32
  }
  func.func @transform_3(%arg0: i32) -> (i32, i32) {
    %c0_i32 = arith.constant 0 : i32
    %c0_i32_0 = arith.constant 0 : i32
    return %arg0, %c0_i32 : i32, i32
  }
}

module attributes {stable_mosaic.version = 11 : i64} {
  func.func @_layernorm_kernel(%arg0: i32, %arg1: memref<128x8xf32, #tpu.memory_space<vmem>>, %arg2: memref<1x8xf32, #tpu.memory_space<vmem>>, %arg3: memref<1x8xf32, #tpu.memory_space<vmem>>, %arg4: memref<128x8xf32, #tpu.memory_space<vmem>>) attributes {dimension_semantics = [#tpu.dimension_semantics<parallel>], iteration_bounds = array<i64: 1>, scalar_prefetch = 0 : i64, scratch_operands = 0 : i64, tpu.core_type = #tpu.core_type<tc>, window_params = [{transform_indices = @transform_0, window_bounds = array<i64: 128, 8>}, {pipeline_mode = #tpu.pipeline_mode<synchronous>, transform_indices = @transform_1, window_bounds = array<i64: 1, 8>}, {pipeline_mode = #tpu.pipeline_mode<synchronous>, transform_indices = @transform_2, window_bounds = array<i64: 1, 8>}, {transform_indices = @transform_3, window_bounds = array<i64: 128, 8>}]} {
    %c0 = arith.constant 0 : index
    %c0_0 = arith.constant 0 : index
    %0 = vector.load %arg1[%c0, %c0_0] : memref<128x8xf32, #tpu.memory_space<vmem>>, vector<128x8xf32>
    %cst = arith.constant dense<0.000000e+00> : vector<128xf32>
    %1 = vector.multi_reduction <add>, %0, %cst [1] : vector<128x8xf32> to vector<128xf32>
    %2 = vector.shape_cast %1 : vector<128xf32> to vector<128x1xf32>
    %cst_1 = arith.constant 8.000000e+00 : f32
    %3 = vector.broadcast %cst_1 : f32 to vector<128x1xf32>
    %4 = arith.divf %2, %3 : vector<128x1xf32>
    %5 = vector.broadcast %4 : vector<128x1xf32> to vector<128x8xf32>
    %6 = arith.subf %0, %5 : vector<128x8xf32>
    %7 = vector.broadcast %4 : vector<128x1xf32> to vector<128x8xf32>
    %8 = arith.subf %0, %7 : vector<128x8xf32>
    %9 = arith.mulf %6, %8 : vector<128x8xf32>
    %cst_2 = arith.constant dense<0.000000e+00> : vector<128xf32>
    %10 = vector.multi_reduction <add>, %9, %cst_2 [1] : vector<128x8xf32> to vector<128xf32>
    %11 = vector.shape_cast %10 : vector<128xf32> to vector<128x1xf32>
    %cst_3 = arith.constant 8.000000e+00 : f32
    %12 = vector.broadcast %cst_3 : f32 to vector<128x1xf32>
    %13 = arith.divf %11, %12 : vector<128x1xf32>
    %14 = vector.broadcast %4 : vector<128x1xf32> to vector<128x8xf32>
    %15 = arith.subf %0, %14 : vector<128x8xf32>
    %cst_4 = arith.constant 9.99999974E-6 : f32
    %16 = vector.broadcast %cst_4 : f32 to vector<128x1xf32>
    %17 = arith.addf %13, %16 : vector<128x1xf32>
    %18 = math.rsqrt %17 : vector<128x1xf32>
    %19 = vector.broadcast %18 : vector<128x1xf32> to vector<128x8xf32>
    %20 = arith.mulf %15, %19 : vector<128x8xf32>
    %c0_5 = arith.constant 0 : index
    %c0_6 = arith.constant 0 : index
    %21 = vector.load %arg2[%c0_5, %c0_6] : memref<1x8xf32, #tpu.memory_space<vmem>>, vector<1x8xf32>
    %22 = vector.broadcast %21 : vector<1x8xf32> to vector<128x8xf32>
    %23 = arith.mulf %20, %22 : vector<128x8xf32>
    %c0_7 = arith.constant 0 : index
    %c0_8 = arith.constant 0 : index
    %24 = vector.load %arg3[%c0_7, %c0_8] : memref<1x8xf32, #tpu.memory_space<vmem>>, vector<1x8xf32>
    %25 = vector.broadcast %24 : vector<1x8xf32> to vector<128x8xf32>
    %26 = arith.addf %23, %25 : vector<128x8xf32>
    %c0_9 = arith.constant 0 : index
    %c0_10 = arith.constant 0 : index
    %27 = vector.load %arg4[%c0_9, %c0_10] : memref<128x8xf32, #tpu.memory_space<vmem>>, vector<128x8xf32>
    tpu.vector_store %arg4[%c0_9, %c0_10], %26 {strides = array<i32>} : memref<128x8xf32, #tpu.memory_space<vmem>>, vector<128x8xf32>,
    return
  }
  func.func @transform_0(%arg0: i32) -> (i32, i32) {
    %c0_i32 = arith.constant 0 : i32
    %c0_i32_0 = arith.constant 0 : i32
    return %arg0, %c0_i32 : i32, i32
  }
  func.func @transform_1(%arg0: i32) -> (i32, i32) {
    %c0_i32 = arith.constant 0 : i32
    %c0_i32_0 = arith.constant 0 : i32
    %c0_i32_1 = arith.constant 0 : i32
    return %c0_i32, %c0_i32_0 : i32, i32
  }
  func.func @transform_2(%arg0: i32) -> (i32, i32) {
    %c0_i32 = arith.constant 0 : i32
    %c0_i32_0 = arith.constant 0 : i32
    %c0_i32_1 = arith.constant 0 : i32
    return %c0_i32, %c0_i32_0 : i32, i32
  }
  func.func @transform_3(%arg0: i32) -> (i32, i32) {
    %c0_i32 = arith.constant 0 : i32
    %c0_i32_0 = arith.constant 0 : i32
    return %arg0, %c0_i32 : i32, i32
  }
}

module attributes {stable_mosaic.version = 11 : i64} {
  func.func @_gemm_kernel(%arg0: i32, %arg1: memref<128x72xbf16, #tpu.memory_space<vmem>>, %arg2: memref<72x24xbf16, #tpu.memory_space<vmem>>, %arg3: memref<1x24xf32, #tpu.memory_space<vmem>>, %arg4: memref<128x24xbf16, #tpu.memory_space<vmem>>) attributes {dimension_semantics = [#tpu.dimension_semantics<parallel>], iteration_bounds = array<i64: 1>, scalar_prefetch = 0 : i64, scratch_operands = 0 : i64, tpu.core_type = #tpu.core_type<tc>, window_params = [{transform_indices = @transform_0, window_bounds = array<i64: 128, 72>}, {pipeline_mode = #tpu.pipeline_mode<synchronous>, transform_indices = @transform_1, window_bounds = array<i64: 72, 24>}, {pipeline_mode = #tpu.pipeline_mode<synchronous>, transform_indices = @transform_2, window_bounds = array<i64: 1, 24>}, {transform_indices = @transform_3, window_bounds = array<i64: 128, 24>}]} {
    %c0 = arith.constant 0 : index
    %c0_0 = arith.constant 0 : index
    %0 = vector.load %arg1[%c0, %c0_0] : memref<128x72xbf16, #tpu.memory_space<vmem>>, vector<128x72xbf16>
    %c0_1 = arith.constant 0 : index
    %c0_2 = arith.constant 0 : index
    %1 = vector.load %arg2[%c0_1, %c0_2] : memref<72x24xbf16, #tpu.memory_space<vmem>>, vector<72x24xbf16>
    %cst = arith.constant dense<0.000000e+00> : vector<128x24xf32>
    %2 = tpu.matmul %0, %1, %cst {dimension_numbers = #tpu.dot_dimension_numbers<[1], [0], [0], [1], [0, 0, 1, 1], [], []>} : vector<128x72xbf16>, vector<72x24xbf16>, vector<128x24xf32> -> vector<128x24xf32>
    %c0_3 = arith.constant 0 : index
    %c0_4 = arith.constant 0 : index
    %3 = vector.load %arg3[%c0_3, %c0_4] : memref<1x24xf32, #tpu.memory_space<vmem>>, vector<1x24xf32>
    %4 = vector.broadcast %3 : vector<1x24xf32> to vector<128x24xf32>
    %5 = arith.addf %2, %4 : vector<128x24xf32>
    %6 = arith.truncf %5 : vector<128x24xf32> to vector<128x24xbf16>
    %c0_5 = arith.constant 0 : index
    %c0_6 = arith.constant 0 : index
    %7 = vector.load %arg4[%c0_5, %c0_6] : memref<128x24xbf16, #tpu.memory_space<vmem>>, vector<128x24xbf16>
    tpu.vector_store %arg4[%c0_5, %c0_6], %6 {strides = array<i32>} : memref<128x24xbf16, #tpu.memory_space<vmem>>, vector<128x24xbf16>,
    return
  }
  func.func @transform_0(%arg0: i32) -> (i32, i32) {
    %c0_i32 = arith.constant 0 : i32
    %c0_i32_0 = arith.constant 0 : i32
    return %arg0, %c0_i32 : i32, i32
  }
  func.func @transform_1(%arg0: i32) -> (i32, i32) {
    %c0_i32 = arith.constant 0 : i32
    %c0_i32_0 = arith.constant 0 : i32
    %c0_i32_1 = arith.constant 0 : i32
    return %c0_i32, %c0_i32_0 : i32, i32
  }
  func.func @transform_2(%arg0: i32) -> (i32, i32) {
    %c0_i32 = arith.constant 0 : i32
    %c0_i32_0 = arith.constant 0 : i32
    %c0_i32_1 = arith.constant 0 : i32
    return %c0_i32, %c0_i32_0 : i32, i32
  }
  func.func @transform_3(%arg0: i32) -> (i32, i32) {
    %c0_i32 = arith.constant 0 : i32
    %c0_i32_0 = arith.constant 0 : i32
    return %arg0, %c0_i32 : i32, i32
  }
}

module attributes {stable_mosaic.version = 11 : i64} {
  func.func @_attention_kernel(%arg0: i32, %arg1: i32, %arg2: memref<1x64x8xbf16, #tpu.memory_space<vmem>>, %arg3: memref<1x64x8xbf16, #tpu.memory_space<vmem>>, %arg4: memref<1x64x8xbf16, #tpu.memory_space<vmem>>, %arg5: memref<1x64x8xf32, #tpu.memory_space<vmem>>) attributes {dimension_semantics = [#tpu.dimension_semantics<parallel>, #tpu.dimension_semantics<parallel>], iteration_bounds = array<i64: 2, 1>, scalar_prefetch = 0 : i64, scratch_operands = 0 : i64, tpu.core_type = #tpu.core_type<tc>, window_params = [{transform_indices = @transform_0, window_bounds = array<i64: 1, 64, 8>}, {transform_indices = @transform_1, window_bounds = array<i64: 1, 64, 8>}, {transform_indices = @transform_2, window_bounds = array<i64: 1, 64, 8>}, {transform_indices = @transform_3, window_bounds = array<i64: 1, 64, 8>}]} {
    %c0 = arith.constant 0 : index
    %c0_0 = arith.constant 0 : index
    %c0_1 = arith.constant 0 : index
    %0 = vector.load %arg2[%c0, %c0_0, %c0_1] : memref<1x64x8xbf16, #tpu.memory_space<vmem>>, vector<1x64x8xbf16>
    %1 = vector.shape_cast %0 : vector<1x64x8xbf16> to vector<64x8xbf16>
    %c0_2 = arith.constant 0 : index
    %c0_3 = arith.constant 0 : index
    %c0_4 = arith.constant 0 : index
    %2 = vector.load %arg3[%c0_2, %c0_3, %c0_4] : memref<1x64x8xbf16, #tpu.memory_space<vmem>>, vector<1x64x8xbf16>
    %3 = vector.shape_cast %2 : vector<1x64x8xbf16> to vector<64x8xbf16>
    %c0_5 = arith.constant 0 : index
    %c0_6 = arith.constant 0 : index
    %c0_7 = arith.constant 0 : index
    %4 = vector.load %arg4[%c0_5, %c0_6, %c0_7] : memref<1x64x8xbf16, #tpu.memory_space<vmem>>, vector<1x64x8xbf16>
    %5 = vector.shape_cast %4 : vector<1x64x8xbf16> to vector<64x8xbf16>
    %cst = arith.constant dense<0.000000e+00> : vector<64x64xf32>
    %6 = tpu.matmul %1, %3, %cst {dimension_numbers = #tpu.dot_dimension_numbers<[1], [1], [0], [0], [0, 0, 1, 0], [], []>} : vector<64x8xbf16>, vector<64x8xbf16>, vector<64x64xf32> -> vector<64x64xf32>
    %cst_8 = arith.constant 0.353553385 : f32
    %7 = vector.broadcast %cst_8 : f32 to vector<64x64xf32>
    %8 = arith.mulf %6, %7 : vector<64x64xf32>
    %cst_9 = arith.constant dense<0xFF800000> : vector<64xf32>
    %9 = vector.multi_reduction <maximumf>, %8, %cst_9 [1] : vector<64x64xf32> to vector<64xf32>
    %10 = vector.shape_cast %9 : vector<64xf32> to vector<64x1xf32>
    %11 = vector.broadcast %10 : vector<64x1xf32> to vector<64x64xf32>
    %12 = arith.subf %8, %11 : vector<64x64xf32>
    %13 = math.exp %12 : vector<64x64xf32>
    %cst_10 = arith.constant dense<0.000000e+00> : vector<64xf32>
    %14 = vector.multi_reduction <add>, %13, %cst_10 [1] : vector<64x64xf32> to vector<64xf32>
    %15 = vector.shape_cast %14 : vector<64xf32> to vector<64x1xf32>
    %16 = vector.broadcast %15 : vector<64x1xf32> to vector<64x64xf32>
    %17 = arith.divf %13, %16 : vector<64x64xf32>
    %18 = arith.truncf %17 : vector<64x64xf32> to vector<64x64xbf16>
    %cst_11 = arith.constant dense<0.000000e+00> : vector<64x8xf32>
    %19 = tpu.matmul %18, %5, %cst_11 {dimension_numbers = #tpu.dot_dimension_numbers<[1], [0], [0], [1], [0, 0, 1, 1], [], []>} : vector<64x64xbf16>, vector<64x8xbf16>, vector<64x8xf32> -> vector<64x8xf32>
    %c0_12 = arith.constant 0 : index
    %c0_13 = arith.constant 0 : index
    %c0_14 = arith.constant 0 : index
    %20 = vector.load %arg5[%c0_12, %c0_13, %c0_14] : memref<1x64x8xf32, #tpu.memory_space<vmem>>, vector<1x64x8xf32>
    %21 = vector.shape_cast %20 : vector<1x64x8xf32> to vector<64x8xf32>
    %22 = vector.shape_cast %19 : vector<64x8xf32> to vector<1x64x8xf32>
    tpu.vector_store %arg5[%c0_12, %c0_13, %c0_14], %22 {strides = array<i32>} : memref<1x64x8xf32, #tpu.memory_space<vmem>>, vector<1x64x8xf32>,
    return
  }
  func.func @transform_0(%arg0: i32, %arg1: i32) -> (i32, i32, i32) {
    %c0_i32 = arith.constant 0 : i32
    %c0_i32_0 = arith.constant 0 : i32
    return %arg0, %arg1, %c0_i32 : i32, i32, i32
  }
  func.func @transform_1(%arg0: i32, %arg1: i32) -> (i32, i32, i32) {
    %c0_i32 = arith.constant 0 : i32
    %c0_i32_0 = arith.constant 0 : i32
    %c0_i32_1 = arith.constant 0 : i32
    return %arg0, %c0_i32, %c0_i32_0 : i32, i32, i32
  }
  func.func @transform_2(%arg0: i32, %arg1: i32) -> (i32, i32, i32) {
    %c0_i32 = arith.constant 0 : i32
    %c0_i32_0 = arith.constant 0 : i32
    %c0_i32_1 = arith.constant 0 : i32
    return %arg0, %c0_i32, %c0_i32_0 : i32, i32, i32
  }
  func.func @transform_3(%arg0: i32, %arg1: i32) -> (i32, i32, i32) {
    %c0_i32 = arith.constant 0 : i32
    %c0_i32_0 = arith.constant 0 : i32
    return %arg0, %arg1, %c0_i32 : i32, i32, i32
  }
}

module attributes {stable_mosaic.version = 11 : i64} {
  func.func @_gemm_kernel(%arg0: i32, %arg1: memref<128x32xbf16, #tpu.memory_space<vmem>>, %arg2: memref<32x8xbf16, #tpu.memory_space<vmem>>, %arg3: memref<1x8xf32, #tpu.memory_space<vmem>>, %arg4: memref<128x8xf32, #tpu.memory_space<vmem>>, %arg5: memref<128x8xf32, #tpu.memory_space<vmem>>) attributes {dimension_semantics = [#tpu.dimension_semantics<parallel>], iteration_bounds = array<i64: 1>, scalar_prefetch = 0 : i64, scratch_operands = 0 : i64, tpu.core_type = #tpu.core_type<tc>, window_params = [{transform_indices = @transform_0, window_bounds = array<i64: 128, 32>}, {pipeline_mode = #tpu.pipeline_mode<synchronous>, transform_indices = @transform_1, window_bounds = array<i64: 32, 8>}, {pipeline_mode = #tpu.pipeline_mode<synchronous>, transform_indices = @transform_2, window_bounds = array<i64: 1, 8>}, {transform_indices = @transform_3, window_bounds = array<i64: 128, 8>}, {transform_indices = @transform_4, window_bounds = array<i64: 128, 8>}]} {
    %c0 = arith.constant 0 : index
    %c0_0 = arith.constant 0 : index
    %0 = vector.load %arg1[%c0, %c0_0] : memref<128x32xbf16, #tpu.memory_space<vmem>>, vector<128x32xbf16>
    %c0_1 = arith.constant 0 : index
    %c0_2 = arith.constant 0 : index
    %1 = vector.load %arg2[%c0_1, %c0_2] : memref<32x8xbf16, #tpu.memory_space<vmem>>, vector<32x8xbf16>
    %cst = arith.constant dense<0.000000e+00> : vector<128x8xf32>
    %2 = tpu.matmul %0, %1, %cst {dimension_numbers = #tpu.dot_dimension_numbers<[1], [0], [0], [1], [0, 0, 1, 1], [], []>} : vector<128x32xbf16>, vector<32x8xbf16>, vector<128x8xf32> -> vector<128x8xf32>
    %c0_3 = arith.constant 0 : index
    %c0_4 = arith.constant 0 : index
    %3 = vector.load %arg3[%c0_3, %c0_4] : memref<1x8xf32, #tpu.memory_space<vmem>>, vector<1x8xf32>
    %4 = vector.broadcast %3 : vector<1x8xf32> to vector<128x8xf32>
    %5 = arith.addf %2, %4 : vector<128x8xf32>
    %c0_5 = arith.constant 0 : index
    %c0_6 = arith.constant 0 : index
    %6 = vector.load %arg4[%c0_5, %c0_6] : memref<128x8xf32, #tpu.memory_space<vmem>>, vector<128x8xf32>
    %7 = arith.addf %5, %6 : vector<128x8xf32>
    %c0_7 = arith.constant 0 : index
    %c0_8 = arith.constant 0 : index
    %8 = vector.load %arg5[%c0_7, %c0_8] : memref<128x8xf32, #tpu.memory_space<vmem>>, vector<128x8xf32>
    tpu.vector_store %arg5[%c0_7, %c0_8], %7 {strides = array<i32>} : memref<128x8xf32, #tpu.memory_space<vmem>>, vector<128x8xf32>,
    return
  }
  func.func @transform_0(%arg0: i32) -> (i32, i32) {
    %c0_i32 = arith.constant 0 : i32
    %c0_i32_0 = arith.constant 0 : i32
    return %arg0, %c0_i32 : i32, i32
  }
  func.func @transform_1(%arg0: i32) -> (i32, i32) {
    %c0_i32 = arith.constant 0 : i32
    %c0_i32_0 = arith.constant 0 : i32
    %c0_i32_1 = arith.constant 0 : i32
    return %c0_i32, %c0_i32_0 : i32, i32
  }
  func.func @transform_2(%arg0: i32) -> (i32, i32) {
    %c0_i32 = arith.constant 0 : i32
    %c0_i32_0 = arith.constant 0 : i32
    %c0_i32_1 = arith.constant 0 : i32
    return %c0_i32, %c0_i32_0 : i32, i32
  }
  func.func @transform_3(%arg0: i32) -> (i32, i32) {
    %c0_i32 = arith.constant 0 : i32
    %c0_i32_0 = arith.constant 0 : i32
    return %arg0, %c0_i32 : i32, i32
  }
  func.func @transform_4(%arg0: i32) -> (i32, i32) {
    %c0_i32 = arith.constant 0 : i32
    %c0_i32_0 = arith.constant 0 : i32
    return %arg0, %c0_i32 : i32, i32
  }
}

module attributes {stable_mosaic.version = 11 : i64} {
  func.func @_gemm_kernel(%arg0: i32, %arg1: memref<128x8xf32, #tpu.memory_space<vmem>>, %arg2: memref<1x8xf32, #tpu.memory_space<vmem>>, %arg3: memref<1x8xf32, #tpu.memory_space<vmem>>, %arg4: memref<8x32xbf16, #tpu.memory_space<vmem>>, %arg5: memref<1x32xf32, #tpu.memory_space<vmem>>, %arg6: memref<128x32xbf16, #tpu.memory_space<vmem>>) attributes {dimension_semantics = [#tpu.dimension_semantics<parallel>], iteration_bounds = array<i64: 1>, scalar_prefetch = 0 : i64, scratch_operands = 0 : i64, tpu.core_type = #tpu.core_type<tc>, window_params = [{transform_indices = @transform_0, window_bounds = array<i64: 128, 8>}, {pipeline_mode = #tpu.pipeline_mode<synchronous>, transform_indices = @transform_1, window_bounds = array<i64: 1, 8>}, {pipeline_mode = #tpu.pipeline_mode<synchronous>, transform_indices = @transform_2, window_bounds = array<i64: 1, 8>}, {pipeline_mode = #tpu.pipeline_mode<synchronous>, transform_indices = @transform_3, window_bounds = array<i64: 8, 32>}, {pipeline_mode = #tpu.pipeline_mode<synchronous>, transform_indices = @transform_4, window_bounds = array<i64: 1, 32>}, {transform_indices = @transform_5, window_bounds = array<i64: 128, 32>}]} {
    %c0 = arith.constant 0 : index
    %c0_0 = arith.constant 0 : index
    %0 = vector.load %arg1[%c0, %c0_0] : memref<128x8xf32, #tpu.memory_space<vmem>>, vector<128x8xf32>
    %cst = arith.constant dense<0.000000e+00> : vector<128xf32>
    %1 = vector.multi_reduction <add>, %0, %cst [1] : vector<128x8xf32> to vector<128xf32>
    %2 = vector.shape_cast %1 : vector<128xf32> to vector<128x1xf32>
    %cst_1 = arith.constant 8.000000e+00 : f32
    %3 = vector.broadcast %cst_1 : f32 to vector<128x1xf32>
    %4 = arith.divf %2, %3 : vector<128x1xf32>
    %5 = vector.broadcast %4 : vector<128x1xf32> to vector<128x8xf32>
    %6 = arith.subf %0, %5 : vector<128x8xf32>
    %7 = vector.broadcast %4 : vector<128x1xf32> to vector<128x8xf32>
    %8 = arith.subf %0, %7 : vector<128x8xf32>
    %9 = arith.mulf %6, %8 : vector<128x8xf32>
    %cst_2 = arith.constant dense<0.000000e+00> : vector<128xf32>
    %10 = vector.multi_reduction <add>, %9, %cst_2 [1] : vector<128x8xf32> to vector<128xf32>
    %11 = vector.shape_cast %10 : vector<128xf32> to vector<128x1xf32>
    %cst_3 = arith.constant 8.000000e+00 : f32
    %12 = vector.broadcast %cst_3 : f32 to vector<128x1xf32>
    %13 = arith.divf %11, %12 : vector<128x1xf32>
    %14 = vector.broadcast %4 : vector<128x1xf32> to vector<128x8xf32>
    %15 = arith.subf %0, %14 : vector<128x8xf32>
    %cst_4 = arith.constant 9.99999974E-6 : f32
    %16 = vector.broadcast %cst_4 : f32 to vector<128x1xf32>
    %17 = arith.addf %13, %16 : vector<128x1xf32>
    %18 = math.rsqrt %17 : vector<128x1xf32>
    %19 = vector.broadcast %18 : vector<128x1xf32> to vector<128x8xf32>
    %20 = arith.mulf %15, %19 : vector<128x8xf32>
    %c0_5 = arith.constant 0 : index
    %c0_6 = arith.constant 0 : index
    %21 = vector.load %arg2[%c0_5, %c0_6] : memref<1x8xf32, #tpu.memory_space<vmem>>, vector<1x8xf32>
    %22 = vector.broadcast %21 : vector<1x8xf32> to vector<128x8xf32>
    %23 = arith.mulf %20, %22 : vector<128x8xf32>
    %c0_7 = arith.constant 0 : index
    %c0_8 = arith.constant 0 : index
    %24 = vector.load %arg3[%c0_7, %c0_8] : memref<1x8xf32, #tpu.memory_space<vmem>>, vector<1x8xf32>
    %25 = vector.broadcast %24 : vector<1x8xf32> to vector<128x8xf32>
    %26 = arith.addf %23, %25 : vector<128x8xf32>
    %27 = arith.truncf %26 : vector<128x8xf32> to vector<128x8xbf16>
    %c0_9 = arith.constant 0 : index
    %c0_10 = arith.constant 0 : index
    %28 = vector.load %arg4[%c0_9, %c0_10] : memref<8x32xbf16, #tpu.memory_space<vmem>>, vector<8x32xbf16>
    %cst_11 = arith.constant dense<0.000000e+00> : vector<128x32xf32>
    %29 = tpu.matmul %27, %28, %cst_11 {dimension_numbers = #tpu.dot_dimension_numbers<[1], [0], [0], [1], [0, 0, 1, 1], [], []>} : vector<128x8xbf16>, vector<8x32xbf16>, vector<128x32xf32> -> vector<128x32xf32>
    %c0_12 = arith.constant 0 : index
    %c0_13 = arith.constant 0 : index
    %30 = vector.load %arg5[%c0_12, %c0_13] : memref<1x32xf32, #tpu.memory_space<vmem>>, vector<1x32xf32>
    %31 = vector.broadcast %30 : vector<1x32xf32> to vector<128x32xf32>
    %32 = arith.addf %29, %31 : vector<128x32xf32>
    %cst_14 = arith.constant 5.000000e-01 : f32
    %33 = vector.broadcast %cst_14 : f32 to vector<128x32xf32>
    %34 = arith.mulf %33, %32 : vector<128x32xf32>
    %cst_15 = arith.constant 0.707106769 : f32
    %35 = vector.broadcast %cst_15 : f32 to vector<128x32xf32>
    %36 = arith.mulf %32, %35 : vector<128x32xf32>
    %37 = math.erf %36 : vector<128x32xf32>
    %cst_16 = arith.constant 1.000000e+00 : f32
    %38 = vector.broadcast %cst_16 : f32 to vector<128x32xf32>
    %39 = arith.addf %38, %37 : vector<128x32xf32>
    %40 = arith.mulf %34, %39 : vector<128x32xf32>
    %41 = arith.truncf %40 : vector<128x32xf32> to vector<128x32xbf16>
    %c0_17 = arith.constant 0 : index
    %c0_18 = arith.constant 0 : index
    %42 = vector.load %arg6[%c0_17, %c0_18] : memref<128x32xbf16, #tpu.memory_space<vmem>>, vector<128x32xbf16>
    tpu.vector_store %arg6[%c0_17, %c0_18], %41 {strides = array<i32>} : memref<128x32xbf16, #tpu.memory_space<vmem>>, vector<128x32xbf16>,
    return
  }
  func.func @transform_0(%arg0: i32) -> (i32, i32) {
    %c0_i32 = arith.constant 0 : i32
    %c0_i32_0 = arith.constant 0 : i32
    return %arg0, %c0_i32 : i32, i32
  }
  func.func @transform_1(%arg0: i32) -> (i32, i32) {
    %c0_i32 = arith.constant 0 : i32
    %c0_i32_0 = arith.constant 0 : i32
    %c0_i32_1 = arith.constant 0 : i32
    return %c0_i32, %c0_i32_0 : i32, i32
  }
  func.func @transform_2(%arg0: i32) -> (i32, i32) {
    %c0_i32 = arith.constant 0 : i32
    %c0_i32_0 = arith.constant 0 : i32
    %c0_i32_1 = arith.constant 0 : i32
    return %c0_i32, %c0_i32_0 : i32, i32
  }
  func.func @transform_3(%arg0: i32) -> (i32, i32) {
    %c0_i32 = arith.constant 0 : i32
    %c0_i32_0 = arith.constant 0 : i32
    %c0_i32_1 = arith.constant 0 : i32
    return %c0_i32, %c0_i32_0 : i32, i32
  }
  func.func @transform_4(%arg0: i32) -> (i32, i32) {
    %c0_i32 = arith.constant 0 : i32
    %c0_i32_0 = arith.constant 0 : i32
    %c0_i32_1 = arith.constant 0 : i32
    return %c0_i32, %c0_i32_0 : i32, i32
  }
  func.func @transform_5(%arg0: i32) -> (i32, i32) {
    %c0_i32 = arith.constant 0 : i32
    %c0_i32_0 = arith.constant 0 : i32
    return %arg0, %c0_i32 : i32, i32
  }
}

module attributes {stable_mosaic.version = 11 : i64} {
  func.func @_gemm_kernel(%arg0: i32, %arg1: memref<32x72xf32, #tpu.memory_space<vmem>>, %arg2: memref<72x24xbf16, #tpu.memory_space<vmem>>, %arg3: memref<1x24xf32, #tpu.memory_space<vmem>>, %arg4: memref<32x24xf32, #tpu.memory_space<vmem>>) attributes {dimension_semantics = [#tpu.dimension_semantics<parallel>], iteration_bounds = array<i64: 1>, scalar_prefetch = 0 : i64, scratch_operands = 0 : i64, tpu.core_type = #tpu.core_type<tc>, window_params = [{transform_indices = @transform_0, window_bounds = array<i64: 32, 72>}, {pipeline_mode = #tpu.pipeline_mode<synchronous>, transform_indices = @transform_1, window_bounds = array<i64: 72, 24>}, {pipeline_mode = #tpu.pipeline_mode<synchronous>, transform_indices = @transform_2, window_bounds = array<i64: 1, 24>}, {transform_indices = @transform_3, window_bounds = array<i64: 32, 24>}]} {
    %c0 = arith.constant 0 : index
    %c0_0 = arith.constant 0 : index
    %0 = vector.load %arg1[%c0, %c0_0] : memref<32x72xf32, #tpu.memory_space<vmem>>, vector<32x72xf32>
    %1 = arith.truncf %0 : vector<32x72xf32> to vector<32x72xbf16>
    %c0_1 = arith.constant 0 : index
    %c0_2 = arith.constant 0 : index
    %2 = vector.load %arg2[%c0_1, %c0_2] : memref<72x24xbf16, #tpu.memory_space<vmem>>, vector<72x24xbf16>
    %cst = arith.constant dense<0.000000e+00> : vector<32x24xf32>
    %3 = tpu.matmul %1, %2, %cst {dimension_numbers = #tpu.dot_dimension_numbers<[1], [0], [0], [1], [0, 0, 1, 1], [], []>} : vector<32x72xbf16>, vector<72x24xbf16>, vector<32x24xf32> -> vector<32x24xf32>
    %c0_3 = arith.constant 0 : index
    %c0_4 = arith.constant 0 : index
    %4 = vector.load %arg3[%c0_3, %c0_4] : memref<1x24xf32, #tpu.memory_space<vmem>>, vector<1x24xf32>
    %5 = vector.broadcast %4 : vector<1x24xf32> to vector<32x24xf32>
    %6 = arith.addf %3, %5 : vector<32x24xf32>
    %c0_5 = arith.constant 0 : index
    %c0_6 = arith.constant 0 : index
    %7 = vector.load %arg4[%c0_5, %c0_6] : memref<32x24xf32, #tpu.memory_space<vmem>>, vector<32x24xf32>
    tpu.vector_store %arg4[%c0_5, %c0_6], %6 {strides = array<i32>} : memref<32x24xf32, #tpu.memory_space<vmem>>, vector<32x24xf32>,
    return
  }
  func.func @transform_0(%arg0: i32) -> (i32, i32) {
    %c0_i32 = arith.constant 0 : i32
    %c0_i32_0 = arith.constant 0 : i32
    return %arg0, %c0_i32 : i32, i32
  }
  func.func @transform_1(%arg0: i32) -> (i32, i32) {
    %c0_i32 = arith.constant 0 : i32
    %c0_i32_0 = arith.constant 0 : i32
    %c0_i32_1 = arith.constant 0 : i32
    return %c0_i32, %c0_i32_0 : i32, i32
  }
  func.func @transform_2(%arg0: i32) -> (i32, i32) {
    %c0_i32 = arith.constant 0 : i32
    %c0_i32_0 = arith.constant 0 : i32
    %c0_i32_1 = arith.constant 0 : i32
    return %c0_i32, %c0_i32_0 : i32, i32
  }
  func.func @transform_3(%arg0: i32) -> (i32, i32) {
    %c0_i32 = arith.constant 0 : i32
    %c0_i32_0 = arith.constant 0 : i32
    return %arg0, %c0_i32 : i32, i32
  }
}

module attributes {stable_mosaic.version = 11 : i64} {
  func.func @_layernorm_kernel(%arg0: i32, %arg1: memref<32x24xf32, #tpu.memory_space<vmem>>, %arg2: memref<1x24xf32, #tpu.memory_space<vmem>>, %arg3: memref<1x24xf32, #tpu.memory_space<vmem>>, %arg4: memref<32x24xbf16, #tpu.memory_space<vmem>>) attributes {dimension_semantics = [#tpu.dimension_semantics<parallel>], iteration_bounds = array<i64: 1>, scalar_prefetch = 0 : i64, scratch_operands = 0 : i64, tpu.core_type = #tpu.core_type<tc>, window_params = [{transform_indices = @transform_0, window_bounds = array<i64: 32, 24>}, {pipeline_mode = #tpu.pipeline_mode<synchronous>, transform_indices = @transform_1, window_bounds = array<i64: 1, 24>}, {pipeline_mode = #tpu.pipeline_mode<synchronous>, transform_indices = @transform_2, window_bounds = array<i64: 1, 24>}, {transform_indices = @transform_3, window_bounds = array<i64: 32, 24>}]} {
    %c0 = arith.constant 0 : index
    %c0_0 = arith.constant 0 : index
    %0 = vector.load %arg1[%c0, %c0_0] : memref<32x24xf32, #tpu.memory_space<vmem>>, vector<32x24xf32>
    %cst = arith.constant dense<0.000000e+00> : vector<32xf32>
    %1 = vector.multi_reduction <add>, %0, %cst [1] : vector<32x24xf32> to vector<32xf32>
    %2 = vector.shape_cast %1 : vector<32xf32> to vector<32x1xf32>
    %cst_1 = arith.constant 2.400000e+01 : f32
    %3 = vector.broadcast %cst_1 : f32 to vector<32x1xf32>
    %4 = arith.divf %2, %3 : vector<32x1xf32>
    %5 = vector.broadcast %4 : vector<32x1xf32> to vector<32x24xf32>
    %6 = arith.subf %0, %5 : vector<32x24xf32>
    %7 = vector.broadcast %4 : vector<32x1xf32> to vector<32x24xf32>
    %8 = arith.subf %0, %7 : vector<32x24xf32>
    %9 = arith.mulf %6, %8 : vector<32x24xf32>
    %cst_2 = arith.constant dense<0.000000e+00> : vector<32xf32>
    %10 = vector.multi_reduction <add>, %9, %cst_2 [1] : vector<32x24xf32> to vector<32xf32>
    %11 = vector.shape_cast %10 : vector<32xf32> to vector<32x1xf32>
    %cst_3 = arith.constant 2.400000e+01 : f32
    %12 = vector.broadcast %cst_3 : f32 to vector<32x1xf32>
    %13 = arith.divf %11, %12 : vector<32x1xf32>
    %14 = vector.broadcast %4 : vector<32x1xf32> to vector<32x24xf32>
    %15 = arith.subf %0, %14 : vector<32x24xf32>
    %cst_4 = arith.constant 9.99999974E-6 : f32
    %16 = vector.broadcast %cst_4 : f32 to vector<32x1xf32>
    %17 = arith.addf %13, %16 : vector<32x1xf32>
    %18 = math.rsqrt %17 : vector<32x1xf32>
    %19 = vector.broadcast %18 : vector<32x1xf32> to vector<32x24xf32>
    %20 = arith.mulf %15, %19 : vector<32x24xf32>
    %c0_5 = arith.constant 0 : index
    %c0_6 = arith.constant 0 : index
    %21 = vector.load %arg2[%c0_5, %c0_6] : memref<1x24xf32, #tpu.memory_space<vmem>>, vector<1x24xf32>
    %22 = vector.broadcast %21 : vector<1x24xf32> to vector<32x24xf32>
    %23 = arith.mulf %20, %22 : vector<32x24xf32>
    %c0_7 = arith.constant 0 : index
    %c0_8 = arith.constant 0 : index
    %24 = vector.load %arg3[%c0_7, %c0_8] : memref<1x24xf32, #tpu.memory_space<vmem>>, vector<1x24xf32>
    %25 = vector.broadcast %24 : vector<1x24xf32> to vector<32x24xf32>
    %26 = arith.addf %23, %25 : vector<32x24xf32>
    %27 = arith.truncf %26 : vector<32x24xf32> to vector<32x24xbf16>
    %c0_9 = arith.constant 0 : index
    %c0_10 = arith.constant 0 : index
    %28 = vector.load %arg4[%c0_9, %c0_10] : memref<32x24xbf16, #tpu.memory_space<vmem>>, vector<32x24xbf16>
    tpu.vector_store %arg4[%c0_9, %c0_10], %27 {strides = array<i32>} : memref<32x24xbf16, #tpu.memory_space<vmem>>, vector<32x24xbf16>,
    return
  }
  func.func @transform_0(%arg0: i32) -> (i32, i32) {
    %c0_i32 = arith.constant 0 : i32
    %c0_i32_0 = arith.constant 0 : i32
    return %arg0, %c0_i32 : i32, i32
  }
  func.func @transform_1(%arg0: i32) -> (i32, i32) {
    %c0_i32 = arith.constant 0 : i32
    %c0_i32_0 = arith.constant 0 : i32
    %c0_i32_1 = arith.constant 0 : i32
    return %c0_i32, %c0_i32_0 : i32, i32
  }
  func.func @transform_2(%arg0: i32) -> (i32, i32) {
    %c0_i32 = arith.constant 0 : i32
    %c0_i32_0 = arith.constant 0 : i32
    %c0_i32_1 = arith.constant 0 : i32
    return %c0_i32, %c0_i32_0 : i32, i32
  }
  func.func @transform_3(%arg0: i32) -> (i32, i32) {
    %c0_i32 = arith.constant 0 : i32
    %c0_i32_0 = arith.constant 0 : i32
    return %arg0, %c0_i32 : i32, i32
  }
}

module attributes {stable_mosaic.version = 11 : i64} {
  func.func @_gemm_kernel(%arg0: i32, %arg1: memref<32x216xbf16, #tpu.memory_space<vmem>>, %arg2: memref<216x72xbf16, #tpu.memory_space<vmem>>, %arg3: memref<1x72xf32, #tpu.memory_space<vmem>>, %arg4: memref<32x72xbf16, #tpu.memory_space<vmem>>) attributes {dimension_semantics = [#tpu.dimension_semantics<parallel>], iteration_bounds = array<i64: 1>, scalar_prefetch = 0 : i64, scratch_operands = 0 : i64, tpu.core_type = #tpu.core_type<tc>, window_params = [{transform_indices = @transform_0, window_bounds = array<i64: 32, 216>}, {pipeline_mode = #tpu.pipeline_mode<synchronous>, transform_indices = @transform_1, window_bounds = array<i64: 216, 72>}, {pipeline_mode = #tpu.pipeline_mode<synchronous>, transform_indices = @transform_2, window_bounds = array<i64: 1, 72>}, {transform_indices = @transform_3, window_bounds = array<i64: 32, 72>}]} {
    %c0 = arith.constant 0 : index
    %c0_0 = arith.constant 0 : index
    %0 = vector.load %arg1[%c0, %c0_0] : memref<32x216xbf16, #tpu.memory_space<vmem>>, vector<32x216xbf16>
    %c0_1 = arith.constant 0 : index
    %c0_2 = arith.constant 0 : index
    %1 = vector.load %arg2[%c0_1, %c0_2] : memref<216x72xbf16, #tpu.memory_space<vmem>>, vector<216x72xbf16>
    %cst = arith.constant dense<0.000000e+00> : vector<32x72xf32>
    %2 = tpu.matmul %0, %1, %cst {dimension_numbers = #tpu.dot_dimension_numbers<[1], [0], [0], [1], [0, 0, 1, 1], [], []>} : vector<32x216xbf16>, vector<216x72xbf16>, vector<32x72xf32> -> vector<32x72xf32>
    %c0_3 = arith.constant 0 : index
    %c0_4 = arith.constant 0 : index
    %3 = vector.load %arg3[%c0_3, %c0_4] : memref<1x72xf32, #tpu.memory_space<vmem>>, vector<1x72xf32>
    %4 = vector.broadcast %3 : vector<1x72xf32> to vector<32x72xf32>
    %5 = arith.addf %2, %4 : vector<32x72xf32>
    %6 = arith.truncf %5 : vector<32x72xf32> to vector<32x72xbf16>
    %c0_5 = arith.constant 0 : index
    %c0_6 = arith.constant 0 : index
    %7 = vector.load %arg4[%c0_5, %c0_6] : memref<32x72xbf16, #tpu.memory_space<vmem>>, vector<32x72xbf16>
    tpu.vector_store %arg4[%c0_5, %c0_6], %6 {strides = array<i32>} : memref<32x72xbf16, #tpu.memory_space<vmem>>, vector<32x72xbf16>,
    return
  }
  func.func @transform_0(%arg0: i32) -> (i32, i32) {
    %c0_i32 = arith.constant 0 : i32
    %c0_i32_0 = arith.constant 0 : i32
    return %arg0, %c0_i32 : i32, i32
  }
  func.func @transform_1(%arg0: i32) -> (i32, i32) {
    %c0_i32 = arith.constant 0 : i32
    %c0_i32_0 = arith.constant 0 : i32
    %c0_i32_1 = arith.constant 0 : i32
    return %c0_i32, %c0_i32_0 : i32, i32
  }
  func.func @transform_2(%arg0: i32) -> (i32, i32) {
    %c0_i32 = arith.constant 0 : i32
    %c0_i32_0 = arith.constant 0 : i32
    %c0_i32_1 = arith.constant 0 : i32
    return %c0_i32, %c0_i32_0 : i32, i32
  }
  func.func @transform_3(%arg0: i32) -> (i32, i32) {
    %c0_i32 = arith.constant 0 : i32
    %c0_i32_0 = arith.constant 0 : i32
    return %arg0, %c0_i32 : i32, i32
  }
}

module attributes {stable_mosaic.version = 11 : i64} {
  func.func @_attention_kernel(%arg0: i32, %arg1: i32, %arg2: memref<1x16x24xbf16, #tpu.memory_space<vmem>>, %arg3: memref<1x16x24xbf16, #tpu.memory_space<vmem>>, %arg4: memref<1x16x24xbf16, #tpu.memory_space<vmem>>, %arg5: memref<1x16x24xbf16, #tpu.memory_space<vmem>>) attributes {dimension_semantics = [#tpu.dimension_semantics<parallel>, #tpu.dimension_semantics<parallel>], iteration_bounds = array<i64: 2, 1>, scalar_prefetch = 0 : i64, scratch_operands = 0 : i64, tpu.core_type = #tpu.core_type<tc>, window_params = [{transform_indices = @transform_0, window_bounds = array<i64: 1, 16, 24>}, {transform_indices = @transform_1, window_bounds = array<i64: 1, 16, 24>}, {transform_indices = @transform_2, window_bounds = array<i64: 1, 16, 24>}, {transform_indices = @transform_3, window_bounds = array<i64: 1, 16, 24>}]} {
    %c0 = arith.constant 0 : index
    %c0_0 = arith.constant 0 : index
    %c0_1 = arith.constant 0 : index
    %0 = vector.load %arg2[%c0, %c0_0, %c0_1] : memref<1x16x24xbf16, #tpu.memory_space<vmem>>, vector<1x16x24xbf16>
    %1 = vector.shape_cast %0 : vector<1x16x24xbf16> to vector<16x24xbf16>
    %c0_2 = arith.constant 0 : index
    %c0_3 = arith.constant 0 : index
    %c0_4 = arith.constant 0 : index
    %2 = vector.load %arg3[%c0_2, %c0_3, %c0_4] : memref<1x16x24xbf16, #tpu.memory_space<vmem>>, vector<1x16x24xbf16>
    %3 = vector.shape_cast %2 : vector<1x16x24xbf16> to vector<16x24xbf16>
    %c0_5 = arith.constant 0 : index
    %c0_6 = arith.constant 0 : index
    %c0_7 = arith.constant 0 : index
    %4 = vector.load %arg4[%c0_5, %c0_6, %c0_7] : memref<1x16x24xbf16, #tpu.memory_space<vmem>>, vector<1x16x24xbf16>
    %5 = vector.shape_cast %4 : vector<1x16x24xbf16> to vector<16x24xbf16>
    %6 = vector.extract_strided_slice %1 {offsets = [0, 0], sizes = [16, 8], strides = [1, 1]} : vector<16x24xbf16> to vector<16x8xbf16>
    %7 = vector.extract_strided_slice %3 {offsets = [0, 0], sizes = [16, 8], strides = [1, 1]} : vector<16x24xbf16> to vector<16x8xbf16>
    %8 = vector.extract_strided_slice %5 {offsets = [0, 0], sizes = [16, 8], strides = [1, 1]} : vector<16x24xbf16> to vector<16x8xbf16>
    %cst = arith.constant dense<0.000000e+00> : vector<16x16xf32>
    %9 = tpu.matmul %6, %7, %cst {dimension_numbers = #tpu.dot_dimension_numbers<[1], [1], [0], [0], [0, 0, 1, 0], [], []>} : vector<16x8xbf16>, vector<16x8xbf16>, vector<16x16xf32> -> vector<16x16xf32>
    %cst_8 = arith.constant 0.353553385 : f32
    %10 = vector.broadcast %cst_8 : f32 to vector<16x16xf32>
    %11 = arith.mulf %9, %10 : vector<16x16xf32>
    %cst_9 = arith.constant dense<0xFF800000> : vector<16xf32>
    %12 = vector.multi_reduction <maximumf>, %11, %cst_9 [1] : vector<16x16xf32> to vector<16xf32>
    %13 = vector.shape_cast %12 : vector<16xf32> to vector<16x1xf32>
    %14 = vector.broadcast %13 : vector<16x1xf32> to vector<16x16xf32>
    %15 = arith.subf %11, %14 : vector<16x16xf32>
    %16 = math.exp %15 : vector<16x16xf32>
    %cst_10 = arith.constant dense<0.000000e+00> : vector<16xf32>
    %17 = vector.multi_reduction <add>, %16, %cst_10 [1] : vector<16x16xf32> to vector<16xf32>
    %18 = vector.shape_cast %17 : vector<16xf32> to vector<16x1xf32>
    %19 = vector.broadcast %18 : vector<16x1xf32> to vector<16x16xf32>
    %20 = arith.divf %16, %19 : vector<16x16xf32>
    %21 = arith.truncf %20 : vector<16x16xf32> to vector<16x16xbf16>
    %cst_11 = arith.constant dense<0.000000e+00> : vector<16x8xf32>
    %22 = tpu.matmul %21, %8, %cst_11 {dimension_numbers = #tpu.dot_dimension_numbers<[1], [0], [0], [1], [0, 0, 1, 1], [], []>} : vector<16x16xbf16>, vector<16x8xbf16>, vector<16x8xf32> -> vector<16x8xf32>
    %23 = vector.extract_strided_slice %1 {offsets = [0, 8], sizes = [16, 8], strides = [1, 1]} : vector<16x24xbf16> to vector<16x8xbf16>
    %24 = vector.extract_strided_slice %3 {offsets = [0, 8], sizes = [16, 8], strides = [1, 1]} : vector<16x24xbf16> to vector<16x8xbf16>
    %25 = vector.extract_strided_slice %5 {offsets = [0, 8], sizes = [16, 8], strides = [1, 1]} : vector<16x24xbf16> to vector<16x8xbf16>
    %cst_12 = arith.constant dense<0.000000e+00> : vector<16x16xf32>
    %26 = tpu.matmul %23, %24, %cst_12 {dimension_numbers = #tpu.dot_dimension_numbers<[1], [1], [0], [0], [0, 0, 1, 0], [], []>} : vector<16x8xbf16>, vector<16x8xbf16>, vector<16x16xf32> -> vector<16x16xf32>
    %cst_13 = arith.constant 0.353553385 : f32
    %27 = vector.broadcast %cst_13 : f32 to vector<16x16xf32>
    %28 = arith.mulf %26, %27 : vector<16x16xf32>
    %cst_14 = arith.constant dense<0xFF800000> : vector<16xf32>
    %29 = vector.multi_reduction <maximumf>, %28, %cst_14 [1] : vector<16x16xf32> to vector<16xf32>
    %30 = vector.shape_cast %29 : vector<16xf32> to vector<16x1xf32>
    %31 = vector.broadcast %30 : vector<16x1xf32> to vector<16x16xf32>
    %32 = arith.subf %28, %31 : vector<16x16xf32>
    %33 = math.exp %32 : vector<16x16xf32>
    %cst_15 = arith.constant dense<0.000000e+00> : vector<16xf32>
    %34 = vector.multi_reduction <add>, %33, %cst_15 [1] : vector<16x16xf32> to vector<16xf32>
    %35 = vector.shape_cast %34 : vector<16xf32> to vector<16x1xf32>
    %36 = vector.broadcast %35 : vector<16x1xf32> to vector<16x16xf32>
    %37 = arith.divf %33, %36 : vector<16x16xf32>
    %38 = arith.truncf %37 : vector<16x16xf32> to vector<16x16xbf16>
    %cst_16 = arith.constant dense<0.000000e+00> : vector<16x8xf32>
    %39 = tpu.matmul %38, %25, %cst_16 {dimension_numbers = #tpu.dot_dimension_numbers<[1], [0], [0], [1], [0, 0, 1, 1], [], []>} : vector<16x16xbf16>, vector<16x8xbf16>, vector<16x8xf32> -> vector<16x8xf32>
    %40 = vector.extract_strided_slice %1 {offsets = [0, 16], sizes = [16, 8], strides = [1, 1]} : vector<16x24xbf16> to vector<16x8xbf16>
    %41 = vector.extract_strided_slice %3 {offsets = [0, 16], sizes = [16, 8], strides = [1, 1]} : vector<16x24xbf16> to vector<16x8xbf16>
    %42 = vector.extract_strided_slice %5 {offsets = [0, 16], sizes = [16, 8], strides = [1, 1]} : vector<16x24xbf16> to vector<16x8xbf16>
    %cst_17 = arith.constant dense<0.000000e+00> : vector<16x16xf32>
    %43 = tpu.matmul %40, %41, %cst_17 {dimension_numbers = #tpu.dot_dimension_numbers<[1], [1], [0], [0], [0, 0, 1, 0], [], []>} : vector<16x8xbf16>, vector<16x8xbf16>, vector<16x16xf32> -> vector<16x16xf32>
    %cst_18 = arith.constant 0.353553385 : f32
    %44 = vector.broadcast %cst_18 : f32 to vector<16x16xf32>
    %45 = arith.mulf %43, %44 : vector<16x16xf32>
    %cst_19 = arith.constant dense<0xFF800000> : vector<16xf32>
    %46 = vector.multi_reduction <maximumf>, %45, %cst_19 [1] : vector<16x16xf32> to vector<16xf32>
    %47 = vector.shape_cast %46 : vector<16xf32> to vector<16x1xf32>
    %48 = vector.broadcast %47 : vector<16x1xf32> to vector<16x16xf32>
    %49 = arith.subf %45, %48 : vector<16x16xf32>
    %50 = math.exp %49 : vector<16x16xf32>
    %cst_20 = arith.constant dense<0.000000e+00> : vector<16xf32>
    %51 = vector.multi_reduction <add>, %50, %cst_20 [1] : vector<16x16xf32> to vector<16xf32>
    %52 = vector.shape_cast %51 : vector<16xf32> to vector<16x1xf32>
    %53 = vector.broadcast %52 : vector<16x1xf32> to vector<16x16xf32>
    %54 = arith.divf %50, %53 : vector<16x16xf32>
    %55 = arith.truncf %54 : vector<16x16xf32> to vector<16x16xbf16>
    %cst_21 = arith.constant dense<0.000000e+00> : vector<16x8xf32>
    %56 = tpu.matmul %55, %42, %cst_21 {dimension_numbers = #tpu.dot_dimension_numbers<[1], [0], [0], [1], [0, 0, 1, 1], [], []>} : vector<16x16xbf16>, vector<16x8xbf16>, vector<16x8xf32> -> vector<16x8xf32>
    %57 = tpu.concatenate %22, %39, %56 in 1 : vector<16x8xf32>, vector<16x8xf32>, vector<16x8xf32> -> vector<16x24xf32>
    %58 = arith.truncf %57 : vector<16x24xf32> to vector<16x24xbf16>
    %c0_22 = arith.constant 0 : index
    %c0_23 = arith.constant 0 : index
    %c0_24 = arith.constant 0 : index
    %59 = vector.load %arg5[%c0_22, %c0_23, %c0_24] : memref<1x16x24xbf16, #tpu.memory_space<vmem>>, vector<1x16x24xbf16>
    %60 = vector.shape_cast %59 : vector<1x16x24xbf16> to vector<16x24xbf16>
    %61 = vector.shape_cast %58 : vector<16x24xbf16> to vector<1x16x24xbf16>
    tpu.vector_store %arg5[%c0_22, %c0_23, %c0_24], %61 {strides = array<i32>} : memref<1x16x24xbf16, #tpu.memory_space<vmem>>, vector<1x16x24xbf16>,
    return
  }
  func.func @transform_0(%arg0: i32, %arg1: i32) -> (i32, i32, i32) {
    %c0_i32 = arith.constant 0 : i32
    %c0_i32_0 = arith.constant 0 : i32
    return %arg0, %arg1, %c0_i32 : i32, i32, i32
  }
  func.func @transform_1(%arg0: i32, %arg1: i32) -> (i32, i32, i32) {
    %c0_i32 = arith.constant 0 : i32
    %c0_i32_0 = arith.constant 0 : i32
    %c0_i32_1 = arith.constant 0 : i32
    return %arg0, %c0_i32, %c0_i32_0 : i32, i32, i32
  }
  func.func @transform_2(%arg0: i32, %arg1: i32) -> (i32, i32, i32) {
    %c0_i32 = arith.constant 0 : i32
    %c0_i32_0 = arith.constant 0 : i32
    %c0_i32_1 = arith.constant 0 : i32
    return %arg0, %c0_i32, %c0_i32_0 : i32, i32, i32
  }
  func.func @transform_3(%arg0: i32, %arg1: i32) -> (i32, i32, i32) {
    %c0_i32 = arith.constant 0 : i32
    %c0_i32_0 = arith.constant 0 : i32
    return %arg0, %arg1, %c0_i32 : i32, i32, i32
  }
}

module attributes {stable_mosaic.version = 11 : i64} {
  func.func @_gemm_kernel(%arg0: i32, %arg1: memref<32x24xbf16, #tpu.memory_space<vmem>>, %arg2: memref<24x24xbf16, #tpu.memory_space<vmem>>, %arg3: memref<1x24xf32, #tpu.memory_space<vmem>>, %arg4: memref<32x24xf32, #tpu.memory_space<vmem>>, %arg5: memref<32x24xf32, #tpu.memory_space<vmem>>) attributes {dimension_semantics = [#tpu.dimension_semantics<parallel>], iteration_bounds = array<i64: 1>, scalar_prefetch = 0 : i64, scratch_operands = 0 : i64, tpu.core_type = #tpu.core_type<tc>, window_params = [{transform_indices = @transform_0, window_bounds = array<i64: 32, 24>}, {pipeline_mode = #tpu.pipeline_mode<synchronous>, transform_indices = @transform_1, window_bounds = array<i64: 24, 24>}, {pipeline_mode = #tpu.pipeline_mode<synchronous>, transform_indices = @transform_2, window_bounds = array<i64: 1, 24>}, {transform_indices = @transform_3, window_bounds = array<i64: 32, 24>}, {transform_indices = @transform_4, window_bounds = array<i64: 32, 24>}]} {
    %c0 = arith.constant 0 : index
    %c0_0 = arith.constant 0 : index
    %0 = vector.load %arg1[%c0, %c0_0] : memref<32x24xbf16, #tpu.memory_space<vmem>>, vector<32x24xbf16>
    %c0_1 = arith.constant 0 : index
    %c0_2 = arith.constant 0 : index
    %1 = vector.load %arg2[%c0_1, %c0_2] : memref<24x24xbf16, #tpu.memory_space<vmem>>, vector<24x24xbf16>
    %cst = arith.constant dense<0.000000e+00> : vector<32x24xf32>
    %2 = tpu.matmul %0, %1, %cst {dimension_numbers = #tpu.dot_dimension_numbers<[1], [0], [0], [1], [0, 0, 1, 1], [], []>} : vector<32x24xbf16>, vector<24x24xbf16>, vector<32x24xf32> -> vector<32x24xf32>
    %c0_3 = arith.constant 0 : index
    %c0_4 = arith.constant 0 : index
    %3 = vector.load %arg3[%c0_3, %c0_4] : memref<1x24xf32, #tpu.memory_space<vmem>>, vector<1x24xf32>
    %4 = vector.broadcast %3 : vector<1x24xf32> to vector<32x24xf32>
    %5 = arith.addf %2, %4 : vector<32x24xf32>
    %c0_5 = arith.constant 0 : index
    %c0_6 = arith.constant 0 : index
    %6 = vector.load %arg4[%c0_5, %c0_6] : memref<32x24xf32, #tpu.memory_space<vmem>>, vector<32x24xf32>
    %7 = arith.addf %5, %6 : vector<32x24xf32>
    %c0_7 = arith.constant 0 : index
    %c0_8 = arith.constant 0 : index
    %8 = vector.load %arg5[%c0_7, %c0_8] : memref<32x24xf32, #tpu.memory_space<vmem>>, vector<32x24xf32>
    tpu.vector_store %arg5[%c0_7, %c0_8], %7 {strides = array<i32>} : memref<32x24xf32, #tpu.memory_space<vmem>>, vector<32x24xf32>,
    return
  }
  func.func @transform_0(%arg0: i32) -> (i32, i32) {
    %c0_i32 = arith.constant 0 : i32
    %c0_i32_0 = arith.constant 0 : i32
    return %arg0, %c0_i32 : i32, i32
  }
  func.func @transform_1(%arg0: i32) -> (i32, i32) {
    %c0_i32 = arith.constant 0 : i32
    %c0_i32_0 = arith.constant 0 : i32
    %c0_i32_1 = arith.constant 0 : i32
    return %c0_i32, %c0_i32_0 : i32, i32
  }
  func.func @transform_2(%arg0: i32) -> (i32, i32) {
    %c0_i32 = arith.constant 0 : i32
    %c0_i32_0 = arith.constant 0 : i32
    %c0_i32_1 = arith.constant 0 : i32
    return %c0_i32, %c0_i32_0 : i32, i32
  }
  func.func @transform_3(%arg0: i32) -> (i32, i32) {
    %c0_i32 = arith.constant 0 : i32
    %c0_i32_0 = arith.constant 0 : i32
    return %arg0, %c0_i32 : i32, i32
  }
  func.func @transform_4(%arg0: i32) -> (i32, i32) {
    %c0_i32 = arith.constant 0 : i32
    %c0_i32_0 = arith.constant 0 : i32
    return %arg0, %c0_i32 : i32, i32
  }
}

module attributes {stable_mosaic.version = 11 : i64} {
  func.func @_gemm_kernel(%arg0: i32, %arg1: memref<32x24xf32, #tpu.memory_space<vmem>>, %arg2: memref<1x24xf32, #tpu.memory_space<vmem>>, %arg3: memref<1x24xf32, #tpu.memory_space<vmem>>, %arg4: memref<24x96xbf16, #tpu.memory_space<vmem>>, %arg5: memref<1x96xf32, #tpu.memory_space<vmem>>, %arg6: memref<32x96xbf16, #tpu.memory_space<vmem>>) attributes {dimension_semantics = [#tpu.dimension_semantics<parallel>], iteration_bounds = array<i64: 1>, scalar_prefetch = 0 : i64, scratch_operands = 0 : i64, tpu.core_type = #tpu.core_type<tc>, window_params = [{transform_indices = @transform_0, window_bounds = array<i64: 32, 24>}, {pipeline_mode = #tpu.pipeline_mode<synchronous>, transform_indices = @transform_1, window_bounds = array<i64: 1, 24>}, {pipeline_mode = #tpu.pipeline_mode<synchronous>, transform_indices = @transform_2, window_bounds = array<i64: 1, 24>}, {pipeline_mode = #tpu.pipeline_mode<synchronous>, transform_indices = @transform_3, window_bounds = array<i64: 24, 96>}, {pipeline_mode = #tpu.pipeline_mode<synchronous>, transform_indices = @transform_4, window_bounds = array<i64: 1, 96>}, {transform_indices = @transform_5, window_bounds = array<i64: 32, 96>}]} {
    %c0 = arith.constant 0 : index
    %c0_0 = arith.constant 0 : index
    %0 = vector.load %arg1[%c0, %c0_0] : memref<32x24xf32, #tpu.memory_space<vmem>>, vector<32x24xf32>
    %cst = arith.constant dense<0.000000e+00> : vector<32xf32>
    %1 = vector.multi_reduction <add>, %0, %cst [1] : vector<32x24xf32> to vector<32xf32>
    %2 = vector.shape_cast %1 : vector<32xf32> to vector<32x1xf32>
    %cst_1 = arith.constant 2.400000e+01 : f32
    %3 = vector.broadcast %cst_1 : f32 to vector<32x1xf32>
    %4 = arith.divf %2, %3 : vector<32x1xf32>
    %5 = vector.broadcast %4 : vector<32x1xf32> to vector<32x24xf32>
    %6 = arith.subf %0, %5 : vector<32x24xf32>
    %7 = vector.broadcast %4 : vector<32x1xf32> to vector<32x24xf32>
    %8 = arith.subf %0, %7 : vector<32x24xf32>
    %9 = arith.mulf %6, %8 : vector<32x24xf32>
    %cst_2 = arith.constant dense<0.000000e+00> : vector<32xf32>
    %10 = vector.multi_reduction <add>, %9, %cst_2 [1] : vector<32x24xf32> to vector<32xf32>
    %11 = vector.shape_cast %10 : vector<32xf32> to vector<32x1xf32>
    %cst_3 = arith.constant 2.400000e+01 : f32
    %12 = vector.broadcast %cst_3 : f32 to vector<32x1xf32>
    %13 = arith.divf %11, %12 : vector<32x1xf32>
    %14 = vector.broadcast %4 : vector<32x1xf32> to vector<32x24xf32>
    %15 = arith.subf %0, %14 : vector<32x24xf32>
    %cst_4 = arith.constant 9.99999974E-6 : f32
    %16 = vector.broadcast %cst_4 : f32 to vector<32x1xf32>
    %17 = arith.addf %13, %16 : vector<32x1xf32>
    %18 = math.rsqrt %17 : vector<32x1xf32>
    %19 = vector.broadcast %18 : vector<32x1xf32> to vector<32x24xf32>
    %20 = arith.mulf %15, %19 : vector<32x24xf32>
    %c0_5 = arith.constant 0 : index
    %c0_6 = arith.constant 0 : index
    %21 = vector.load %arg2[%c0_5, %c0_6] : memref<1x24xf32, #tpu.memory_space<vmem>>, vector<1x24xf32>
    %22 = vector.broadcast %21 : vector<1x24xf32> to vector<32x24xf32>
    %23 = arith.mulf %20, %22 : vector<32x24xf32>
    %c0_7 = arith.constant 0 : index
    %c0_8 = arith.constant 0 : index
    %24 = vector.load %arg3[%c0_7, %c0_8] : memref<1x24xf32, #tpu.memory_space<vmem>>, vector<1x24xf32>
    %25 = vector.broadcast %24 : vector<1x24xf32> to vector<32x24xf32>
    %26 = arith.addf %23, %25 : vector<32x24xf32>
    %27 = arith.truncf %26 : vector<32x24xf32> to vector<32x24xbf16>
    %c0_9 = arith.constant 0 : index
    %c0_10 = arith.constant 0 : index
    %28 = vector.load %arg4[%c0_9, %c0_10] : memref<24x96xbf16, #tpu.memory_space<vmem>>, vector<24x96xbf16>
    %cst_11 = arith.constant dense<0.000000e+00> : vector<32x96xf32>
    %29 = tpu.matmul %27, %28, %cst_11 {dimension_numbers = #tpu.dot_dimension_numbers<[1], [0], [0], [1], [0, 0, 1, 1], [], []>} : vector<32x24xbf16>, vector<24x96xbf16>, vector<32x96xf32> -> vector<32x96xf32>
    %c0_12 = arith.constant 0 : index
    %c0_13 = arith.constant 0 : index
    %30 = vector.load %arg5[%c0_12, %c0_13] : memref<1x96xf32, #tpu.memory_space<vmem>>, vector<1x96xf32>
    %31 = vector.broadcast %30 : vector<1x96xf32> to vector<32x96xf32>
    %32 = arith.addf %29, %31 : vector<32x96xf32>
    %cst_14 = arith.constant 5.000000e-01 : f32
    %33 = vector.broadcast %cst_14 : f32 to vector<32x96xf32>
    %34 = arith.mulf %33, %32 : vector<32x96xf32>
    %cst_15 = arith.constant 0.707106769 : f32
    %35 = vector.broadcast %cst_15 : f32 to vector<32x96xf32>
    %36 = arith.mulf %32, %35 : vector<32x96xf32>
    %37 = math.erf %36 : vector<32x96xf32>
    %cst_16 = arith.constant 1.000000e+00 : f32
    %38 = vector.broadcast %cst_16 : f32 to vector<32x96xf32>
    %39 = arith.addf %38, %37 : vector<32x96xf32>
    %40 = arith.mulf %34, %39 : vector<32x96xf32>
    %41 = arith.truncf %40 : vector<32x96xf32> to vector<32x96xbf16>
    %c0_17 = arith.constant 0 : index
    %c0_18 = arith.constant 0 : index
    %42 = vector.load %arg6[%c0_17, %c0_18] : memref<32x96xbf16, #tpu.memory_space<vmem>>, vector<32x96xbf16>
    tpu.vector_store %arg6[%c0_17, %c0_18], %41 {strides = array<i32>} : memref<32x96xbf16, #tpu.memory_space<vmem>>, vector<32x96xbf16>,
    return
  }
  func.func @transform_0(%arg0: i32) -> (i32, i32) {
    %c0_i32 = arith.constant 0 : i32
    %c0_i32_0 = arith.constant 0 : i32
    return %arg0, %c0_i32 : i32, i32
  }
  func.func @transform_1(%arg0: i32) -> (i32, i32) {
    %c0_i32 = arith.constant 0 : i32
    %c0_i32_0 = arith.constant 0 : i32
    %c0_i32_1 = arith.constant 0 : i32
    return %c0_i32, %c0_i32_0 : i32, i32
  }
  func.func @transform_2(%arg0: i32) -> (i32, i32) {
    %c0_i32 = arith.constant 0 : i32
    %c0_i32_0 = arith.constant 0 : i32
    %c0_i32_1 = arith.constant 0 : i32
    return %c0_i32, %c0_i32_0 : i32, i32
  }
  func.func @transform_3(%arg0: i32) -> (i32, i32) {
    %c0_i32 = arith.constant 0 : i32
    %c0_i32_0 = arith.constant 0 : i32
    %c0_i32_1 = arith.constant 0 : i32
    return %c0_i32, %c0_i32_0 : i32, i32
  }
  func.func @transform_4(%arg0: i32) -> (i32, i32) {
    %c0_i32 = arith.constant 0 : i32
    %c0_i32_0 = arith.constant 0 : i32
    %c0_i32_1 = arith.constant 0 : i32
    return %c0_i32, %c0_i32_0 : i32, i32
  }
  func.func @transform_5(%arg0: i32) -> (i32, i32) {
    %c0_i32 = arith.constant 0 : i32
    %c0_i32_0 = arith.constant 0 : i32
    return %arg0, %c0_i32 : i32, i32
  }
}

module attributes {stable_mosaic.version = 11 : i64} {
  func.func @_gemm_kernel(%arg0: i32, %arg1: memref<32x96xbf16, #tpu.memory_space<vmem>>, %arg2: memref<96x24xbf16, #tpu.memory_space<vmem>>, %arg3: memref<1x24xf32, #tpu.memory_space<vmem>>, %arg4: memref<32x24xf32, #tpu.memory_space<vmem>>, %arg5: memref<32x24xf32, #tpu.memory_space<vmem>>) attributes {dimension_semantics = [#tpu.dimension_semantics<parallel>], iteration_bounds = array<i64: 1>, scalar_prefetch = 0 : i64, scratch_operands = 0 : i64, tpu.core_type = #tpu.core_type<tc>, window_params = [{transform_indices = @transform_0, window_bounds = array<i64: 32, 96>}, {pipeline_mode = #tpu.pipeline_mode<synchronous>, transform_indices = @transform_1, window_bounds = array<i64: 96, 24>}, {pipeline_mode = #tpu.pipeline_mode<synchronous>, transform_indices = @transform_2, window_bounds = array<i64: 1, 24>}, {transform_indices = @transform_3, window_bounds = array<i64: 32, 24>}, {transform_indices = @transform_4, window_bounds = array<i64: 32, 24>}]} {
    %c0 = arith.constant 0 : index
    %c0_0 = arith.constant 0 : index
    %0 = vector.load %arg1[%c0, %c0_0] : memref<32x96xbf16, #tpu.memory_space<vmem>>, vector<32x96xbf16>
    %c0_1 = arith.constant 0 : index
    %c0_2 = arith.constant 0 : index
    %1 = vector.load %arg2[%c0_1, %c0_2] : memref<96x24xbf16, #tpu.memory_space<vmem>>, vector<96x24xbf16>
    %cst = arith.constant dense<0.000000e+00> : vector<32x24xf32>
    %2 = tpu.matmul %0, %1, %cst {dimension_numbers = #tpu.dot_dimension_numbers<[1], [0], [0], [1], [0, 0, 1, 1], [], []>} : vector<32x96xbf16>, vector<96x24xbf16>, vector<32x24xf32> -> vector<32x24xf32>
    %c0_3 = arith.constant 0 : index
    %c0_4 = arith.constant 0 : index
    %3 = vector.load %arg3[%c0_3, %c0_4] : memref<1x24xf32, #tpu.memory_space<vmem>>, vector<1x24xf32>
    %4 = vector.broadcast %3 : vector<1x24xf32> to vector<32x24xf32>
    %5 = arith.addf %2, %4 : vector<32x24xf32>
    %c0_5 = arith.constant 0 : index
    %c0_6 = arith.constant 0 : index
    %6 = vector.load %arg4[%c0_5, %c0_6] : memref<32x24xf32, #tpu.memory_space<vmem>>, vector<32x24xf32>
    %7 = arith.addf %5, %6 : vector<32x24xf32>
    %c0_7 = arith.constant 0 : index
    %c0_8 = arith.constant 0 : index
    %8 = vector.load %arg5[%c0_7, %c0_8] : memref<32x24xf32, #tpu.memory_space<vmem>>, vector<32x24xf32>
    tpu.vector_store %arg5[%c0_7, %c0_8], %7 {strides = array<i32>} : memref<32x24xf32, #tpu.memory_space<vmem>>, vector<32x24xf32>,
    return
  }
  func.func @transform_0(%arg0: i32) -> (i32, i32) {
    %c0_i32 = arith.constant 0 : i32
    %c0_i32_0 = arith.constant 0 : i32
    return %arg0, %c0_i32 : i32, i32
  }
  func.func @transform_1(%arg0: i32) -> (i32, i32) {
    %c0_i32 = arith.constant 0 : i32
    %c0_i32_0 = arith.constant 0 : i32
    %c0_i32_1 = arith.constant 0 : i32
    return %c0_i32, %c0_i32_0 : i32, i32
  }
  func.func @transform_2(%arg0: i32) -> (i32, i32) {
    %c0_i32 = arith.constant 0 : i32
    %c0_i32_0 = arith.constant 0 : i32
    %c0_i32_1 = arith.constant 0 : i32
    return %c0_i32, %c0_i32_0 : i32, i32
  }
  func.func @transform_3(%arg0: i32) -> (i32, i32) {
    %c0_i32 = arith.constant 0 : i32
    %c0_i32_0 = arith.constant 0 : i32
    return %arg0, %c0_i32 : i32, i32
  }
  func.func @transform_4(%arg0: i32) -> (i32, i32) {
    %c0_i32 = arith.constant 0 : i32
    %c0_i32_0 = arith.constant 0 : i32
    return %arg0, %c0_i32 : i32, i32
  }
}

module attributes {stable_mosaic.version = 11 : i64} {
  func.func @_gemm_kernel(%arg0: i32, %arg1: memref<8x216xf32, #tpu.memory_space<vmem>>, %arg2: memref<216x48xbf16, #tpu.memory_space<vmem>>, %arg3: memref<1x48xf32, #tpu.memory_space<vmem>>, %arg4: memref<8x48xf32, #tpu.memory_space<vmem>>) attributes {dimension_semantics = [#tpu.dimension_semantics<parallel>], iteration_bounds = array<i64: 1>, scalar_prefetch = 0 : i64, scratch_operands = 0 : i64, tpu.core_type = #tpu.core_type<tc>, window_params = [{transform_indices = @transform_0, window_bounds = array<i64: 8, 216>}, {pipeline_mode = #tpu.pipeline_mode<synchronous>, transform_indices = @transform_1, window_bounds = array<i64: 216, 48>}, {pipeline_mode = #tpu.pipeline_mode<synchronous>, transform_indices = @transform_2, window_bounds = array<i64: 1, 48>}, {transform_indices = @transform_3, window_bounds = array<i64: 8, 48>}]} {
    %c0 = arith.constant 0 : index
    %c0_0 = arith.constant 0 : index
    %0 = vector.load %arg1[%c0, %c0_0] : memref<8x216xf32, #tpu.memory_space<vmem>>, vector<8x216xf32>
    %1 = arith.truncf %0 : vector<8x216xf32> to vector<8x216xbf16>
    %c0_1 = arith.constant 0 : index
    %c0_2 = arith.constant 0 : index
    %2 = vector.load %arg2[%c0_1, %c0_2] : memref<216x48xbf16, #tpu.memory_space<vmem>>, vector<216x48xbf16>
    %cst = arith.constant dense<0.000000e+00> : vector<8x48xf32>
    %3 = tpu.matmul %1, %2, %cst {dimension_numbers = #tpu.dot_dimension_numbers<[1], [0], [0], [1], [0, 0, 1, 1], [], []>} : vector<8x216xbf16>, vector<216x48xbf16>, vector<8x48xf32> -> vector<8x48xf32>
    %c0_3 = arith.constant 0 : index
    %c0_4 = arith.constant 0 : index
    %4 = vector.load %arg3[%c0_3, %c0_4] : memref<1x48xf32, #tpu.memory_space<vmem>>, vector<1x48xf32>
    %5 = vector.broadcast %4 : vector<1x48xf32> to vector<8x48xf32>
    %6 = arith.addf %3, %5 : vector<8x48xf32>
    %c0_5 = arith.constant 0 : index
    %c0_6 = arith.constant 0 : index
    %7 = vector.load %arg4[%c0_5, %c0_6] : memref<8x48xf32, #tpu.memory_space<vmem>>, vector<8x48xf32>
    tpu.vector_store %arg4[%c0_5, %c0_6], %6 {strides = array<i32>} : memref<8x48xf32, #tpu.memory_space<vmem>>, vector<8x48xf32>,
    return
  }
  func.func @transform_0(%arg0: i32) -> (i32, i32) {
    %c0_i32 = arith.constant 0 : i32
    %c0_i32_0 = arith.constant 0 : i32
    return %arg0, %c0_i32 : i32, i32
  }
  func.func @transform_1(%arg0: i32) -> (i32, i32) {
    %c0_i32 = arith.constant 0 : i32
    %c0_i32_0 = arith.constant 0 : i32
    %c0_i32_1 = arith.constant 0 : i32
    return %c0_i32, %c0_i32_0 : i32, i32
  }
  func.func @transform_2(%arg0: i32) -> (i32, i32) {
    %c0_i32 = arith.constant 0 : i32
    %c0_i32_0 = arith.constant 0 : i32
    %c0_i32_1 = arith.constant 0 : i32
    return %c0_i32, %c0_i32_0 : i32, i32
  }
  func.func @transform_3(%arg0: i32) -> (i32, i32) {
    %c0_i32 = arith.constant 0 : i32
    %c0_i32_0 = arith.constant 0 : i32
    return %arg0, %c0_i32 : i32, i32
  }
}

module attributes {stable_mosaic.version = 11 : i64} {
  func.func @_layernorm_kernel(%arg0: i32, %arg1: memref<8x48xf32, #tpu.memory_space<vmem>>, %arg2: memref<1x48xf32, #tpu.memory_space<vmem>>, %arg3: memref<1x48xf32, #tpu.memory_space<vmem>>, %arg4: memref<8x48xf32, #tpu.memory_space<vmem>>) attributes {dimension_semantics = [#tpu.dimension_semantics<parallel>], iteration_bounds = array<i64: 1>, scalar_prefetch = 0 : i64, scratch_operands = 0 : i64, tpu.core_type = #tpu.core_type<tc>, window_params = [{transform_indices = @transform_0, window_bounds = array<i64: 8, 48>}, {pipeline_mode = #tpu.pipeline_mode<synchronous>, transform_indices = @transform_1, window_bounds = array<i64: 1, 48>}, {pipeline_mode = #tpu.pipeline_mode<synchronous>, transform_indices = @transform_2, window_bounds = array<i64: 1, 48>}, {transform_indices = @transform_3, window_bounds = array<i64: 8, 48>}]} {
    %c0 = arith.constant 0 : index
    %c0_0 = arith.constant 0 : index
    %0 = vector.load %arg1[%c0, %c0_0] : memref<8x48xf32, #tpu.memory_space<vmem>>, vector<8x48xf32>
    %cst = arith.constant dense<0.000000e+00> : vector<8xf32>
    %1 = vector.multi_reduction <add>, %0, %cst [1] : vector<8x48xf32> to vector<8xf32>
    %2 = vector.shape_cast %1 : vector<8xf32> to vector<8x1xf32>
    %cst_1 = arith.constant 4.800000e+01 : f32
    %3 = vector.broadcast %cst_1 : f32 to vector<8x1xf32>
    %4 = arith.divf %2, %3 : vector<8x1xf32>
    %5 = vector.broadcast %4 : vector<8x1xf32> to vector<8x48xf32>
    %6 = arith.subf %0, %5 : vector<8x48xf32>
    %7 = vector.broadcast %4 : vector<8x1xf32> to vector<8x48xf32>
    %8 = arith.subf %0, %7 : vector<8x48xf32>
    %9 = arith.mulf %6, %8 : vector<8x48xf32>
    %cst_2 = arith.constant dense<0.000000e+00> : vector<8xf32>
    %10 = vector.multi_reduction <add>, %9, %cst_2 [1] : vector<8x48xf32> to vector<8xf32>
    %11 = vector.shape_cast %10 : vector<8xf32> to vector<8x1xf32>
    %cst_3 = arith.constant 4.800000e+01 : f32
    %12 = vector.broadcast %cst_3 : f32 to vector<8x1xf32>
    %13 = arith.divf %11, %12 : vector<8x1xf32>
    %14 = vector.broadcast %4 : vector<8x1xf32> to vector<8x48xf32>
    %15 = arith.subf %0, %14 : vector<8x48xf32>
    %cst_4 = arith.constant 9.99999974E-6 : f32
    %16 = vector.broadcast %cst_4 : f32 to vector<8x1xf32>
    %17 = arith.addf %13, %16 : vector<8x1xf32>
    %18 = math.rsqrt %17 : vector<8x1xf32>
    %19 = vector.broadcast %18 : vector<8x1xf32> to vector<8x48xf32>
    %20 = arith.mulf %15, %19 : vector<8x48xf32>
    %c0_5 = arith.constant 0 : index
    %c0_6 = arith.constant 0 : index
    %21 = vector.load %arg2[%c0_5, %c0_6] : memref<1x48xf32, #tpu.memory_space<vmem>>, vector<1x48xf32>
    %22 = vector.broadcast %21 : vector<1x48xf32> to vector<8x48xf32>
    %23 = arith.mulf %20, %22 : vector<8x48xf32>
    %c0_7 = arith.constant 0 : index
    %c0_8 = arith.constant 0 : index
    %24 = vector.load %arg3[%c0_7, %c0_8] : memref<1x48xf32, #tpu.memory_space<vmem>>, vector<1x48xf32>
    %25 = vector.broadcast %24 : vector<1x48xf32> to vector<8x48xf32>
    %26 = arith.addf %23, %25 : vector<8x48xf32>
    %c0_9 = arith.constant 0 : index
    %c0_10 = arith.constant 0 : index
    %27 = vector.load %arg4[%c0_9, %c0_10] : memref<8x48xf32, #tpu.memory_space<vmem>>, vector<8x48xf32>
    tpu.vector_store %arg4[%c0_9, %c0_10], %26 {strides = array<i32>} : memref<8x48xf32, #tpu.memory_space<vmem>>, vector<8x48xf32>,
    return
  }
  func.func @transform_0(%arg0: i32) -> (i32, i32) {
    %c0_i32 = arith.constant 0 : i32
    %c0_i32_0 = arith.constant 0 : i32
    return %arg0, %c0_i32 : i32, i32
  }
  func.func @transform_1(%arg0: i32) -> (i32, i32) {
    %c0_i32 = arith.constant 0 : i32
    %c0_i32_0 = arith.constant 0 : i32
    %c0_i32_1 = arith.constant 0 : i32
    return %c0_i32, %c0_i32_0 : i32, i32
  }
  func.func @transform_2(%arg0: i32) -> (i32, i32) {
    %c0_i32 = arith.constant 0 : i32
    %c0_i32_0 = arith.constant 0 : i32
    %c0_i32_1 = arith.constant 0 : i32
    return %c0_i32, %c0_i32_0 : i32, i32
  }
  func.func @transform_3(%arg0: i32) -> (i32, i32) {
    %c0_i32 = arith.constant 0 : i32
    %c0_i32_0 = arith.constant 0 : i32
    return %arg0, %c0_i32 : i32, i32
  }
}

module attributes {stable_mosaic.version = 11 : i64} {
  func.func @_layernorm_kernel(%arg0: i32, %arg1: memref<16x48xf32, #tpu.memory_space<vmem>>, %arg2: memref<1x48xf32, #tpu.memory_space<vmem>>, %arg3: memref<1x48xf32, #tpu.memory_space<vmem>>, %arg4: memref<16x48xbf16, #tpu.memory_space<vmem>>) attributes {dimension_semantics = [#tpu.dimension_semantics<parallel>], iteration_bounds = array<i64: 1>, scalar_prefetch = 0 : i64, scratch_operands = 0 : i64, tpu.core_type = #tpu.core_type<tc>, window_params = [{transform_indices = @transform_0, window_bounds = array<i64: 16, 48>}, {pipeline_mode = #tpu.pipeline_mode<synchronous>, transform_indices = @transform_1, window_bounds = array<i64: 1, 48>}, {pipeline_mode = #tpu.pipeline_mode<synchronous>, transform_indices = @transform_2, window_bounds = array<i64: 1, 48>}, {transform_indices = @transform_3, window_bounds = array<i64: 16, 48>}]} {
    %c0 = arith.constant 0 : index
    %c0_0 = arith.constant 0 : index
    %0 = vector.load %arg1[%c0, %c0_0] : memref<16x48xf32, #tpu.memory_space<vmem>>, vector<16x48xf32>
    %cst = arith.constant dense<0.000000e+00> : vector<16xf32>
    %1 = vector.multi_reduction <add>, %0, %cst [1] : vector<16x48xf32> to vector<16xf32>
    %2 = vector.shape_cast %1 : vector<16xf32> to vector<16x1xf32>
    %cst_1 = arith.constant 4.800000e+01 : f32
    %3 = vector.broadcast %cst_1 : f32 to vector<16x1xf32>
    %4 = arith.divf %2, %3 : vector<16x1xf32>
    %5 = vector.broadcast %4 : vector<16x1xf32> to vector<16x48xf32>
    %6 = arith.subf %0, %5 : vector<16x48xf32>
    %7 = vector.broadcast %4 : vector<16x1xf32> to vector<16x48xf32>
    %8 = arith.subf %0, %7 : vector<16x48xf32>
    %9 = arith.mulf %6, %8 : vector<16x48xf32>
    %cst_2 = arith.constant dense<0.000000e+00> : vector<16xf32>
    %10 = vector.multi_reduction <add>, %9, %cst_2 [1] : vector<16x48xf32> to vector<16xf32>
    %11 = vector.shape_cast %10 : vector<16xf32> to vector<16x1xf32>
    %cst_3 = arith.constant 4.800000e+01 : f32
    %12 = vector.broadcast %cst_3 : f32 to vector<16x1xf32>
    %13 = arith.divf %11, %12 : vector<16x1xf32>
    %14 = vector.broadcast %4 : vector<16x1xf32> to vector<16x48xf32>
    %15 = arith.subf %0, %14 : vector<16x48xf32>
    %cst_4 = arith.constant 9.99999974E-6 : f32
    %16 = vector.broadcast %cst_4 : f32 to vector<16x1xf32>
    %17 = arith.addf %13, %16 : vector<16x1xf32>
    %18 = math.rsqrt %17 : vector<16x1xf32>
    %19 = vector.broadcast %18 : vector<16x1xf32> to vector<16x48xf32>
    %20 = arith.mulf %15, %19 : vector<16x48xf32>
    %c0_5 = arith.constant 0 : index
    %c0_6 = arith.constant 0 : index
    %21 = vector.load %arg2[%c0_5, %c0_6] : memref<1x48xf32, #tpu.memory_space<vmem>>, vector<1x48xf32>
    %22 = vector.broadcast %21 : vector<1x48xf32> to vector<16x48xf32>
    %23 = arith.mulf %20, %22 : vector<16x48xf32>
    %c0_7 = arith.constant 0 : index
    %c0_8 = arith.constant 0 : index
    %24 = vector.load %arg3[%c0_7, %c0_8] : memref<1x48xf32, #tpu.memory_space<vmem>>, vector<1x48xf32>
    %25 = vector.broadcast %24 : vector<1x48xf32> to vector<16x48xf32>
    %26 = arith.addf %23, %25 : vector<16x48xf32>
    %27 = arith.truncf %26 : vector<16x48xf32> to vector<16x48xbf16>
    %c0_9 = arith.constant 0 : index
    %c0_10 = arith.constant 0 : index
    %28 = vector.load %arg4[%c0_9, %c0_10] : memref<16x48xbf16, #tpu.memory_space<vmem>>, vector<16x48xbf16>
    tpu.vector_store %arg4[%c0_9, %c0_10], %27 {strides = array<i32>} : memref<16x48xbf16, #tpu.memory_space<vmem>>, vector<16x48xbf16>,
    return
  }
  func.func @transform_0(%arg0: i32) -> (i32, i32) {
    %c0_i32 = arith.constant 0 : i32
    %c0_i32_0 = arith.constant 0 : i32
    return %arg0, %c0_i32 : i32, i32
  }
  func.func @transform_1(%arg0: i32) -> (i32, i32) {
    %c0_i32 = arith.constant 0 : i32
    %c0_i32_0 = arith.constant 0 : i32
    %c0_i32_1 = arith.constant 0 : i32
    return %c0_i32, %c0_i32_0 : i32, i32
  }
  func.func @transform_2(%arg0: i32) -> (i32, i32) {
    %c0_i32 = arith.constant 0 : i32
    %c0_i32_0 = arith.constant 0 : i32
    %c0_i32_1 = arith.constant 0 : i32
    return %c0_i32, %c0_i32_0 : i32, i32
  }
  func.func @transform_3(%arg0: i32) -> (i32, i32) {
    %c0_i32 = arith.constant 0 : i32
    %c0_i32_0 = arith.constant 0 : i32
    return %arg0, %c0_i32 : i32, i32
  }
}

module attributes {stable_mosaic.version = 11 : i64} {
  func.func @_gemm_kernel(%arg0: i32, %arg1: memref<8x432xbf16, #tpu.memory_space<vmem>>, %arg2: memref<432x144xbf16, #tpu.memory_space<vmem>>, %arg3: memref<1x144xf32, #tpu.memory_space<vmem>>, %arg4: memref<8x144xbf16, #tpu.memory_space<vmem>>) attributes {dimension_semantics = [#tpu.dimension_semantics<parallel>], iteration_bounds = array<i64: 1>, scalar_prefetch = 0 : i64, scratch_operands = 0 : i64, tpu.core_type = #tpu.core_type<tc>, window_params = [{transform_indices = @transform_0, window_bounds = array<i64: 8, 432>}, {pipeline_mode = #tpu.pipeline_mode<synchronous>, transform_indices = @transform_1, window_bounds = array<i64: 432, 144>}, {pipeline_mode = #tpu.pipeline_mode<synchronous>, transform_indices = @transform_2, window_bounds = array<i64: 1, 144>}, {transform_indices = @transform_3, window_bounds = array<i64: 8, 144>}]} {
    %c0 = arith.constant 0 : index
    %c0_0 = arith.constant 0 : index
    %0 = vector.load %arg1[%c0, %c0_0] : memref<8x432xbf16, #tpu.memory_space<vmem>>, vector<8x432xbf16>
    %c0_1 = arith.constant 0 : index
    %c0_2 = arith.constant 0 : index
    %1 = vector.load %arg2[%c0_1, %c0_2] : memref<432x144xbf16, #tpu.memory_space<vmem>>, vector<432x144xbf16>
    %cst = arith.constant dense<0.000000e+00> : vector<8x144xf32>
    %2 = tpu.matmul %0, %1, %cst {dimension_numbers = #tpu.dot_dimension_numbers<[1], [0], [0], [1], [0, 0, 1, 1], [], []>} : vector<8x432xbf16>, vector<432x144xbf16>, vector<8x144xf32> -> vector<8x144xf32>
    %c0_3 = arith.constant 0 : index
    %c0_4 = arith.constant 0 : index
    %3 = vector.load %arg3[%c0_3, %c0_4] : memref<1x144xf32, #tpu.memory_space<vmem>>, vector<1x144xf32>
    %4 = vector.broadcast %3 : vector<1x144xf32> to vector<8x144xf32>
    %5 = arith.addf %2, %4 : vector<8x144xf32>
    %6 = arith.truncf %5 : vector<8x144xf32> to vector<8x144xbf16>
    %c0_5 = arith.constant 0 : index
    %c0_6 = arith.constant 0 : index
    %7 = vector.load %arg4[%c0_5, %c0_6] : memref<8x144xbf16, #tpu.memory_space<vmem>>, vector<8x144xbf16>
    tpu.vector_store %arg4[%c0_5, %c0_6], %6 {strides = array<i32>} : memref<8x144xbf16, #tpu.memory_space<vmem>>, vector<8x144xbf16>,
    return
  }
  func.func @transform_0(%arg0: i32) -> (i32, i32) {
    %c0_i32 = arith.constant 0 : i32
    %c0_i32_0 = arith.constant 0 : i32
    return %arg0, %c0_i32 : i32, i32
  }
  func.func @transform_1(%arg0: i32) -> (i32, i32) {
    %c0_i32 = arith.constant 0 : i32
    %c0_i32_0 = arith.constant 0 : i32
    %c0_i32_1 = arith.constant 0 : i32
    return %c0_i32, %c0_i32_0 : i32, i32
  }
  func.func @transform_2(%arg0: i32) -> (i32, i32) {
    %c0_i32 = arith.constant 0 : i32
    %c0_i32_0 = arith.constant 0 : i32
    %c0_i32_1 = arith.constant 0 : i32
    return %c0_i32, %c0_i32_0 : i32, i32
  }
  func.func @transform_3(%arg0: i32) -> (i32, i32) {
    %c0_i32 = arith.constant 0 : i32
    %c0_i32_0 = arith.constant 0 : i32
    return %arg0, %c0_i32 : i32, i32
  }
}

module attributes {stable_mosaic.version = 11 : i64} {
  func.func @_attention_kernel(%arg0: i32, %arg1: i32, %arg2: memref<1x8x48xbf16, #tpu.memory_space<vmem>>, %arg3: memref<1x5x48xbf16, #tpu.memory_space<vmem>>, %arg4: memref<1x5x48xbf16, #tpu.memory_space<vmem>>, %arg5: memref<1x8x48xbf16, #tpu.memory_space<vmem>>) attributes {dimension_semantics = [#tpu.dimension_semantics<parallel>, #tpu.dimension_semantics<parallel>], iteration_bounds = array<i64: 2, 1>, scalar_prefetch = 0 : i64, scratch_operands = 0 : i64, tpu.core_type = #tpu.core_type<tc>, window_params = [{transform_indices = @transform_0, window_bounds = array<i64: 1, 8, 48>}, {transform_indices = @transform_1, window_bounds = array<i64: 1, 5, 48>}, {transform_indices = @transform_2, window_bounds = array<i64: 1, 5, 48>}, {transform_indices = @transform_3, window_bounds = array<i64: 1, 8, 48>}]} {
    %c0 = arith.constant 0 : index
    %c0_0 = arith.constant 0 : index
    %c0_1 = arith.constant 0 : index
    %0 = vector.load %arg2[%c0, %c0_0, %c0_1] : memref<1x8x48xbf16, #tpu.memory_space<vmem>>, vector<1x8x48xbf16>
    %1 = vector.shape_cast %0 : vector<1x8x48xbf16> to vector<8x48xbf16>
    %c0_2 = arith.constant 0 : index
    %c0_3 = arith.constant 0 : index
    %c0_4 = arith.constant 0 : index
    %2 = vector.load %arg3[%c0_2, %c0_3, %c0_4] : memref<1x5x48xbf16, #tpu.memory_space<vmem>>, vector<1x5x48xbf16>
    %3 = vector.shape_cast %2 : vector<1x5x48xbf16> to vector<5x48xbf16>
    %c0_5 = arith.constant 0 : index
    %c0_6 = arith.constant 0 : index
    %c0_7 = arith.constant 0 : index
    %4 = vector.load %arg4[%c0_5, %c0_6, %c0_7] : memref<1x5x48xbf16, #tpu.memory_space<vmem>>, vector<1x5x48xbf16>
    %5 = vector.shape_cast %4 : vector<1x5x48xbf16> to vector<5x48xbf16>
    %6 = vector.extract_strided_slice %1 {offsets = [0, 0], sizes = [8, 8], strides = [1, 1]} : vector<8x48xbf16> to vector<8x8xbf16>
    %7 = vector.extract_strided_slice %3 {offsets = [0, 0], sizes = [5, 8], strides = [1, 1]} : vector<5x48xbf16> to vector<5x8xbf16>
    %8 = vector.extract_strided_slice %5 {offsets = [0, 0], sizes = [5, 8], strides = [1, 1]} : vector<5x48xbf16> to vector<5x8xbf16>
    %cst = arith.constant dense<0.000000e+00> : vector<8x5xf32>
    %9 = tpu.matmul %6, %7, %cst {dimension_numbers = #tpu.dot_dimension_numbers<[1], [1], [0], [0], [0, 0, 1, 0], [], []>} : vector<8x8xbf16>, vector<5x8xbf16>, vector<8x5xf32> -> vector<8x5xf32>
    %cst_8 = arith.constant 0.353553385 : f32
    %10 = vector.broadcast %cst_8 : f32 to vector<8x5xf32>
    %11 = arith.mulf %9, %10 : vector<8x5xf32>
    %cst_9 = arith.constant dense<0xFF800000> : vector<8xf32>
    %12 = vector.multi_reduction <maximumf>, %11, %cst_9 [1] : vector<8x5xf32> to vector<8xf32>
    %13 = vector.shape_cast %12 : vector<8xf32> to vector<8x1xf32>
    %14 = vector.broadcast %13 : vector<8x1xf32> to vector<8x5xf32>
    %15 = arith.subf %11, %14 : vector<8x5xf32>
    %16 = math.exp %15 : vector<8x5xf32>
    %cst_10 = arith.constant dense<0.000000e+00> : vector<8xf32>
    %17 = vector.multi_reduction <add>, %16, %cst_10 [1] : vector<8x5xf32> to vector<8xf32>
    %18 = vector.shape_cast %17 : vector<8xf32> to vector<8x1xf32>
    %19 = vector.broadcast %18 : vector<8x1xf32> to vector<8x5xf32>
    %20 = arith.divf %16, %19 : vector<8x5xf32>
    %21 = arith.truncf %20 : vector<8x5xf32> to vector<8x5xbf16>
    %cst_11 = arith.constant dense<0.000000e+00> : vector<8x8xf32>
    %22 = tpu.matmul %21, %8, %cst_11 {dimension_numbers = #tpu.dot_dimension_numbers<[1], [0], [0], [1], [0, 0, 1, 1], [], []>} : vector<8x5xbf16>, vector<5x8xbf16>, vector<8x8xf32> -> vector<8x8xf32>
    %23 = vector.extract_strided_slice %1 {offsets = [0, 8], sizes = [8, 8], strides = [1, 1]} : vector<8x48xbf16> to vector<8x8xbf16>
    %24 = vector.extract_strided_slice %3 {offsets = [0, 8], sizes = [5, 8], strides = [1, 1]} : vector<5x48xbf16> to vector<5x8xbf16>
    %25 = vector.extract_strided_slice %5 {offsets = [0, 8], sizes = [5, 8], strides = [1, 1]} : vector<5x48xbf16> to vector<5x8xbf16>
    %cst_12 = arith.constant dense<0.000000e+00> : vector<8x5xf32>
    %26 = tpu.matmul %23, %24, %cst_12 {dimension_numbers = #tpu.dot_dimension_numbers<[1], [1], [0], [0], [0, 0, 1, 0], [], []>} : vector<8x8xbf16>, vector<5x8xbf16>, vector<8x5xf32> -> vector<8x5xf32>
    %cst_13 = arith.constant 0.353553385 : f32
    %27 = vector.broadcast %cst_13 : f32 to vector<8x5xf32>
    %28 = arith.mulf %26, %27 : vector<8x5xf32>
    %cst_14 = arith.constant dense<0xFF800000> : vector<8xf32>
    %29 = vector.multi_reduction <maximumf>, %28, %cst_14 [1] : vector<8x5xf32> to vector<8xf32>
    %30 = vector.shape_cast %29 : vector<8xf32> to vector<8x1xf32>
    %31 = vector.broadcast %30 : vector<8x1xf32> to vector<8x5xf32>
    %32 = arith.subf %28, %31 : vector<8x5xf32>
    %33 = math.exp %32 : vector<8x5xf32>
    %cst_15 = arith.constant dense<0.000000e+00> : vector<8xf32>
    %34 = vector.multi_reduction <add>, %33, %cst_15 [1] : vector<8x5xf32> to vector<8xf32>
    %35 = vector.shape_cast %34 : vector<8xf32> to vector<8x1xf32>
    %36 = vector.broadcast %35 : vector<8x1xf32> to vector<8x5xf32>
    %37 = arith.divf %33, %36 : vector<8x5xf32>
    %38 = arith.truncf %37 : vector<8x5xf32> to vector<8x5xbf16>
    %cst_16 = arith.constant dense<0.000000e+00> : vector<8x8xf32>
    %39 = tpu.matmul %38, %25, %cst_16 {dimension_numbers = #tpu.dot_dimension_numbers<[1], [0], [0], [1], [0, 0, 1, 1], [], []>} : vector<8x5xbf16>, vector<5x8xbf16>, vector<8x8xf32> -> vector<8x8xf32>
    %40 = vector.extract_strided_slice %1 {offsets = [0, 16], sizes = [8, 8], strides = [1, 1]} : vector<8x48xbf16> to vector<8x8xbf16>
    %41 = vector.extract_strided_slice %3 {offsets = [0, 16], sizes = [5, 8], strides = [1, 1]} : vector<5x48xbf16> to vector<5x8xbf16>
    %42 = vector.extract_strided_slice %5 {offsets = [0, 16], sizes = [5, 8], strides = [1, 1]} : vector<5x48xbf16> to vector<5x8xbf16>
    %cst_17 = arith.constant dense<0.000000e+00> : vector<8x5xf32>
    %43 = tpu.matmul %40, %41, %cst_17 {dimension_numbers = #tpu.dot_dimension_numbers<[1], [1], [0], [0], [0, 0, 1, 0], [], []>} : vector<8x8xbf16>, vector<5x8xbf16>, vector<8x5xf32> -> vector<8x5xf32>
    %cst_18 = arith.constant 0.353553385 : f32
    %44 = vector.broadcast %cst_18 : f32 to vector<8x5xf32>
    %45 = arith.mulf %43, %44 : vector<8x5xf32>
    %cst_19 = arith.constant dense<0xFF800000> : vector<8xf32>
    %46 = vector.multi_reduction <maximumf>, %45, %cst_19 [1] : vector<8x5xf32> to vector<8xf32>
    %47 = vector.shape_cast %46 : vector<8xf32> to vector<8x1xf32>
    %48 = vector.broadcast %47 : vector<8x1xf32> to vector<8x5xf32>
    %49 = arith.subf %45, %48 : vector<8x5xf32>
    %50 = math.exp %49 : vector<8x5xf32>
    %cst_20 = arith.constant dense<0.000000e+00> : vector<8xf32>
    %51 = vector.multi_reduction <add>, %50, %cst_20 [1] : vector<8x5xf32> to vector<8xf32>
    %52 = vector.shape_cast %51 : vector<8xf32> to vector<8x1xf32>
    %53 = vector.broadcast %52 : vector<8x1xf32> to vector<8x5xf32>
    %54 = arith.divf %50, %53 : vector<8x5xf32>
    %55 = arith.truncf %54 : vector<8x5xf32> to vector<8x5xbf16>
    %cst_21 = arith.constant dense<0.000000e+00> : vector<8x8xf32>
    %56 = tpu.matmul %55, %42, %cst_21 {dimension_numbers = #tpu.dot_dimension_numbers<[1], [0], [0], [1], [0, 0, 1, 1], [], []>} : vector<8x5xbf16>, vector<5x8xbf16>, vector<8x8xf32> -> vector<8x8xf32>
    %57 = vector.extract_strided_slice %1 {offsets = [0, 24], sizes = [8, 8], strides = [1, 1]} : vector<8x48xbf16> to vector<8x8xbf16>
    %58 = vector.extract_strided_slice %3 {offsets = [0, 24], sizes = [5, 8], strides = [1, 1]} : vector<5x48xbf16> to vector<5x8xbf16>
    %59 = vector.extract_strided_slice %5 {offsets = [0, 24], sizes = [5, 8], strides = [1, 1]} : vector<5x48xbf16> to vector<5x8xbf16>
    %cst_22 = arith.constant dense<0.000000e+00> : vector<8x5xf32>
    %60 = tpu.matmul %57, %58, %cst_22 {dimension_numbers = #tpu.dot_dimension_numbers<[1], [1], [0], [0], [0, 0, 1, 0], [], []>} : vector<8x8xbf16>, vector<5x8xbf16>, vector<8x5xf32> -> vector<8x5xf32>
    %cst_23 = arith.constant 0.353553385 : f32
    %61 = vector.broadcast %cst_23 : f32 to vector<8x5xf32>
    %62 = arith.mulf %60, %61 : vector<8x5xf32>
    %cst_24 = arith.constant dense<0xFF800000> : vector<8xf32>
    %63 = vector.multi_reduction <maximumf>, %62, %cst_24 [1] : vector<8x5xf32> to vector<8xf32>
    %64 = vector.shape_cast %63 : vector<8xf32> to vector<8x1xf32>
    %65 = vector.broadcast %64 : vector<8x1xf32> to vector<8x5xf32>
    %66 = arith.subf %62, %65 : vector<8x5xf32>
    %67 = math.exp %66 : vector<8x5xf32>
    %cst_25 = arith.constant dense<0.000000e+00> : vector<8xf32>
    %68 = vector.multi_reduction <add>, %67, %cst_25 [1] : vector<8x5xf32> to vector<8xf32>
    %69 = vector.shape_cast %68 : vector<8xf32> to vector<8x1xf32>
    %70 = vector.broadcast %69 : vector<8x1xf32> to vector<8x5xf32>
    %71 = arith.divf %67, %70 : vector<8x5xf32>
    %72 = arith.truncf %71 : vector<8x5xf32> to vector<8x5xbf16>
    %cst_26 = arith.constant dense<0.000000e+00> : vector<8x8xf32>
    %73 = tpu.matmul %72, %59, %cst_26 {dimension_numbers = #tpu.dot_dimension_numbers<[1], [0], [0], [1], [0, 0, 1, 1], [], []>} : vector<8x5xbf16>, vector<5x8xbf16>, vector<8x8xf32> -> vector<8x8xf32>
    %74 = vector.extract_strided_slice %1 {offsets = [0, 32], sizes = [8, 8], strides = [1, 1]} : vector<8x48xbf16> to vector<8x8xbf16>
    %75 = vector.extract_strided_slice %3 {offsets = [0, 32], sizes = [5, 8], strides = [1, 1]} : vector<5x48xbf16> to vector<5x8xbf16>
    %76 = vector.extract_strided_slice %5 {offsets = [0, 32], sizes = [5, 8], strides = [1, 1]} : vector<5x48xbf16> to vector<5x8xbf16>
    %cst_27 = arith.constant dense<0.000000e+00> : vector<8x5xf32>
    %77 = tpu.matmul %74, %75, %cst_27 {dimension_numbers = #tpu.dot_dimension_numbers<[1], [1], [0], [0], [0, 0, 1, 0], [], []>} : vector<8x8xbf16>, vector<5x8xbf16>, vector<8x5xf32> -> vector<8x5xf32>
    %cst_28 = arith.constant 0.353553385 : f32
    %78 = vector.broadcast %cst_28 : f32 to vector<8x5xf32>
    %79 = arith.mulf %77, %78 : vector<8x5xf32>
    %cst_29 = arith.constant dense<0xFF800000> : vector<8xf32>
    %80 = vector.multi_reduction <maximumf>, %79, %cst_29 [1] : vector<8x5xf32> to vector<8xf32>
    %81 = vector.shape_cast %80 : vector<8xf32> to vector<8x1xf32>
    %82 = vector.broadcast %81 : vector<8x1xf32> to vector<8x5xf32>
    %83 = arith.subf %79, %82 : vector<8x5xf32>
    %84 = math.exp %83 : vector<8x5xf32>
    %cst_30 = arith.constant dense<0.000000e+00> : vector<8xf32>
    %85 = vector.multi_reduction <add>, %84, %cst_30 [1] : vector<8x5xf32> to vector<8xf32>
    %86 = vector.shape_cast %85 : vector<8xf32> to vector<8x1xf32>
    %87 = vector.broadcast %86 : vector<8x1xf32> to vector<8x5xf32>
    %88 = arith.divf %84, %87 : vector<8x5xf32>
    %89 = arith.truncf %88 : vector<8x5xf32> to vector<8x5xbf16>
    %cst_31 = arith.constant dense<0.000000e+00> : vector<8x8xf32>
    %90 = tpu.matmul %89, %76, %cst_31 {dimension_numbers = #tpu.dot_dimension_numbers<[1], [0], [0], [1], [0, 0, 1, 1], [], []>} : vector<8x5xbf16>, vector<5x8xbf16>, vector<8x8xf32> -> vector<8x8xf32>
    %91 = vector.extract_strided_slice %1 {offsets = [0, 40], sizes = [8, 8], strides = [1, 1]} : vector<8x48xbf16> to vector<8x8xbf16>
    %92 = vector.extract_strided_slice %3 {offsets = [0, 40], sizes = [5, 8], strides = [1, 1]} : vector<5x48xbf16> to vector<5x8xbf16>
    %93 = vector.extract_strided_slice %5 {offsets = [0, 40], sizes = [5, 8], strides = [1, 1]} : vector<5x48xbf16> to vector<5x8xbf16>
    %cst_32 = arith.constant dense<0.000000e+00> : vector<8x5xf32>
    %94 = tpu.matmul %91, %92, %cst_32 {dimension_numbers = #tpu.dot_dimension_numbers<[1], [1], [0], [0], [0, 0, 1, 0], [], []>} : vector<8x8xbf16>, vector<5x8xbf16>, vector<8x5xf32> -> vector<8x5xf32>
    %cst_33 = arith.constant 0.353553385 : f32
    %95 = vector.broadcast %cst_33 : f32 to vector<8x5xf32>
    %96 = arith.mulf %94, %95 : vector<8x5xf32>
    %cst_34 = arith.constant dense<0xFF800000> : vector<8xf32>
    %97 = vector.multi_reduction <maximumf>, %96, %cst_34 [1] : vector<8x5xf32> to vector<8xf32>
    %98 = vector.shape_cast %97 : vector<8xf32> to vector<8x1xf32>
    %99 = vector.broadcast %98 : vector<8x1xf32> to vector<8x5xf32>
    %100 = arith.subf %96, %99 : vector<8x5xf32>
    %101 = math.exp %100 : vector<8x5xf32>
    %cst_35 = arith.constant dense<0.000000e+00> : vector<8xf32>
    %102 = vector.multi_reduction <add>, %101, %cst_35 [1] : vector<8x5xf32> to vector<8xf32>
    %103 = vector.shape_cast %102 : vector<8xf32> to vector<8x1xf32>
    %104 = vector.broadcast %103 : vector<8x1xf32> to vector<8x5xf32>
    %105 = arith.divf %101, %104 : vector<8x5xf32>
    %106 = arith.truncf %105 : vector<8x5xf32> to vector<8x5xbf16>
    %cst_36 = arith.constant dense<0.000000e+00> : vector<8x8xf32>
    %107 = tpu.matmul %106, %93, %cst_36 {dimension_numbers = #tpu.dot_dimension_numbers<[1], [0], [0], [1], [0, 0, 1, 1], [], []>} : vector<8x5xbf16>, vector<5x8xbf16>, vector<8x8xf32> -> vector<8x8xf32>
    %108 = tpu.concatenate %22, %39, %56, %73, %90, %107 in 1 : vector<8x8xf32>, vector<8x8xf32>, vector<8x8xf32>, vector<8x8xf32>, vector<8x8xf32>, vector<8x8xf32> -> vector<8x48xf32>
    %109 = arith.truncf %108 : vector<8x48xf32> to vector<8x48xbf16>
    %c0_37 = arith.constant 0 : index
    %c0_38 = arith.constant 0 : index
    %c0_39 = arith.constant 0 : index
    %110 = vector.load %arg5[%c0_37, %c0_38, %c0_39] : memref<1x8x48xbf16, #tpu.memory_space<vmem>>, vector<1x8x48xbf16>
    %111 = vector.shape_cast %110 : vector<1x8x48xbf16> to vector<8x48xbf16>
    %112 = vector.shape_cast %109 : vector<8x48xbf16> to vector<1x8x48xbf16>
    tpu.vector_store %arg5[%c0_37, %c0_38, %c0_39], %112 {strides = array<i32>} : memref<1x8x48xbf16, #tpu.memory_space<vmem>>, vector<1x8x48xbf16>,
    return
  }
  func.func @transform_0(%arg0: i32, %arg1: i32) -> (i32, i32, i32) {
    %c0_i32 = arith.constant 0 : i32
    %c0_i32_0 = arith.constant 0 : i32
    return %arg0, %arg1, %c0_i32 : i32, i32, i32
  }
  func.func @transform_1(%arg0: i32, %arg1: i32) -> (i32, i32, i32) {
    %c0_i32 = arith.constant 0 : i32
    %c0_i32_0 = arith.constant 0 : i32
    %c0_i32_1 = arith.constant 0 : i32
    return %arg0, %c0_i32, %c0_i32_0 : i32, i32, i32
  }
  func.func @transform_2(%arg0: i32, %arg1: i32) -> (i32, i32, i32) {
    %c0_i32 = arith.constant 0 : i32
    %c0_i32_0 = arith.constant 0 : i32
    %c0_i32_1 = arith.constant 0 : i32
    return %arg0, %c0_i32, %c0_i32_0 : i32, i32, i32
  }
  func.func @transform_3(%arg0: i32, %arg1: i32) -> (i32, i32, i32) {
    %c0_i32 = arith.constant 0 : i32
    %c0_i32_0 = arith.constant 0 : i32
    return %arg0, %arg1, %c0_i32 : i32, i32, i32
  }
}

module attributes {stable_mosaic.version = 11 : i64} {
  func.func @_gemm_kernel(%arg0: i32, %arg1: memref<16x48xbf16, #tpu.memory_space<vmem>>, %arg2: memref<48x48xbf16, #tpu.memory_space<vmem>>, %arg3: memref<1x48xf32, #tpu.memory_space<vmem>>, %arg4: memref<16x48xf32, #tpu.memory_space<vmem>>, %arg5: memref<16x48xf32, #tpu.memory_space<vmem>>) attributes {dimension_semantics = [#tpu.dimension_semantics<parallel>], iteration_bounds = array<i64: 1>, scalar_prefetch = 0 : i64, scratch_operands = 0 : i64, tpu.core_type = #tpu.core_type<tc>, window_params = [{transform_indices = @transform_0, window_bounds = array<i64: 16, 48>}, {pipeline_mode = #tpu.pipeline_mode<synchronous>, transform_indices = @transform_1, window_bounds = array<i64: 48, 48>}, {pipeline_mode = #tpu.pipeline_mode<synchronous>, transform_indices = @transform_2, window_bounds = array<i64: 1, 48>}, {transform_indices = @transform_3, window_bounds = array<i64: 16, 48>}, {transform_indices = @transform_4, window_bounds = array<i64: 16, 48>}]} {
    %c0 = arith.constant 0 : index
    %c0_0 = arith.constant 0 : index
    %0 = vector.load %arg1[%c0, %c0_0] : memref<16x48xbf16, #tpu.memory_space<vmem>>, vector<16x48xbf16>
    %c0_1 = arith.constant 0 : index
    %c0_2 = arith.constant 0 : index
    %1 = vector.load %arg2[%c0_1, %c0_2] : memref<48x48xbf16, #tpu.memory_space<vmem>>, vector<48x48xbf16>
    %cst = arith.constant dense<0.000000e+00> : vector<16x48xf32>
    %2 = tpu.matmul %0, %1, %cst {dimension_numbers = #tpu.dot_dimension_numbers<[1], [0], [0], [1], [0, 0, 1, 1], [], []>} : vector<16x48xbf16>, vector<48x48xbf16>, vector<16x48xf32> -> vector<16x48xf32>
    %c0_3 = arith.constant 0 : index
    %c0_4 = arith.constant 0 : index
    %3 = vector.load %arg3[%c0_3, %c0_4] : memref<1x48xf32, #tpu.memory_space<vmem>>, vector<1x48xf32>
    %4 = vector.broadcast %3 : vector<1x48xf32> to vector<16x48xf32>
    %5 = arith.addf %2, %4 : vector<16x48xf32>
    %c0_5 = arith.constant 0 : index
    %c0_6 = arith.constant 0 : index
    %6 = vector.load %arg4[%c0_5, %c0_6] : memref<16x48xf32, #tpu.memory_space<vmem>>, vector<16x48xf32>
    %7 = arith.addf %5, %6 : vector<16x48xf32>
    %c0_7 = arith.constant 0 : index
    %c0_8 = arith.constant 0 : index
    %8 = vector.load %arg5[%c0_7, %c0_8] : memref<16x48xf32, #tpu.memory_space<vmem>>, vector<16x48xf32>
    tpu.vector_store %arg5[%c0_7, %c0_8], %7 {strides = array<i32>} : memref<16x48xf32, #tpu.memory_space<vmem>>, vector<16x48xf32>,
    return
  }
  func.func @transform_0(%arg0: i32) -> (i32, i32) {
    %c0_i32 = arith.constant 0 : i32
    %c0_i32_0 = arith.constant 0 : i32
    return %arg0, %c0_i32 : i32, i32
  }
  func.func @transform_1(%arg0: i32) -> (i32, i32) {
    %c0_i32 = arith.constant 0 : i32
    %c0_i32_0 = arith.constant 0 : i32
    %c0_i32_1 = arith.constant 0 : i32
    return %c0_i32, %c0_i32_0 : i32, i32
  }
  func.func @transform_2(%arg0: i32) -> (i32, i32) {
    %c0_i32 = arith.constant 0 : i32
    %c0_i32_0 = arith.constant 0 : i32
    %c0_i32_1 = arith.constant 0 : i32
    return %c0_i32, %c0_i32_0 : i32, i32
  }
  func.func @transform_3(%arg0: i32) -> (i32, i32) {
    %c0_i32 = arith.constant 0 : i32
    %c0_i32_0 = arith.constant 0 : i32
    return %arg0, %c0_i32 : i32, i32
  }
  func.func @transform_4(%arg0: i32) -> (i32, i32) {
    %c0_i32 = arith.constant 0 : i32
    %c0_i32_0 = arith.constant 0 : i32
    return %arg0, %c0_i32 : i32, i32
  }
}

module attributes {stable_mosaic.version = 11 : i64} {
  func.func @_gemm_kernel(%arg0: i32, %arg1: memref<16x48xf32, #tpu.memory_space<vmem>>, %arg2: memref<1x48xf32, #tpu.memory_space<vmem>>, %arg3: memref<1x48xf32, #tpu.memory_space<vmem>>, %arg4: memref<48x192xbf16, #tpu.memory_space<vmem>>, %arg5: memref<1x192xf32, #tpu.memory_space<vmem>>, %arg6: memref<16x192xbf16, #tpu.memory_space<vmem>>) attributes {dimension_semantics = [#tpu.dimension_semantics<parallel>], iteration_bounds = array<i64: 1>, scalar_prefetch = 0 : i64, scratch_operands = 0 : i64, tpu.core_type = #tpu.core_type<tc>, window_params = [{transform_indices = @transform_0, window_bounds = array<i64: 16, 48>}, {pipeline_mode = #tpu.pipeline_mode<synchronous>, transform_indices = @transform_1, window_bounds = array<i64: 1, 48>}, {pipeline_mode = #tpu.pipeline_mode<synchronous>, transform_indices = @transform_2, window_bounds = array<i64: 1, 48>}, {pipeline_mode = #tpu.pipeline_mode<synchronous>, transform_indices = @transform_3, window_bounds = array<i64: 48, 192>}, {pipeline_mode = #tpu.pipeline_mode<synchronous>, transform_indices = @transform_4, window_bounds = array<i64: 1, 192>}, {transform_indices = @transform_5, window_bounds = array<i64: 16, 192>}]} {
    %c0 = arith.constant 0 : index
    %c0_0 = arith.constant 0 : index
    %0 = vector.load %arg1[%c0, %c0_0] : memref<16x48xf32, #tpu.memory_space<vmem>>, vector<16x48xf32>
    %cst = arith.constant dense<0.000000e+00> : vector<16xf32>
    %1 = vector.multi_reduction <add>, %0, %cst [1] : vector<16x48xf32> to vector<16xf32>
    %2 = vector.shape_cast %1 : vector<16xf32> to vector<16x1xf32>
    %cst_1 = arith.constant 4.800000e+01 : f32
    %3 = vector.broadcast %cst_1 : f32 to vector<16x1xf32>
    %4 = arith.divf %2, %3 : vector<16x1xf32>
    %5 = vector.broadcast %4 : vector<16x1xf32> to vector<16x48xf32>
    %6 = arith.subf %0, %5 : vector<16x48xf32>
    %7 = vector.broadcast %4 : vector<16x1xf32> to vector<16x48xf32>
    %8 = arith.subf %0, %7 : vector<16x48xf32>
    %9 = arith.mulf %6, %8 : vector<16x48xf32>
    %cst_2 = arith.constant dense<0.000000e+00> : vector<16xf32>
    %10 = vector.multi_reduction <add>, %9, %cst_2 [1] : vector<16x48xf32> to vector<16xf32>
    %11 = vector.shape_cast %10 : vector<16xf32> to vector<16x1xf32>
    %cst_3 = arith.constant 4.800000e+01 : f32
    %12 = vector.broadcast %cst_3 : f32 to vector<16x1xf32>
    %13 = arith.divf %11, %12 : vector<16x1xf32>
    %14 = vector.broadcast %4 : vector<16x1xf32> to vector<16x48xf32>
    %15 = arith.subf %0, %14 : vector<16x48xf32>
    %cst_4 = arith.constant 9.99999974E-6 : f32
    %16 = vector.broadcast %cst_4 : f32 to vector<16x1xf32>
    %17 = arith.addf %13, %16 : vector<16x1xf32>
    %18 = math.rsqrt %17 : vector<16x1xf32>
    %19 = vector.broadcast %18 : vector<16x1xf32> to vector<16x48xf32>
    %20 = arith.mulf %15, %19 : vector<16x48xf32>
    %c0_5 = arith.constant 0 : index
    %c0_6 = arith.constant 0 : index
    %21 = vector.load %arg2[%c0_5, %c0_6] : memref<1x48xf32, #tpu.memory_space<vmem>>, vector<1x48xf32>
    %22 = vector.broadcast %21 : vector<1x48xf32> to vector<16x48xf32>
    %23 = arith.mulf %20, %22 : vector<16x48xf32>
    %c0_7 = arith.constant 0 : index
    %c0_8 = arith.constant 0 : index
    %24 = vector.load %arg3[%c0_7, %c0_8] : memref<1x48xf32, #tpu.memory_space<vmem>>, vector<1x48xf32>
    %25 = vector.broadcast %24 : vector<1x48xf32> to vector<16x48xf32>
    %26 = arith.addf %23, %25 : vector<16x48xf32>
    %27 = arith.truncf %26 : vector<16x48xf32> to vector<16x48xbf16>
    %c0_9 = arith.constant 0 : index
    %c0_10 = arith.constant 0 : index
    %28 = vector.load %arg4[%c0_9, %c0_10] : memref<48x192xbf16, #tpu.memory_space<vmem>>, vector<48x192xbf16>
    %cst_11 = arith.constant dense<0.000000e+00> : vector<16x192xf32>
    %29 = tpu.matmul %27, %28, %cst_11 {dimension_numbers = #tpu.dot_dimension_numbers<[1], [0], [0], [1], [0, 0, 1, 1], [], []>} : vector<16x48xbf16>, vector<48x192xbf16>, vector<16x192xf32> -> vector<16x192xf32>
    %c0_12 = arith.constant 0 : index
    %c0_13 = arith.constant 0 : index
    %30 = vector.load %arg5[%c0_12, %c0_13] : memref<1x192xf32, #tpu.memory_space<vmem>>, vector<1x192xf32>
    %31 = vector.broadcast %30 : vector<1x192xf32> to vector<16x192xf32>
    %32 = arith.addf %29, %31 : vector<16x192xf32>
    %cst_14 = arith.constant 5.000000e-01 : f32
    %33 = vector.broadcast %cst_14 : f32 to vector<16x192xf32>
    %34 = arith.mulf %33, %32 : vector<16x192xf32>
    %cst_15 = arith.constant 0.707106769 : f32
    %35 = vector.broadcast %cst_15 : f32 to vector<16x192xf32>
    %36 = arith.mulf %32, %35 : vector<16x192xf32>
    %37 = math.erf %36 : vector<16x192xf32>
    %cst_16 = arith.constant 1.000000e+00 : f32
    %38 = vector.broadcast %cst_16 : f32 to vector<16x192xf32>
    %39 = arith.addf %38, %37 : vector<16x192xf32>
    %40 = arith.mulf %34, %39 : vector<16x192xf32>
    %41 = arith.truncf %40 : vector<16x192xf32> to vector<16x192xbf16>
    %c0_17 = arith.constant 0 : index
    %c0_18 = arith.constant 0 : index
    %42 = vector.load %arg6[%c0_17, %c0_18] : memref<16x192xbf16, #tpu.memory_space<vmem>>, vector<16x192xbf16>
    tpu.vector_store %arg6[%c0_17, %c0_18], %41 {strides = array<i32>} : memref<16x192xbf16, #tpu.memory_space<vmem>>, vector<16x192xbf16>,
    return
  }
  func.func @transform_0(%arg0: i32) -> (i32, i32) {
    %c0_i32 = arith.constant 0 : i32
    %c0_i32_0 = arith.constant 0 : i32
    return %arg0, %c0_i32 : i32, i32
  }
  func.func @transform_1(%arg0: i32) -> (i32, i32) {
    %c0_i32 = arith.constant 0 : i32
    %c0_i32_0 = arith.constant 0 : i32
    %c0_i32_1 = arith.constant 0 : i32
    return %c0_i32, %c0_i32_0 : i32, i32
  }
  func.func @transform_2(%arg0: i32) -> (i32, i32) {
    %c0_i32 = arith.constant 0 : i32
    %c0_i32_0 = arith.constant 0 : i32
    %c0_i32_1 = arith.constant 0 : i32
    return %c0_i32, %c0_i32_0 : i32, i32
  }
  func.func @transform_3(%arg0: i32) -> (i32, i32) {
    %c0_i32 = arith.constant 0 : i32
    %c0_i32_0 = arith.constant 0 : i32
    %c0_i32_1 = arith.constant 0 : i32
    return %c0_i32, %c0_i32_0 : i32, i32
  }
  func.func @transform_4(%arg0: i32) -> (i32, i32) {
    %c0_i32 = arith.constant 0 : i32
    %c0_i32_0 = arith.constant 0 : i32
    %c0_i32_1 = arith.constant 0 : i32
    return %c0_i32, %c0_i32_0 : i32, i32
  }
  func.func @transform_5(%arg0: i32) -> (i32, i32) {
    %c0_i32 = arith.constant 0 : i32
    %c0_i32_0 = arith.constant 0 : i32
    return %arg0, %c0_i32 : i32, i32
  }
}

module attributes {stable_mosaic.version = 11 : i64} {
  func.func @_gemm_kernel(%arg0: i32, %arg1: memref<16x192xbf16, #tpu.memory_space<vmem>>, %arg2: memref<192x48xbf16, #tpu.memory_space<vmem>>, %arg3: memref<1x48xf32, #tpu.memory_space<vmem>>, %arg4: memref<16x48xf32, #tpu.memory_space<vmem>>, %arg5: memref<16x48xf32, #tpu.memory_space<vmem>>) attributes {dimension_semantics = [#tpu.dimension_semantics<parallel>], iteration_bounds = array<i64: 1>, scalar_prefetch = 0 : i64, scratch_operands = 0 : i64, tpu.core_type = #tpu.core_type<tc>, window_params = [{transform_indices = @transform_0, window_bounds = array<i64: 16, 192>}, {pipeline_mode = #tpu.pipeline_mode<synchronous>, transform_indices = @transform_1, window_bounds = array<i64: 192, 48>}, {pipeline_mode = #tpu.pipeline_mode<synchronous>, transform_indices = @transform_2, window_bounds = array<i64: 1, 48>}, {transform_indices = @transform_3, window_bounds = array<i64: 16, 48>}, {transform_indices = @transform_4, window_bounds = array<i64: 16, 48>}]} {
    %c0 = arith.constant 0 : index
    %c0_0 = arith.constant 0 : index
    %0 = vector.load %arg1[%c0, %c0_0] : memref<16x192xbf16, #tpu.memory_space<vmem>>, vector<16x192xbf16>
    %c0_1 = arith.constant 0 : index
    %c0_2 = arith.constant 0 : index
    %1 = vector.load %arg2[%c0_1, %c0_2] : memref<192x48xbf16, #tpu.memory_space<vmem>>, vector<192x48xbf16>
    %cst = arith.constant dense<0.000000e+00> : vector<16x48xf32>
    %2 = tpu.matmul %0, %1, %cst {dimension_numbers = #tpu.dot_dimension_numbers<[1], [0], [0], [1], [0, 0, 1, 1], [], []>} : vector<16x192xbf16>, vector<192x48xbf16>, vector<16x48xf32> -> vector<16x48xf32>
    %c0_3 = arith.constant 0 : index
    %c0_4 = arith.constant 0 : index
    %3 = vector.load %arg3[%c0_3, %c0_4] : memref<1x48xf32, #tpu.memory_space<vmem>>, vector<1x48xf32>
    %4 = vector.broadcast %3 : vector<1x48xf32> to vector<16x48xf32>
    %5 = arith.addf %2, %4 : vector<16x48xf32>
    %c0_5 = arith.constant 0 : index
    %c0_6 = arith.constant 0 : index
    %6 = vector.load %arg4[%c0_5, %c0_6] : memref<16x48xf32, #tpu.memory_space<vmem>>, vector<16x48xf32>
    %7 = arith.addf %5, %6 : vector<16x48xf32>
    %c0_7 = arith.constant 0 : index
    %c0_8 = arith.constant 0 : index
    %8 = vector.load %arg5[%c0_7, %c0_8] : memref<16x48xf32, #tpu.memory_space<vmem>>, vector<16x48xf32>
    tpu.vector_store %arg5[%c0_7, %c0_8], %7 {strides = array<i32>} : memref<16x48xf32, #tpu.memory_space<vmem>>, vector<16x48xf32>,
    return
  }
  func.func @transform_0(%arg0: i32) -> (i32, i32) {
    %c0_i32 = arith.constant 0 : i32
    %c0_i32_0 = arith.constant 0 : i32
    return %arg0, %c0_i32 : i32, i32
  }
  func.func @transform_1(%arg0: i32) -> (i32, i32) {
    %c0_i32 = arith.constant 0 : i32
    %c0_i32_0 = arith.constant 0 : i32
    %c0_i32_1 = arith.constant 0 : i32
    return %c0_i32, %c0_i32_0 : i32, i32
  }
  func.func @transform_2(%arg0: i32) -> (i32, i32) {
    %c0_i32 = arith.constant 0 : i32
    %c0_i32_0 = arith.constant 0 : i32
    %c0_i32_1 = arith.constant 0 : i32
    return %c0_i32, %c0_i32_0 : i32, i32
  }
  func.func @transform_3(%arg0: i32) -> (i32, i32) {
    %c0_i32 = arith.constant 0 : i32
    %c0_i32_0 = arith.constant 0 : i32
    return %arg0, %c0_i32 : i32, i32
  }
  func.func @transform_4(%arg0: i32) -> (i32, i32) {
    %c0_i32 = arith.constant 0 : i32
    %c0_i32_0 = arith.constant 0 : i32
    return %arg0, %c0_i32 : i32, i32
  }
}

module attributes {stable_mosaic.version = 11 : i64} {
  func.func @_gemm_kernel(%arg0: i32, %arg1: memref<8x48xf32, #tpu.memory_space<vmem>>, %arg2: memref<1x48xf32, #tpu.memory_space<vmem>>, %arg3: memref<1x48xf32, #tpu.memory_space<vmem>>, %arg4: memref<48x10xbf16, #tpu.memory_space<vmem>>, %arg5: memref<1x10xf32, #tpu.memory_space<vmem>>, %arg6: memref<8x10xf32, #tpu.memory_space<vmem>>) attributes {dimension_semantics = [#tpu.dimension_semantics<parallel>], iteration_bounds = array<i64: 1>, scalar_prefetch = 0 : i64, scratch_operands = 0 : i64, tpu.core_type = #tpu.core_type<tc>, window_params = [{transform_indices = @transform_0, window_bounds = array<i64: 8, 48>}, {pipeline_mode = #tpu.pipeline_mode<synchronous>, transform_indices = @transform_1, window_bounds = array<i64: 1, 48>}, {pipeline_mode = #tpu.pipeline_mode<synchronous>, transform_indices = @transform_2, window_bounds = array<i64: 1, 48>}, {pipeline_mode = #tpu.pipeline_mode<synchronous>, transform_indices = @transform_3, window_bounds = array<i64: 48, 10>}, {pipeline_mode = #tpu.pipeline_mode<synchronous>, transform_indices = @transform_4, window_bounds = array<i64: 1, 10>}, {transform_indices = @transform_5, window_bounds = array<i64: 8, 10>}]} {
    %c0 = arith.constant 0 : index
    %c0_0 = arith.constant 0 : index
    %0 = vector.load %arg1[%c0, %c0_0] : memref<8x48xf32, #tpu.memory_space<vmem>>, vector<8x48xf32>
    %cst = arith.constant dense<0.000000e+00> : vector<8xf32>
    %1 = vector.multi_reduction <add>, %0, %cst [1] : vector<8x48xf32> to vector<8xf32>
    %2 = vector.shape_cast %1 : vector<8xf32> to vector<8x1xf32>
    %cst_1 = arith.constant 4.800000e+01 : f32
    %3 = vector.broadcast %cst_1 : f32 to vector<8x1xf32>
    %4 = arith.divf %2, %3 : vector<8x1xf32>
    %5 = vector.broadcast %4 : vector<8x1xf32> to vector<8x48xf32>
    %6 = arith.subf %0, %5 : vector<8x48xf32>
    %7 = vector.broadcast %4 : vector<8x1xf32> to vector<8x48xf32>
    %8 = arith.subf %0, %7 : vector<8x48xf32>
    %9 = arith.mulf %6, %8 : vector<8x48xf32>
    %cst_2 = arith.constant dense<0.000000e+00> : vector<8xf32>
    %10 = vector.multi_reduction <add>, %9, %cst_2 [1] : vector<8x48xf32> to vector<8xf32>
    %11 = vector.shape_cast %10 : vector<8xf32> to vector<8x1xf32>
    %cst_3 = arith.constant 4.800000e+01 : f32
    %12 = vector.broadcast %cst_3 : f32 to vector<8x1xf32>
    %13 = arith.divf %11, %12 : vector<8x1xf32>
    %14 = vector.broadcast %4 : vector<8x1xf32> to vector<8x48xf32>
    %15 = arith.subf %0, %14 : vector<8x48xf32>
    %cst_4 = arith.constant 9.99999974E-6 : f32
    %16 = vector.broadcast %cst_4 : f32 to vector<8x1xf32>
    %17 = arith.addf %13, %16 : vector<8x1xf32>
    %18 = math.rsqrt %17 : vector<8x1xf32>
    %19 = vector.broadcast %18 : vector<8x1xf32> to vector<8x48xf32>
    %20 = arith.mulf %15, %19 : vector<8x48xf32>
    %c0_5 = arith.constant 0 : index
    %c0_6 = arith.constant 0 : index
    %21 = vector.load %arg2[%c0_5, %c0_6] : memref<1x48xf32, #tpu.memory_space<vmem>>, vector<1x48xf32>
    %22 = vector.broadcast %21 : vector<1x48xf32> to vector<8x48xf32>
    %23 = arith.mulf %20, %22 : vector<8x48xf32>
    %c0_7 = arith.constant 0 : index
    %c0_8 = arith.constant 0 : index
    %24 = vector.load %arg3[%c0_7, %c0_8] : memref<1x48xf32, #tpu.memory_space<vmem>>, vector<1x48xf32>
    %25 = vector.broadcast %24 : vector<1x48xf32> to vector<8x48xf32>
    %26 = arith.addf %23, %25 : vector<8x48xf32>
    %27 = arith.truncf %26 : vector<8x48xf32> to vector<8x48xbf16>
    %c0_9 = arith.constant 0 : index
    %c0_10 = arith.constant 0 : index
    %28 = vector.load %arg4[%c0_9, %c0_10] : memref<48x10xbf16, #tpu.memory_space<vmem>>, vector<48x10xbf16>
    %cst_11 = arith.constant dense<0.000000e+00> : vector<8x10xf32>
    %29 = tpu.matmul %27, %28, %cst_11 {dimension_numbers = #tpu.dot_dimension_numbers<[1], [0], [0], [1], [0, 0, 1, 1], [], []>} : vector<8x48xbf16>, vector<48x10xbf16>, vector<8x10xf32> -> vector<8x10xf32>
    %c0_12 = arith.constant 0 : index
    %c0_13 = arith.constant 0 : index
    %30 = vector.load %arg5[%c0_12, %c0_13] : memref<1x10xf32, #tpu.memory_space<vmem>>, vector<1x10xf32>
    %31 = vector.broadcast %30 : vector<1x10xf32> to vector<8x10xf32>
    %32 = arith.addf %29, %31 : vector<8x10xf32>
    %c0_14 = arith.constant 0 : index
    %c0_15 = arith.constant 0 : index
    %33 = vector.load %arg6[%c0_14, %c0_15] : memref<8x10xf32, #tpu.memory_space<vmem>>, vector<8x10xf32>
    tpu.vector_store %arg6[%c0_14, %c0_15], %32 {strides = array<i32>} : memref<8x10xf32, #tpu.memory_space<vmem>>, vector<8x10xf32>,
    return
  }
  func.func @transform_0(%arg0: i32) -> (i32, i32) {
    %c0_i32 = arith.constant 0 : i32
    %c0_i32_0 = arith.constant 0 : i32
    return %arg0, %c0_i32 : i32, i32
  }
  func.func @transform_1(%arg0: i32) -> (i32, i32) {
    %c0_i32 = arith.constant 0 : i32
    %c0_i32_0 = arith.constant 0 : i32
    %c0_i32_1 = arith.constant 0 : i32
    return %c0_i32, %c0_i32_0 : i32, i32
  }
  func.func @transform_2(%arg0: i32) -> (i32, i32) {
    %c0_i32 = arith.constant 0 : i32
    %c0_i32_0 = arith.constant 0 : i32
    %c0_i32_1 = arith.constant 0 : i32
    return %c0_i32, %c0_i32_0 : i32, i32
  }
  func.func @transform_3(%arg0: i32) -> (i32, i32) {
    %c0_i32 = arith.constant 0 : i32
    %c0_i32_0 = arith.constant 0 : i32
    %c0_i32_1 = arith.constant 0 : i32
    return %c0_i32, %c0_i32_0 : i32, i32
  }
  func.func @transform_4(%arg0: i32) -> (i32, i32) {
    %c0_i32 = arith.constant 0 : i32
    %c0_i32_0 = arith.constant 0 : i32
    %c0_i32_1 = arith.constant 0 : i32
    return %c0_i32, %c0_i32_0 : i32, i32
  }
  func.func @transform_5(%arg0: i32) -> (i32, i32) {
    %c0_i32 = arith.constant 0 : i32
    %c0_i32_0 = arith.constant 0 : i32
    return %arg0, %c0_i32 : i32, i32
  }
}

</mosaic_0001>

<llo_original>
// kernel: forward.31
$region0: #{forward.31}
  #allocation0 [shape = 'u32[]', space=smem, size = 0x4, offset = 0x4, fixed_abs, tag = 'smem constant byte address 0x4 - core index']
  #allocation1 [shape = 'u32[144,128]{1,0:T(1,128)}', space=vmem, size = 0x12000, scoped, tag = 'internal scratch']
  %s0 = inlined_call_operand.vmem [shape: f32[128,8], index: 0, kind: input, shape index: {}]
  %s1 = inlined_call_operand.vmem [shape: f32[1,8], index: 1, kind: input, shape index: {}]
  %s2 = inlined_call_operand.vmem [shape: f32[1,8], index: 2, kind: input, shape index: {}]
  %s3 = inlined_call_operand.vmem [shape: bf16[128,8], index: 3, kind: output, shape index: {}]
  %s4 = sld [smem:[#allocation0]]
  $region22: #{forward.31} parent=0
    _
  %s6 = ssub.s32 1, %s4
  %s7 = scalar_select 0, %s6, %s4
  // Predicated region
  $region2: #{forward.31} parent=0 // pred_check
    _
  $region3: #{forward.31} parent=0 // pred_check_branch
    %9 = sbr.rel (0) target = $region5
  $region4: #{forward.31} parent=0 // pred_region
    _
  $region5: #{forward.31} parent=0 // pred_fallthru
    _
  // Predicated region
  $region6: #{forward.31} parent=0 // pred_check
    _
  $region7: #{forward.31} parent=0 // pred_check_branch
    %11 = sbr.rel (0) target = $region9
  $region8: #{forward.31} parent=0 // pred_region
    _
  $region9: #{forward.31} parent=0 // pred_fallthru
    _
  // Predicated region
  $region10: #{forward.31} parent=0 // pred_check
    _
  $region11: #{forward.31} parent=0 // pred_check_branch
    %13 = sbr.rel (0) target = $region13
  $region12: #{forward.31} parent=0 // pred_region
    _
  $region13: #{forward.31} parent=0 // pred_fallthru
    _
  %v14 = vld [vmem:[%s0] sm:$0xff]
  %v15 = vld [vmem:[%s0 + $0x8] sm:$0xff]
  %v16 = vld [vmem:[%s0 + $0x10] sm:$0xff]
  %v17 = vld [vmem:[%s0 + $0x18] sm:$0xff]
  %v18 = vld [vmem:[%s0 + $0x20] sm:$0xff]
  %v19 = vld [vmem:[%s0 + $0x28] sm:$0xff]
  %v20 = vld [vmem:[%s0 + $0x30] sm:$0xff]
  %v21 = vld [vmem:[%s0 + $0x38] sm:$0xff]
  %v22 = vld [vmem:[%s0 + $0x40] sm:$0xff]
  %v23 = vld [vmem:[%s0 + $0x48] sm:$0xff]
  %v24 = vld [vmem:[%s0 + $0x50] sm:$0xff]
  %v25 = vld [vmem:[%s0 + $0x58] sm:$0xff]
  %v26 = vld [vmem:[%s0 + $0x60] sm:$0xff]
  %v27 = vld [vmem:[%s0 + $0x68] sm:$0xff]
  %v28 = vld [vmem:[%s0 + $0x70] sm:$0xff]
  %v29 = vld [vmem:[%s0 + $0x78] sm:$0xff]
  %vm30 = vcmask 64512
  %v31 = vsel %vm30, %v14, 0.0
  %32 = vadd.xlane.f32.xlu0 %v31
  %v33 = vpop.xlane.xlu0 %32
  %v34 = vsel %vm30, %v15, 0.0
  %35 = vadd.xlane.f32.xlu0 %v34
  %v36 = vpop.xlane.xlu0 %35
  %v37 = vsel %vm30, %v16, 0.0
  %38 = vadd.xlane.f32.xlu0 %v37
  %v39 = vpop.xlane.xlu0 %38
  %v40 = vsel %vm30, %v17, 0.0
  %41 = vadd.xlane.f32.xlu0 %v40
  %v42 = vpop.xlane.xlu0 %41
  %v43 = vsel %vm30, %v18, 0.0
  %44 = vadd.xlane.f32.xlu0 %v43
  %v45 = vpop.xlane.xlu0 %44
  %v46 = vsel %vm30, %v19, 0.0
  %47 = vadd.xlane.f32.xlu0 %v46
  %v48 = vpop.xlane.xlu0 %47
  %v49 = vsel %vm30, %v20, 0.0
  %50 = vadd.xlane.f32.xlu0 %v49
  %v51 = vpop.xlane.xlu0 %50
  %v52 = vsel %vm30, %v21, 0.0
  %53 = vadd.xlane.f32.xlu0 %v52
  %v54 = vpop.xlane.xlu0 %53
  %v55 = vsel %vm30, %v22, 0.0
  %56 = vadd.xlane.f32.xlu0 %v55
  %v57 = vpop.xlane.xlu0 %56
  %v58 = vsel %vm30, %v23, 0.0
  %59 = vadd.xlane.f32.xlu0 %v58
  %v60 = vpop.xlane.xlu0 %59
  %v61 = vsel %vm30, %v24, 0.0
  %62 = vadd.xlane.f32.xlu0 %v61
  %v63 = vpop.xlane.xlu0 %62
  %v64 = vsel %vm30, %v25, 0.0
  %65 = vadd.xlane.f32.xlu0 %v64
  %v66 = vpop.xlane.xlu0 %65
  %v67 = vsel %vm30, %v26, 0.0
  %68 = vadd.xlane.f32.xlu0 %v67
  %v69 = vpop.xlane.xlu0 %68
  %v70 = vsel %vm30, %v27, 0.0
  %71 = vadd.xlane.f32.xlu0 %v70
  %v72 = vpop.xlane.xlu0 %71
  %v73 = vsel %vm30, %v28, 0.0
  %74 = vadd.xlane.f32.xlu0 %v73
  %v75 = vpop.xlane.xlu0 %74
  %v76 = vsel %vm30, %v29, 0.0
  %77 = vadd.xlane.f32.xlu0 %v76
  %v78 = vpop.xlane.xlu0 %77
  %v79 = vrcp.pop 8.0
  %v80 = vmul.f32 %v33, %v79
  %v81 = vmul.f32 %v36, %v79
  %v82 = vmul.f32 %v39, %v79
  %v83 = vmul.f32 %v42, %v79
  %v84 = vmul.f32 %v45, %v79
  %v85 = vmul.f32 %v48, %v79
  %v86 = vmul.f32 %v51, %v79
  %v87 = vmul.f32 %v54, %v79
  %v88 = vmul.f32 %v57, %v79
  %v89 = vmul.f32 %v60, %v79
  %v90 = vmul.f32 %v63, %v79
  %v91 = vmul.f32 %v66, %v79
  %v92 = vmul.f32 %v69, %v79
  %v93 = vmul.f32 %v72, %v79
  %v94 = vmul.f32 %v75, %v79
  %v95 = vmul.f32 %v78, %v79
  %v96 = vsub.f32 %v14, %v80
  %v97 = vsub.f32 %v15, %v81
  %v98 = vsub.f32 %v16, %v82
  %v99 = vsub.f32 %v17, %v83
  %v100 = vsub.f32 %v18, %v84
  %v101 = vsub.f32 %v19, %v85
  %v102 = vsub.f32 %v20, %v86
  %v103 = vsub.f32 %v21, %v87
  %v104 = vsub.f32 %v22, %v88
  %v105 = vsub.f32 %v23, %v89
  %v106 = vsub.f32 %v24, %v90
  %v107 = vsub.f32 %v25, %v91
  %v108 = vsub.f32 %v26, %v92
  %v109 = vsub.f32 %v27, %v93
  %v110 = vsub.f32 %v28, %v94
  %v111 = vsub.f32 %v29, %v95
  %v112 = vmul.f32 %v96, %v96
  %v113 = vmul.f32 %v97, %v97
  %v114 = vmul.f32 %v98, %v98
  %v115 = vmul.f32 %v99, %v99
  %v116 = vmul.f32 %v100, %v100
  %v117 = vmul.f32 %v101, %v101
  %v118 = vmul.f32 %v102, %v102
  %v119 = vmul.f32 %v103, %v103
  %v120 = vmul.f32 %v104, %v104
  %v121 = vmul.f32 %v105, %v105
  %v122 = vmul.f32 %v106, %v106
  %v123 = vmul.f32 %v107, %v107
  %v124 = vmul.f32 %v108, %v108
  %v125 = vmul.f32 %v109, %v109
  %v126 = vmul.f32 %v110, %v110
  %v127 = vmul.f32 %v111, %v111
  %v128 = vsel %vm30, %v112, 0.0
  %129 = vadd.xlane.f32.xlu0 %v128
  %v130 = vpop.xlane.xlu0 %129
  %v131 = vsel %vm30, %v113, 0.0
  %132 = vadd.xlane.f32.xlu0 %v131
  %v133 = vpop.xlane.xlu0 %132
  %v134 = vsel %vm30, %v114, 0.0
  %135 = vadd.xlane.f32.xlu0 %v134
  %v136 = vpop.xlane.xlu0 %135
  %v137 = vsel %vm30, %v115, 0.0
  %138 = vadd.xlane.f32.xlu0 %v137
  %v139 = vpop.xlane.xlu0 %138
  %v140 = vsel %vm30, %v116, 0.0
  %141 = vadd.xlane.f32.xlu0 %v140
  %v142 = vpop.xlane.xlu0 %141
  %v143 = vsel %vm30, %v117, 0.0
  %144 = vadd.xlane.f32.xlu0 %v143
  %v145 = vpop.xlane.xlu0 %144
  %v146 = vsel %vm30, %v118, 0.0
  %147 = vadd.xlane.f32.xlu0 %v146
  %v148 = vpop.xlane.xlu0 %147
  %v149 = vsel %vm30, %v119, 0.0
  %150 = vadd.xlane.f32.xlu0 %v149
  %v151 = vpop.xlane.xlu0 %150
  %v152 = vsel %vm30, %v120, 0.0
  %153 = vadd.xlane.f32.xlu0 %v152
  %v154 = vpop.xlane.xlu0 %153
  %v155 = vsel %vm30, %v121, 0.0
  %156 = vadd.xlane.f32.xlu0 %v155
  %v157 = vpop.xlane.xlu0 %156
  %v158 = vsel %vm30, %v122, 0.0
  %159 = vadd.xlane.f32.xlu0 %v158
  %v160 = vpop.xlane.xlu0 %159
  %v161 = vsel %vm30, %v123, 0.0
  %162 = vadd.xlane.f32.xlu0 %v161
  %v163 = vpop.xlane.xlu0 %162
  %v164 = vsel %vm30, %v124, 0.0
  %165 = vadd.xlane.f32.xlu0 %v164
  %v166 = vpop.xlane.xlu0 %165
  %v167 = vsel %vm30, %v125, 0.0
  %168 = vadd.xlane.f32.xlu0 %v167
  %v169 = vpop.xlane.xlu0 %168
  %v170 = vsel %vm30, %v126, 0.0
  %171 = vadd.xlane.f32.xlu0 %v170
  %v172 = vpop.xlane.xlu0 %171
  %v173 = vsel %vm30, %v127, 0.0
  %174 = vadd.xlane.f32.xlu0 %v173
  %v175 = vpop.xlane.xlu0 %174
  %v176 = vmul.f32 %v130, %v79
  %v177 = vmul.f32 %v133, %v79
  %v178 = vmul.f32 %v136, %v79
  %v179 = vmul.f32 %v139, %v79
  %v180 = vmul.f32 %v142, %v79
  %v181 = vmul.f32 %v145, %v79
  %v182 = vmul.f32 %v148, %v79
  %v183 = vmul.f32 %v151, %v79
  %v184 = vmul.f32 %v154, %v79
  %v185 = vmul.f32 %v157, %v79
  %v186 = vmul.f32 %v160, %v79
  %v187 = vmul.f32 %v163, %v79
  %v188 = vmul.f32 %v166, %v79
  %v189 = vmul.f32 %v169, %v79
  %v190 = vmul.f32 %v172, %v79
  %v191 = vmul.f32 %v175, %v79
  %v192 = vadd.f32 %v176, 1e-05
  %v193 = vadd.f32 %v177, 1e-05
  %v194 = vadd.f32 %v178, 1e-05
  %v195 = vadd.f32 %v179, 1e-05
  %v196 = vadd.f32 %v180, 1e-05
  %v197 = vadd.f32 %v181, 1e-05
  %v198 = vadd.f32 %v182, 1e-05
  %v199 = vadd.f32 %v183, 1e-05
  %v200 = vadd.f32 %v184, 1e-05
  %v201 = vadd.f32 %v185, 1e-05
  %v202 = vadd.f32 %v186, 1e-05
  %v203 = vadd.f32 %v187, 1e-05
  %v204 = vadd.f32 %v188, 1e-05
  %v205 = vadd.f32 %v189, 1e-05
  %v206 = vadd.f32 %v190, 1e-05
  %v207 = vadd.f32 %v191, 1e-05
  %v208 = vrsqrt.pop %v192
  %v209 = vrsqrt.pop %v193
  %v210 = vrsqrt.pop %v194
  %v211 = vrsqrt.pop %v195
  %v212 = vrsqrt.pop %v196
  %v213 = vrsqrt.pop %v197
  %v214 = vrsqrt.pop %v198
  %v215 = vrsqrt.pop %v199
  %v216 = vrsqrt.pop %v200
  %v217 = vrsqrt.pop %v201
  %v218 = vrsqrt.pop %v202
  %v219 = vrsqrt.pop %v203
  %v220 = vrsqrt.pop %v204
  %v221 = vrsqrt.pop %v205
  %v222 = vrsqrt.pop %v206
  %v223 = vrsqrt.pop %v207
  %v224 = vmul.f32 %v96, %v208
  %v225 = vmul.f32 %v97, %v209
  %v226 = vmul.f32 %v98, %v210
  %v227 = vmul.f32 %v99, %v211
  %v228 = vmul.f32 %v100, %v212
  %v229 = vmul.f32 %v101, %v213
  %v230 = vmul.f32 %v102, %v214
  %v231 = vmul.f32 %v103, %v215
  %v232 = vmul.f32 %v104, %v216
  %v233 = vmul.f32 %v105, %v217
  %v234 = vmul.f32 %v106, %v218
  %v235 = vmul.f32 %v107, %v219
  %v236 = vmul.f32 %v108, %v220
  %v237 = vmul.f32 %v109, %v221
  %v238 = vmul.f32 %v110, %v222
  %v239 = vmul.f32 %v111, %v223
  %v240 = vld [vmem:[%s1] sm:$0x1]
  %v242 = vlaneseq
  %v243 = vshrl.u32 %v242, 7
  %v244 = vsub.s32 0, %v243
  %v245 = vrot.slane %v240, %v244
  %v247 = vmul.f32 %v224, %v245
  %v248 = vmul.f32 %v225, %v245
  %v249 = vmul.f32 %v226, %v245
  %v250 = vmul.f32 %v227, %v245
  %v251 = vmul.f32 %v228, %v245
  %v252 = vmul.f32 %v229, %v245
  %v253 = vmul.f32 %v230, %v245
  %v254 = vmul.f32 %v231, %v245
  %v255 = vmul.f32 %v232, %v245
  %v256 = vmul.f32 %v233, %v245
  %v257 = vmul.f32 %v234, %v245
  %v258 = vmul.f32 %v235, %v245
  %v259 = vmul.f32 %v236, %v245
  %v260 = vmul.f32 %v237, %v245
  %v261 = vmul.f32 %v238, %v245
  %v262 = vmul.f32 %v239, %v245
  %v263 = vld [vmem:[%s2] sm:$0x1]
  %v265 = vlaneseq
  %v266 = vshrl.u32 %v265, 7
  %v267 = vsub.s32 0, %v266
  %v268 = vrot.slane %v263, %v267
  %v270 = vadd.f32 %v247, %v268
  %v271 = vadd.f32 %v248, %v268
  %v272 = vadd.f32 %v249, %v268
  %v273 = vadd.f32 %v250, %v268
  %v274 = vadd.f32 %v251, %v268
  %v275 = vadd.f32 %v252, %v268
  %v276 = vadd.f32 %v253, %v268
  %v277 = vadd.f32 %v254, %v268
  %v278 = vadd.f32 %v255, %v268
  %v279 = vadd.f32 %v256, %v268
  %v280 = vadd.f32 %v257, %v268
  %v281 = vadd.f32 %v258, %v268
  %v282 = vadd.f32 %v259, %v268
  %v283 = vadd.f32 %v260, %v268
  %v284 = vadd.f32 %v261, %v268
  %v285 = vadd.f32 %v262, %v268
  %v286 = vpack.c.bf16 %v271, %v270
  %v287 = vpack.c.bf16 %v273, %v272
  %v288 = vpack.c.bf16 %v275, %v274
  %v289 = vpack.c.bf16 %v277, %v276
  %v290 = vpack.c.bf16 %v279, %v278
  %v291 = vpack.c.bf16 %v281, %v280
  %v292 = vpack.c.bf16 %v283, %v282
  %v293 = vpack.c.bf16 %v285, %v284
  %v302 = vunpack.c.l.b16 %v286
  %v303 = vunpack.c.h.b16 %v286
  %v304 = vunpack.c.l.b16 %v287
  %v305 = vunpack.c.h.b16 %v287
  %v306 = vunpack.c.l.b16 %v288
  %v307 = vunpack.c.h.b16 %v288
  %v308 = vunpack.c.l.b16 %v289
  %v309 = vunpack.c.h.b16 %v289
  %v310 = vunpack.c.l.b16 %v290
  %v311 = vunpack.c.h.b16 %v290
  %v312 = vunpack.c.l.b16 %v291
  %v313 = vunpack.c.h.b16 %v291
  %v314 = vunpack.c.l.b16 %v292
  %v315 = vunpack.c.h.b16 %v292
  %v316 = vunpack.c.l.b16 %v293
  %v317 = vunpack.c.h.b16 %v293
  %v318 = vpack.c.b16 %v302, %v302
  %v319 = vpack.c.b16 %v303, %v303
  %v320 = vpack.c.b16 %v304, %v304
  %v321 = vpack.c.b16 %v305, %v305
  %v322 = vpack.c.b16 %v306, %v306
  %v323 = vpack.c.b16 %v307, %v307
  %v324 = vpack.c.b16 %v308, %v308
  %v325 = vpack.c.b16 %v309, %v309
  %v326 = vpack.c.b16 %v310, %v310
  %v327 = vpack.c.b16 %v311, %v311
  %v328 = vpack.c.b16 %v312, %v312
  %v329 = vpack.c.b16 %v313, %v313
  %v330 = vpack.c.b16 %v314, %v314
  %v331 = vpack.c.b16 %v315, %v315
  %v332 = vpack.c.b16 %v316, %v316
  %v333 = vpack.c.b16 %v317, %v317
  %vm350 = vcmask 60416
  %351 = vst.msk [vmem:[%s3] sm:$0xf] %vm350, %v318
  %352 = vst.msk [vmem:[%s3 + $0x4] sm:$0xf] %vm350, %v319
  %353 = vst.msk [vmem:[%s3 + $0x8] sm:$0xf] %vm350, %v320
  %354 = vst.msk [vmem:[%s3 + $0xc] sm:$0xf] %vm350, %v321
  %355 = vst.msk [vmem:[%s3 + $0x10] sm:$0xf] %vm350, %v322
  %356 = vst.msk [vmem:[%s3 + $0x14] sm:$0xf] %vm350, %v323
  %357 = vst.msk [vmem:[%s3 + $0x18] sm:$0xf] %vm350, %v324
  %358 = vst.msk [vmem:[%s3 + $0x1c] sm:$0xf] %vm350, %v325
  %359 = vst.msk [vmem:[%s3 + $0x20] sm:$0xf] %vm350, %v326
  %360 = vst.msk [vmem:[%s3 + $0x24] sm:$0xf] %vm350, %v327
  %361 = vst.msk [vmem:[%s3 + $0x28] sm:$0xf] %vm350, %v328
  %362 = vst.msk [vmem:[%s3 + $0x2c] sm:$0xf] %vm350, %v329
  %363 = vst.msk [vmem:[%s3 + $0x30] sm:$0xf] %vm350, %v330
  %364 = vst.msk [vmem:[%s3 + $0x34] sm:$0xf] %vm350, %v331
  %365 = vst.msk [vmem:[%s3 + $0x38] sm:$0xf] %vm350, %v332
  %366 = vst.msk [vmem:[%s3 + $0x3c] sm:$0xf] %vm350, %v333
  // Predicated region
  $region14: #{forward.31} parent=0 // pred_check
    _
  $region15: #{forward.31} parent=0 // pred_check_branch
    %368 = sbr.rel (0) target = $region17
  $region16: #{forward.31} parent=0 // pred_region
    _
  $region17: #{forward.31} parent=0 // pred_fallthru
    _
  // Predicated region
  $region18: #{forward.31} parent=0 // pred_check
    _
  $region19: #{forward.31} parent=0 // pred_check_branch
    %370 = sbr.rel (0) target = $region21
  $region20: #{forward.31} parent=0 // pred_region
    _
  $region21: #{forward.31} parent=0 // pred_fallthru
    _

// kernel: forward.29
$region0: #{forward.29}
  #allocation0 [shape = 'u32[]', space=smem, size = 0x4, offset = 0x4, fixed_abs, tag = 'smem constant byte address 0x4 - core index']
  #allocation1 [shape = 'u32[144,128]{1,0:T(1,128)}', space=vmem, size = 0x12000, scoped, tag = 'internal scratch']
  %s0 = inlined_call_operand.vmem [shape: f32[128,147], index: 0, kind: input, shape index: {}]
  %s1 = inlined_call_operand.vmem [shape: bf16[147,8], index: 1, kind: input, shape index: {}]
  %s2 = inlined_call_operand.vmem [shape: f32[1,8], index: 2, kind: input, shape index: {}]
  %s3 = inlined_call_operand.vmem [shape: f32[128,8], index: 3, kind: output, shape index: {}]
  %s4 = sld [smem:[#allocation0]]
  $region22: #{forward.29} parent=0
    _
  %s6 = ssub.s32 1, %s4
  %s7 = scalar_select 0, %s6, %s4
  // Predicated region
  $region2: #{forward.29} parent=0 // pred_check
    _
  $region3: #{forward.29} parent=0 // pred_check_branch
    %9 = sbr.rel (0) target = $region5
  $region4: #{forward.29} parent=0 // pred_region
    _
  $region5: #{forward.29} parent=0 // pred_fallthru
    _
  // Predicated region
  $region6: #{forward.29} parent=0 // pred_check
    _
  $region7: #{forward.29} parent=0 // pred_check_branch
    %11 = sbr.rel (0) target = $region9
  $region8: #{forward.29} parent=0 // pred_region
    _
  $region9: #{forward.29} parent=0 // pred_fallthru
    _
  // Predicated region
  $region10: #{forward.29} parent=0 // pred_check
    _
  $region11: #{forward.29} parent=0 // pred_check_branch
    %13 = sbr.rel (0) target = $region13
  $region12: #{forward.29} parent=0 // pred_region
    _
  $region13: #{forward.29} parent=0 // pred_fallthru
    _
  %v15 = vld [vmem:[%s0] sm:$0xff]
  %v16 = vld [vmem:[%s0 + $0x8] sm:$0xff]
  %v17 = vld [vmem:[%s0 + $0x10] sm:$0xff]
  %v18 = vld [vmem:[%s0 + $0x18] sm:$0xff]
  %v19 = vld [vmem:[%s0 + $0x20] sm:$0xff]
  %v20 = vld [vmem:[%s0 + $0x28] sm:$0xff]
  %v21 = vld [vmem:[%s0 + $0x30] sm:$0xff]
  %v22 = vld [vmem:[%s0 + $0x38] sm:$0xff]
  %v23 = vld [vmem:[%s0 + $0x40] sm:$0xff]
  %v24 = vld [vmem:[%s0 + $0x48] sm:$0xff]
  %v25 = vld [vmem:[%s0 + $0x50] sm:$0xff]
  %v26 = vld [vmem:[%s0 + $0x58] sm:$0xff]
  %v27 = vld [vmem:[%s0 + $0x60] sm:$0xff]
  %v28 = vld [vmem:[%s0 + $0x68] sm:$0xff]
  %v29 = vld [vmem:[%s0 + $0x70] sm:$0xff]
  %v30 = vld [vmem:[%s0 + $0x78] sm:$0xff]
  %v31 = vld [vmem:[%s0 + $0x80] sm:$0xff]
  %v32 = vld [vmem:[%s0 + $0x88] sm:$0xff]
  %v33 = vld [vmem:[%s0 + $0x90] sm:$0xff]
  %v34 = vld [vmem:[%s0 + $0x98] sm:$0xff]
  %v35 = vld [vmem:[%s0 + $0xa0] sm:$0xff]
  %v36 = vld [vmem:[%s0 + $0xa8] sm:$0xff]
  %v37 = vld [vmem:[%s0 + $0xb0] sm:$0xff]
  %v38 = vld [vmem:[%s0 + $0xb8] sm:$0xff]
  %v39 = vld [vmem:[%s0 + $0xc0] sm:$0xff]
  %v40 = vld [vmem:[%s0 + $0xc8] sm:$0xff]
  %v41 = vld [vmem:[%s0 + $0xd0] sm:$0xff]
  %v42 = vld [vmem:[%s0 + $0xd8] sm:$0xff]
  %v43 = vld [vmem:[%s0 + $0xe0] sm:$0xff]
  %v44 = vld [vmem:[%s0 + $0xe8] sm:$0xff]
  %v45 = vld [vmem:[%s0 + $0xf0] sm:$0xff]
  %v46 = vld [vmem:[%s0 + $0xf8] sm:$0xff]
  %v47 = vpack.c.bf16 %v17, %v15
  %v48 = vpack.c.bf16 %v18, %v16
  %v49 = vpack.c.bf16 %v21, %v19
  %v50 = vpack.c.bf16 %v22, %v20
  %v51 = vpack.c.bf16 %v25, %v23
  %v52 = vpack.c.bf16 %v26, %v24
  %v53 = vpack.c.bf16 %v29, %v27
  %v54 = vpack.c.bf16 %v30, %v28
  %v55 = vpack.c.bf16 %v33, %v31
  %v56 = vpack.c.bf16 %v34, %v32
  %v57 = vpack.c.bf16 %v37, %v35
  %v58 = vpack.c.bf16 %v38, %v36
  %v59 = vpack.c.bf16 %v41, %v39
  %v60 = vpack.c.bf16 %v42, %v40
  %v61 = vpack.c.bf16 %v45, %v43
  %v62 = vpack.c.bf16 %v46, %v44
  %v63 = vld [vmem:[%s1] sm:$0xf]
  %v64 = vld [vmem:[%s1 + $0x4] sm:$0xf]
  %v65 = vld [vmem:[%s1 + $0x8] sm:$0xf]
  %v66 = vld [vmem:[%s1 + $0xc] sm:$0xf]
  %v67 = vld [vmem:[%s1 + $0x10] sm:$0xf]
  %v68 = vld [vmem:[%s1 + $0x14] sm:$0xf]
  %v69 = vld [vmem:[%s1 + $0x18] sm:$0xf]
  %v70 = vld [vmem:[%s1 + $0x1c] sm:$0xf]
  %v71 = vld [vmem:[%s1 + $0x20] sm:$0xf]
  %v72 = vld [vmem:[%s1 + $0x24] sm:$0xf]
  %v73 = vld [vmem:[%s1 + $0x28] sm:$0xf]
  %v74 = vld [vmem:[%s1 + $0x2c] sm:$0xf]
  %v75 = vld [vmem:[%s1 + $0x30] sm:$0xf]
  %v76 = vld [vmem:[%s1 + $0x34] sm:$0xf]
  %v77 = vld [vmem:[%s1 + $0x38] sm:$0xf]
  %v78 = vld [vmem:[%s1 + $0x3c] sm:$0xf]
  %v79 = vld [vmem:[%s1 + $0x40] sm:$0xf]
  %v80 = vld [vmem:[%s1 + $0x44] sm:$0xf]
  %v81 = vld [vmem:[%s1 + $0x48] sm:$0x3]
  %v82 = vld [vmem:[%s2] sm:$0x1]
  %v84 = vlaneseq
  %v85 = vshrl.u32 %v84, 7
  %v86 = vsub.s32 0, %v85
  %v87 = vrot.slane %v82, %v86
  %v108 = vunpack.c.l.b16 %v63
  %v109 = vunpack.c.l.b16 %v64
  %v110 = vunpack.c.l.b16 %v65
  %v111 = vunpack.c.l.b16 %v66
  %v112 = vunpack.c.l.b16 %v67
  %v113 = vunpack.c.l.b16 %v68
  %v114 = vunpack.c.l.b16 %v69
  %v115 = vunpack.c.l.b16 %v70
  %v116 = vunpack.c.l.b16 %v71
  %v117 = vunpack.c.l.b16 %v72
  %v118 = vunpack.c.l.b16 %v73
  %v119 = vunpack.c.l.b16 %v74
  %v120 = vunpack.c.l.b16 %v75
  %v121 = vunpack.c.l.b16 %v76
  %v122 = vunpack.c.l.b16 %v77
  %v123 = vunpack.c.l.b16 %v78
  %v124 = vunpack.c.l.b16 %v79
  %v125 = vunpack.c.l.b16 %v80
  %v126 = vunpack.c.l.b16 %v81
  %v127 = vpack.c.b16 %v109, %v108
  %v128 = vpack.c.b16 %v111, %v110
  %v129 = vpack.c.b16 %v113, %v112
  %v130 = vpack.c.b16 %v115, %v114
  %v131 = vpack.c.b16 %v117, %v116
  %v132 = vpack.c.b16 %v119, %v118
  %v133 = vpack.c.b16 %v121, %v120
  %v134 = vpack.c.b16 %v123, %v122
  %v135 = vpack.c.b16 %v125, %v124
  %v136 = vpack.c.b16 %v126, %v126
  %vm146 = vcmask 154624
  %v148 = vsel %vm146, %v48, 0
  %v151 = vsel %vm146, %v50, 0
  %v154 = vsel %vm146, %v52, 0
  %v157 = vsel %vm146, %v54, 0
  %v160 = vsel %vm146, %v56, 0
  %v163 = vsel %vm146, %v58, 0
  %v166 = vsel %vm146, %v60, 0
  %v169 = vsel %vm146, %v62, 0
  %vm171 = vcmask 1040384
  %vm172 = vcmask 1041408
  %v173 = vsel %vm171, 4294967295, 65535
  %v174 = vsel %vm172, %v173, 0
  %v176 = vand.u32 %v136, %v174
  %178 = vmatprep.subr.bf16.mxu0 0
  %179 = vmatpush1.bf16.msra.mxu0 %v127
  %180 = vmatprep.subr.bf16.mxu0 0
  %181 = vmatpush1.bf16.msra.mxu0 %v128
  %182 = vmatprep.subr.bf16.mxu0 0
  %183 = vmatpush1.bf16.msra.mxu0 %v129
  %184 = vmatprep.subr.bf16.mxu0 0
  %185 = vmatpush1.bf16.msra.mxu0 %v130
  %186 = vmatprep.subr.bf16.mxu0 0
  %187 = vmatpush1.bf16.msra.mxu0 %v131
  %188 = vmatprep.subr.bf16.mxu0 0
  %189 = vmatpush1.bf16.msra.mxu0 %v132
  %190 = vmatprep.subr.bf16.mxu0 0
  %191 = vmatpush1.bf16.msra.mxu0 %v133
  %192 = vmatprep.subr.bf16.mxu0 0
  %193 = vmatpush1.bf16.msra.mxu0 %v134
  %194 = vmatprep.subr.bf16.mxu0 0
  %195 = vmatpush1.bf16.msra.mxu0 %v135
  %196 = vmatprep.subr.bf16.mxu0 0
  %197 = vmatpush1.bf16.msra.mxu0 %v176
  %198 = vmatprep.subr.bf16.mxu0 0
  %199 = vmatpush1.bf16.msra.mxu0 0
  %200 = vmatprep.subr.bf16.mxu0 0
  %201 = vmatpush1.bf16.msra.mxu0 0
  %202 = vmatprep.subr.bf16.mxu0 0
  %203 = vmatpush1.bf16.msra.mxu0 0
  %204 = vmatprep.subr.bf16.mxu0 0
  %205 = vmatpush1.bf16.msra.mxu0 0
  %206 = vmatprep.subr.bf16.mxu0 0
  %207 = vmatpush1.bf16.msra.mxu0 0
  %208 = vmatprep.subr.bf16.mxu0 0
  %209 = vmatpush1.bf16.msra.mxu0 0
  %210 = vmatprep.mubr.bf16.mxu0 %v148
  %211 = vmatmul.mubr.bf16.gmra.mrb[0].mxu0 %v47
  %v212 = vpop.f32.mrb[0].mxu0
  %v213 = vadd.f32 %v87, %v212
  %v214 = vpop.f32.mrb[0].mxu0
  %v215 = vpop.f32.mrb[0].mxu0
  %v216 = vadd.f32 %v87, %v215
  %v217 = vpop.f32.mrb[0].mxu0
  %218 = vmatprep.mubr.bf16.mxu0 %v151
  %219 = vmatmul.mubr.bf16.gmra.mrb[0].mxu0 %v49
  %v220 = vpop.f32.mrb[0].mxu0
  %v221 = vadd.f32 %v87, %v220
  %v222 = vpop.f32.mrb[0].mxu0
  %v223 = vpop.f32.mrb[0].mxu0
  %v224 = vadd.f32 %v87, %v223
  %v225 = vpop.f32.mrb[0].mxu0
  %226 = vmatprep.mubr.bf16.mxu0 %v154
  %227 = vmatmul.mubr.bf16.gmra.mrb[0].mxu0 %v51
  %v228 = vpop.f32.mrb[0].mxu0
  %v229 = vadd.f32 %v87, %v228
  %v230 = vpop.f32.mrb[0].mxu0
  %v231 = vpop.f32.mrb[0].mxu0
  %v232 = vadd.f32 %v87, %v231
  %v233 = vpop.f32.mrb[0].mxu0
  %234 = vmatprep.mubr.bf16.mxu0 %v157
  %235 = vmatmul.mubr.bf16.gmra.mrb[0].mxu0 %v53
  %v236 = vpop.f32.mrb[0].mxu0
  %v237 = vadd.f32 %v87, %v236
  %v238 = vpop.f32.mrb[0].mxu0
  %v239 = vpop.f32.mrb[0].mxu0
  %v240 = vadd.f32 %v87, %v239
  %v241 = vpop.f32.mrb[0].mxu0
  %242 = vmatprep.mubr.bf16.mxu0 %v160
  %243 = vmatmul.mubr.bf16.gmra.mrb[0].mxu0 %v55
  %v244 = vpop.f32.mrb[0].mxu0
  %v245 = vadd.f32 %v87, %v244
  %v246 = vpop.f32.mrb[0].mxu0
  %v247 = vpop.f32.mrb[0].mxu0
  %v248 = vadd.f32 %v87, %v247
  %v249 = vpop.f32.mrb[0].mxu0
  %250 = vmatprep.mubr.bf16.mxu0 %v163
  %251 = vmatmul.mubr.bf16.gmra.mrb[0].mxu0 %v57
  %v252 = vpop.f32.mrb[0].mxu0
  %v253 = vadd.f32 %v87, %v252
  %v254 = vpop.f32.mrb[0].mxu0
  %v255 = vpop.f32.mrb[0].mxu0
  %v256 = vadd.f32 %v87, %v255
  %v257 = vpop.f32.mrb[0].mxu0
  %258 = vmatprep.mubr.bf16.mxu0 %v166
  %259 = vmatmul.mubr.bf16.gmra.mrb[0].mxu0 %v59
  %v260 = vpop.f32.mrb[0].mxu0
  %v261 = vadd.f32 %v87, %v260
  %v262 = vpop.f32.mrb[0].mxu0
  %v263 = vpop.f32.mrb[0].mxu0
  %v264 = vadd.f32 %v87, %v263
  %v265 = vpop.f32.mrb[0].mxu0
  %266 = vmatprep.mubr.bf16.mxu0 %v169
  %267 = vmatmul.mubr.bf16.gmra.mrb[0].mxu0 %v61
  %v268 = vpop.f32.mrb[0].mxu0
  %v269 = vadd.f32 %v87, %v268
  %v270 = vpop.f32.mrb[0].mxu0
  %v271 = vpop.f32.mrb[0].mxu0
  %v272 = vadd.f32 %v87, %v271
  %v273 = vpop.f32.mrb[0].mxu0
  %274 = vdwg.mxu0
  %vm275 = vcmask 64512
  %276 = vst.msk [vmem:[%s3] sm:$0xff] %vm275, %v213
  %277 = vst.msk [vmem:[%s3 + $0x8] sm:$0xff] %vm275, %v216
  %278 = vst.msk [vmem:[%s3 + $0x10] sm:$0xff] %vm275, %v221
  %279 = vst.msk [vmem:[%s3 + $0x18] sm:$0xff] %vm275, %v224
  %280 = vst.msk [vmem:[%s3 + $0x20] sm:$0xff] %vm275, %v229
  %281 = vst.msk [vmem:[%s3 + $0x28] sm:$0xff] %vm275, %v232
  %282 = vst.msk [vmem:[%s3 + $0x30] sm:$0xff] %vm275, %v237
  %283 = vst.msk [vmem:[%s3 + $0x38] sm:$0xff] %vm275, %v240
  %284 = vst.msk [vmem:[%s3 + $0x40] sm:$0xff] %vm275, %v245
  %285 = vst.msk [vmem:[%s3 + $0x48] sm:$0xff] %vm275, %v248
  %286 = vst.msk [vmem:[%s3 + $0x50] sm:$0xff] %vm275, %v253
  %287 = vst.msk [vmem:[%s3 + $0x58] sm:$0xff] %vm275, %v256
  %288 = vst.msk [vmem:[%s3 + $0x60] sm:$0xff] %vm275, %v261
  %289 = vst.msk [vmem:[%s3 + $0x68] sm:$0xff] %vm275, %v264
  %290 = vst.msk [vmem:[%s3 + $0x70] sm:$0xff] %vm275, %v269
  %291 = vst.msk [vmem:[%s3 + $0x78] sm:$0xff] %vm275, %v272
  // Predicated region
  $region14: #{forward.29} parent=0 // pred_check
    _
  $region15: #{forward.29} parent=0 // pred_check_branch
    %293 = sbr.rel (0) target = $region17
  $region16: #{forward.29} parent=0 // pred_region
    _
  $region17: #{forward.29} parent=0 // pred_fallthru
    _
  // Predicated region
  $region18: #{forward.29} parent=0 // pred_check
    _
  $region19: #{forward.29} parent=0 // pred_check_branch
    %295 = sbr.rel (0) target = $region21
  $region20: #{forward.29} parent=0 // pred_region
    _
  $region21: #{forward.29} parent=0 // pred_fallthru
    _

// kernel: forward.30
$region0: #{forward.30}
  #allocation0 [shape = 'u32[]', space=smem, size = 0x4, offset = 0x4, fixed_abs, tag = 'smem constant byte address 0x4 - core index']
  #allocation1 [shape = 'u32[144,128]{1,0:T(1,128)}', space=vmem, size = 0x12000, scoped, tag = 'internal scratch']
  %s0 = inlined_call_operand.vmem [shape: f32[128,8], index: 0, kind: input, shape index: {}]
  %s1 = inlined_call_operand.vmem [shape: f32[1,8], index: 1, kind: input, shape index: {}]
  %s2 = inlined_call_operand.vmem [shape: f32[1,8], index: 2, kind: input, shape index: {}]
  %s3 = inlined_call_operand.vmem [shape: f32[128,8], index: 3, kind: output, shape index: {}]
  %s4 = sld [smem:[#allocation0]]
  $region22: #{forward.30} parent=0
    _
  %s6 = ssub.s32 1, %s4
  %s7 = scalar_select 0, %s6, %s4
  // Predicated region
  $region2: #{forward.30} parent=0 // pred_check
    _
  $region3: #{forward.30} parent=0 // pred_check_branch
    %9 = sbr.rel (0) target = $region5
  $region4: #{forward.30} parent=0 // pred_region
    _
  $region5: #{forward.30} parent=0 // pred_fallthru
    _
  // Predicated region
  $region6: #{forward.30} parent=0 // pred_check
    _
  $region7: #{forward.30} parent=0 // pred_check_branch
    %11 = sbr.rel (0) target = $region9
  $region8: #{forward.30} parent=0 // pred_region
    _
  $region9: #{forward.30} parent=0 // pred_fallthru
    _
  // Predicated region
  $region10: #{forward.30} parent=0 // pred_check
    _
  $region11: #{forward.30} parent=0 // pred_check_branch
    %13 = sbr.rel (0) target = $region13
  $region12: #{forward.30} parent=0 // pred_region
    _
  $region13: #{forward.30} parent=0 // pred_fallthru
    _
  %v14 = vld [vmem:[%s0] sm:$0xff]
  %v15 = vld [vmem:[%s0 + $0x8] sm:$0xff]
  %v16 = vld [vmem:[%s0 + $0x10] sm:$0xff]
  %v17 = vld [vmem:[%s0 + $0x18] sm:$0xff]
  %v18 = vld [vmem:[%s0 + $0x20] sm:$0xff]
  %v19 = vld [vmem:[%s0 + $0x28] sm:$0xff]
  %v20 = vld [vmem:[%s0 + $0x30] sm:$0xff]
  %v21 = vld [vmem:[%s0 + $0x38] sm:$0xff]
  %v22 = vld [vmem:[%s0 + $0x40] sm:$0xff]
  %v23 = vld [vmem:[%s0 + $0x48] sm:$0xff]
  %v24 = vld [vmem:[%s0 + $0x50] sm:$0xff]
  %v25 = vld [vmem:[%s0 + $0x58] sm:$0xff]
  %v26 = vld [vmem:[%s0 + $0x60] sm:$0xff]
  %v27 = vld [vmem:[%s0 + $0x68] sm:$0xff]
  %v28 = vld [vmem:[%s0 + $0x70] sm:$0xff]
  %v29 = vld [vmem:[%s0 + $0x78] sm:$0xff]
  %vm30 = vcmask 64512
  %v31 = vsel %vm30, %v14, 0.0
  %32 = vadd.xlane.f32.xlu0 %v31
  %v33 = vpop.xlane.xlu0 %32
  %v34 = vsel %vm30, %v15, 0.0
  %35 = vadd.xlane.f32.xlu0 %v34
  %v36 = vpop.xlane.xlu0 %35
  %v37 = vsel %vm30, %v16, 0.0
  %38 = vadd.xlane.f32.xlu0 %v37
  %v39 = vpop.xlane.xlu0 %38
  %v40 = vsel %vm30, %v17, 0.0
  %41 = vadd.xlane.f32.xlu0 %v40
  %v42 = vpop.xlane.xlu0 %41
  %v43 = vsel %vm30, %v18, 0.0
  %44 = vadd.xlane.f32.xlu0 %v43
  %v45 = vpop.xlane.xlu0 %44
  %v46 = vsel %vm30, %v19, 0.0
  %47 = vadd.xlane.f32.xlu0 %v46
  %v48 = vpop.xlane.xlu0 %47
  %v49 = vsel %vm30, %v20, 0.0
  %50 = vadd.xlane.f32.xlu0 %v49
  %v51 = vpop.xlane.xlu0 %50
  %v52 = vsel %vm30, %v21, 0.0
  %53 = vadd.xlane.f32.xlu0 %v52
  %v54 = vpop.xlane.xlu0 %53
  %v55 = vsel %vm30, %v22, 0.0
  %56 = vadd.xlane.f32.xlu0 %v55
  %v57 = vpop.xlane.xlu0 %56
  %v58 = vsel %vm30, %v23, 0.0
  %59 = vadd.xlane.f32.xlu0 %v58
  %v60 = vpop.xlane.xlu0 %59
  %v61 = vsel %vm30, %v24, 0.0
  %62 = vadd.xlane.f32.xlu0 %v61
  %v63 = vpop.xlane.xlu0 %62
  %v64 = vsel %vm30, %v25, 0.0
  %65 = vadd.xlane.f32.xlu0 %v64
  %v66 = vpop.xlane.xlu0 %65
  %v67 = vsel %vm30, %v26, 0.0
  %68 = vadd.xlane.f32.xlu0 %v67
  %v69 = vpop.xlane.xlu0 %68
  %v70 = vsel %vm30, %v27, 0.0
  %71 = vadd.xlane.f32.xlu0 %v70
  %v72 = vpop.xlane.xlu0 %71
  %v73 = vsel %vm30, %v28, 0.0
  %74 = vadd.xlane.f32.xlu0 %v73
  %v75 = vpop.xlane.xlu0 %74
  %v76 = vsel %vm30, %v29, 0.0
  %77 = vadd.xlane.f32.xlu0 %v76
  %v78 = vpop.xlane.xlu0 %77
  %v79 = vrcp.pop 8.0
  %v80 = vmul.f32 %v33, %v79
  %v81 = vmul.f32 %v36, %v79
  %v82 = vmul.f32 %v39, %v79
  %v83 = vmul.f32 %v42, %v79
  %v84 = vmul.f32 %v45, %v79
  %v85 = vmul.f32 %v48, %v79
  %v86 = vmul.f32 %v51, %v79
  %v87 = vmul.f32 %v54, %v79
  %v88 = vmul.f32 %v57, %v79
  %v89 = vmul.f32 %v60, %v79
  %v90 = vmul.f32 %v63, %v79
  %v91 = vmul.f32 %v66, %v79
  %v92 = vmul.f32 %v69, %v79
  %v93 = vmul.f32 %v72, %v79
  %v94 = vmul.f32 %v75, %v79
  %v95 = vmul.f32 %v78, %v79
  %v96 = vsub.f32 %v14, %v80
  %v97 = vsub.f32 %v15, %v81
  %v98 = vsub.f32 %v16, %v82
  %v99 = vsub.f32 %v17, %v83
  %v100 = vsub.f32 %v18, %v84
  %v101 = vsub.f32 %v19, %v85
  %v102 = vsub.f32 %v20, %v86
  %v103 = vsub.f32 %v21, %v87
  %v104 = vsub.f32 %v22, %v88
  %v105 = vsub.f32 %v23, %v89
  %v106 = vsub.f32 %v24, %v90
  %v107 = vsub.f32 %v25, %v91
  %v108 = vsub.f32 %v26, %v92
  %v109 = vsub.f32 %v27, %v93
  %v110 = vsub.f32 %v28, %v94
  %v111 = vsub.f32 %v29, %v95
  %v112 = vmul.f32 %v96, %v96
  %v113 = vmul.f32 %v97, %v97
  %v114 = vmul.f32 %v98, %v98
  %v115 = vmul.f32 %v99, %v99
  %v116 = vmul.f32 %v100, %v100
  %v117 = vmul.f32 %v101, %v101
  %v118 = vmul.f32 %v102, %v102
  %v119 = vmul.f32 %v103, %v103
  %v120 = vmul.f32 %v104, %v104
  %v121 = vmul.f32 %v105, %v105
  %v122 = vmul.f32 %v106, %v106
  %v123 = vmul.f32 %v107, %v107
  %v124 = vmul.f32 %v108, %v108
  %v125 = vmul.f32 %v109, %v109
  %v126 = vmul.f32 %v110, %v110
  %v127 = vmul.f32 %v111, %v111
  %v128 = vsel %vm30, %v112, 0.0
  %129 = vadd.xlane.f32.xlu0 %v128
  %v130 = vpop.xlane.xlu0 %129
  %v131 = vsel %vm30, %v113, 0.0
  %132 = vadd.xlane.f32.xlu0 %v131
  %v133 = vpop.xlane.xlu0 %132
  %v134 = vsel %vm30, %v114, 0.0
  %135 = vadd.xlane.f32.xlu0 %v134
  %v136 = vpop.xlane.xlu0 %135
  %v137 = vsel %vm30, %v115, 0.0
  %138 = vadd.xlane.f32.xlu0 %v137
  %v139 = vpop.xlane.xlu0 %138
  %v140 = vsel %vm30, %v116, 0.0
  %141 = vadd.xlane.f32.xlu0 %v140
  %v142 = vpop.xlane.xlu0 %141
  %v143 = vsel %vm30, %v117, 0.0
  %144 = vadd.xlane.f32.xlu0 %v143
  %v145 = vpop.xlane.xlu0 %144
  %v146 = vsel %vm30, %v118, 0.0
  %147 = vadd.xlane.f32.xlu0 %v146
  %v148 = vpop.xlane.xlu0 %147
  %v149 = vsel %vm30, %v119, 0.0
  %150 = vadd.xlane.f32.xlu0 %v149
  %v151 = vpop.xlane.xlu0 %150
  %v152 = vsel %vm30, %v120, 0.0
  %153 = vadd.xlane.f32.xlu0 %v152
  %v154 = vpop.xlane.xlu0 %153
  %v155 = vsel %vm30, %v121, 0.0
  %156 = vadd.xlane.f32.xlu0 %v155
  %v157 = vpop.xlane.xlu0 %156
  %v158 = vsel %vm30, %v122, 0.0
  %159 = vadd.xlane.f32.xlu0 %v158
  %v160 = vpop.xlane.xlu0 %159
  %v161 = vsel %vm30, %v123, 0.0
  %162 = vadd.xlane.f32.xlu0 %v161
  %v163 = vpop.xlane.xlu0 %162
  %v164 = vsel %vm30, %v124, 0.0
  %165 = vadd.xlane.f32.xlu0 %v164
  %v166 = vpop.xlane.xlu0 %165
  %v167 = vsel %vm30, %v125, 0.0
  %168 = vadd.xlane.f32.xlu0 %v167
  %v169 = vpop.xlane.xlu0 %168
  %v170 = vsel %vm30, %v126, 0.0
  %171 = vadd.xlane.f32.xlu0 %v170
  %v172 = vpop.xlane.xlu0 %171
  %v173 = vsel %vm30, %v127, 0.0
  %174 = vadd.xlane.f32.xlu0 %v173
  %v175 = vpop.xlane.xlu0 %174
  %v176 = vmul.f32 %v130, %v79
  %v177 = vmul.f32 %v133, %v79
  %v178 = vmul.f32 %v136, %v79
  %v179 = vmul.f32 %v139, %v79
  %v180 = vmul.f32 %v142, %v79
  %v181 = vmul.f32 %v145, %v79
  %v182 = vmul.f32 %v148, %v79
  %v183 = vmul.f32 %v151, %v79
  %v184 = vmul.f32 %v154, %v79
  %v185 = vmul.f32 %v157, %v79
  %v186 = vmul.f32 %v160, %v79
  %v187 = vmul.f32 %v163, %v79
  %v188 = vmul.f32 %v166, %v79
  %v189 = vmul.f32 %v169, %v79
  %v190 = vmul.f32 %v172, %v79
  %v191 = vmul.f32 %v175, %v79
  %v192 = vadd.f32 %v176, 1e-05
  %v193 = vadd.f32 %v177, 1e-05
  %v194 = vadd.f32 %v178, 1e-05
  %v195 = vadd.f32 %v179, 1e-05
  %v196 = vadd.f32 %v180, 1e-05
  %v197 = vadd.f32 %v181, 1e-05
  %v198 = vadd.f32 %v182, 1e-05
  %v199 = vadd.f32 %v183, 1e-05
  %v200 = vadd.f32 %v184, 1e-05
  %v201 = vadd.f32 %v185, 1e-05
  %v202 = vadd.f32 %v186, 1e-05
  %v203 = vadd.f32 %v187, 1e-05
  %v204 = vadd.f32 %v188, 1e-05
  %v205 = vadd.f32 %v189, 1e-05
  %v206 = vadd.f32 %v190, 1e-05
  %v207 = vadd.f32 %v191, 1e-05
  %v208 = vrsqrt.pop %v192
  %v209 = vrsqrt.pop %v193
  %v210 = vrsqrt.pop %v194
  %v211 = vrsqrt.pop %v195
  %v212 = vrsqrt.pop %v196
  %v213 = vrsqrt.pop %v197
  %v214 = vrsqrt.pop %v198
  %v215 = vrsqrt.pop %v199
  %v216 = vrsqrt.pop %v200
  %v217 = vrsqrt.pop %v201
  %v218 = vrsqrt.pop %v202
  %v219 = vrsqrt.pop %v203
  %v220 = vrsqrt.pop %v204
  %v221 = vrsqrt.pop %v205
  %v222 = vrsqrt.pop %v206
  %v223 = vrsqrt.pop %v207
  %v224 = vmul.f32 %v96, %v208
  %v225 = vmul.f32 %v97, %v209
  %v226 = vmul.f32 %v98, %v210
  %v227 = vmul.f32 %v99, %v211
  %v228 = vmul.f32 %v100, %v212
  %v229 = vmul.f32 %v101, %v213
  %v230 = vmul.f32 %v102, %v214
  %v231 = vmul.f32 %v103, %v215
  %v232 = vmul.f32 %v104, %v216
  %v233 = vmul.f32 %v105, %v217
  %v234 = vmul.f32 %v106, %v218
  %v235 = vmul.f32 %v107, %v219
  %v236 = vmul.f32 %v108, %v220
  %v237 = vmul.f32 %v109, %v221
  %v238 = vmul.f32 %v110, %v222
  %v239 = vmul.f32 %v111, %v223
  %v240 = vld [vmem:[%s1] sm:$0x1]
  %v242 = vlaneseq
  %v243 = vshrl.u32 %v242, 7
  %v244 = vsub.s32 0, %v243
  %v245 = vrot.slane %v240, %v244
  %v247 = vmul.f32 %v224, %v245
  %v248 = vmul.f32 %v225, %v245
  %v249 = vmul.f32 %v226, %v245
  %v250 = vmul.f32 %v227, %v245
  %v251 = vmul.f32 %v228, %v245
  %v252 = vmul.f32 %v229, %v245
  %v253 = vmul.f32 %v230, %v245
  %v254 = vmul.f32 %v231, %v245
  %v255 = vmul.f32 %v232, %v245
  %v256 = vmul.f32 %v233, %v245
  %v257 = vmul.f32 %v234, %v245
  %v258 = vmul.f32 %v235, %v245
  %v259 = vmul.f32 %v236, %v245
  %v260 = vmul.f32 %v237, %v245
  %v261 = vmul.f32 %v238, %v245
  %v262 = vmul.f32 %v239, %v245
  %v263 = vld [vmem:[%s2] sm:$0x1]
  %v265 = vlaneseq
  %v266 = vshrl.u32 %v265, 7
  %v267 = vsub.s32 0, %v266
  %v268 = vrot.slane %v263, %v267
  %v270 = vadd.f32 %v247, %v268
  %v271 = vadd.f32 %v248, %v268
  %v272 = vadd.f32 %v249, %v268
  %v273 = vadd.f32 %v250, %v268
  %v274 = vadd.f32 %v251, %v268
  %v275 = vadd.f32 %v252, %v268
  %v276 = vadd.f32 %v253, %v268
  %v277 = vadd.f32 %v254, %v268
  %v278 = vadd.f32 %v255, %v268
  %v279 = vadd.f32 %v256, %v268
  %v280 = vadd.f32 %v257, %v268
  %v281 = vadd.f32 %v258, %v268
  %v282 = vadd.f32 %v259, %v268
  %v283 = vadd.f32 %v260, %v268
  %v284 = vadd.f32 %v261, %v268
  %v285 = vadd.f32 %v262, %v268
  %286 = vst.msk [vmem:[%s3] sm:$0xff] %vm30, %v270
  %287 = vst.msk [vmem:[%s3 + $0x8] sm:$0xff] %vm30, %v271
  %288 = vst.msk [vmem:[%s3 + $0x10] sm:$0xff] %vm30, %v272
  %289 = vst.msk [vmem:[%s3 + $0x18] sm:$0xff] %vm30, %v273
  %290 = vst.msk [vmem:[%s3 + $0x20] sm:$0xff] %vm30, %v274
  %291 = vst.msk [vmem:[%s3 + $0x28] sm:$0xff] %vm30, %v275
  %292 = vst.msk [vmem:[%s3 + $0x30] sm:$0xff] %vm30, %v276
  %293 = vst.msk [vmem:[%s3 + $0x38] sm:$0xff] %vm30, %v277
  %294 = vst.msk [vmem:[%s3 + $0x40] sm:$0xff] %vm30, %v278
  %295 = vst.msk [vmem:[%s3 + $0x48] sm:$0xff] %vm30, %v279
  %296 = vst.msk [vmem:[%s3 + $0x50] sm:$0xff] %vm30, %v280
  %297 = vst.msk [vmem:[%s3 + $0x58] sm:$0xff] %vm30, %v281
  %298 = vst.msk [vmem:[%s3 + $0x60] sm:$0xff] %vm30, %v282
  %299 = vst.msk [vmem:[%s3 + $0x68] sm:$0xff] %vm30, %v283
  %300 = vst.msk [vmem:[%s3 + $0x70] sm:$0xff] %vm30, %v284
  %301 = vst.msk [vmem:[%s3 + $0x78] sm:$0xff] %vm30, %v285
  // Predicated region
  $region14: #{forward.30} parent=0 // pred_check
    _
  $region15: #{forward.30} parent=0 // pred_check_branch
    %303 = sbr.rel (0) target = $region17
  $region16: #{forward.30} parent=0 // pred_region
    _
  $region17: #{forward.30} parent=0 // pred_fallthru
    _
  // Predicated region
  $region18: #{forward.30} parent=0 // pred_check
    _
  $region19: #{forward.30} parent=0 // pred_check_branch
    %305 = sbr.rel (0) target = $region21
  $region20: #{forward.30} parent=0 // pred_region
    _
  $region21: #{forward.30} parent=0 // pred_fallthru
    _

// kernel: squeeze.28
$region0: #{squeeze.28}
  %s0 = inlined_call_operand.vmem [shape: f32[8,3,3], index: 0, kind: input, shape index: {}]
  %s1 = inlined_call_operand.vmem [shape: f32[8,9], index: 1, kind: output, shape index: {}]
  $region1: #{squeeze.28} parent=0
    #allocation0 [shape = 'u8[12288]{0}', space=vmem, size = 0x3000, scoped, tag = 'scoped mem for input reshape']
    %s3 = sshllo.u32 0, 4
    %s4 = smul.addr 4, 2
    %s5 = scalar_lea.vmem %s0, %s4
    %v6 = vld [vmem:[%s5] sm:%s3]
    %s7 = scalar_lea.vmem [#allocation0], 16
    %8 = vst [vmem:[%s7] sm:%s3] %v6
    %s9 = scalar_lea.vmem %s0, 4
    %v10 = vld [vmem:[%s9] sm:%s3]
    %s11 = scalar_lea.vmem [#allocation0], 8
    %12 = vst [vmem:[%s11] sm:%s3] %v10
    %v13 = vld [vmem:[%s0] sm:%s3]
    %14 = vst [vmem:[#allocation0] sm:%s3] %v13
    %v15 = vld [vmem:[#allocation0] sm:$0x7]
    %vm16 = vcmask 64512
    %17 = vst.msk [vmem:[%s1] sm:$0x7] %vm16, %v15
    %s18 = scalar_lea.vmem [#allocation0], 8
    %v19 = vld [vmem:[%s18] sm:$0x7]
    %vm20 = vcmask 64512
    %s21 = scalar_lea.vmem %s1, 3
    %22 = vst.msk [vmem:[%s21] sm:$0x7] %vm20, %v19
    %s23 = scalar_lea.vmem [#allocation0], 16
    %v24 = vld [vmem:[%s23] sm:$0x7]
    %vm25 = vcmask 64512
    %s26 = scalar_lea.vmem %s1, 6
    %27 = vst.msk [vmem:[%s26] sm:$0x7] %vm25, %v24

// kernel: forward.32
$region0: #{forward.32}
  #allocation0 [shape = 'u32[]', space=smem, size = 0x4, offset = 0x4, fixed_abs, tag = 'smem constant byte address 0x4 - core index']
  #allocation1 [shape = 'u32[144,128]{1,0:T(1,128)}', space=vmem, size = 0x12000, scoped, tag = 'internal scratch']
  %s0 = inlined_call_operand.vmem [shape: bf16[128,72], index: 0, kind: input, shape index: {}]
  %s1 = inlined_call_operand.vmem [shape: bf16[72,24], index: 1, kind: input, shape index: {}]
  %s2 = inlined_call_operand.vmem [shape: f32[1,24], index: 2, kind: input, shape index: {}]
  %s3 = inlined_call_operand.vmem [shape: bf16[128,24], index: 3, kind: output, shape index: {}]
  %s4 = sld [smem:[#allocation0]]
  $region22: #{forward.32} parent=0
    _
  %s6 = ssub.s32 1, %s4
  %s7 = scalar_select 0, %s6, %s4
  // Predicated region
  $region2: #{forward.32} parent=0 // pred_check
    _
  $region3: #{forward.32} parent=0 // pred_check_branch
    %9 = sbr.rel (0) target = $region5
  $region4: #{forward.32} parent=0 // pred_region
    _
  $region5: #{forward.32} parent=0 // pred_fallthru
    _
  // Predicated region
  $region6: #{forward.32} parent=0 // pred_check
    _
  $region7: #{forward.32} parent=0 // pred_check_branch
    %11 = sbr.rel (0) target = $region9
  $region8: #{forward.32} parent=0 // pred_region
    _
  $region9: #{forward.32} parent=0 // pred_fallthru
    _
  // Predicated region
  $region10: #{forward.32} parent=0 // pred_check
    _
  $region11: #{forward.32} parent=0 // pred_check_branch
    %13 = sbr.rel (0) target = $region13
  $region12: #{forward.32} parent=0 // pred_region
    _
  $region13: #{forward.32} parent=0 // pred_fallthru
    _
  %v15 = vld [vmem:[%s0] sm:$0xf]
  %v16 = vld [vmem:[%s0 + $0x4] sm:$0xf]
  %v17 = vld [vmem:[%s0 + $0x8] sm:$0xf]
  %v18 = vld [vmem:[%s0 + $0xc] sm:$0xf]
  %v19 = vld [vmem:[%s0 + $0x10] sm:$0xf]
  %v20 = vld [vmem:[%s0 + $0x14] sm:$0xf]
  %v21 = vld [vmem:[%s0 + $0x18] sm:$0xf]
  %v22 = vld [vmem:[%s0 + $0x1c] sm:$0xf]
  %v23 = vld [vmem:[%s0 + $0x20] sm:$0xf]
  %v24 = vld [vmem:[%s0 + $0x24] sm:$0xf]
  %v25 = vld [vmem:[%s0 + $0x28] sm:$0xf]
  %v26 = vld [vmem:[%s0 + $0x2c] sm:$0xf]
  %v27 = vld [vmem:[%s0 + $0x30] sm:$0xf]
  %v28 = vld [vmem:[%s0 + $0x34] sm:$0xf]
  %v29 = vld [vmem:[%s0 + $0x38] sm:$0xf]
  %v30 = vld [vmem:[%s0 + $0x3c] sm:$0xf]
  %v31 = vld [vmem:[%s1] sm:$0xf]
  %v32 = vld [vmem:[%s1 + $0x4] sm:$0xf]
  %v33 = vld [vmem:[%s1 + $0x8] sm:$0xf]
  %v34 = vld [vmem:[%s1 + $0xc] sm:$0xf]
  %v35 = vld [vmem:[%s1 + $0x10] sm:$0xf]
  %v36 = vld [vmem:[%s1 + $0x14] sm:$0xf]
  %v37 = vld [vmem:[%s1 + $0x18] sm:$0xf]
  %v38 = vld [vmem:[%s1 + $0x1c] sm:$0xf]
  %v39 = vld [vmem:[%s1 + $0x20] sm:$0xf]
  %v40 = vld [vmem:[%s2] sm:$0x1]
  %v42 = vlaneseq
  %v43 = vshrl.u32 %v42, 7
  %v44 = vsub.s32 0, %v43
  %v45 = vrot.slane %v40, %v44
  %v63 = vunpack.c.l.b16 %v15
  %v64 = vunpack.c.l.b16 %v16
  %v65 = vunpack.c.l.b16 %v17
  %v66 = vunpack.c.l.b16 %v18
  %v67 = vunpack.c.l.b16 %v19
  %v68 = vunpack.c.l.b16 %v20
  %v69 = vunpack.c.l.b16 %v21
  %v70 = vunpack.c.l.b16 %v22
  %v71 = vunpack.c.l.b16 %v23
  %v72 = vunpack.c.l.b16 %v24
  %v73 = vunpack.c.l.b16 %v25
  %v74 = vunpack.c.l.b16 %v26
  %v75 = vunpack.c.l.b16 %v27
  %v76 = vunpack.c.l.b16 %v28
  %v77 = vunpack.c.l.b16 %v29
  %v78 = vunpack.c.l.b16 %v30
  %v79 = vpack.c.b16 %v64, %v63
  %v80 = vpack.c.b16 %v66, %v65
  %v81 = vpack.c.b16 %v68, %v67
  %v82 = vpack.c.b16 %v70, %v69
  %v83 = vpack.c.b16 %v72, %v71
  %v84 = vpack.c.b16 %v74, %v73
  %v85 = vpack.c.b16 %v76, %v75
  %v86 = vpack.c.b16 %v78, %v77
  %v96 = vunpack.c.l.b16 %v31
  %v97 = vunpack.c.l.b16 %v32
  %v98 = vunpack.c.l.b16 %v33
  %v99 = vunpack.c.l.b16 %v34
  %v100 = vunpack.c.l.b16 %v35
  %v101 = vunpack.c.l.b16 %v36
  %v102 = vunpack.c.l.b16 %v37
  %v103 = vunpack.c.l.b16 %v38
  %v104 = vunpack.c.l.b16 %v39
  %v105 = vpack.c.b16 %v97, %v96
  %v106 = vpack.c.b16 %v99, %v98
  %v107 = vpack.c.b16 %v101, %v100
  %v108 = vpack.c.b16 %v103, %v102
  %v109 = vpack.c.b16 %v104, %v104
  %vm114 = vcmask 588800
  %v116 = vsel %vm114, %v79, 0
  %v119 = vsel %vm114, %v80, 0
  %v122 = vsel %vm114, %v81, 0
  %v125 = vsel %vm114, %v82, 0
  %v128 = vsel %vm114, %v83, 0
  %v131 = vsel %vm114, %v84, 0
  %v134 = vsel %vm114, %v85, 0
  %v137 = vsel %vm114, %v86, 0
  %vm139 = vcmask 1043456
  %v141 = vsel %vm139, %v109, 0
  %143 = vmatprep.subr.bf16.mxu0 0
  %144 = vmatpush1.bf16.msra.mxu0 %v105
  %145 = vmatprep.subr.bf16.mxu0 0
  %146 = vmatpush1.bf16.msra.mxu0 %v106
  %147 = vmatprep.subr.bf16.mxu0 0
  %148 = vmatpush1.bf16.msra.mxu0 %v107
  %149 = vmatprep.subr.bf16.mxu0 0
  %150 = vmatpush1.bf16.msra.mxu0 %v108
  %151 = vmatprep.subr.bf16.mxu0 0
  %152 = vmatpush1.bf16.msra.mxu0 %v141
  %153 = vmatprep.subr.bf16.mxu0 0
  %154 = vmatpush1.bf16.msra.mxu0 0
  %155 = vmatprep.subr.bf16.mxu0 0
  %156 = vmatpush1.bf16.msra.mxu0 0
  %157 = vmatprep.subr.bf16.mxu0 0
  %158 = vmatpush1.bf16.msra.mxu0 0
  %159 = vmatprep.subr.bf16.mxu0 0
  %160 = vmatpush1.bf16.msra.mxu0 0
  %161 = vmatprep.subr.bf16.mxu0 0
  %162 = vmatpush1.bf16.msra.mxu0 0
  %163 = vmatprep.subr.bf16.mxu0 0
  %164 = vmatpush1.bf16.msra.mxu0 0
  %165 = vmatprep.subr.bf16.mxu0 0
  %166 = vmatpush1.bf16.msra.mxu0 0
  %167 = vmatprep.subr.bf16.mxu0 0
  %168 = vmatpush1.bf16.msra.mxu0 0
  %169 = vmatprep.subr.bf16.mxu0 0
  %170 = vmatpush1.bf16.msra.mxu0 0
  %171 = vmatprep.subr.bf16.mxu0 0
  %172 = vmatpush1.bf16.msra.mxu0 0
  %173 = vmatprep.subr.bf16.mxu0 0
  %174 = vmatpush1.bf16.msra.mxu0 0
  %175 = vmatprep.mubr.bf16.mxu0 0
  %176 = vmatmul.mubr.bf16.gmra.mrb[0].mxu0 %v116
  %v177 = vpop.f32.mrb[0].mxu0
  %v178 = vadd.f32 %v45, %v177
  %v179 = vpop.f32.mrb[0].mxu0
  %v180 = vpop.f32.mrb[0].mxu0
  %v181 = vadd.f32 %v45, %v180
  %v182 = vpop.f32.mrb[0].mxu0
  %183 = vmatprep.mubr.bf16.mxu0 0
  %184 = vmatmul.mubr.bf16.gmra.mrb[0].mxu0 %v119
  %v185 = vpop.f32.mrb[0].mxu0
  %v186 = vadd.f32 %v45, %v185
  %v187 = vpop.f32.mrb[0].mxu0
  %v188 = vpop.f32.mrb[0].mxu0
  %v189 = vadd.f32 %v45, %v188
  %v190 = vpop.f32.mrb[0].mxu0
  %191 = vmatprep.mubr.bf16.mxu0 0
  %192 = vmatmul.mubr.bf16.gmra.mrb[0].mxu0 %v122
  %v193 = vpop.f32.mrb[0].mxu0
  %v194 = vadd.f32 %v45, %v193
  %v195 = vpop.f32.mrb[0].mxu0
  %v196 = vpop.f32.mrb[0].mxu0
  %v197 = vadd.f32 %v45, %v196
  %v198 = vpop.f32.mrb[0].mxu0
  %199 = vmatprep.mubr.bf16.mxu0 0
  %200 = vmatmul.mubr.bf16.gmra.mrb[0].mxu0 %v125
  %v201 = vpop.f32.mrb[0].mxu0
  %v202 = vadd.f32 %v45, %v201
  %v203 = vpop.f32.mrb[0].mxu0
  %v204 = vpop.f32.mrb[0].mxu0
  %v205 = vadd.f32 %v45, %v204
  %v206 = vpop.f32.mrb[0].mxu0
  %207 = vmatprep.mubr.bf16.mxu0 0
  %208 = vmatmul.mubr.bf16.gmra.mrb[0].mxu0 %v128
  %v209 = vpop.f32.mrb[0].mxu0
  %v210 = vadd.f32 %v45, %v209
  %v211 = vpop.f32.mrb[0].mxu0
  %v212 = vpop.f32.mrb[0].mxu0
  %v213 = vadd.f32 %v45, %v212
  %v214 = vpop.f32.mrb[0].mxu0
  %215 = vmatprep.mubr.bf16.mxu0 0
  %216 = vmatmul.mubr.bf16.gmra.mrb[0].mxu0 %v131
  %v217 = vpop.f32.mrb[0].mxu0
  %v218 = vadd.f32 %v45, %v217
  %v219 = vpop.f32.mrb[0].mxu0
  %v220 = vpop.f32.mrb[0].mxu0
  %v221 = vadd.f32 %v45, %v220
  %v222 = vpop.f32.mrb[0].mxu0
  %223 = vmatprep.mubr.bf16.mxu0 0
  %224 = vmatmul.mubr.bf16.gmra.mrb[0].mxu0 %v134
  %v225 = vpop.f32.mrb[0].mxu0
  %v226 = vadd.f32 %v45, %v225
  %v227 = vpop.f32.mrb[0].mxu0
  %v228 = vpop.f32.mrb[0].mxu0
  %v229 = vadd.f32 %v45, %v228
  %v230 = vpop.f32.mrb[0].mxu0
  %231 = vmatprep.mubr.bf16.mxu0 0
  %232 = vmatmul.mubr.bf16.gmra.mrb[0].mxu0 %v137
  %v233 = vpop.f32.mrb[0].mxu0
  %v234 = vadd.f32 %v45, %v233
  %v235 = vpop.f32.mrb[0].mxu0
  %v236 = vpop.f32.mrb[0].mxu0
  %v237 = vadd.f32 %v45, %v236
  %v238 = vpop.f32.mrb[0].mxu0
  %239 = vdwg.mxu0
  %v240 = vpack.c.bf16 %v181, %v178
  %v241 = vpack.c.bf16 %v189, %v186
  %v242 = vpack.c.bf16 %v197, %v194
  %v243 = vpack.c.bf16 %v205, %v202
  %v244 = vpack.c.bf16 %v213, %v210
  %v245 = vpack.c.bf16 %v221, %v218
  %v246 = vpack.c.bf16 %v229, %v226
  %v247 = vpack.c.bf16 %v237, %v234
  %v256 = vunpack.c.l.b16 %v240
  %v257 = vunpack.c.h.b16 %v240
  %v258 = vunpack.c.l.b16 %v241
  %v259 = vunpack.c.h.b16 %v241
  %v260 = vunpack.c.l.b16 %v242
  %v261 = vunpack.c.h.b16 %v242
  %v262 = vunpack.c.l.b16 %v243
  %v263 = vunpack.c.h.b16 %v243
  %v264 = vunpack.c.l.b16 %v244
  %v265 = vunpack.c.h.b16 %v244
  %v266 = vunpack.c.l.b16 %v245
  %v267 = vunpack.c.h.b16 %v245
  %v268 = vunpack.c.l.b16 %v246
  %v269 = vunpack.c.h.b16 %v246
  %v270 = vunpack.c.l.b16 %v247
  %v271 = vunpack.c.h.b16 %v247
  %v272 = vpack.c.b16 %v256, %v256
  %v273 = vpack.c.b16 %v257, %v257
  %v274 = vpack.c.b16 %v258, %v258
  %v275 = vpack.c.b16 %v259, %v259
  %v276 = vpack.c.b16 %v260, %v260
  %v277 = vpack.c.b16 %v261, %v261
  %v278 = vpack.c.b16 %v262, %v262
  %v279 = vpack.c.b16 %v263, %v263
  %v280 = vpack.c.b16 %v264, %v264
  %v281 = vpack.c.b16 %v265, %v265
  %v282 = vpack.c.b16 %v266, %v266
  %v283 = vpack.c.b16 %v267, %v267
  %v284 = vpack.c.b16 %v268, %v268
  %v285 = vpack.c.b16 %v269, %v269
  %v286 = vpack.c.b16 %v270, %v270
  %v287 = vpack.c.b16 %v271, %v271
  %vm304 = vcmask 191488
  %305 = vst.msk [vmem:[%s3] sm:$0xf] %vm304, %v272
  %306 = vst.msk [vmem:[%s3 + $0x4] sm:$0xf] %vm304, %v273
  %307 = vst.msk [vmem:[%s3 + $0x8] sm:$0xf] %vm304, %v274
  %308 = vst.msk [vmem:[%s3 + $0xc] sm:$0xf] %vm304, %v275
  %309 = vst.msk [vmem:[%s3 + $0x10] sm:$0xf] %vm304, %v276
  %310 = vst.msk [vmem:[%s3 + $0x14] sm:$0xf] %vm304, %v277
  %311 = vst.msk [vmem:[%s3 + $0x18] sm:$0xf] %vm304, %v278
  %312 = vst.msk [vmem:[%s3 + $0x1c] sm:$0xf] %vm304, %v279
  %313 = vst.msk [vmem:[%s3 + $0x20] sm:$0xf] %vm304, %v280
  %314 = vst.msk [vmem:[%s3 + $0x24] sm:$0xf] %vm304, %v281
  %315 = vst.msk [vmem:[%s3 + $0x28] sm:$0xf] %vm304, %v282
  %316 = vst.msk [vmem:[%s3 + $0x2c] sm:$0xf] %vm304, %v283
  %317 = vst.msk [vmem:[%s3 + $0x30] sm:$0xf] %vm304, %v284
  %318 = vst.msk [vmem:[%s3 + $0x34] sm:$0xf] %vm304, %v285
  %319 = vst.msk [vmem:[%s3 + $0x38] sm:$0xf] %vm304, %v286
  %320 = vst.msk [vmem:[%s3 + $0x3c] sm:$0xf] %vm304, %v287
  // Predicated region
  $region14: #{forward.32} parent=0 // pred_check
    _
  $region15: #{forward.32} parent=0 // pred_check_branch
    %322 = sbr.rel (0) target = $region17
  $region16: #{forward.32} parent=0 // pred_region
    _
  $region17: #{forward.32} parent=0 // pred_fallthru
    _
  // Predicated region
  $region18: #{forward.32} parent=0 // pred_check
    _
  $region19: #{forward.32} parent=0 // pred_check_branch
    %324 = sbr.rel (0) target = $region21
  $region20: #{forward.32} parent=0 // pred_region
    _
  $region21: #{forward.32} parent=0 // pred_fallthru
    _

// kernel: forward.33
$region0: #{forward.33}
  #allocation0 [shape = 'u32[]', space=smem, size = 0x4, offset = 0x4, fixed_abs, tag = 'smem constant byte address 0x4 - core index']
  #allocation1 [shape = 'u32[144,128]{1,0:T(1,128)}', space=vmem, size = 0x12000, scoped, tag = 'internal scratch']
  %s0 = inlined_call_operand.vmem [shape: bf16[2,64,8], index: 0, kind: input, shape index: {}]
  %s1 = inlined_call_operand.vmem [shape: bf16[2,64,8], index: 1, kind: input, shape index: {}]
  %s2 = inlined_call_operand.vmem [shape: bf16[2,64,8], index: 2, kind: input, shape index: {}]
  %s3 = inlined_call_operand.vmem [shape: f32[2,64,8], index: 3, kind: output, shape index: {}]
  %s4 = sld [smem:[#allocation0]]
  $region45: #{forward.33} parent=0
    _
  %s6 = ssub.s32 1, %s4
  %s7 = scalar_select 0, %s6, %s4
  loop: start=0, step=1, limit=4
  $region2: #{forward.33} parent=0 // loop_pre_header
    _
  $region3: #{forward.33} parent=0 // loop_header
    %s9 = sphi 0, %s13
    %p10 = scmp.ge.s32.totalorder %s9, 4
    %s16 = sphi 0, %s28
    %s17 = sphi 0, %s24
    %s18 = sphi 0, %s16
    %s19 = sphi 0, %s17
    %s20 = sphi 0, %s18
    %s21 = sphi 0, %s19
    %s33 = sphi 0, %s35
    %s36 = sphi 0, %s33
    %s37 = sphi 0, %s36
    %s53 = sphi 0, %s37
    %s59 = sphi 0, %s61
    %s62 = sphi 0, %s59
    %s63 = sphi 0, %s62
    %s79 = sphi 0, %s63
    %s85 = sphi 0, %s87
    %s88 = sphi 0, %s85
    %s89 = sphi 0, %s88
    %s105 = sphi 0, %s89
    %s113 = sphi 0, %s115
    %s116 = sphi 0, %s113
    %s117 = sphi 0, %s116
    %s133 = sphi 0, %s117
  $region4: #{forward.33} parent=0 // loop_header_branch
    %12 = sbr.rel (%p10) target = $region8
  $region5: #{forward.33} parent=0 // loop_body
    %s14 = ssub.s32 %s9, 1
    %s15 = ssub.s32 %s9, 2
    %s22 = sadd.s32 1, %s17
    %p23 = scmp.ge.s32.totalorder %s22, 1
    %s24 = scalar_select %p23, 0, %s22
    %s25 = sadd.s32 1, %s16
    %s26 = scalar_select %p23, %s25, %s16
    %p27 = scmp.ge.s32.totalorder %s26, 2
    %s28 = scalar_select %p27, 0, %s26
    %s29 = ssub.s32 %s16, %s28
    %s30 = ssub.s32 %s17, %s24
    %s31 = sor.u32 %s29, %s30
    %p32 = scmp.eq.s32.totalorder %s31, 0
    %s34 = sadd.s32 %s33, 1
    %s35 = scalar_select %p32, %s33, %s34
    %p38 = pneg %p32
    %p39 = scmp.eq.s32.totalorder %s9, 1
    %p40 = por %p38, %p39
    %p41 = scmp.ne.s32.totalorder %s33, %s36
    %p42 = scmp.eq.s32.totalorder %s9, 0
    %p43 = por %p41, %p42
    %p44 = scmp.ne.s32.totalorder %s33, %s36
    %p45 = scmp.eq.s32.totalorder %s14, 1
    %p46 = por %p44, %p45
    %p47 = scmp.ne.s32.totalorder %s36, %s37
    %p48 = scmp.eq.s32.totalorder %s14, 0
    %p49 = por %p47, %p48
    %p50 = scmp.ne.s32.totalorder %s36, %s37
    %p51 = scmp.eq.s32.totalorder %s15, 1
    %p52 = por %p50, %p51
    %p54 = scmp.ne.s32.totalorder %s37, %s53
    %p55 = scmp.eq.s32.totalorder %s15, 0
    %p56 = por %p54, %p55
    %s57 = ssub.s32 %s16, %s28
    %p58 = scmp.eq.s32.totalorder %s57, 0
    %s60 = sadd.s32 %s59, 1
    %s61 = scalar_select %p58, %s59, %s60
    %p64 = pneg %p58
    %p65 = scmp.eq.s32.totalorder %s9, 1
    %p66 = por %p64, %p65
    %p67 = scmp.ne.s32.totalorder %s59, %s62
    %p68 = scmp.eq.s32.totalorder %s9, 0
    %p69 = por %p67, %p68
    %p70 = scmp.ne.s32.totalorder %s59, %s62
    %p71 = scmp.eq.s32.totalorder %s14, 1
    %p72 = por %p70, %p71
    %p73 = scmp.ne.s32.totalorder %s62, %s63
    %p74 = scmp.eq.s32.totalorder %s14, 0
    %p75 = por %p73, %p74
    %p76 = scmp.ne.s32.totalorder %s62, %s63
    %p77 = scmp.eq.s32.totalorder %s15, 1
    %p78 = por %p76, %p77
    %p80 = scmp.ne.s32.totalorder %s63, %s79
    %p81 = scmp.eq.s32.totalorder %s15, 0
    %p82 = por %p80, %p81
    %s83 = ssub.s32 %s16, %s28
    %p84 = scmp.eq.s32.totalorder %s83, 0
    %s86 = sadd.s32 %s85, 1
    %s87 = scalar_select %p84, %s85, %s86
    %p90 = pneg %p84
    %p91 = scmp.eq.s32.totalorder %s9, 1
    %p92 = por %p90, %p91
    %p93 = scmp.ne.s32.totalorder %s85, %s88
    %p94 = scmp.eq.s32.totalorder %s9, 0
    %p95 = por %p93, %p94
    %p96 = scmp.ne.s32.totalorder %s85, %s88
    %p97 = scmp.eq.s32.totalorder %s14, 1
    %p98 = por %p96, %p97
    %p99 = scmp.ne.s32.totalorder %s88, %s89
    %p100 = scmp.eq.s32.totalorder %s14, 0
    %p101 = por %p99, %p100
    %p102 = scmp.ne.s32.totalorder %s88, %s89
    %p103 = scmp.eq.s32.totalorder %s15, 1
    %p104 = por %p102, %p103
    %p106 = scmp.ne.s32.totalorder %s89, %s105
    %p107 = scmp.eq.s32.totalorder %s15, 0
    %p108 = por %p106, %p107
    %s109 = ssub.s32 %s16, %s28
    %s110 = ssub.s32 %s17, %s24
    %s111 = sor.u32 %s109, %s110
    %p112 = scmp.eq.s32.totalorder %s111, 0
    %s114 = sadd.s32 %s113, 1
    %s115 = scalar_select %p112, %s113, %s114
    %p118 = pneg %p112
    %p119 = scmp.eq.s32.totalorder %s9, 1
    %p120 = por %p118, %p119
    %p121 = scmp.ne.s32.totalorder %s113, %s116
    %p122 = scmp.eq.s32.totalorder %s9, 0
    %p123 = por %p121, %p122
    %p124 = scmp.ne.s32.totalorder %s113, %s116
    %p125 = scmp.eq.s32.totalorder %s14, 1
    %p126 = por %p124, %p125
    %p127 = scmp.ne.s32.totalorder %s116, %s117
    %p128 = scmp.eq.s32.totalorder %s14, 0
    %p129 = por %p127, %p128
    %p130 = scmp.ne.s32.totalorder %s116, %s117
    %p131 = scmp.eq.s32.totalorder %s15, 1
    %p132 = por %p130, %p131
    %p134 = scmp.ne.s32.totalorder %s117, %s133
    %p135 = scmp.eq.s32.totalorder %s15, 0
    %p136 = por %p134, %p135
    %p137 = scmp.le.s32.totalorder 1, %s9
    %p138 = scmp.lt.s32.totalorder %s9, 3
    %p139 = pnand %p137, %p138
    %p140 = pneg %p139
    // Predicated region
    $region9: #{forward.33} parent=5 // pred_check
      _
    $region10: #{forward.33} parent=5 // pred_check_branch
      %142 = sbr.rel (%p139) target = $region12
    $region11: #{forward.33} parent=5 // pred_region
      %s143 = ssub.s32 %s9, 1
    $region12: #{forward.33} parent=5 // pred_fallthru
      _
    %p144 = scmp.lt.s32.totalorder %s9, 2
    // Predicated region
    $region13: #{forward.33} parent=5 // pred_check
      %p145 = pneg %p144
    $region14: #{forward.33} parent=5 // pred_check_branch
      %147 = sbr.rel (%p145) target = $region16
    $region15: #{forward.33} parent=5 // pred_region
      // Predicated region
      $region17: #{forward.33} parent=15 // pred_check
        %p148 = pneg %p43
      $region18: #{forward.33} parent=15 // pred_check_branch
        %150 = sbr.rel (%p148) target = $region20
      $region19: #{forward.33} parent=15 // pred_region
        %s151 = smul.u32 8, %s17
        %p152 = scmp.lt.s32.totalorder %s16, 1
        %s153 = scalar_select %p152, %s16, 1
        %p154 = scmp.lt.s32.totalorder %s151, 7
        %s155 = scalar_select %p154, %s151, 7
        %s156 = smul.addr %s153, 8
        %s157 = sadd.s32 %s155, %s156
        %s158 = smul.addr %s157, 4
        %s159 = scalar_lea.vmem %s0, %s158
        %s160 = smul.u32 8, %s17
      $region20: #{forward.33} parent=15 // pred_fallthru
        _
      // Predicated region
      $region21: #{forward.33} parent=15 // pred_check
        %p161 = pneg %p69
      $region22: #{forward.33} parent=15 // pred_check_branch
        %163 = sbr.rel (%p161) target = $region24
      $region23: #{forward.33} parent=15 // pred_region
        %p164 = scmp.lt.s32.totalorder %s16, 1
        %s165 = scalar_select %p164, %s16, 1
        %s166 = smul.addr %s165, 8
        %s167 = smul.addr %s166, 4
        %s168 = scalar_lea.vmem %s1, %s167
      $region24: #{forward.33} parent=15 // pred_fallthru
        _
      // Predicated region
      $region25: #{forward.33} parent=15 // pred_check
        %p169 = pneg %p95
      $region26: #{forward.33} parent=15 // pred_check_branch
        %171 = sbr.rel (%p169) target = $region28
      $region27: #{forward.33} parent=15 // pred_region
        %p172 = scmp.lt.s32.totalorder %s16, 1
        %s173 = scalar_select %p172, %s16, 1
        %s174 = smul.addr %s173, 8
        %s175 = smul.addr %s174, 4
        %s176 = scalar_lea.vmem %s2, %s175
      $region28: #{forward.33} parent=15 // pred_fallthru
        _
    $region16: #{forward.33} parent=5 // pred_fallthru
      _
    %p177 = scmp.le.s32.totalorder 1, %s9
    %p178 = scmp.lt.s32.totalorder %s9, 3
    %p179 = pnand %p177, %p178
    %p180 = pneg %p179
    // Predicated region
    $region29: #{forward.33} parent=5 // pred_check
      _
    $region30: #{forward.33} parent=5 // pred_check_branch
      %182 = sbr.rel (%p179) target = $region32
    $region31: #{forward.33} parent=5 // pred_region
      %s183 = ssub.s32 %s9, 1
      %s184 = smul.u32 8, %s19
      %p185 = scmp.lt.s32.totalorder %s18, 1
      %s186 = scalar_select %p185, %s18, 1
      %p187 = scmp.lt.s32.totalorder %s184, 7
      %s188 = scalar_select %p187, %s184, 7
      %s189 = smul.addr %s186, 8
      %s190 = sadd.s32 %s188, %s189
      %s191 = smul.addr %s190, 4
      %s192 = scalar_lea.vmem %s0, %s191
      %p193 = pneg %p49
      %p194 = pneg %p46
      %p195 = scmp.lt.s32.totalorder %s18, 1
      %s196 = scalar_select %p195, %s18, 1
      %s197 = smul.addr %s196, 8
      %s198 = smul.addr %s197, 4
      %s199 = scalar_lea.vmem %s1, %s198
      %p200 = pneg %p75
      %p201 = pneg %p72
      %p202 = scmp.lt.s32.totalorder %s18, 1
      %s203 = scalar_select %p202, %s18, 1
      %s204 = smul.addr %s203, 8
      %s205 = smul.addr %s204, 4
      %s206 = scalar_lea.vmem %s2, %s205
      %p207 = pneg %p101
      %p208 = pneg %p98
      %p209 = pneg %p129
      %p210 = pneg %p126
      %s211 = smul.u32 8, %s19
      %p212 = scmp.lt.s32.totalorder %s18, 1
      %s213 = scalar_select %p212, %s18, 1
      %p214 = scmp.lt.s32.totalorder %s211, 7
      %s215 = scalar_select %p214, %s211, 7
      %s216 = smul.addr %s213, 8
      %s217 = sadd.s32 %s215, %s216
      %s218 = smul.addr %s217, 8
      %s219 = scalar_lea.vmem %s3, %s218
      %s220 = smul.u32 8, %s19
      %p221 = scmp.lt.s32.totalorder %s18, 1
      %s222 = scalar_select %p221, %s18, 1
      %p223 = scmp.lt.s32.totalorder %s220, 7
      %s224 = scalar_select %p223, %s220, 7
      %s225 = smul.addr %s222, 8
      %s226 = sadd.s32 %s224, %s225
      %s227 = smul.addr %s226, 4
      %s228 = scalar_lea.vmem %s0, %s227
      %s229 = smul.u32 8, %s19
      %p230 = scmp.lt.s32.totalorder %s18, 1
      %s231 = scalar_select %p230, %s18, 1
      %s232 = smul.addr %s231, 8
      %s233 = smul.addr %s232, 4
      %s234 = scalar_lea.vmem %s1, %s233
      %p235 = scmp.lt.s32.totalorder %s18, 1
      %s236 = scalar_select %p235, %s18, 1
      %s237 = smul.addr %s236, 8
      %s238 = smul.addr %s237, 4
      %s239 = scalar_lea.vmem %s2, %s238
      %s240 = smul.u32 8, %s19
      %p241 = scmp.lt.s32.totalorder %s18, 1
      %s242 = scalar_select %p241, %s18, 1
      %p243 = scmp.lt.s32.totalorder %s240, 7
      %s244 = scalar_select %p243, %s240, 7
      %s245 = smul.addr %s242, 8
      %s246 = sadd.s32 %s244, %s245
      %s247 = smul.addr %s246, 8
      %s248 = scalar_lea.vmem %s3, %s247
      %s249 = smul.u32 8, %s19
      %v251 = vld [vmem:[%s228] sm:$0xf]
      %v252 = vld [vmem:[%s228 + $0x4] sm:$0xf]
      %v253 = vld [vmem:[%s228 + $0x8] sm:$0xf]
      %v254 = vld [vmem:[%s228 + $0xc] sm:$0xf]
      %v255 = vld [vmem:[%s228 + $0x10] sm:$0xf]
      %v256 = vld [vmem:[%s228 + $0x14] sm:$0xf]
      %v257 = vld [vmem:[%s228 + $0x18] sm:$0xf]
      %v258 = vld [vmem:[%s228 + $0x1c] sm:$0xf]
      %v259 = vld [vmem:[%s234] sm:$0xf]
      %v260 = vld [vmem:[%s234 + $0x4] sm:$0xf]
      %v261 = vld [vmem:[%s234 + $0x8] sm:$0xf]
      %v262 = vld [vmem:[%s234 + $0xc] sm:$0xf]
      %v263 = vld [vmem:[%s234 + $0x10] sm:$0xf]
      %v264 = vld [vmem:[%s234 + $0x14] sm:$0xf]
      %v265 = vld [vmem:[%s234 + $0x18] sm:$0xf]
      %v266 = vld [vmem:[%s234 + $0x1c] sm:$0xf]
      %v267 = vld [vmem:[%s239] sm:$0xf]
      %v268 = vld [vmem:[%s239 + $0x4] sm:$0xf]
      %v269 = vld [vmem:[%s239 + $0x8] sm:$0xf]
      %v270 = vld [vmem:[%s239 + $0xc] sm:$0xf]
      %v271 = vld [vmem:[%s239 + $0x10] sm:$0xf]
      %v272 = vld [vmem:[%s239 + $0x14] sm:$0xf]
      %v273 = vld [vmem:[%s239 + $0x18] sm:$0xf]
      %v274 = vld [vmem:[%s239 + $0x1c] sm:$0xf]
      %v283 = vunpack.c.l.b16 %v251
      %v284 = vunpack.c.l.b16 %v252
      %v285 = vunpack.c.l.b16 %v253
      %v286 = vunpack.c.l.b16 %v254
      %v287 = vunpack.c.l.b16 %v255
      %v288 = vunpack.c.l.b16 %v256
      %v289 = vunpack.c.l.b16 %v257
      %v290 = vunpack.c.l.b16 %v258
      %v291 = vpack.c.b16 %v284, %v283
      %v292 = vpack.c.b16 %v286, %v285
      %v293 = vpack.c.b16 %v288, %v287
      %v294 = vpack.c.b16 %v290, %v289
      %v303 = vunpack.c.l.b16 %v259
      %v304 = vunpack.c.l.b16 %v260
      %v305 = vunpack.c.l.b16 %v261
      %v306 = vunpack.c.l.b16 %v262
      %v307 = vunpack.c.l.b16 %v263
      %v308 = vunpack.c.l.b16 %v264
      %v309 = vunpack.c.l.b16 %v265
      %v310 = vunpack.c.l.b16 %v266
      %v311 = vpack.c.b16 %v304, %v303
      %v312 = vpack.c.b16 %v306, %v305
      %v313 = vpack.c.b16 %v308, %v307
      %v314 = vpack.c.b16 %v310, %v309
      %vm315 = vcmask 64512
      %v317 = vsel %vm315, %v291, 0
      %v320 = vsel %vm315, %v292, 0
      %v323 = vsel %vm315, %v293, 0
      %v326 = vsel %vm315, %v294, 0
      %v329 = vsel %vm315, %v311, 0
      %v332 = vsel %vm315, %v312, 0
      %v335 = vsel %vm315, %v313, 0
      %v338 = vsel %vm315, %v314, 0
      %340 = vmatprep.subr.bf16.mxu0 0
      %341 = vmatpush1.bf16.xpose.msra.mxu0 %v329
      %342 = vmatprep.subr.bf16.mxu0 0
      %343 = vmatpush1.bf16.xpose.msra.mxu0 %v332
      %344 = vmatprep.subr.bf16.mxu0 0
      %345 = vmatpush1.bf16.xpose.msra.mxu0 %v335
      %346 = vmatprep.subr.bf16.mxu0 0
      %347 = vmatpush1.bf16.xpose.msra.mxu0 %v338
      %348 = vmatprep.subr.bf16.mxu0 0
      %349 = vmatpush1.bf16.xpose.msra.mxu0 0
      %350 = vmatprep.subr.bf16.mxu0 0
      %351 = vmatpush1.bf16.xpose.msra.mxu0 0
      %352 = vmatprep.subr.bf16.mxu0 0
      %353 = vmatpush1.bf16.xpose.msra.mxu0 0
      %354 = vmatprep.subr.bf16.mxu0 0
      %355 = vmatpush1.bf16.xpose.msra.mxu0 0
      %356 = vmatprep.subr.bf16.mxu0 0
      %357 = vmatpush1.bf16.xpose.msra.mxu0 0
      %358 = vmatprep.subr.bf16.mxu0 0
      %359 = vmatpush1.bf16.xpose.msra.mxu0 0
      %360 = vmatprep.subr.bf16.mxu0 0
      %361 = vmatpush1.bf16.xpose.msra.mxu0 0
      %362 = vmatprep.subr.bf16.mxu0 0
      %363 = vmatpush1.bf16.xpose.msra.mxu0 0
      %364 = vmatprep.subr.bf16.mxu0 0
      %365 = vmatpush1.bf16.xpose.msra.mxu0 0
      %366 = vmatprep.subr.bf16.mxu0 0
      %367 = vmatpush1.bf16.xpose.msra.mxu0 0
      %368 = vmatprep.subr.bf16.mxu0 0
      %369 = vmatpush1.bf16.xpose.msra.mxu0 0
      %370 = vmatprep.subr.bf16.mxu0 0
      %371 = vmatpush1.bf16.xpose.msra.mxu0 0
      %372 = vmatprep.mubr.bf16.mxu0 0
      %373 = vmatmul.mubr.bf16.gmra.mrb[0].mxu0 %v317
      %v374 = vpop.f32.mrb[0].mxu0
      %v375 = vadd.f32 0.0, %v374
      %v376 = vpop.f32.mrb[0].mxu0
      %v377 = vpop.f32.mrb[0].mxu0
      %v378 = vadd.f32 0.0, %v377
      %v379 = vpop.f32.mrb[0].mxu0
      %380 = vmatprep.mubr.bf16.mxu0 0
      %381 = vmatmul.mubr.bf16.gmra.mrb[0].mxu0 %v320
      %v382 = vpop.f32.mrb[0].mxu0
      %v383 = vadd.f32 0.0, %v382
      %v384 = vpop.f32.mrb[0].mxu0
      %v385 = vpop.f32.mrb[0].mxu0
      %v386 = vadd.f32 0.0, %v385
      %v387 = vpop.f32.mrb[0].mxu0
      %388 = vmatprep.mubr.bf16.mxu0 0
      %389 = vmatmul.mubr.bf16.gmra.mrb[0].mxu0 %v323
      %v390 = vpop.f32.mrb[0].mxu0
      %v391 = vadd.f32 0.0, %v390
      %v392 = vpop.f32.mrb[0].mxu0
      %v393 = vpop.f32.mrb[0].mxu0
      %v394 = vadd.f32 0.0, %v393
      %v395 = vpop.f32.mrb[0].mxu0
      %396 = vmatprep.mubr.bf16.mxu0 0
      %397 = vmatmul.mubr.bf16.gmra.mrb[0].mxu0 %v326
      %v398 = vpop.f32.mrb[0].mxu0
      %v399 = vadd.f32 0.0, %v398
      %v400 = vpop.f32.mrb[0].mxu0
      %v401 = vpop.f32.mrb[0].mxu0
      %v402 = vadd.f32 0.0, %v401
      %v403 = vpop.f32.mrb[0].mxu0
      %404 = vdwg.mxu0
      %v405 = vmul.f32 %v375, 0.35355338
      %v406 = vmul.f32 %v378, 0.35355338
      %v407 = vmul.f32 %v383, 0.35355338
      %v408 = vmul.f32 %v386, 0.35355338
      %v409 = vmul.f32 %v391, 0.35355338
      %v410 = vmul.f32 %v394, 0.35355338
      %v411 = vmul.f32 %v399, 0.35355338
      %v412 = vmul.f32 %v402, 0.35355338
      %vm413 = vcmask 523264
      %v414 = vsel %vm413, %v405, -inf
      %415 = vmax.xlane.f32.xlu0 %v414
      %v416 = vpop.xlane.xlu0 %415
      %v417 = vsel %vm413, %v406, -inf
      %418 = vmax.xlane.f32.xlu0 %v417
      %v419 = vpop.xlane.xlu0 %418
      %v420 = vsel %vm413, %v407, -inf
      %421 = vmax.xlane.f32.xlu0 %v420
      %v422 = vpop.xlane.xlu0 %421
      %v423 = vsel %vm413, %v408, -inf
      %424 = vmax.xlane.f32.xlu0 %v423
      %v425 = vpop.xlane.xlu0 %424
      %v426 = vsel %vm413, %v409, -inf
      %427 = vmax.xlane.f32.xlu0 %v426
      %v428 = vpop.xlane.xlu0 %427
      %v429 = vsel %vm413, %v410, -inf
      %430 = vmax.xlane.f32.xlu0 %v429
      %v431 = vpop.xlane.xlu0 %430
      %v432 = vsel %vm413, %v411, -inf
      %433 = vmax.xlane.f32.xlu0 %v432
      %v434 = vpop.xlane.xlu0 %433
      %v435 = vsel %vm413, %v412, -inf
      %436 = vmax.xlane.f32.xlu0 %v435
      %v437 = vpop.xlane.xlu0 %436
      %v438 = vsub.f32 %v405, %v416
      %v439 = vsub.f32 %v406, %v419
      %v440 = vsub.f32 %v407, %v422
      %v441 = vsub.f32 %v408, %v425
      %v442 = vsub.f32 %v409, %v428
      %v443 = vsub.f32 %v410, %v431
      %v444 = vsub.f32 %v411, %v434
      %v445 = vsub.f32 %v412, %v437
      %v446 = vmul.f32 %v438, 1.442695
      %v447 = vpow.pop %v446
      %v448 = vmul.f32 %v439, 1.442695
      %v449 = vpow.pop %v448
      %v450 = vmul.f32 %v440, 1.442695
      %v451 = vpow.pop %v450
      %v452 = vmul.f32 %v441, 1.442695
      %v453 = vpow.pop %v452
      %v454 = vmul.f32 %v442, 1.442695
      %v455 = vpow.pop %v454
      %v456 = vmul.f32 %v443, 1.442695
      %v457 = vpow.pop %v456
      %v458 = vmul.f32 %v444, 1.442695
      %v459 = vpow.pop %v458
      %v460 = vmul.f32 %v445, 1.442695
      %v461 = vpow.pop %v460
      %v462 = vsel %vm413, %v447, 0.0
      %463 = vadd.xlane.f32.xlu0 %v462
      %v464 = vpop.xlane.xlu0 %463
      %v465 = vsel %vm413, %v449, 0.0
      %466 = vadd.xlane.f32.xlu0 %v465
      %v467 = vpop.xlane.xlu0 %466
      %v468 = vsel %vm413, %v451, 0.0
      %469 = vadd.xlane.f32.xlu0 %v468
      %v470 = vpop.xlane.xlu0 %469
      %v471 = vsel %vm413, %v453, 0.0
      %472 = vadd.xlane.f32.xlu0 %v471
      %v473 = vpop.xlane.xlu0 %472
      %v474 = vsel %vm413, %v455, 0.0
      %475 = vadd.xlane.f32.xlu0 %v474
      %v476 = vpop.xlane.xlu0 %475
      %v477 = vsel %vm413, %v457, 0.0
      %478 = vadd.xlane.f32.xlu0 %v477
      %v479 = vpop.xlane.xlu0 %478
      %v480 = vsel %vm413, %v459, 0.0
      %481 = vadd.xlane.f32.xlu0 %v480
      %v482 = vpop.xlane.xlu0 %481
      %v483 = vsel %vm413, %v461, 0.0
      %484 = vadd.xlane.f32.xlu0 %v483
      %v485 = vpop.xlane.xlu0 %484
      %v486 = vrcp.pop %v464
      %v487 = vmul.f32 %v447, %v486
      %v488 = vrcp.pop %v467
      %v489 = vmul.f32 %v449, %v488
      %v490 = vrcp.pop %v470
      %v491 = vmul.f32 %v451, %v490
      %v492 = vrcp.pop %v473
      %v493 = vmul.f32 %v453, %v492
      %v494 = vrcp.pop %v476
      %v495 = vmul.f32 %v455, %v494
      %v496 = vrcp.pop %v479
      %v497 = vmul.f32 %v457, %v496
      %v498 = vrcp.pop %v482
      %v499 = vmul.f32 %v459, %v498
      %v500 = vrcp.pop %v485
      %v501 = vmul.f32 %v461, %v500
      %v502 = vpack.c.bf16 %v489, %v487
      %v503 = vpack.c.bf16 %v493, %v491
      %v504 = vpack.c.bf16 %v497, %v495
      %v505 = vpack.c.bf16 %v501, %v499
      %v514 = vunpack.c.l.b16 %v267
      %v515 = vunpack.c.l.b16 %v268
      %v516 = vunpack.c.l.b16 %v269
      %v517 = vunpack.c.l.b16 %v270
      %v518 = vunpack.c.l.b16 %v271
      %v519 = vunpack.c.l.b16 %v272
      %v520 = vunpack.c.l.b16 %v273
      %v521 = vunpack.c.l.b16 %v274
      %v522 = vpack.c.b16 %v515, %v514
      %v523 = vpack.c.b16 %v517, %v516
      %v524 = vpack.c.b16 %v519, %v518
      %v525 = vpack.c.b16 %v521, %v520
      %v531 = vsel %vm413, %v502, 0
      %v534 = vsel %vm413, %v503, 0
      %v537 = vsel %vm413, %v504, 0
      %v540 = vsel %vm413, %v505, 0
      %542 = vmatprep.subr.bf16.mxu0 0
      %543 = vmatpush1.bf16.msra.mxu0 %v522
      %544 = vmatprep.subr.bf16.mxu0 0
      %545 = vmatpush1.bf16.msra.mxu0 %v523
      %546 = vmatprep.subr.bf16.mxu0 0
      %547 = vmatpush1.bf16.msra.mxu0 %v524
      %548 = vmatprep.subr.bf16.mxu0 0
      %549 = vmatpush1.bf16.msra.mxu0 %v525
      %550 = vmatprep.subr.bf16.mxu0 0
      %551 = vmatpush1.bf16.msra.mxu0 0
      %552 = vmatprep.subr.bf16.mxu0 0
      %553 = vmatpush1.bf16.msra.mxu0 0
      %554 = vmatprep.subr.bf16.mxu0 0
      %555 = vmatpush1.bf16.msra.mxu0 0
      %556 = vmatprep.subr.bf16.mxu0 0
      %557 = vmatpush1.bf16.msra.mxu0 0
      %558 = vmatprep.subr.bf16.mxu0 0
      %559 = vmatpush1.bf16.msra.mxu0 0
      %560 = vmatprep.subr.bf16.mxu0 0
      %561 = vmatpush1.bf16.msra.mxu0 0
      %562 = vmatprep.subr.bf16.mxu0 0
      %563 = vmatpush1.bf16.msra.mxu0 0
      %564 = vmatprep.subr.bf16.mxu0 0
      %565 = vmatpush1.bf16.msra.mxu0 0
      %566 = vmatprep.subr.bf16.mxu0 0
      %567 = vmatpush1.bf16.msra.mxu0 0
      %568 = vmatprep.subr.bf16.mxu0 0
      %569 = vmatpush1.bf16.msra.mxu0 0
      %570 = vmatprep.subr.bf16.mxu0 0
      %571 = vmatpush1.bf16.msra.mxu0 0
      %572 = vmatprep.subr.bf16.mxu0 0
      %573 = vmatpush1.bf16.msra.mxu0 0
      %574 = vmatprep.mubr.bf16.mxu0 0
      %575 = vmatmul.mubr.bf16.gmra.mrb[0].mxu0 %v531
      %v576 = vpop.f32.mrb[0].mxu0
      %v577 = vadd.f32 0.0, %v576
      %v578 = vpop.f32.mrb[0].mxu0
      %v579 = vpop.f32.mrb[0].mxu0
      %v580 = vadd.f32 0.0, %v579
      %v581 = vpop.f32.mrb[0].mxu0
      %582 = vmatprep.mubr.bf16.mxu0 0
      %583 = vmatmul.mubr.bf16.gmra.mrb[0].mxu0 %v534
      %v584 = vpop.f32.mrb[0].mxu0
      %v585 = vadd.f32 0.0, %v584
      %v586 = vpop.f32.mrb[0].mxu0
      %v587 = vpop.f32.mrb[0].mxu0
      %v588 = vadd.f32 0.0, %v587
      %v589 = vpop.f32.mrb[0].mxu0
      %590 = vmatprep.mubr.bf16.mxu0 0
      %591 = vmatmul.mubr.bf16.gmra.mrb[0].mxu0 %v537
      %v592 = vpop.f32.mrb[0].mxu0
      %v593 = vadd.f32 0.0, %v592
      %v594 = vpop.f32.mrb[0].mxu0
      %v595 = vpop.f32.mrb[0].mxu0
      %v596 = vadd.f32 0.0, %v595
      %v597 = vpop.f32.mrb[0].mxu0
      %598 = vmatprep.mubr.bf16.mxu0 0
      %599 = vmatmul.mubr.bf16.gmra.mrb[0].mxu0 %v540
      %v600 = vpop.f32.mrb[0].mxu0
      %v601 = vadd.f32 0.0, %v600
      %v602 = vpop.f32.mrb[0].mxu0
      %v603 = vpop.f32.mrb[0].mxu0
      %v604 = vadd.f32 0.0, %v603
      %v605 = vpop.f32.mrb[0].mxu0
      %606 = vdwg.mxu0
      %607 = vst.msk [vmem:[%s248] sm:$0xff] %vm315, %v577
      %608 = vst.msk [vmem:[%s248 + $0x8] sm:$0xff] %vm315, %v580
      %609 = vst.msk [vmem:[%s248 + $0x10] sm:$0xff] %vm315, %v585
      %610 = vst.msk [vmem:[%s248 + $0x18] sm:$0xff] %vm315, %v588
      %611 = vst.msk [vmem:[%s248 + $0x20] sm:$0xff] %vm315, %v593
      %612 = vst.msk [vmem:[%s248 + $0x28] sm:$0xff] %vm315, %v596
      %613 = vst.msk [vmem:[%s248 + $0x30] sm:$0xff] %vm315, %v601
      %614 = vst.msk [vmem:[%s248 + $0x38] sm:$0xff] %vm315, %v604
      %s615 = smul.u32 8, %s19
      %p616 = scmp.lt.s32.totalorder %s18, 1
      %s617 = scalar_select %p616, %s18, 1
      %p618 = scmp.lt.s32.totalorder %s615, 7
      %s619 = scalar_select %p618, %s615, 7
      %s620 = smul.addr %s617, 8
      %s621 = sadd.s32 %s619, %s620
      %s622 = smul.addr %s621, 8
      %s623 = scalar_lea.vmem %s3, %s622
      // Predicated region
      $region33: #{forward.33} parent=31 // pred_check
        %p624 = pneg %p126
      $region34: #{forward.33} parent=31 // pred_check_branch
        %626 = sbr.rel (%p624) target = $region36
      $region35: #{forward.33} parent=31 // pred_region
        %s627 = smul.u32 8, %s19
      $region36: #{forward.33} parent=31 // pred_fallthru
        _
    $region32: #{forward.33} parent=5 // pred_fallthru
      _
    %p628 = scmp.le.s32.totalorder 2, %s9
    // Predicated region
    $region37: #{forward.33} parent=5 // pred_check
      %p629 = pneg %p628
    $region38: #{forward.33} parent=5 // pred_check_branch
      %631 = sbr.rel (%p629) target = $region40
    $region39: #{forward.33} parent=5 // pred_region
      %s632 = ssub.s32 %s9, 2
      // Predicated region
      $region41: #{forward.33} parent=39 // pred_check
        %p633 = pneg %p132
      $region42: #{forward.33} parent=39 // pred_check_branch
        %635 = sbr.rel (%p633) target = $region44
      $region43: #{forward.33} parent=39 // pred_region
        %s636 = smul.u32 8, %s21
        %p637 = scmp.lt.s32.totalorder %s20, 1
        %s638 = scalar_select %p637, %s20, 1
        %p639 = scmp.lt.s32.totalorder %s636, 7
        %s640 = scalar_select %p639, %s636, 7
        %s641 = smul.addr %s638, 8
        %s642 = sadd.s32 %s640, %s641
        %s643 = smul.addr %s642, 8
        %s644 = scalar_lea.vmem %s3, %s643
      $region44: #{forward.33} parent=39 // pred_fallthru
        _
    $region40: #{forward.33} parent=5 // pred_fallthru
      _
  $region6: #{forward.33} parent=0 // loop_footer
    %s13 = sadd.s32 1, %s9
  $region7: #{forward.33} parent=0 // loop_footer_branch
    %8 = sbr.rel target = $region3
  $region8: #{forward.33} parent=0 // loop_exit
    _

// kernel: forward.35
$region0: #{forward.35}
  #allocation0 [shape = 'u32[]', space=smem, size = 0x4, offset = 0x4, fixed_abs, tag = 'smem constant byte address 0x4 - core index']
  #allocation1 [shape = 'u32[144,128]{1,0:T(1,128)}', space=vmem, size = 0x12000, scoped, tag = 'internal scratch']
  %s0 = inlined_call_operand.vmem [shape: bf16[128,32], index: 0, kind: input, shape index: {}]
  %s1 = inlined_call_operand.vmem [shape: bf16[32,8], index: 1, kind: input, shape index: {}]
  %s2 = inlined_call_operand.vmem [shape: f32[1,8], index: 2, kind: input, shape index: {}]
  %s3 = inlined_call_operand.vmem [shape: f32[128,8], index: 3, kind: input, shape index: {}]
  %s4 = inlined_call_operand.vmem [shape: f32[128,8], index: 4, kind: output, shape index: {}]
  %s5 = sld [smem:[#allocation0]]
  $region26: #{forward.35} parent=0
    _
  %s7 = ssub.s32 1, %s5
  %s8 = scalar_select 0, %s7, %s5
  // Predicated region
  $region2: #{forward.35} parent=0 // pred_check
    _
  $region3: #{forward.35} parent=0 // pred_check_branch
    %10 = sbr.rel (0) target = $region5
  $region4: #{forward.35} parent=0 // pred_region
    _
  $region5: #{forward.35} parent=0 // pred_fallthru
    _
  // Predicated region
  $region6: #{forward.35} parent=0 // pred_check
    _
  $region7: #{forward.35} parent=0 // pred_check_branch
    %12 = sbr.rel (0) target = $region9
  $region8: #{forward.35} parent=0 // pred_region
    _
  $region9: #{forward.35} parent=0 // pred_fallthru
    _
  // Predicated region
  $region10: #{forward.35} parent=0 // pred_check
    _
  $region11: #{forward.35} parent=0 // pred_check_branch
    %14 = sbr.rel (0) target = $region13
  $region12: #{forward.35} parent=0 // pred_region
    _
  $region13: #{forward.35} parent=0 // pred_fallthru
    _
  // Predicated region
  $region14: #{forward.35} parent=0 // pred_check
    _
  $region15: #{forward.35} parent=0 // pred_check_branch
    %16 = sbr.rel (0) target = $region17
  $region16: #{forward.35} parent=0 // pred_region
    _
  $region17: #{forward.35} parent=0 // pred_fallthru
    _
  %v18 = vld [vmem:[%s0] sm:$0xf]
  %v19 = vld [vmem:[%s0 + $0x4] sm:$0xf]
  %v20 = vld [vmem:[%s0 + $0x8] sm:$0xf]
  %v21 = vld [vmem:[%s0 + $0xc] sm:$0xf]
  %v22 = vld [vmem:[%s0 + $0x10] sm:$0xf]
  %v23 = vld [vmem:[%s0 + $0x14] sm:$0xf]
  %v24 = vld [vmem:[%s0 + $0x18] sm:$0xf]
  %v25 = vld [vmem:[%s0 + $0x1c] sm:$0xf]
  %v26 = vld [vmem:[%s0 + $0x20] sm:$0xf]
  %v27 = vld [vmem:[%s0 + $0x24] sm:$0xf]
  %v28 = vld [vmem:[%s0 + $0x28] sm:$0xf]
  %v29 = vld [vmem:[%s0 + $0x2c] sm:$0xf]
  %v30 = vld [vmem:[%s0 + $0x30] sm:$0xf]
  %v31 = vld [vmem:[%s0 + $0x34] sm:$0xf]
  %v32 = vld [vmem:[%s0 + $0x38] sm:$0xf]
  %v33 = vld [vmem:[%s0 + $0x3c] sm:$0xf]
  %v34 = vld [vmem:[%s1] sm:$0xf]
  %v35 = vld [vmem:[%s1 + $0x4] sm:$0xf]
  %v36 = vld [vmem:[%s1 + $0x8] sm:$0xf]
  %v37 = vld [vmem:[%s1 + $0xc] sm:$0xf]
  %v38 = vld [vmem:[%s2] sm:$0x1]
  %v40 = vlaneseq
  %v41 = vshrl.u32 %v40, 7
  %v42 = vsub.s32 0, %v41
  %v43 = vrot.slane %v38, %v42
  %v61 = vunpack.c.l.b16 %v18
  %v62 = vunpack.c.l.b16 %v19
  %v63 = vunpack.c.l.b16 %v20
  %v64 = vunpack.c.l.b16 %v21
  %v65 = vunpack.c.l.b16 %v22
  %v66 = vunpack.c.l.b16 %v23
  %v67 = vunpack.c.l.b16 %v24
  %v68 = vunpack.c.l.b16 %v25
  %v69 = vunpack.c.l.b16 %v26
  %v70 = vunpack.c.l.b16 %v27
  %v71 = vunpack.c.l.b16 %v28
  %v72 = vunpack.c.l.b16 %v29
  %v73 = vunpack.c.l.b16 %v30
  %v74 = vunpack.c.l.b16 %v31
  %v75 = vunpack.c.l.b16 %v32
  %v76 = vunpack.c.l.b16 %v33
  %v77 = vpack.c.b16 %v62, %v61
  %v78 = vpack.c.b16 %v64, %v63
  %v79 = vpack.c.b16 %v66, %v65
  %v80 = vpack.c.b16 %v68, %v67
  %v81 = vpack.c.b16 %v70, %v69
  %v82 = vpack.c.b16 %v72, %v71
  %v83 = vpack.c.b16 %v74, %v73
  %v84 = vpack.c.b16 %v76, %v75
  %v89 = vunpack.c.l.b16 %v34
  %v90 = vunpack.c.l.b16 %v35
  %v91 = vunpack.c.l.b16 %v36
  %v92 = vunpack.c.l.b16 %v37
  %v93 = vpack.c.b16 %v90, %v89
  %v94 = vpack.c.b16 %v92, %v91
  %vm97 = vcmask 261120
  %v99 = vsel %vm97, %v77, 0
  %v102 = vsel %vm97, %v78, 0
  %v105 = vsel %vm97, %v79, 0
  %v108 = vsel %vm97, %v80, 0
  %v111 = vsel %vm97, %v81, 0
  %v114 = vsel %vm97, %v82, 0
  %v117 = vsel %vm97, %v83, 0
  %v120 = vsel %vm97, %v84, 0
  %122 = vmatprep.subr.bf16.mxu0 0
  %123 = vmatpush1.bf16.msra.mxu0 %v93
  %124 = vmatprep.subr.bf16.mxu0 0
  %125 = vmatpush1.bf16.msra.mxu0 %v94
  %126 = vmatprep.subr.bf16.mxu0 0
  %127 = vmatpush1.bf16.msra.mxu0 0
  %128 = vmatprep.subr.bf16.mxu0 0
  %129 = vmatpush1.bf16.msra.mxu0 0
  %130 = vmatprep.subr.bf16.mxu0 0
  %131 = vmatpush1.bf16.msra.mxu0 0
  %132 = vmatprep.subr.bf16.mxu0 0
  %133 = vmatpush1.bf16.msra.mxu0 0
  %134 = vmatprep.subr.bf16.mxu0 0
  %135 = vmatpush1.bf16.msra.mxu0 0
  %136 = vmatprep.subr.bf16.mxu0 0
  %137 = vmatpush1.bf16.msra.mxu0 0
  %138 = vmatprep.subr.bf16.mxu0 0
  %139 = vmatpush1.bf16.msra.mxu0 0
  %140 = vmatprep.subr.bf16.mxu0 0
  %141 = vmatpush1.bf16.msra.mxu0 0
  %142 = vmatprep.subr.bf16.mxu0 0
  %143 = vmatpush1.bf16.msra.mxu0 0
  %144 = vmatprep.subr.bf16.mxu0 0
  %145 = vmatpush1.bf16.msra.mxu0 0
  %146 = vmatprep.subr.bf16.mxu0 0
  %147 = vmatpush1.bf16.msra.mxu0 0
  %148 = vmatprep.subr.bf16.mxu0 0
  %149 = vmatpush1.bf16.msra.mxu0 0
  %150 = vmatprep.subr.bf16.mxu0 0
  %151 = vmatpush1.bf16.msra.mxu0 0
  %152 = vmatprep.subr.bf16.mxu0 0
  %153 = vmatpush1.bf16.msra.mxu0 0
  %154 = vmatprep.mubr.bf16.mxu0 0
  %155 = vmatmul.mubr.bf16.gmra.mrb[0].mxu0 %v99
  %v156 = vpop.f32.mrb[0].mxu0
  %v157 = vadd.f32 %v43, %v156
  %v158 = vpop.f32.mrb[0].mxu0
  %v159 = vpop.f32.mrb[0].mxu0
  %v160 = vadd.f32 %v43, %v159
  %v161 = vpop.f32.mrb[0].mxu0
  %162 = vmatprep.mubr.bf16.mxu0 0
  %163 = vmatmul.mubr.bf16.gmra.mrb[0].mxu0 %v102
  %v164 = vpop.f32.mrb[0].mxu0
  %v165 = vadd.f32 %v43, %v164
  %v166 = vpop.f32.mrb[0].mxu0
  %v167 = vpop.f32.mrb[0].mxu0
  %v168 = vadd.f32 %v43, %v167
  %v169 = vpop.f32.mrb[0].mxu0
  %170 = vmatprep.mubr.bf16.mxu0 0
  %171 = vmatmul.mubr.bf16.gmra.mrb[0].mxu0 %v105
  %v172 = vpop.f32.mrb[0].mxu0
  %v173 = vadd.f32 %v43, %v172
  %v174 = vpop.f32.mrb[0].mxu0
  %v175 = vpop.f32.mrb[0].mxu0
  %v176 = vadd.f32 %v43, %v175
  %v177 = vpop.f32.mrb[0].mxu0
  %178 = vmatprep.mubr.bf16.mxu0 0
  %179 = vmatmul.mubr.bf16.gmra.mrb[0].mxu0 %v108
  %v180 = vpop.f32.mrb[0].mxu0
  %v181 = vadd.f32 %v43, %v180
  %v182 = vpop.f32.mrb[0].mxu0
  %v183 = vpop.f32.mrb[0].mxu0
  %v184 = vadd.f32 %v43, %v183
  %v185 = vpop.f32.mrb[0].mxu0
  %186 = vmatprep.mubr.bf16.mxu0 0
  %187 = vmatmul.mubr.bf16.gmra.mrb[0].mxu0 %v111
  %v188 = vpop.f32.mrb[0].mxu0
  %v189 = vadd.f32 %v43, %v188
  %v190 = vpop.f32.mrb[0].mxu0
  %v191 = vpop.f32.mrb[0].mxu0
  %v192 = vadd.f32 %v43, %v191
  %v193 = vpop.f32.mrb[0].mxu0
  %194 = vmatprep.mubr.bf16.mxu0 0
  %195 = vmatmul.mubr.bf16.gmra.mrb[0].mxu0 %v114
  %v196 = vpop.f32.mrb[0].mxu0
  %v197 = vadd.f32 %v43, %v196
  %v198 = vpop.f32.mrb[0].mxu0
  %v199 = vpop.f32.mrb[0].mxu0
  %v200 = vadd.f32 %v43, %v199
  %v201 = vpop.f32.mrb[0].mxu0
  %202 = vmatprep.mubr.bf16.mxu0 0
  %203 = vmatmul.mubr.bf16.gmra.mrb[0].mxu0 %v117
  %v204 = vpop.f32.mrb[0].mxu0
  %v205 = vadd.f32 %v43, %v204
  %v206 = vpop.f32.mrb[0].mxu0
  %v207 = vpop.f32.mrb[0].mxu0
  %v208 = vadd.f32 %v43, %v207
  %v209 = vpop.f32.mrb[0].mxu0
  %210 = vmatprep.mubr.bf16.mxu0 0
  %211 = vmatmul.mubr.bf16.gmra.mrb[0].mxu0 %v120
  %v212 = vpop.f32.mrb[0].mxu0
  %v213 = vadd.f32 %v43, %v212
  %v214 = vpop.f32.mrb[0].mxu0
  %v215 = vpop.f32.mrb[0].mxu0
  %v216 = vadd.f32 %v43, %v215
  %v217 = vpop.f32.mrb[0].mxu0
  %218 = vdwg.mxu0
  %v219 = vld [vmem:[%s3] sm:$0xff]
  %v220 = vld [vmem:[%s3 + $0x8] sm:$0xff]
  %v221 = vld [vmem:[%s3 + $0x10] sm:$0xff]
  %v222 = vld [vmem:[%s3 + $0x18] sm:$0xff]
  %v223 = vld [vmem:[%s3 + $0x20] sm:$0xff]
  %v224 = vld [vmem:[%s3 + $0x28] sm:$0xff]
  %v225 = vld [vmem:[%s3 + $0x30] sm:$0xff]
  %v226 = vld [vmem:[%s3 + $0x38] sm:$0xff]
  %v227 = vld [vmem:[%s3 + $0x40] sm:$0xff]
  %v228 = vld [vmem:[%s3 + $0x48] sm:$0xff]
  %v229 = vld [vmem:[%s3 + $0x50] sm:$0xff]
  %v230 = vld [vmem:[%s3 + $0x58] sm:$0xff]
  %v231 = vld [vmem:[%s3 + $0x60] sm:$0xff]
  %v232 = vld [vmem:[%s3 + $0x68] sm:$0xff]
  %v233 = vld [vmem:[%s3 + $0x70] sm:$0xff]
  %v234 = vld [vmem:[%s3 + $0x78] sm:$0xff]
  %v235 = vadd.f32 %v157, %v219
  %v236 = vadd.f32 %v160, %v220
  %v237 = vadd.f32 %v165, %v221
  %v238 = vadd.f32 %v168, %v222
  %v239 = vadd.f32 %v173, %v223
  %v240 = vadd.f32 %v176, %v224
  %v241 = vadd.f32 %v181, %v225
  %v242 = vadd.f32 %v184, %v226
  %v243 = vadd.f32 %v189, %v227
  %v244 = vadd.f32 %v192, %v228
  %v245 = vadd.f32 %v197, %v229
  %v246 = vadd.f32 %v200, %v230
  %v247 = vadd.f32 %v205, %v231
  %v248 = vadd.f32 %v208, %v232
  %v249 = vadd.f32 %v213, %v233
  %v250 = vadd.f32 %v216, %v234
  %vm251 = vcmask 64512
  %252 = vst.msk [vmem:[%s4] sm:$0xff] %vm251, %v235
  %253 = vst.msk [vmem:[%s4 + $0x8] sm:$0xff] %vm251, %v236
  %254 = vst.msk [vmem:[%s4 + $0x10] sm:$0xff] %vm251, %v237
  %255 = vst.msk [vmem:[%s4 + $0x18] sm:$0xff] %vm251, %v238
  %256 = vst.msk [vmem:[%s4 + $0x20] sm:$0xff] %vm251, %v239
  %257 = vst.msk [vmem:[%s4 + $0x28] sm:$0xff] %vm251, %v240
  %258 = vst.msk [vmem:[%s4 + $0x30] sm:$0xff] %vm251, %v241
  %259 = vst.msk [vmem:[%s4 + $0x38] sm:$0xff] %vm251, %v242
  %260 = vst.msk [vmem:[%s4 + $0x40] sm:$0xff] %vm251, %v243
  %261 = vst.msk [vmem:[%s4 + $0x48] sm:$0xff] %vm251, %v244
  %262 = vst.msk [vmem:[%s4 + $0x50] sm:$0xff] %vm251, %v245
  %263 = vst.msk [vmem:[%s4 + $0x58] sm:$0xff] %vm251, %v246
  %264 = vst.msk [vmem:[%s4 + $0x60] sm:$0xff] %vm251, %v247
  %265 = vst.msk [vmem:[%s4 + $0x68] sm:$0xff] %vm251, %v248
  %266 = vst.msk [vmem:[%s4 + $0x70] sm:$0xff] %vm251, %v249
  %267 = vst.msk [vmem:[%s4 + $0x78] sm:$0xff] %vm251, %v250
  // Predicated region
  $region18: #{forward.35} parent=0 // pred_check
    _
  $region19: #{forward.35} parent=0 // pred_check_branch
    %269 = sbr.rel (0) target = $region21
  $region20: #{forward.35} parent=0 // pred_region
    _
  $region21: #{forward.35} parent=0 // pred_fallthru
    _
  // Predicated region
  $region22: #{forward.35} parent=0 // pred_check
    _
  $region23: #{forward.35} parent=0 // pred_check_branch
    %271 = sbr.rel (0) target = $region25
  $region24: #{forward.35} parent=0 // pred_region
    _
  $region25: #{forward.35} parent=0 // pred_fallthru
    _

// kernel: forward.34
$region0: #{forward.34}
  #allocation0 [shape = 'u32[]', space=smem, size = 0x4, offset = 0x4, fixed_abs, tag = 'smem constant byte address 0x4 - core index']
  #allocation1 [shape = 'u32[144,128]{1,0:T(1,128)}', space=vmem, size = 0x12000, scoped, tag = 'internal scratch']
  %s0 = inlined_call_operand.vmem [shape: f32[128,8], index: 0, kind: input, shape index: {}]
  %s1 = inlined_call_operand.vmem [shape: f32[1,8], index: 1, kind: input, shape index: {}]
  %s2 = inlined_call_operand.vmem [shape: f32[1,8], index: 2, kind: input, shape index: {}]
  %s3 = inlined_call_operand.vmem [shape: bf16[8,32], index: 3, kind: input, shape index: {}]
  %s4 = inlined_call_operand.vmem [shape: f32[1,32], index: 4, kind: input, shape index: {}]
  %s5 = inlined_call_operand.vmem [shape: bf16[128,32], index: 5, kind: output, shape index: {}]
  %s6 = sld [smem:[#allocation0]]
  $region30: #{forward.34} parent=0
    _
  %s8 = ssub.s32 1, %s6
  %s9 = scalar_select 0, %s8, %s6
  // Predicated region
  $region2: #{forward.34} parent=0 // pred_check
    _
  $region3: #{forward.34} parent=0 // pred_check_branch
    %11 = sbr.rel (0) target = $region5
  $region4: #{forward.34} parent=0 // pred_region
    _
  $region5: #{forward.34} parent=0 // pred_fallthru
    _
  // Predicated region
  $region6: #{forward.34} parent=0 // pred_check
    _
  $region7: #{forward.34} parent=0 // pred_check_branch
    %13 = sbr.rel (0) target = $region9
  $region8: #{forward.34} parent=0 // pred_region
    _
  $region9: #{forward.34} parent=0 // pred_fallthru
    _
  // Predicated region
  $region10: #{forward.34} parent=0 // pred_check
    _
  $region11: #{forward.34} parent=0 // pred_check_branch
    %15 = sbr.rel (0) target = $region13
  $region12: #{forward.34} parent=0 // pred_region
    _
  $region13: #{forward.34} parent=0 // pred_fallthru
    _
  // Predicated region
  $region14: #{forward.34} parent=0 // pred_check
    _
  $region15: #{forward.34} parent=0 // pred_check_branch
    %17 = sbr.rel (0) target = $region17
  $region16: #{forward.34} parent=0 // pred_region
    _
  $region17: #{forward.34} parent=0 // pred_fallthru
    _
  // Predicated region
  $region18: #{forward.34} parent=0 // pred_check
    _
  $region19: #{forward.34} parent=0 // pred_check_branch
    %19 = sbr.rel (0) target = $region21
  $region20: #{forward.34} parent=0 // pred_region
    _
  $region21: #{forward.34} parent=0 // pred_fallthru
    _
  %v21 = vld [vmem:[%s0] sm:$0xff]
  %v22 = vld [vmem:[%s0 + $0x8] sm:$0xff]
  %v23 = vld [vmem:[%s0 + $0x10] sm:$0xff]
  %v24 = vld [vmem:[%s0 + $0x18] sm:$0xff]
  %v25 = vld [vmem:[%s0 + $0x20] sm:$0xff]
  %v26 = vld [vmem:[%s0 + $0x28] sm:$0xff]
  %v27 = vld [vmem:[%s0 + $0x30] sm:$0xff]
  %v28 = vld [vmem:[%s0 + $0x38] sm:$0xff]
  %v29 = vld [vmem:[%s0 + $0x40] sm:$0xff]
  %v30 = vld [vmem:[%s0 + $0x48] sm:$0xff]
  %v31 = vld [vmem:[%s0 + $0x50] sm:$0xff]
  %v32 = vld [vmem:[%s0 + $0x58] sm:$0xff]
  %v33 = vld [vmem:[%s0 + $0x60] sm:$0xff]
  %v34 = vld [vmem:[%s0 + $0x68] sm:$0xff]
  %v35 = vld [vmem:[%s0 + $0x70] sm:$0xff]
  %v36 = vld [vmem:[%s0 + $0x78] sm:$0xff]
  %vm37 = vcmask 64512
  %v38 = vsel %vm37, %v21, 0.0
  %39 = vadd.xlane.f32.xlu0 %v38
  %v40 = vpop.xlane.xlu0 %39
  %v41 = vsel %vm37, %v22, 0.0
  %42 = vadd.xlane.f32.xlu0 %v41
  %v43 = vpop.xlane.xlu0 %42
  %v44 = vsel %vm37, %v23, 0.0
  %45 = vadd.xlane.f32.xlu0 %v44
  %v46 = vpop.xlane.xlu0 %45
  %v47 = vsel %vm37, %v24, 0.0
  %48 = vadd.xlane.f32.xlu0 %v47
  %v49 = vpop.xlane.xlu0 %48
  %v50 = vsel %vm37, %v25, 0.0
  %51 = vadd.xlane.f32.xlu0 %v50
  %v52 = vpop.xlane.xlu0 %51
  %v53 = vsel %vm37, %v26, 0.0
  %54 = vadd.xlane.f32.xlu0 %v53
  %v55 = vpop.xlane.xlu0 %54
  %v56 = vsel %vm37, %v27, 0.0
  %57 = vadd.xlane.f32.xlu0 %v56
  %v58 = vpop.xlane.xlu0 %57
  %v59 = vsel %vm37, %v28, 0.0
  %60 = vadd.xlane.f32.xlu0 %v59
  %v61 = vpop.xlane.xlu0 %60
  %v62 = vsel %vm37, %v29, 0.0
  %63 = vadd.xlane.f32.xlu0 %v62
  %v64 = vpop.xlane.xlu0 %63
  %v65 = vsel %vm37, %v30, 0.0
  %66 = vadd.xlane.f32.xlu0 %v65
  %v67 = vpop.xlane.xlu0 %66
  %v68 = vsel %vm37, %v31, 0.0
  %69 = vadd.xlane.f32.xlu0 %v68
  %v70 = vpop.xlane.xlu0 %69
  %v71 = vsel %vm37, %v32, 0.0
  %72 = vadd.xlane.f32.xlu0 %v71
  %v73 = vpop.xlane.xlu0 %72
  %v74 = vsel %vm37, %v33, 0.0
  %75 = vadd.xlane.f32.xlu0 %v74
  %v76 = vpop.xlane.xlu0 %75
  %v77 = vsel %vm37, %v34, 0.0
  %78 = vadd.xlane.f32.xlu0 %v77
  %v79 = vpop.xlane.xlu0 %78
  %v80 = vsel %vm37, %v35, 0.0
  %81 = vadd.xlane.f32.xlu0 %v80
  %v82 = vpop.xlane.xlu0 %81
  %v83 = vsel %vm37, %v36, 0.0
  %84 = vadd.xlane.f32.xlu0 %v83
  %v85 = vpop.xlane.xlu0 %84
  %v86 = vrcp.pop 8.0
  %v87 = vmul.f32 %v40, %v86
  %v88 = vmul.f32 %v43, %v86
  %v89 = vmul.f32 %v46, %v86
  %v90 = vmul.f32 %v49, %v86
  %v91 = vmul.f32 %v52, %v86
  %v92 = vmul.f32 %v55, %v86
  %v93 = vmul.f32 %v58, %v86
  %v94 = vmul.f32 %v61, %v86
  %v95 = vmul.f32 %v64, %v86
  %v96 = vmul.f32 %v67, %v86
  %v97 = vmul.f32 %v70, %v86
  %v98 = vmul.f32 %v73, %v86
  %v99 = vmul.f32 %v76, %v86
  %v100 = vmul.f32 %v79, %v86
  %v101 = vmul.f32 %v82, %v86
  %v102 = vmul.f32 %v85, %v86
  %v103 = vsub.f32 %v21, %v87
  %v104 = vsub.f32 %v22, %v88
  %v105 = vsub.f32 %v23, %v89
  %v106 = vsub.f32 %v24, %v90
  %v107 = vsub.f32 %v25, %v91
  %v108 = vsub.f32 %v26, %v92
  %v109 = vsub.f32 %v27, %v93
  %v110 = vsub.f32 %v28, %v94
  %v111 = vsub.f32 %v29, %v95
  %v112 = vsub.f32 %v30, %v96
  %v113 = vsub.f32 %v31, %v97
  %v114 = vsub.f32 %v32, %v98
  %v115 = vsub.f32 %v33, %v99
  %v116 = vsub.f32 %v34, %v100
  %v117 = vsub.f32 %v35, %v101
  %v118 = vsub.f32 %v36, %v102
  %v119 = vmul.f32 %v103, %v103
  %v120 = vmul.f32 %v104, %v104
  %v121 = vmul.f32 %v105, %v105
  %v122 = vmul.f32 %v106, %v106
  %v123 = vmul.f32 %v107, %v107
  %v124 = vmul.f32 %v108, %v108
  %v125 = vmul.f32 %v109, %v109
  %v126 = vmul.f32 %v110, %v110
  %v127 = vmul.f32 %v111, %v111
  %v128 = vmul.f32 %v112, %v112
  %v129 = vmul.f32 %v113, %v113
  %v130 = vmul.f32 %v114, %v114
  %v131 = vmul.f32 %v115, %v115
  %v132 = vmul.f32 %v116, %v116
  %v133 = vmul.f32 %v117, %v117
  %v134 = vmul.f32 %v118, %v118
  %v135 = vsel %vm37, %v119, 0.0
  %136 = vadd.xlane.f32.xlu0 %v135
  %v137 = vpop.xlane.xlu0 %136
  %v138 = vsel %vm37, %v120, 0.0
  %139 = vadd.xlane.f32.xlu0 %v138
  %v140 = vpop.xlane.xlu0 %139
  %v141 = vsel %vm37, %v121, 0.0
  %142 = vadd.xlane.f32.xlu0 %v141
  %v143 = vpop.xlane.xlu0 %142
  %v144 = vsel %vm37, %v122, 0.0
  %145 = vadd.xlane.f32.xlu0 %v144
  %v146 = vpop.xlane.xlu0 %145
  %v147 = vsel %vm37, %v123, 0.0
  %148 = vadd.xlane.f32.xlu0 %v147
  %v149 = vpop.xlane.xlu0 %148
  %v150 = vsel %vm37, %v124, 0.0
  %151 = vadd.xlane.f32.xlu0 %v150
  %v152 = vpop.xlane.xlu0 %151
  %v153 = vsel %vm37, %v125, 0.0
  %154 = vadd.xlane.f32.xlu0 %v153
  %v155 = vpop.xlane.xlu0 %154
  %v156 = vsel %vm37, %v126, 0.0
  %157 = vadd.xlane.f32.xlu0 %v156
  %v158 = vpop.xlane.xlu0 %157
  %v159 = vsel %vm37, %v127, 0.0
  %160 = vadd.xlane.f32.xlu0 %v159
  %v161 = vpop.xlane.xlu0 %160
  %v162 = vsel %vm37, %v128, 0.0
  %163 = vadd.xlane.f32.xlu0 %v162
  %v164 = vpop.xlane.xlu0 %163
  %v165 = vsel %vm37, %v129, 0.0
  %166 = vadd.xlane.f32.xlu0 %v165
  %v167 = vpop.xlane.xlu0 %166
  %v168 = vsel %vm37, %v130, 0.0
  %169 = vadd.xlane.f32.xlu0 %v168
  %v170 = vpop.xlane.xlu0 %169
  %v171 = vsel %vm37, %v131, 0.0
  %172 = vadd.xlane.f32.xlu0 %v171
  %v173 = vpop.xlane.xlu0 %172
  %v174 = vsel %vm37, %v132, 0.0
  %175 = vadd.xlane.f32.xlu0 %v174
  %v176 = vpop.xlane.xlu0 %175
  %v177 = vsel %vm37, %v133, 0.0
  %178 = vadd.xlane.f32.xlu0 %v177
  %v179 = vpop.xlane.xlu0 %178
  %v180 = vsel %vm37, %v134, 0.0
  %181 = vadd.xlane.f32.xlu0 %v180
  %v182 = vpop.xlane.xlu0 %181
  %v183 = vmul.f32 %v137, %v86
  %v184 = vmul.f32 %v140, %v86
  %v185 = vmul.f32 %v143, %v86
  %v186 = vmul.f32 %v146, %v86
  %v187 = vmul.f32 %v149, %v86
  %v188 = vmul.f32 %v152, %v86
  %v189 = vmul.f32 %v155, %v86
  %v190 = vmul.f32 %v158, %v86
  %v191 = vmul.f32 %v161, %v86
  %v192 = vmul.f32 %v164, %v86
  %v193 = vmul.f32 %v167, %v86
  %v194 = vmul.f32 %v170, %v86
  %v195 = vmul.f32 %v173, %v86
  %v196 = vmul.f32 %v176, %v86
  %v197 = vmul.f32 %v179, %v86
  %v198 = vmul.f32 %v182, %v86
  %v199 = vadd.f32 %v183, 1e-05
  %v200 = vadd.f32 %v184, 1e-05
  %v201 = vadd.f32 %v185, 1e-05
  %v202 = vadd.f32 %v186, 1e-05
  %v203 = vadd.f32 %v187, 1e-05
  %v204 = vadd.f32 %v188, 1e-05
  %v205 = vadd.f32 %v189, 1e-05
  %v206 = vadd.f32 %v190, 1e-05
  %v207 = vadd.f32 %v191, 1e-05
  %v208 = vadd.f32 %v192, 1e-05
  %v209 = vadd.f32 %v193, 1e-05
  %v210 = vadd.f32 %v194, 1e-05
  %v211 = vadd.f32 %v195, 1e-05
  %v212 = vadd.f32 %v196, 1e-05
  %v213 = vadd.f32 %v197, 1e-05
  %v214 = vadd.f32 %v198, 1e-05
  %v215 = vrsqrt.pop %v199
  %v216 = vrsqrt.pop %v200
  %v217 = vrsqrt.pop %v201
  %v218 = vrsqrt.pop %v202
  %v219 = vrsqrt.pop %v203
  %v220 = vrsqrt.pop %v204
  %v221 = vrsqrt.pop %v205
  %v222 = vrsqrt.pop %v206
  %v223 = vrsqrt.pop %v207
  %v224 = vrsqrt.pop %v208
  %v225 = vrsqrt.pop %v209
  %v226 = vrsqrt.pop %v210
  %v227 = vrsqrt.pop %v211
  %v228 = vrsqrt.pop %v212
  %v229 = vrsqrt.pop %v213
  %v230 = vrsqrt.pop %v214
  %v231 = vmul.f32 %v103, %v215
  %v232 = vmul.f32 %v104, %v216
  %v233 = vmul.f32 %v105, %v217
  %v234 = vmul.f32 %v106, %v218
  %v235 = vmul.f32 %v107, %v219
  %v236 = vmul.f32 %v108, %v220
  %v237 = vmul.f32 %v109, %v221
  %v238 = vmul.f32 %v110, %v222
  %v239 = vmul.f32 %v111, %v223
  %v240 = vmul.f32 %v112, %v224
  %v241 = vmul.f32 %v113, %v225
  %v242 = vmul.f32 %v114, %v226
  %v243 = vmul.f32 %v115, %v227
  %v244 = vmul.f32 %v116, %v228
  %v245 = vmul.f32 %v117, %v229
  %v246 = vmul.f32 %v118, %v230
  %v247 = vld [vmem:[%s1] sm:$0x1]
  %v249 = vlaneseq
  %v250 = vshrl.u32 %v249, 7
  %v251 = vsub.s32 0, %v250
  %v252 = vrot.slane %v247, %v251
  %v254 = vmul.f32 %v231, %v252
  %v255 = vmul.f32 %v232, %v252
  %v256 = vmul.f32 %v233, %v252
  %v257 = vmul.f32 %v234, %v252
  %v258 = vmul.f32 %v235, %v252
  %v259 = vmul.f32 %v236, %v252
  %v260 = vmul.f32 %v237, %v252
  %v261 = vmul.f32 %v238, %v252
  %v262 = vmul.f32 %v239, %v252
  %v263 = vmul.f32 %v240, %v252
  %v264 = vmul.f32 %v241, %v252
  %v265 = vmul.f32 %v242, %v252
  %v266 = vmul.f32 %v243, %v252
  %v267 = vmul.f32 %v244, %v252
  %v268 = vmul.f32 %v245, %v252
  %v269 = vmul.f32 %v246, %v252
  %v270 = vld [vmem:[%s2] sm:$0x1]
  %v272 = vlaneseq
  %v273 = vshrl.u32 %v272, 7
  %v274 = vsub.s32 0, %v273
  %v275 = vrot.slane %v270, %v274
  %v277 = vadd.f32 %v254, %v275
  %v278 = vadd.f32 %v255, %v275
  %v279 = vadd.f32 %v256, %v275
  %v280 = vadd.f32 %v257, %v275
  %v281 = vadd.f32 %v258, %v275
  %v282 = vadd.f32 %v259, %v275
  %v283 = vadd.f32 %v260, %v275
  %v284 = vadd.f32 %v261, %v275
  %v285 = vadd.f32 %v262, %v275
  %v286 = vadd.f32 %v263, %v275
  %v287 = vadd.f32 %v264, %v275
  %v288 = vadd.f32 %v265, %v275
  %v289 = vadd.f32 %v266, %v275
  %v290 = vadd.f32 %v267, %v275
  %v291 = vadd.f32 %v268, %v275
  %v292 = vadd.f32 %v269, %v275
  %v293 = vpack.c.bf16 %v278, %v277
  %v294 = vpack.c.bf16 %v280, %v279
  %v295 = vpack.c.bf16 %v282, %v281
  %v296 = vpack.c.bf16 %v284, %v283
  %v297 = vpack.c.bf16 %v286, %v285
  %v298 = vpack.c.bf16 %v288, %v287
  %v299 = vpack.c.bf16 %v290, %v289
  %v300 = vpack.c.bf16 %v292, %v291
  %v301 = vld [vmem:[%s3] sm:$0xf]
  %v302 = vld [vmem:[%s4] sm:$0x1]
  %v304 = vlaneseq
  %v305 = vshrl.u32 %v304, 7
  %v306 = vsub.s32 0, %v305
  %v307 = vrot.slane %v302, %v306
  %v310 = vsel %vm37, %v293, 0
  %v313 = vsel %vm37, %v294, 0
  %v316 = vsel %vm37, %v295, 0
  %v319 = vsel %vm37, %v296, 0
  %v322 = vsel %vm37, %v297, 0
  %v325 = vsel %vm37, %v298, 0
  %v328 = vsel %vm37, %v299, 0
  %v331 = vsel %vm37, %v300, 0
  %vm333 = vcmask 1043456
  %v335 = vsel %vm333, %v301, 0
  %337 = vmatprep.subr.bf16.mxu0 0
  %338 = vmatpush1.bf16.msra.mxu0 %v335
  %339 = vmatprep.subr.bf16.mxu0 0
  %340 = vmatpush1.bf16.msra.mxu0 0
  %341 = vmatprep.subr.bf16.mxu0 0
  %342 = vmatpush1.bf16.msra.mxu0 0
  %343 = vmatprep.subr.bf16.mxu0 0
  %344 = vmatpush1.bf16.msra.mxu0 0
  %345 = vmatprep.subr.bf16.mxu0 0
  %346 = vmatpush1.bf16.msra.mxu0 0
  %347 = vmatprep.subr.bf16.mxu0 0
  %348 = vmatpush1.bf16.msra.mxu0 0
  %349 = vmatprep.subr.bf16.mxu0 0
  %350 = vmatpush1.bf16.msra.mxu0 0
  %351 = vmatprep.subr.bf16.mxu0 0
  %352 = vmatpush1.bf16.msra.mxu0 0
  %353 = vmatprep.subr.bf16.mxu0 0
  %354 = vmatpush1.bf16.msra.mxu0 0
  %355 = vmatprep.subr.bf16.mxu0 0
  %356 = vmatpush1.bf16.msra.mxu0 0
  %357 = vmatprep.subr.bf16.mxu0 0
  %358 = vmatpush1.bf16.msra.mxu0 0
  %359 = vmatprep.subr.bf16.mxu0 0
  %360 = vmatpush1.bf16.msra.mxu0 0
  %361 = vmatprep.subr.bf16.mxu0 0
  %362 = vmatpush1.bf16.msra.mxu0 0
  %363 = vmatprep.subr.bf16.mxu0 0
  %364 = vmatpush1.bf16.msra.mxu0 0
  %365 = vmatprep.subr.bf16.mxu0 0
  %366 = vmatpush1.bf16.msra.mxu0 0
  %367 = vmatprep.subr.bf16.mxu0 0
  %368 = vmatpush1.bf16.msra.mxu0 0
  %369 = vmatprep.mubr.bf16.mxu0 0
  %370 = vmatmul.mubr.bf16.gmra.mrb[0].mxu0 %v310
  %v371 = vpop.f32.mrb[0].mxu0
  %v372 = vadd.f32 %v307, %v371
  %v373 = vpop.f32.mrb[0].mxu0
  %v374 = vpop.f32.mrb[0].mxu0
  %v375 = vadd.f32 %v307, %v374
  %v376 = vpop.f32.mrb[0].mxu0
  %377 = vmatprep.mubr.bf16.mxu0 0
  %378 = vmatmul.mubr.bf16.gmra.mrb[0].mxu0 %v313
  %v379 = vpop.f32.mrb[0].mxu0
  %v380 = vadd.f32 %v307, %v379
  %v381 = vpop.f32.mrb[0].mxu0
  %v382 = vpop.f32.mrb[0].mxu0
  %v383 = vadd.f32 %v307, %v382
  %v384 = vpop.f32.mrb[0].mxu0
  %385 = vmatprep.mubr.bf16.mxu0 0
  %386 = vmatmul.mubr.bf16.gmra.mrb[0].mxu0 %v316
  %v387 = vpop.f32.mrb[0].mxu0
  %v388 = vadd.f32 %v307, %v387
  %v389 = vpop.f32.mrb[0].mxu0
  %v390 = vpop.f32.mrb[0].mxu0
  %v391 = vadd.f32 %v307, %v390
  %v392 = vpop.f32.mrb[0].mxu0
  %393 = vmatprep.mubr.bf16.mxu0 0
  %394 = vmatmul.mubr.bf16.gmra.mrb[0].mxu0 %v319
  %v395 = vpop.f32.mrb[0].mxu0
  %v396 = vadd.f32 %v307, %v395
  %v397 = vpop.f32.mrb[0].mxu0
  %v398 = vpop.f32.mrb[0].mxu0
  %v399 = vadd.f32 %v307, %v398
  %v400 = vpop.f32.mrb[0].mxu0
  %401 = vmatprep.mubr.bf16.mxu0 0
  %402 = vmatmul.mubr.bf16.gmra.mrb[0].mxu0 %v322
  %v403 = vpop.f32.mrb[0].mxu0
  %v404 = vadd.f32 %v307, %v403
  %v405 = vpop.f32.mrb[0].mxu0
  %v406 = vpop.f32.mrb[0].mxu0
  %v407 = vadd.f32 %v307, %v406
  %v408 = vpop.f32.mrb[0].mxu0
  %409 = vmatprep.mubr.bf16.mxu0 0
  %410 = vmatmul.mubr.bf16.gmra.mrb[0].mxu0 %v325
  %v411 = vpop.f32.mrb[0].mxu0
  %v412 = vadd.f32 %v307, %v411
  %v413 = vpop.f32.mrb[0].mxu0
  %v414 = vpop.f32.mrb[0].mxu0
  %v415 = vadd.f32 %v307, %v414
  %v416 = vpop.f32.mrb[0].mxu0
  %417 = vmatprep.mubr.bf16.mxu0 0
  %418 = vmatmul.mubr.bf16.gmra.mrb[0].mxu0 %v328
  %v419 = vpop.f32.mrb[0].mxu0
  %v420 = vadd.f32 %v307, %v419
  %v421 = vpop.f32.mrb[0].mxu0
  %v422 = vpop.f32.mrb[0].mxu0
  %v423 = vadd.f32 %v307, %v422
  %v424 = vpop.f32.mrb[0].mxu0
  %425 = vmatprep.mubr.bf16.mxu0 0
  %426 = vmatmul.mubr.bf16.gmra.mrb[0].mxu0 %v331
  %v427 = vpop.f32.mrb[0].mxu0
  %v428 = vadd.f32 %v307, %v427
  %v429 = vpop.f32.mrb[0].mxu0
  %v430 = vpop.f32.mrb[0].mxu0
  %v431 = vadd.f32 %v307, %v430
  %v432 = vpop.f32.mrb[0].mxu0
  %433 = vdwg.mxu0
  %v434 = vmul.f32 %v372, 0.5
  %v435 = vmul.f32 %v375, 0.5
  %v436 = vmul.f32 %v380, 0.5
  %v437 = vmul.f32 %v383, 0.5
  %v438 = vmul.f32 %v388, 0.5
  %v439 = vmul.f32 %v391, 0.5
  %v440 = vmul.f32 %v396, 0.5
  %v441 = vmul.f32 %v399, 0.5
  %v442 = vmul.f32 %v404, 0.5
  %v443 = vmul.f32 %v407, 0.5
  %v444 = vmul.f32 %v412, 0.5
  %v445 = vmul.f32 %v415, 0.5
  %v446 = vmul.f32 %v420, 0.5
  %v447 = vmul.f32 %v423, 0.5
  %v448 = vmul.f32 %v428, 0.5
  %v449 = vmul.f32 %v431, 0.5
  %v450 = vmul.f32 %v372, 0.70710677
  %v451 = vmul.f32 %v375, 0.70710677
  %v452 = vmul.f32 %v380, 0.70710677
  %v453 = vmul.f32 %v383, 0.70710677
  %v454 = vmul.f32 %v388, 0.70710677
  %v455 = vmul.f32 %v391, 0.70710677
  %v456 = vmul.f32 %v396, 0.70710677
  %v457 = vmul.f32 %v399, 0.70710677
  %v458 = vmul.f32 %v404, 0.70710677
  %v459 = vmul.f32 %v407, 0.70710677
  %v460 = vmul.f32 %v412, 0.70710677
  %v461 = vmul.f32 %v415, 0.70710677
  %v462 = vmul.f32 %v420, 0.70710677
  %v463 = vmul.f32 %v423, 0.70710677
  %v464 = vmul.f32 %v428, 0.70710677
  %v465 = vmul.f32 %v431, 0.70710677
  %v466 = verf.f32.pop %v450
  %v467 = verf.f32.pop %v451
  %v468 = verf.f32.pop %v452
  %v469 = verf.f32.pop %v453
  %v470 = verf.f32.pop %v454
  %v471 = verf.f32.pop %v455
  %v472 = verf.f32.pop %v456
  %v473 = verf.f32.pop %v457
  %v474 = verf.f32.pop %v458
  %v475 = verf.f32.pop %v459
  %v476 = verf.f32.pop %v460
  %v477 = verf.f32.pop %v461
  %v478 = verf.f32.pop %v462
  %v479 = verf.f32.pop %v463
  %v480 = verf.f32.pop %v464
  %v481 = verf.f32.pop %v465
  %v482 = vadd.f32 %v466, 1.0
  %v483 = vadd.f32 %v467, 1.0
  %v484 = vadd.f32 %v468, 1.0
  %v485 = vadd.f32 %v469, 1.0
  %v486 = vadd.f32 %v470, 1.0
  %v487 = vadd.f32 %v471, 1.0
  %v488 = vadd.f32 %v472, 1.0
  %v489 = vadd.f32 %v473, 1.0
  %v490 = vadd.f32 %v474, 1.0
  %v491 = vadd.f32 %v475, 1.0
  %v492 = vadd.f32 %v476, 1.0
  %v493 = vadd.f32 %v477, 1.0
  %v494 = vadd.f32 %v478, 1.0
  %v495 = vadd.f32 %v479, 1.0
  %v496 = vadd.f32 %v480, 1.0
  %v497 = vadd.f32 %v481, 1.0
  %v498 = vmul.f32 %v434, %v482
  %v499 = vmul.f32 %v435, %v483
  %v500 = vmul.f32 %v436, %v484
  %v501 = vmul.f32 %v437, %v485
  %v502 = vmul.f32 %v438, %v486
  %v503 = vmul.f32 %v439, %v487
  %v504 = vmul.f32 %v440, %v488
  %v505 = vmul.f32 %v441, %v489
  %v506 = vmul.f32 %v442, %v490
  %v507 = vmul.f32 %v443, %v491
  %v508 = vmul.f32 %v444, %v492
  %v509 = vmul.f32 %v445, %v493
  %v510 = vmul.f32 %v446, %v494
  %v511 = vmul.f32 %v447, %v495
  %v512 = vmul.f32 %v448, %v496
  %v513 = vmul.f32 %v449, %v497
  %v514 = vpack.c.bf16 %v499, %v498
  %v515 = vpack.c.bf16 %v501, %v500
  %v516 = vpack.c.bf16 %v503, %v502
  %v517 = vpack.c.bf16 %v505, %v504
  %v518 = vpack.c.bf16 %v507, %v506
  %v519 = vpack.c.bf16 %v509, %v508
  %v520 = vpack.c.bf16 %v511, %v510
  %v521 = vpack.c.bf16 %v513, %v512
  %v530 = vunpack.c.l.b16 %v514
  %v531 = vunpack.c.h.b16 %v514
  %v532 = vunpack.c.l.b16 %v515
  %v533 = vunpack.c.h.b16 %v515
  %v534 = vunpack.c.l.b16 %v516
  %v535 = vunpack.c.h.b16 %v516
  %v536 = vunpack.c.l.b16 %v517
  %v537 = vunpack.c.h.b16 %v517
  %v538 = vunpack.c.l.b16 %v518
  %v539 = vunpack.c.h.b16 %v518
  %v540 = vunpack.c.l.b16 %v519
  %v541 = vunpack.c.h.b16 %v519
  %v542 = vunpack.c.l.b16 %v520
  %v543 = vunpack.c.h.b16 %v520
  %v544 = vunpack.c.l.b16 %v521
  %v545 = vunpack.c.h.b16 %v521
  %v546 = vpack.c.b16 %v530, %v530
  %v547 = vpack.c.b16 %v531, %v531
  %v548 = vpack.c.b16 %v532, %v532
  %v549 = vpack.c.b16 %v533, %v533
  %v550 = vpack.c.b16 %v534, %v534
  %v551 = vpack.c.b16 %v535, %v535
  %v552 = vpack.c.b16 %v536, %v536
  %v553 = vpack.c.b16 %v537, %v537
  %v554 = vpack.c.b16 %v538, %v538
  %v555 = vpack.c.b16 %v539, %v539
  %v556 = vpack.c.b16 %v540, %v540
  %v557 = vpack.c.b16 %v541, %v541
  %v558 = vpack.c.b16 %v542, %v542
  %v559 = vpack.c.b16 %v543, %v543
  %v560 = vpack.c.b16 %v544, %v544
  %v561 = vpack.c.b16 %v545, %v545
  %vm578 = vcmask 257024
  %579 = vst.msk [vmem:[%s5] sm:$0xf] %vm578, %v546
  %580 = vst.msk [vmem:[%s5 + $0x4] sm:$0xf] %vm578, %v547
  %581 = vst.msk [vmem:[%s5 + $0x8] sm:$0xf] %vm578, %v548
  %582 = vst.msk [vmem:[%s5 + $0xc] sm:$0xf] %vm578, %v549
  %583 = vst.msk [vmem:[%s5 + $0x10] sm:$0xf] %vm578, %v550
  %584 = vst.msk [vmem:[%s5 + $0x14] sm:$0xf] %vm578, %v551
  %585 = vst.msk [vmem:[%s5 + $0x18] sm:$0xf] %vm578, %v552
  %586 = vst.msk [vmem:[%s5 + $0x1c] sm:$0xf] %vm578, %v553
  %587 = vst.msk [vmem:[%s5 + $0x20] sm:$0xf] %vm578, %v554
  %588 = vst.msk [vmem:[%s5 + $0x24] sm:$0xf] %vm578, %v555
  %589 = vst.msk [vmem:[%s5 + $0x28] sm:$0xf] %vm578, %v556
  %590 = vst.msk [vmem:[%s5 + $0x2c] sm:$0xf] %vm578, %v557
  %591 = vst.msk [vmem:[%s5 + $0x30] sm:$0xf] %vm578, %v558
  %592 = vst.msk [vmem:[%s5 + $0x34] sm:$0xf] %vm578, %v559
  %593 = vst.msk [vmem:[%s5 + $0x38] sm:$0xf] %vm578, %v560
  %594 = vst.msk [vmem:[%s5 + $0x3c] sm:$0xf] %vm578, %v561
  // Predicated region
  $region22: #{forward.34} parent=0 // pred_check
    _
  $region23: #{forward.34} parent=0 // pred_check_branch
    %596 = sbr.rel (0) target = $region25
  $region24: #{forward.34} parent=0 // pred_region
    _
  $region25: #{forward.34} parent=0 // pred_fallthru
    _
  // Predicated region
  $region26: #{forward.34} parent=0 // pred_check
    _
  $region27: #{forward.34} parent=0 // pred_check_branch
    %598 = sbr.rel (0) target = $region29
  $region28: #{forward.34} parent=0 // pred_region
    _
  $region29: #{forward.34} parent=0 // pred_fallthru
    _

// kernel: squeeze.34
$region0: #{squeeze.34}
  %s0 = inlined_call_operand.vmem [shape: f32[24,3,3], index: 0, kind: input, shape index: {}]
  %s1 = inlined_call_operand.vmem [shape: f32[24,9], index: 1, kind: output, shape index: {}]
  $region1: #{squeeze.34} parent=0
    #allocation0 [shape = 'u8[12288]{0}', space=vmem, size = 0x3000, scoped, tag = 'scoped mem for input reshape']
    %s3 = sshllo.u32 0, 4
    %s4 = smul.addr 4, 2
    %s5 = scalar_lea.vmem %s0, %s4
    %v6 = vld [vmem:[%s5] sm:%s3]
    %s7 = scalar_lea.vmem [#allocation0], 16
    %8 = vst [vmem:[%s7] sm:%s3] %v6
    %s9 = scalar_lea.vmem %s0, 4
    %v10 = vld [vmem:[%s9] sm:%s3]
    %s11 = scalar_lea.vmem [#allocation0], 8
    %12 = vst [vmem:[%s11] sm:%s3] %v10
    %v13 = vld [vmem:[%s0] sm:%s3]
    %14 = vst [vmem:[#allocation0] sm:%s3] %v13
    %v15 = vld [vmem:[#allocation0] sm:$0x7]
    %vm16 = vcmask 195584
    %17 = vst.msk [vmem:[%s1] sm:$0x7] %vm16, %v15
    %s18 = scalar_lea.vmem [#allocation0], 8
    %v19 = vld [vmem:[%s18] sm:$0x7]
    %vm20 = vcmask 195584
    %s21 = scalar_lea.vmem %s1, 3
    %22 = vst.msk [vmem:[%s21] sm:$0x7] %vm20, %v19
    %s23 = scalar_lea.vmem [#allocation0], 16
    %v24 = vld [vmem:[%s23] sm:$0x7]
    %vm25 = vcmask 195584
    %s26 = scalar_lea.vmem %s1, 6
    %27 = vst.msk [vmem:[%s26] sm:$0x7] %vm25, %v24

// kernel: forward.36
$region0: #{forward.36}
  #allocation0 [shape = 'u32[]', space=smem, size = 0x4, offset = 0x4, fixed_abs, tag = 'smem constant byte address 0x4 - core index']
  #allocation1 [shape = 'u32[144,128]{1,0:T(1,128)}', space=vmem, size = 0x12000, scoped, tag = 'internal scratch']
  %s0 = inlined_call_operand.vmem [shape: f32[32,72], index: 0, kind: input, shape index: {}]
  %s1 = inlined_call_operand.vmem [shape: bf16[72,24], index: 1, kind: input, shape index: {}]
  %s2 = inlined_call_operand.vmem [shape: f32[1,24], index: 2, kind: input, shape index: {}]
  %s3 = inlined_call_operand.vmem [shape: f32[32,24], index: 3, kind: output, shape index: {}]
  %s4 = sld [smem:[#allocation0]]
  $region22: #{forward.36} parent=0
    _
  %s6 = ssub.s32 1, %s4
  %s7 = scalar_select 0, %s6, %s4
  // Predicated region
  $region2: #{forward.36} parent=0 // pred_check
    _
  $region3: #{forward.36} parent=0 // pred_check_branch
    %9 = sbr.rel (0) target = $region5
  $region4: #{forward.36} parent=0 // pred_region
    _
  $region5: #{forward.36} parent=0 // pred_fallthru
    _
  // Predicated region
  $region6: #{forward.36} parent=0 // pred_check
    _
  $region7: #{forward.36} parent=0 // pred_check_branch
    %11 = sbr.rel (0) target = $region9
  $region8: #{forward.36} parent=0 // pred_region
    _
  $region9: #{forward.36} parent=0 // pred_fallthru
    _
  // Predicated region
  $region10: #{forward.36} parent=0 // pred_check
    _
  $region11: #{forward.36} parent=0 // pred_check_branch
    %13 = sbr.rel (0) target = $region13
  $region12: #{forward.36} parent=0 // pred_region
    _
  $region13: #{forward.36} parent=0 // pred_fallthru
    _
  %v15 = vld [vmem:[%s0] sm:$0xff]
  %v16 = vld [vmem:[%s0 + $0x8] sm:$0xff]
  %v17 = vld [vmem:[%s0 + $0x10] sm:$0xff]
  %v18 = vld [vmem:[%s0 + $0x18] sm:$0xff]
  %v19 = vpack.c.bf16 %v16, %v15
  %v20 = vpack.c.bf16 %v18, %v17
  %v21 = vld [vmem:[%s1] sm:$0xf]
  %v22 = vld [vmem:[%s1 + $0x4] sm:$0xf]
  %v23 = vld [vmem:[%s1 + $0x8] sm:$0xf]
  %v24 = vld [vmem:[%s1 + $0xc] sm:$0xf]
  %v25 = vld [vmem:[%s1 + $0x10] sm:$0xf]
  %v26 = vld [vmem:[%s1 + $0x14] sm:$0xf]
  %v27 = vld [vmem:[%s1 + $0x18] sm:$0xf]
  %v28 = vld [vmem:[%s1 + $0x1c] sm:$0xf]
  %v29 = vld [vmem:[%s1 + $0x20] sm:$0xf]
  %v30 = vld [vmem:[%s2] sm:$0x1]
  %v32 = vlaneseq
  %v33 = vshrl.u32 %v32, 7
  %v34 = vsub.s32 0, %v33
  %v35 = vrot.slane %v30, %v34
  %v46 = vunpack.c.l.b16 %v21
  %v47 = vunpack.c.l.b16 %v22
  %v48 = vunpack.c.l.b16 %v23
  %v49 = vunpack.c.l.b16 %v24
  %v50 = vunpack.c.l.b16 %v25
  %v51 = vunpack.c.l.b16 %v26
  %v52 = vunpack.c.l.b16 %v27
  %v53 = vunpack.c.l.b16 %v28
  %v54 = vunpack.c.l.b16 %v29
  %v55 = vpack.c.b16 %v47, %v46
  %v56 = vpack.c.b16 %v49, %v48
  %v57 = vpack.c.b16 %v51, %v50
  %v58 = vpack.c.b16 %v53, %v52
  %v59 = vpack.c.b16 %v54, %v54
  %vm64 = vcmask 588800
  %v66 = vsel %vm64, %v19, 0
  %v69 = vsel %vm64, %v20, 0
  %vm71 = vcmask 1043456
  %v73 = vsel %vm71, %v59, 0
  %75 = vmatprep.subr.bf16.mxu0 0
  %76 = vmatpush1.bf16.msra.mxu0 %v55
  %77 = vmatprep.subr.bf16.mxu0 0
  %78 = vmatpush1.bf16.msra.mxu0 %v56
  %79 = vmatprep.subr.bf16.mxu0 0
  %80 = vmatpush1.bf16.msra.mxu0 %v57
  %81 = vmatprep.subr.bf16.mxu0 0
  %82 = vmatpush1.bf16.msra.mxu0 %v58
  %83 = vmatprep.subr.bf16.mxu0 0
  %84 = vmatpush1.bf16.msra.mxu0 %v73
  %85 = vmatprep.subr.bf16.mxu0 0
  %86 = vmatpush1.bf16.msra.mxu0 0
  %87 = vmatprep.subr.bf16.mxu0 0
  %88 = vmatpush1.bf16.msra.mxu0 0
  %89 = vmatprep.subr.bf16.mxu0 0
  %90 = vmatpush1.bf16.msra.mxu0 0
  %91 = vmatprep.subr.bf16.mxu0 0
  %92 = vmatpush1.bf16.msra.mxu0 0
  %93 = vmatprep.subr.bf16.mxu0 0
  %94 = vmatpush1.bf16.msra.mxu0 0
  %95 = vmatprep.subr.bf16.mxu0 0
  %96 = vmatpush1.bf16.msra.mxu0 0
  %97 = vmatprep.subr.bf16.mxu0 0
  %98 = vmatpush1.bf16.msra.mxu0 0
  %99 = vmatprep.subr.bf16.mxu0 0
  %100 = vmatpush1.bf16.msra.mxu0 0
  %101 = vmatprep.subr.bf16.mxu0 0
  %102 = vmatpush1.bf16.msra.mxu0 0
  %103 = vmatprep.subr.bf16.mxu0 0
  %104 = vmatpush1.bf16.msra.mxu0 0
  %105 = vmatprep.subr.bf16.mxu0 0
  %106 = vmatpush1.bf16.msra.mxu0 0
  %107 = vmatprep.mubr.bf16.mxu0 0
  %108 = vmatmul.mubr.bf16.gmra.mrb[0].mxu0 %v66
  %v109 = vpop.f32.mrb[0].mxu0
  %v110 = vadd.f32 %v35, %v109
  %v111 = vpop.f32.mrb[0].mxu0
  %v112 = vpop.f32.mrb[0].mxu0
  %v113 = vadd.f32 %v35, %v112
  %v114 = vpop.f32.mrb[0].mxu0
  %115 = vmatprep.mubr.bf16.mxu0 0
  %116 = vmatmul.mubr.bf16.gmra.mrb[0].mxu0 %v69
  %v117 = vpop.f32.mrb[0].mxu0
  %v118 = vadd.f32 %v35, %v117
  %v119 = vpop.f32.mrb[0].mxu0
  %v120 = vpop.f32.mrb[0].mxu0
  %v121 = vadd.f32 %v35, %v120
  %v122 = vpop.f32.mrb[0].mxu0
  %123 = vdwg.mxu0
  %vm124 = vcmask 195584
  %125 = vst.msk [vmem:[%s3] sm:$0xff] %vm124, %v110
  %126 = vst.msk [vmem:[%s3 + $0x8] sm:$0xff] %vm124, %v113
  %127 = vst.msk [vmem:[%s3 + $0x10] sm:$0xff] %vm124, %v118
  %128 = vst.msk [vmem:[%s3 + $0x18] sm:$0xff] %vm124, %v121
  // Predicated region
  $region14: #{forward.36} parent=0 // pred_check
    _
  $region15: #{forward.36} parent=0 // pred_check_branch
    %130 = sbr.rel (0) target = $region17
  $region16: #{forward.36} parent=0 // pred_region
    _
  $region17: #{forward.36} parent=0 // pred_fallthru
    _
  // Predicated region
  $region18: #{forward.36} parent=0 // pred_check
    _
  $region19: #{forward.36} parent=0 // pred_check_branch
    %132 = sbr.rel (0) target = $region21
  $region20: #{forward.36} parent=0 // pred_region
    _
  $region21: #{forward.36} parent=0 // pred_fallthru
    _

// kernel: forward.37
$region0: #{forward.37}
  #allocation0 [shape = 'u32[]', space=smem, size = 0x4, offset = 0x4, fixed_abs, tag = 'smem constant byte address 0x4 - core index']
  #allocation1 [shape = 'u32[144,128]{1,0:T(1,128)}', space=vmem, size = 0x12000, scoped, tag = 'internal scratch']
  %s0 = inlined_call_operand.vmem [shape: f32[32,24], index: 0, kind: input, shape index: {}]
  %s1 = inlined_call_operand.vmem [shape: f32[1,24], index: 1, kind: input, shape index: {}]
  %s2 = inlined_call_operand.vmem [shape: f32[1,24], index: 2, kind: input, shape index: {}]
  %s3 = inlined_call_operand.vmem [shape: bf16[32,24], index: 3, kind: output, shape index: {}]
  %s4 = sld [smem:[#allocation0]]
  $region22: #{forward.37} parent=0
    _
  %s6 = ssub.s32 1, %s4
  %s7 = scalar_select 0, %s6, %s4
  // Predicated region
  $region2: #{forward.37} parent=0 // pred_check
    _
  $region3: #{forward.37} parent=0 // pred_check_branch
    %9 = sbr.rel (0) target = $region5
  $region4: #{forward.37} parent=0 // pred_region
    _
  $region5: #{forward.37} parent=0 // pred_fallthru
    _
  // Predicated region
  $region6: #{forward.37} parent=0 // pred_check
    _
  $region7: #{forward.37} parent=0 // pred_check_branch
    %11 = sbr.rel (0) target = $region9
  $region8: #{forward.37} parent=0 // pred_region
    _
  $region9: #{forward.37} parent=0 // pred_fallthru
    _
  // Predicated region
  $region10: #{forward.37} parent=0 // pred_check
    _
  $region11: #{forward.37} parent=0 // pred_check_branch
    %13 = sbr.rel (0) target = $region13
  $region12: #{forward.37} parent=0 // pred_region
    _
  $region13: #{forward.37} parent=0 // pred_fallthru
    _
  %v14 = vld [vmem:[%s0] sm:$0xff]
  %v15 = vld [vmem:[%s0 + $0x8] sm:$0xff]
  %v16 = vld [vmem:[%s0 + $0x10] sm:$0xff]
  %v17 = vld [vmem:[%s0 + $0x18] sm:$0xff]
  %vm18 = vcmask 195584
  %v19 = vsel %vm18, %v14, 0.0
  %20 = vadd.xlane.f32.xlu0 %v19
  %v21 = vpop.xlane.xlu0 %20
  %v22 = vsel %vm18, %v15, 0.0
  %23 = vadd.xlane.f32.xlu0 %v22
  %v24 = vpop.xlane.xlu0 %23
  %v25 = vsel %vm18, %v16, 0.0
  %26 = vadd.xlane.f32.xlu0 %v25
  %v27 = vpop.xlane.xlu0 %26
  %v28 = vsel %vm18, %v17, 0.0
  %29 = vadd.xlane.f32.xlu0 %v28
  %v30 = vpop.xlane.xlu0 %29
  %v31 = vrcp.pop 24.0
  %v32 = vmul.f32 %v21, %v31
  %v33 = vmul.f32 %v24, %v31
  %v34 = vmul.f32 %v27, %v31
  %v35 = vmul.f32 %v30, %v31
  %v36 = vsub.f32 %v14, %v32
  %v37 = vsub.f32 %v15, %v33
  %v38 = vsub.f32 %v16, %v34
  %v39 = vsub.f32 %v17, %v35
  %v40 = vmul.f32 %v36, %v36
  %v41 = vmul.f32 %v37, %v37
  %v42 = vmul.f32 %v38, %v38
  %v43 = vmul.f32 %v39, %v39
  %v44 = vsel %vm18, %v40, 0.0
  %45 = vadd.xlane.f32.xlu0 %v44
  %v46 = vpop.xlane.xlu0 %45
  %v47 = vsel %vm18, %v41, 0.0
  %48 = vadd.xlane.f32.xlu0 %v47
  %v49 = vpop.xlane.xlu0 %48
  %v50 = vsel %vm18, %v42, 0.0
  %51 = vadd.xlane.f32.xlu0 %v50
  %v52 = vpop.xlane.xlu0 %51
  %v53 = vsel %vm18, %v43, 0.0
  %54 = vadd.xlane.f32.xlu0 %v53
  %v55 = vpop.xlane.xlu0 %54
  %v56 = vmul.f32 %v46, %v31
  %v57 = vmul.f32 %v49, %v31
  %v58 = vmul.f32 %v52, %v31
  %v59 = vmul.f32 %v55, %v31
  %v60 = vadd.f32 %v56, 1e-05
  %v61 = vadd.f32 %v57, 1e-05
  %v62 = vadd.f32 %v58, 1e-05
  %v63 = vadd.f32 %v59, 1e-05
  %v64 = vrsqrt.pop %v60
  %v65 = vrsqrt.pop %v61
  %v66 = vrsqrt.pop %v62
  %v67 = vrsqrt.pop %v63
  %v68 = vmul.f32 %v36, %v64
  %v69 = vmul.f32 %v37, %v65
  %v70 = vmul.f32 %v38, %v66
  %v71 = vmul.f32 %v39, %v67
  %v72 = vld [vmem:[%s1] sm:$0x1]
  %v74 = vlaneseq
  %v75 = vshrl.u32 %v74, 7
  %v76 = vsub.s32 0, %v75
  %v77 = vrot.slane %v72, %v76
  %v79 = vmul.f32 %v68, %v77
  %v80 = vmul.f32 %v69, %v77
  %v81 = vmul.f32 %v70, %v77
  %v82 = vmul.f32 %v71, %v77
  %v83 = vld [vmem:[%s2] sm:$0x1]
  %v85 = vlaneseq
  %v86 = vshrl.u32 %v85, 7
  %v87 = vsub.s32 0, %v86
  %v88 = vrot.slane %v83, %v87
  %v90 = vadd.f32 %v79, %v88
  %v91 = vadd.f32 %v80, %v88
  %v92 = vadd.f32 %v81, %v88
  %v93 = vadd.f32 %v82, %v88
  %v94 = vpack.c.bf16 %v91, %v90
  %v95 = vpack.c.bf16 %v93, %v92
  %v98 = vunpack.c.l.b16 %v94
  %v99 = vunpack.c.h.b16 %v94
  %v100 = vunpack.c.l.b16 %v95
  %v101 = vunpack.c.h.b16 %v95
  %v102 = vpack.c.b16 %v98, %v98
  %v103 = vpack.c.b16 %v99, %v99
  %v104 = vpack.c.b16 %v100, %v100
  %v105 = vpack.c.b16 %v101, %v101
  %vm110 = vcmask 191488
  %111 = vst.msk [vmem:[%s3] sm:$0xf] %vm110, %v102
  %112 = vst.msk [vmem:[%s3 + $0x4] sm:$0xf] %vm110, %v103
  %113 = vst.msk [vmem:[%s3 + $0x8] sm:$0xf] %vm110, %v104
  %114 = vst.msk [vmem:[%s3 + $0xc] sm:$0xf] %vm110, %v105
  // Predicated region
  $region14: #{forward.37} parent=0 // pred_check
    _
  $region15: #{forward.37} parent=0 // pred_check_branch
    %116 = sbr.rel (0) target = $region17
  $region16: #{forward.37} parent=0 // pred_region
    _
  $region17: #{forward.37} parent=0 // pred_fallthru
    _
  // Predicated region
  $region18: #{forward.37} parent=0 // pred_check
    _
  $region19: #{forward.37} parent=0 // pred_check_branch
    %118 = sbr.rel (0) target = $region21
  $region20: #{forward.37} parent=0 // pred_region
    _
  $region21: #{forward.37} parent=0 // pred_fallthru
    _

// kernel: forward.38
$region0: #{forward.38}
  #allocation0 [shape = 'u32[]', space=smem, size = 0x4, offset = 0x4, fixed_abs, tag = 'smem constant byte address 0x4 - core index']
  #allocation1 [shape = 'u32[144,128]{1,0:T(1,128)}', space=vmem, size = 0x12000, scoped, tag = 'internal scratch']
  %s0 = inlined_call_operand.vmem [shape: bf16[32,216], index: 0, kind: input, shape index: {}]
  %s1 = inlined_call_operand.vmem [shape: bf16[216,72], index: 1, kind: input, shape index: {}]
  %s2 = inlined_call_operand.vmem [shape: f32[1,72], index: 2, kind: input, shape index: {}]
  %s3 = inlined_call_operand.vmem [shape: bf16[32,72], index: 3, kind: output, shape index: {}]
  %s4 = sld [smem:[#allocation0]]
  $region22: #{forward.38} parent=0
    _
  %s6 = ssub.s32 1, %s4
  %s7 = scalar_select 0, %s6, %s4
  // Predicated region
  $region2: #{forward.38} parent=0 // pred_check
    _
  $region3: #{forward.38} parent=0 // pred_check_branch
    %9 = sbr.rel (0) target = $region5
  $region4: #{forward.38} parent=0 // pred_region
    _
  $region5: #{forward.38} parent=0 // pred_fallthru
    _
  // Predicated region
  $region6: #{forward.38} parent=0 // pred_check
    _
  $region7: #{forward.38} parent=0 // pred_check_branch
    %11 = sbr.rel (0) target = $region9
  $region8: #{forward.38} parent=0 // pred_region
    _
  $region9: #{forward.38} parent=0 // pred_fallthru
    _
  // Predicated region
  $region10: #{forward.38} parent=0 // pred_check
    _
  $region11: #{forward.38} parent=0 // pred_check_branch
    %13 = sbr.rel (0) target = $region13
  $region12: #{forward.38} parent=0 // pred_region
    _
  $region13: #{forward.38} parent=0 // pred_fallthru
    _
  %v15 = vld [vmem:[%s0] sm:$0xff]
  %v16 = vld [vmem:[%s0 + $0x8] sm:$0xff]
  %v17 = vld [vmem:[%s0 + $0x10] sm:$0xff]
  %v18 = vld [vmem:[%s0 + $0x18] sm:$0xff]
  %v19 = vld [vmem:[%s1] sm:$0xf]
  %v20 = vld [vmem:[%s1 + $0x4] sm:$0xf]
  %v21 = vld [vmem:[%s1 + $0x8] sm:$0xf]
  %v22 = vld [vmem:[%s1 + $0xc] sm:$0xf]
  %v23 = vld [vmem:[%s1 + $0x10] sm:$0xf]
  %v24 = vld [vmem:[%s1 + $0x14] sm:$0xf]
  %v25 = vld [vmem:[%s1 + $0x18] sm:$0xf]
  %v26 = vld [vmem:[%s1 + $0x1c] sm:$0xf]
  %v27 = vld [vmem:[%s1 + $0x20] sm:$0xf]
  %v28 = vld [vmem:[%s1 + $0x24] sm:$0xf]
  %v29 = vld [vmem:[%s1 + $0x28] sm:$0xf]
  %v30 = vld [vmem:[%s1 + $0x2c] sm:$0xf]
  %v31 = vld [vmem:[%s1 + $0x30] sm:$0xf]
  %v32 = vld [vmem:[%s1 + $0x34] sm:$0xf]
  %v33 = vld [vmem:[%s1 + $0x38] sm:$0xf]
  %v34 = vld [vmem:[%s1 + $0x3c] sm:$0xf]
  %v35 = vld [vmem:[%s1 + $0x40] sm:$0xf]
  %v36 = vld [vmem:[%s1 + $0x44] sm:$0xf]
  %v37 = vld [vmem:[%s1 + $0x48] sm:$0xf]
  %v38 = vld [vmem:[%s1 + $0x4c] sm:$0xf]
  %v39 = vld [vmem:[%s1 + $0x50] sm:$0xf]
  %v40 = vld [vmem:[%s1 + $0x54] sm:$0xf]
  %v41 = vld [vmem:[%s1 + $0x58] sm:$0xf]
  %v42 = vld [vmem:[%s1 + $0x5c] sm:$0xf]
  %v43 = vld [vmem:[%s1 + $0x60] sm:$0xf]
  %v44 = vld [vmem:[%s1 + $0x64] sm:$0xf]
  %v45 = vld [vmem:[%s1 + $0x68] sm:$0xf]
  %v46 = vld [vmem:[%s2] sm:$0x1]
  %v48 = vlaneseq
  %v49 = vshrl.u32 %v48, 7
  %v50 = vsub.s32 0, %v49
  %v51 = vrot.slane %v46, %v50
  %v57 = vunpack.c.l.b16 %v15
  %v58 = vunpack.c.h.b16 %v15
  %v59 = vunpack.c.l.b16 %v16
  %v60 = vunpack.c.h.b16 %v16
  %v61 = vunpack.c.l.b16 %v17
  %v62 = vunpack.c.h.b16 %v17
  %v63 = vunpack.c.l.b16 %v18
  %v64 = vunpack.c.h.b16 %v18
  %v65 = vpack.c.b16 %v59, %v57
  %v66 = vpack.c.b16 %v60, %v58
  %v67 = vpack.c.b16 %v63, %v61
  %v68 = vpack.c.b16 %v64, %v62
  %v98 = vunpack.c.l.b16 %v19
  %v99 = vunpack.c.l.b16 %v20
  %v100 = vunpack.c.l.b16 %v21
  %v101 = vunpack.c.l.b16 %v22
  %v102 = vunpack.c.l.b16 %v23
  %v103 = vunpack.c.l.b16 %v24
  %v104 = vunpack.c.l.b16 %v25
  %v105 = vunpack.c.l.b16 %v26
  %v106 = vunpack.c.l.b16 %v27
  %v107 = vunpack.c.l.b16 %v28
  %v108 = vunpack.c.l.b16 %v29
  %v109 = vunpack.c.l.b16 %v30
  %v110 = vunpack.c.l.b16 %v31
  %v111 = vunpack.c.l.b16 %v32
  %v112 = vunpack.c.l.b16 %v33
  %v113 = vunpack.c.l.b16 %v34
  %v114 = vunpack.c.l.b16 %v35
  %v115 = vunpack.c.l.b16 %v36
  %v116 = vunpack.c.l.b16 %v37
  %v117 = vunpack.c.l.b16 %v38
  %v118 = vunpack.c.l.b16 %v39
  %v119 = vunpack.c.l.b16 %v40
  %v120 = vunpack.c.l.b16 %v41
  %v121 = vunpack.c.l.b16 %v42
  %v122 = vunpack.c.l.b16 %v43
  %v123 = vunpack.c.l.b16 %v44
  %v124 = vunpack.c.l.b16 %v45
  %v125 = vpack.c.b16 %v99, %v98
  %v126 = vpack.c.b16 %v101, %v100
  %v127 = vpack.c.b16 %v103, %v102
  %v128 = vpack.c.b16 %v105, %v104
  %v129 = vpack.c.b16 %v107, %v106
  %v130 = vpack.c.b16 %v109, %v108
  %v131 = vpack.c.b16 %v111, %v110
  %v132 = vpack.c.b16 %v113, %v112
  %v133 = vpack.c.b16 %v115, %v114
  %v134 = vpack.c.b16 %v117, %v116
  %v135 = vpack.c.b16 %v119, %v118
  %v136 = vpack.c.b16 %v121, %v120
  %v137 = vpack.c.b16 %v123, %v122
  %v138 = vpack.c.b16 %v124, %v124
  %vm152 = vcmask 719872
  %v154 = vsel %vm152, %v66, 0
  %v157 = vsel %vm152, %v68, 0
  %vm159 = vcmask 1043456
  %v161 = vsel %vm159, %v138, 0
  %163 = vmatprep.subr.bf16.mxu0 0
  %164 = vmatpush1.bf16.msra.mxu0 %v125
  %165 = vmatprep.subr.bf16.mxu0 0
  %166 = vmatpush1.bf16.msra.mxu0 %v126
  %167 = vmatprep.subr.bf16.mxu0 0
  %168 = vmatpush1.bf16.msra.mxu0 %v127
  %169 = vmatprep.subr.bf16.mxu0 0
  %170 = vmatpush1.bf16.msra.mxu0 %v128
  %171 = vmatprep.subr.bf16.mxu0 0
  %172 = vmatpush1.bf16.msra.mxu0 %v129
  %173 = vmatprep.subr.bf16.mxu0 0
  %174 = vmatpush1.bf16.msra.mxu0 %v130
  %175 = vmatprep.subr.bf16.mxu0 0
  %176 = vmatpush1.bf16.msra.mxu0 %v131
  %177 = vmatprep.subr.bf16.mxu0 0
  %178 = vmatpush1.bf16.msra.mxu0 %v132
  %179 = vmatprep.subr.bf16.mxu0 0
  %180 = vmatpush1.bf16.msra.mxu0 %v133
  %181 = vmatprep.subr.bf16.mxu0 0
  %182 = vmatpush1.bf16.msra.mxu0 %v134
  %183 = vmatprep.subr.bf16.mxu0 0
  %184 = vmatpush1.bf16.msra.mxu0 %v135
  %185 = vmatprep.subr.bf16.mxu0 0
  %186 = vmatpush1.bf16.msra.mxu0 %v136
  %187 = vmatprep.subr.bf16.mxu0 0
  %188 = vmatpush1.bf16.msra.mxu0 %v137
  %189 = vmatprep.subr.bf16.mxu0 0
  %190 = vmatpush1.bf16.msra.mxu0 %v161
  %191 = vmatprep.subr.bf16.mxu0 0
  %192 = vmatpush1.bf16.msra.mxu0 0
  %193 = vmatprep.subr.bf16.mxu0 0
  %194 = vmatpush1.bf16.msra.mxu0 0
  %195 = vmatprep.mubr.bf16.mxu0 %v154
  %196 = vmatmul.mubr.bf16.gmra.mrb[0].mxu0 %v65
  %v197 = vpop.f32.mrb[0].mxu0
  %v198 = vadd.f32 %v51, %v197
  %v199 = vpop.f32.mrb[0].mxu0
  %v200 = vpop.f32.mrb[0].mxu0
  %v201 = vadd.f32 %v51, %v200
  %v202 = vpop.f32.mrb[0].mxu0
  %203 = vmatprep.mubr.bf16.mxu0 %v157
  %204 = vmatmul.mubr.bf16.gmra.mrb[0].mxu0 %v67
  %v205 = vpop.f32.mrb[0].mxu0
  %v206 = vadd.f32 %v51, %v205
  %v207 = vpop.f32.mrb[0].mxu0
  %v208 = vpop.f32.mrb[0].mxu0
  %v209 = vadd.f32 %v51, %v208
  %v210 = vpop.f32.mrb[0].mxu0
  %211 = vdwg.mxu0
  %v212 = vpack.c.bf16 %v201, %v198
  %v213 = vpack.c.bf16 %v209, %v206
  %v216 = vunpack.c.l.b16 %v212
  %v217 = vunpack.c.h.b16 %v212
  %v218 = vunpack.c.l.b16 %v213
  %v219 = vunpack.c.h.b16 %v213
  %v220 = vpack.c.b16 %v216, %v216
  %v221 = vpack.c.b16 %v217, %v217
  %v222 = vpack.c.b16 %v218, %v218
  %v223 = vpack.c.b16 %v219, %v219
  %vm228 = vcmask 584704
  %229 = vst.msk [vmem:[%s3] sm:$0xf] %vm228, %v220
  %230 = vst.msk [vmem:[%s3 + $0x4] sm:$0xf] %vm228, %v221
  %231 = vst.msk [vmem:[%s3 + $0x8] sm:$0xf] %vm228, %v222
  %232 = vst.msk [vmem:[%s3 + $0xc] sm:$0xf] %vm228, %v223
  // Predicated region
  $region14: #{forward.38} parent=0 // pred_check
    _
  $region15: #{forward.38} parent=0 // pred_check_branch
    %234 = sbr.rel (0) target = $region17
  $region16: #{forward.38} parent=0 // pred_region
    _
  $region17: #{forward.38} parent=0 // pred_fallthru
    _
  // Predicated region
  $region18: #{forward.38} parent=0 // pred_check
    _
  $region19: #{forward.38} parent=0 // pred_check_branch
    %236 = sbr.rel (0) target = $region21
  $region20: #{forward.38} parent=0 // pred_region
    _
  $region21: #{forward.38} parent=0 // pred_fallthru
    _

// kernel: forward.39
$region0: #{forward.39}
  #allocation0 [shape = 'u32[]', space=smem, size = 0x4, offset = 0x4, fixed_abs, tag = 'smem constant byte address 0x4 - core index']
  #allocation1 [shape = 'u32[144,128]{1,0:T(1,128)}', space=vmem, size = 0x12000, scoped, tag = 'internal scratch']
  %s0 = inlined_call_operand.vmem [shape: bf16[2,16,24], index: 0, kind: input, shape index: {}]
  %s1 = inlined_call_operand.vmem [shape: bf16[2,16,24], index: 1, kind: input, shape index: {}]
  %s2 = inlined_call_operand.vmem [shape: bf16[2,16,24], index: 2, kind: input, shape index: {}]
  %s3 = inlined_call_operand.vmem [shape: bf16[2,16,24], index: 3, kind: output, shape index: {}]
  %s4 = sld [smem:[#allocation0]]
  $region45: #{forward.39} parent=0
    _
  %s6 = ssub.s32 1, %s4
  %s7 = scalar_select 0, %s6, %s4
  loop: start=0, step=1, limit=4
  $region2: #{forward.39} parent=0 // loop_pre_header
    _
  $region3: #{forward.39} parent=0 // loop_header
    %s9 = sphi 0, %s13
    %p10 = scmp.ge.s32.totalorder %s9, 4
    %s16 = sphi 0, %s28
    %s17 = sphi 0, %s24
    %s18 = sphi 0, %s16
    %s19 = sphi 0, %s17
    %s20 = sphi 0, %s18
    %s21 = sphi 0, %s19
    %s33 = sphi 0, %s35
    %s36 = sphi 0, %s33
    %s37 = sphi 0, %s36
    %s53 = sphi 0, %s37
    %s59 = sphi 0, %s61
    %s62 = sphi 0, %s59
    %s63 = sphi 0, %s62
    %s79 = sphi 0, %s63
    %s85 = sphi 0, %s87
    %s88 = sphi 0, %s85
    %s89 = sphi 0, %s88
    %s105 = sphi 0, %s89
    %s113 = sphi 0, %s115
    %s116 = sphi 0, %s113
    %s117 = sphi 0, %s116
    %s133 = sphi 0, %s117
  $region4: #{forward.39} parent=0 // loop_header_branch
    %12 = sbr.rel (%p10) target = $region8
  $region5: #{forward.39} parent=0 // loop_body
    %s14 = ssub.s32 %s9, 1
    %s15 = ssub.s32 %s9, 2
    %s22 = sadd.s32 1, %s17
    %p23 = scmp.ge.s32.totalorder %s22, 1
    %s24 = scalar_select %p23, 0, %s22
    %s25 = sadd.s32 1, %s16
    %s26 = scalar_select %p23, %s25, %s16
    %p27 = scmp.ge.s32.totalorder %s26, 2
    %s28 = scalar_select %p27, 0, %s26
    %s29 = ssub.s32 %s16, %s28
    %s30 = ssub.s32 %s17, %s24
    %s31 = sor.u32 %s29, %s30
    %p32 = scmp.eq.s32.totalorder %s31, 0
    %s34 = sadd.s32 %s33, 1
    %s35 = scalar_select %p32, %s33, %s34
    %p38 = pneg %p32
    %p39 = scmp.eq.s32.totalorder %s9, 1
    %p40 = por %p38, %p39
    %p41 = scmp.ne.s32.totalorder %s33, %s36
    %p42 = scmp.eq.s32.totalorder %s9, 0
    %p43 = por %p41, %p42
    %p44 = scmp.ne.s32.totalorder %s33, %s36
    %p45 = scmp.eq.s32.totalorder %s14, 1
    %p46 = por %p44, %p45
    %p47 = scmp.ne.s32.totalorder %s36, %s37
    %p48 = scmp.eq.s32.totalorder %s14, 0
    %p49 = por %p47, %p48
    %p50 = scmp.ne.s32.totalorder %s36, %s37
    %p51 = scmp.eq.s32.totalorder %s15, 1
    %p52 = por %p50, %p51
    %p54 = scmp.ne.s32.totalorder %s37, %s53
    %p55 = scmp.eq.s32.totalorder %s15, 0
    %p56 = por %p54, %p55
    %s57 = ssub.s32 %s16, %s28
    %p58 = scmp.eq.s32.totalorder %s57, 0
    %s60 = sadd.s32 %s59, 1
    %s61 = scalar_select %p58, %s59, %s60
    %p64 = pneg %p58
    %p65 = scmp.eq.s32.totalorder %s9, 1
    %p66 = por %p64, %p65
    %p67 = scmp.ne.s32.totalorder %s59, %s62
    %p68 = scmp.eq.s32.totalorder %s9, 0
    %p69 = por %p67, %p68
    %p70 = scmp.ne.s32.totalorder %s59, %s62
    %p71 = scmp.eq.s32.totalorder %s14, 1
    %p72 = por %p70, %p71
    %p73 = scmp.ne.s32.totalorder %s62, %s63
    %p74 = scmp.eq.s32.totalorder %s14, 0
    %p75 = por %p73, %p74
    %p76 = scmp.ne.s32.totalorder %s62, %s63
    %p77 = scmp.eq.s32.totalorder %s15, 1
    %p78 = por %p76, %p77
    %p80 = scmp.ne.s32.totalorder %s63, %s79
    %p81 = scmp.eq.s32.totalorder %s15, 0
    %p82 = por %p80, %p81
    %s83 = ssub.s32 %s16, %s28
    %p84 = scmp.eq.s32.totalorder %s83, 0
    %s86 = sadd.s32 %s85, 1
    %s87 = scalar_select %p84, %s85, %s86
    %p90 = pneg %p84
    %p91 = scmp.eq.s32.totalorder %s9, 1
    %p92 = por %p90, %p91
    %p93 = scmp.ne.s32.totalorder %s85, %s88
    %p94 = scmp.eq.s32.totalorder %s9, 0
    %p95 = por %p93, %p94
    %p96 = scmp.ne.s32.totalorder %s85, %s88
    %p97 = scmp.eq.s32.totalorder %s14, 1
    %p98 = por %p96, %p97
    %p99 = scmp.ne.s32.totalorder %s88, %s89
    %p100 = scmp.eq.s32.totalorder %s14, 0
    %p101 = por %p99, %p100
    %p102 = scmp.ne.s32.totalorder %s88, %s89
    %p103 = scmp.eq.s32.totalorder %s15, 1
    %p104 = por %p102, %p103
    %p106 = scmp.ne.s32.totalorder %s89, %s105
    %p107 = scmp.eq.s32.totalorder %s15, 0
    %p108 = por %p106, %p107
    %s109 = ssub.s32 %s16, %s28
    %s110 = ssub.s32 %s17, %s24
    %s111 = sor.u32 %s109, %s110
    %p112 = scmp.eq.s32.totalorder %s111, 0
    %s114 = sadd.s32 %s113, 1
    %s115 = scalar_select %p112, %s113, %s114
    %p118 = pneg %p112
    %p119 = scmp.eq.s32.totalorder %s9, 1
    %p120 = por %p118, %p119
    %p121 = scmp.ne.s32.totalorder %s113, %s116
    %p122 = scmp.eq.s32.totalorder %s9, 0
    %p123 = por %p121, %p122
    %p124 = scmp.ne.s32.totalorder %s113, %s116
    %p125 = scmp.eq.s32.totalorder %s14, 1
    %p126 = por %p124, %p125
    %p127 = scmp.ne.s32.totalorder %s116, %s117
    %p128 = scmp.eq.s32.totalorder %s14, 0
    %p129 = por %p127, %p128
    %p130 = scmp.ne.s32.totalorder %s116, %s117
    %p131 = scmp.eq.s32.totalorder %s15, 1
    %p132 = por %p130, %p131
    %p134 = scmp.ne.s32.totalorder %s117, %s133
    %p135 = scmp.eq.s32.totalorder %s15, 0
    %p136 = por %p134, %p135
    %p137 = scmp.le.s32.totalorder 1, %s9
    %p138 = scmp.lt.s32.totalorder %s9, 3
    %p139 = pnand %p137, %p138
    %p140 = pneg %p139
    // Predicated region
    $region9: #{forward.39} parent=5 // pred_check
      _
    $region10: #{forward.39} parent=5 // pred_check_branch
      %142 = sbr.rel (%p139) target = $region12
    $region11: #{forward.39} parent=5 // pred_region
      %s143 = ssub.s32 %s9, 1
    $region12: #{forward.39} parent=5 // pred_fallthru
      _
    %p144 = scmp.lt.s32.totalorder %s9, 2
    // Predicated region
    $region13: #{forward.39} parent=5 // pred_check
      %p145 = pneg %p144
    $region14: #{forward.39} parent=5 // pred_check_branch
      %147 = sbr.rel (%p145) target = $region16
    $region15: #{forward.39} parent=5 // pred_region
      // Predicated region
      $region17: #{forward.39} parent=15 // pred_check
        %p148 = pneg %p43
      $region18: #{forward.39} parent=15 // pred_check_branch
        %150 = sbr.rel (%p148) target = $region20
      $region19: #{forward.39} parent=15 // pred_region
        %s151 = smul.u32 2, %s17
        %p152 = scmp.lt.s32.totalorder %s16, 1
        %s153 = scalar_select %p152, %s16, 1
        %p154 = scmp.lt.s32.totalorder %s151, 1
        %s155 = scalar_select %p154, %s151, 1
        %s156 = smul.addr %s153, 2
        %s157 = sadd.s32 %s155, %s156
        %s158 = smul.addr %s157, 4
        %s159 = scalar_lea.vmem %s0, %s158
        %s160 = smul.u32 2, %s17
      $region20: #{forward.39} parent=15 // pred_fallthru
        _
      // Predicated region
      $region21: #{forward.39} parent=15 // pred_check
        %p161 = pneg %p69
      $region22: #{forward.39} parent=15 // pred_check_branch
        %163 = sbr.rel (%p161) target = $region24
      $region23: #{forward.39} parent=15 // pred_region
        %p164 = scmp.lt.s32.totalorder %s16, 1
        %s165 = scalar_select %p164, %s16, 1
        %s166 = smul.addr %s165, 2
        %s167 = smul.addr %s166, 4
        %s168 = scalar_lea.vmem %s1, %s167
      $region24: #{forward.39} parent=15 // pred_fallthru
        _
      // Predicated region
      $region25: #{forward.39} parent=15 // pred_check
        %p169 = pneg %p95
      $region26: #{forward.39} parent=15 // pred_check_branch
        %171 = sbr.rel (%p169) target = $region28
      $region27: #{forward.39} parent=15 // pred_region
        %p172 = scmp.lt.s32.totalorder %s16, 1
        %s173 = scalar_select %p172, %s16, 1
        %s174 = smul.addr %s173, 2
        %s175 = smul.addr %s174, 4
        %s176 = scalar_lea.vmem %s2, %s175
      $region28: #{forward.39} parent=15 // pred_fallthru
        _
    $region16: #{forward.39} parent=5 // pred_fallthru
      _
    %p177 = scmp.le.s32.totalorder 1, %s9
    %p178 = scmp.lt.s32.totalorder %s9, 3
    %p179 = pnand %p177, %p178
    %p180 = pneg %p179
    // Predicated region
    $region29: #{forward.39} parent=5 // pred_check
      _
    $region30: #{forward.39} parent=5 // pred_check_branch
      %182 = sbr.rel (%p179) target = $region32
    $region31: #{forward.39} parent=5 // pred_region
      %s183 = ssub.s32 %s9, 1
      %s184 = smul.u32 2, %s19
      %p185 = scmp.lt.s32.totalorder %s18, 1
      %s186 = scalar_select %p185, %s18, 1
      %p187 = scmp.lt.s32.totalorder %s184, 1
      %s188 = scalar_select %p187, %s184, 1
      %s189 = smul.addr %s186, 2
      %s190 = sadd.s32 %s188, %s189
      %s191 = smul.addr %s190, 4
      %s192 = scalar_lea.vmem %s0, %s191
      %p193 = pneg %p49
      %p194 = pneg %p46
      %p195 = scmp.lt.s32.totalorder %s18, 1
      %s196 = scalar_select %p195, %s18, 1
      %s197 = smul.addr %s196, 2
      %s198 = smul.addr %s197, 4
      %s199 = scalar_lea.vmem %s1, %s198
      %p200 = pneg %p75
      %p201 = pneg %p72
      %p202 = scmp.lt.s32.totalorder %s18, 1
      %s203 = scalar_select %p202, %s18, 1
      %s204 = smul.addr %s203, 2
      %s205 = smul.addr %s204, 4
      %s206 = scalar_lea.vmem %s2, %s205
      %p207 = pneg %p101
      %p208 = pneg %p98
      %p209 = pneg %p129
      %p210 = pneg %p126
      %s211 = smul.u32 2, %s19
      %p212 = scmp.lt.s32.totalorder %s18, 1
      %s213 = scalar_select %p212, %s18, 1
      %p214 = scmp.lt.s32.totalorder %s211, 1
      %s215 = scalar_select %p214, %s211, 1
      %s216 = smul.addr %s213, 2
      %s217 = sadd.s32 %s215, %s216
      %s218 = smul.addr %s217, 4
      %s219 = scalar_lea.vmem %s3, %s218
      %s220 = smul.u32 2, %s19
      %p221 = scmp.lt.s32.totalorder %s18, 1
      %s222 = scalar_select %p221, %s18, 1
      %p223 = scmp.lt.s32.totalorder %s220, 1
      %s224 = scalar_select %p223, %s220, 1
      %s225 = smul.addr %s222, 2
      %s226 = sadd.s32 %s224, %s225
      %s227 = smul.addr %s226, 4
      %s228 = scalar_lea.vmem %s0, %s227
      %s229 = smul.u32 2, %s19
      %p230 = scmp.lt.s32.totalorder %s18, 1
      %s231 = scalar_select %p230, %s18, 1
      %s232 = smul.addr %s231, 2
      %s233 = smul.addr %s232, 4
      %s234 = scalar_lea.vmem %s1, %s233
      %p235 = scmp.lt.s32.totalorder %s18, 1
      %s236 = scalar_select %p235, %s18, 1
      %s237 = smul.addr %s236, 2
      %s238 = smul.addr %s237, 4
      %s239 = scalar_lea.vmem %s2, %s238
      %s240 = smul.u32 2, %s19
      %p241 = scmp.lt.s32.totalorder %s18, 1
      %s242 = scalar_select %p241, %s18, 1
      %p243 = scmp.lt.s32.totalorder %s240, 1
      %s244 = scalar_select %p243, %s240, 1
      %s245 = smul.addr %s242, 2
      %s246 = sadd.s32 %s244, %s245
      %s247 = smul.addr %s246, 4
      %s248 = scalar_lea.vmem %s3, %s247
      %s249 = smul.u32 2, %s19
      %v251 = vld [vmem:[%s228] sm:$0xf]
      %v252 = vld [vmem:[%s228 + $0x4] sm:$0xf]
      %v253 = vld [vmem:[%s234] sm:$0xf]
      %v254 = vld [vmem:[%s234 + $0x4] sm:$0xf]
      %v255 = vld [vmem:[%s239] sm:$0xf]
      %v256 = vld [vmem:[%s239 + $0x4] sm:$0xf]
      %v259 = vunpack.c.l.b16 %v251
      %v260 = vunpack.c.l.b16 %v252
      %v261 = vpack.c.b16 %v260, %v259
      %v264 = vunpack.c.l.b16 %v253
      %v265 = vunpack.c.l.b16 %v254
      %v266 = vpack.c.b16 %v265, %v264
      %vm267 = vcmask 64512
      %v269 = vsel %vm267, %v261, 0
      %v272 = vsel %vm267, %v266, 0
      %274 = vmatprep.subr.bf16.mxu0 0
      %275 = vmatpush1.bf16.xpose.msra.mxu0 %v272
      %276 = vmatprep.subr.bf16.mxu0 0
      %277 = vmatpush1.bf16.xpose.msra.mxu0 0
      %278 = vmatprep.subr.bf16.mxu0 0
      %279 = vmatpush1.bf16.xpose.msra.mxu0 0
      %280 = vmatprep.subr.bf16.mxu0 0
      %281 = vmatpush1.bf16.xpose.msra.mxu0 0
      %282 = vmatprep.subr.bf16.mxu0 0
      %283 = vmatpush1.bf16.xpose.msra.mxu0 0
      %284 = vmatprep.subr.bf16.mxu0 0
      %285 = vmatpush1.bf16.xpose.msra.mxu0 0
      %286 = vmatprep.subr.bf16.mxu0 0
      %287 = vmatpush1.bf16.xpose.msra.mxu0 0
      %288 = vmatprep.subr.bf16.mxu0 0
      %289 = vmatpush1.bf16.xpose.msra.mxu0 0
      %290 = vmatprep.subr.bf16.mxu0 0
      %291 = vmatpush1.bf16.xpose.msra.mxu0 0
      %292 = vmatprep.subr.bf16.mxu0 0
      %293 = vmatpush1.bf16.xpose.msra.mxu0 0
      %294 = vmatprep.subr.bf16.mxu0 0
      %295 = vmatpush1.bf16.xpose.msra.mxu0 0
      %296 = vmatprep.subr.bf16.mxu0 0
      %297 = vmatpush1.bf16.xpose.msra.mxu0 0
      %298 = vmatprep.subr.bf16.mxu0 0
      %299 = vmatpush1.bf16.xpose.msra.mxu0 0
      %300 = vmatprep.subr.bf16.mxu0 0
      %301 = vmatpush1.bf16.xpose.msra.mxu0 0
      %302 = vmatprep.subr.bf16.mxu0 0
      %303 = vmatpush1.bf16.xpose.msra.mxu0 0
      %304 = vmatprep.subr.bf16.mxu0 0
      %305 = vmatpush1.bf16.xpose.msra.mxu0 0
      %306 = vmatprep.mubr.bf16.mxu0 0
      %307 = vmatmul.mubr.bf16.gmra.mrb[0].mxu0 %v269
      %v308 = vpop.f32.mrb[0].mxu0
      %v309 = vadd.f32 0.0, %v308
      %v310 = vpop.f32.mrb[0].mxu0
      %v311 = vpop.f32.mrb[0].mxu0
      %v312 = vadd.f32 0.0, %v311
      %v313 = vpop.f32.mrb[0].mxu0
      %314 = vdwg.mxu0
      %v315 = vmul.f32 %v309, 0.35355338
      %v316 = vmul.f32 %v312, 0.35355338
      %vm317 = vcmask 130048
      %v318 = vsel %vm317, %v315, -inf
      %319 = vmax.xlane.f32.xlu0 %v318
      %v320 = vpop.xlane.xlu0 %319
      %v321 = vsel %vm317, %v316, -inf
      %322 = vmax.xlane.f32.xlu0 %v321
      %v323 = vpop.xlane.xlu0 %322
      %v324 = vsub.f32 %v315, %v320
      %v325 = vsub.f32 %v316, %v323
      %v326 = vmul.f32 %v324, 1.442695
      %v327 = vpow.pop %v326
      %v328 = vmul.f32 %v325, 1.442695
      %v329 = vpow.pop %v328
      %v330 = vsel %vm317, %v327, 0.0
      %331 = vadd.xlane.f32.xlu0 %v330
      %v332 = vpop.xlane.xlu0 %331
      %v333 = vsel %vm317, %v329, 0.0
      %334 = vadd.xlane.f32.xlu0 %v333
      %v335 = vpop.xlane.xlu0 %334
      %v336 = vrcp.pop %v332
      %v337 = vmul.f32 %v327, %v336
      %v338 = vrcp.pop %v335
      %v339 = vmul.f32 %v329, %v338
      %v340 = vpack.c.bf16 %v339, %v337
      %v343 = vunpack.c.l.b16 %v255
      %v344 = vunpack.c.l.b16 %v256
      %v345 = vpack.c.b16 %v344, %v343
      %v348 = vsel %vm317, %v340, 0
      %350 = vmatprep.subr.bf16.mxu0 0
      %351 = vmatpush1.bf16.msra.mxu0 %v345
      %352 = vmatprep.subr.bf16.mxu0 0
      %353 = vmatpush1.bf16.msra.mxu0 0
      %354 = vmatprep.subr.bf16.mxu0 0
      %355 = vmatpush1.bf16.msra.mxu0 0
      %356 = vmatprep.subr.bf16.mxu0 0
      %357 = vmatpush1.bf16.msra.mxu0 0
      %358 = vmatprep.subr.bf16.mxu0 0
      %359 = vmatpush1.bf16.msra.mxu0 0
      %360 = vmatprep.subr.bf16.mxu0 0
      %361 = vmatpush1.bf16.msra.mxu0 0
      %362 = vmatprep.subr.bf16.mxu0 0
      %363 = vmatpush1.bf16.msra.mxu0 0
      %364 = vmatprep.subr.bf16.mxu0 0
      %365 = vmatpush1.bf16.msra.mxu0 0
      %366 = vmatprep.subr.bf16.mxu0 0
      %367 = vmatpush1.bf16.msra.mxu0 0
      %368 = vmatprep.subr.bf16.mxu0 0
      %369 = vmatpush1.bf16.msra.mxu0 0
      %370 = vmatprep.subr.bf16.mxu0 0
      %371 = vmatpush1.bf16.msra.mxu0 0
      %372 = vmatprep.subr.bf16.mxu0 0
      %373 = vmatpush1.bf16.msra.mxu0 0
      %374 = vmatprep.subr.bf16.mxu0 0
      %375 = vmatpush1.bf16.msra.mxu0 0
      %376 = vmatprep.subr.bf16.mxu0 0
      %377 = vmatpush1.bf16.msra.mxu0 0
      %378 = vmatprep.subr.bf16.mxu0 0
      %379 = vmatpush1.bf16.msra.mxu0 0
      %380 = vmatprep.subr.bf16.mxu0 0
      %381 = vmatpush1.bf16.msra.mxu0 0
      %382 = vmatprep.mubr.bf16.mxu0 0
      %383 = vmatmul.mubr.bf16.gmra.mrb[0].mxu0 %v348
      %v384 = vpop.f32.mrb[0].mxu0
      %v385 = vadd.f32 0.0, %v384
      %v386 = vpop.f32.mrb[0].mxu0
      %v387 = vpop.f32.mrb[0].mxu0
      %v388 = vadd.f32 0.0, %v387
      %v389 = vpop.f32.mrb[0].mxu0
      %390 = vdwg.mxu0
      %391 = vrot.lane.b32.xlu0 %v261, 120
      %v392 = vpop.permute.xlu0 %391
      %393 = vrot.lane.b32.xlu0 %v266, 120
      %v394 = vpop.permute.xlu0 %393
      %v396 = vsel %vm267, %v392, 0
      %v399 = vsel %vm267, %v394, 0
      %401 = vmatprep.subr.bf16.mxu0 0
      %402 = vmatpush1.bf16.xpose.msra.mxu0 %v399
      %403 = vmatprep.subr.bf16.mxu0 0
      %404 = vmatpush1.bf16.xpose.msra.mxu0 0
      %405 = vmatprep.subr.bf16.mxu0 0
      %406 = vmatpush1.bf16.xpose.msra.mxu0 0
      %407 = vmatprep.subr.bf16.mxu0 0
      %408 = vmatpush1.bf16.xpose.msra.mxu0 0
      %409 = vmatprep.subr.bf16.mxu0 0
      %410 = vmatpush1.bf16.xpose.msra.mxu0 0
      %411 = vmatprep.subr.bf16.mxu0 0
      %412 = vmatpush1.bf16.xpose.msra.mxu0 0
      %413 = vmatprep.subr.bf16.mxu0 0
      %414 = vmatpush1.bf16.xpose.msra.mxu0 0
      %415 = vmatprep.subr.bf16.mxu0 0
      %416 = vmatpush1.bf16.xpose.msra.mxu0 0
      %417 = vmatprep.subr.bf16.mxu0 0
      %418 = vmatpush1.bf16.xpose.msra.mxu0 0
      %419 = vmatprep.subr.bf16.mxu0 0
      %420 = vmatpush1.bf16.xpose.msra.mxu0 0
      %421 = vmatprep.subr.bf16.mxu0 0
      %422 = vmatpush1.bf16.xpose.msra.mxu0 0
      %423 = vmatprep.subr.bf16.mxu0 0
      %424 = vmatpush1.bf16.xpose.msra.mxu0 0
      %425 = vmatprep.subr.bf16.mxu0 0
      %426 = vmatpush1.bf16.xpose.msra.mxu0 0
      %427 = vmatprep.subr.bf16.mxu0 0
      %428 = vmatpush1.bf16.xpose.msra.mxu0 0
      %429 = vmatprep.subr.bf16.mxu0 0
      %430 = vmatpush1.bf16.xpose.msra.mxu0 0
      %431 = vmatprep.subr.bf16.mxu0 0
      %432 = vmatpush1.bf16.xpose.msra.mxu0 0
      %433 = vmatprep.mubr.bf16.mxu0 0
      %434 = vmatmul.mubr.bf16.gmra.mrb[0].mxu0 %v396
      %v435 = vpop.f32.mrb[0].mxu0
      %v436 = vadd.f32 0.0, %v435
      %v437 = vpop.f32.mrb[0].mxu0
      %v438 = vpop.f32.mrb[0].mxu0
      %v439 = vadd.f32 0.0, %v438
      %v440 = vpop.f32.mrb[0].mxu0
      %441 = vdwg.mxu0
      %v442 = vmul.f32 %v436, 0.35355338
      %v443 = vmul.f32 %v439, 0.35355338
      %v444 = vsel %vm317, %v442, -inf
      %445 = vmax.xlane.f32.xlu0 %v444
      %v446 = vpop.xlane.xlu0 %445
      %v447 = vsel %vm317, %v443, -inf
      %448 = vmax.xlane.f32.xlu0 %v447
      %v449 = vpop.xlane.xlu0 %448
      %v450 = vsub.f32 %v442, %v446
      %v451 = vsub.f32 %v443, %v449
      %v452 = vmul.f32 %v450, 1.442695
      %v453 = vpow.pop %v452
      %v454 = vmul.f32 %v451, 1.442695
      %v455 = vpow.pop %v454
      %v456 = vsel %vm317, %v453, 0.0
      %457 = vadd.xlane.f32.xlu0 %v456
      %v458 = vpop.xlane.xlu0 %457
      %v459 = vsel %vm317, %v455, 0.0
      %460 = vadd.xlane.f32.xlu0 %v459
      %v461 = vpop.xlane.xlu0 %460
      %v462 = vrcp.pop %v458
      %v463 = vmul.f32 %v453, %v462
      %v464 = vrcp.pop %v461
      %v465 = vmul.f32 %v455, %v464
      %v466 = vpack.c.bf16 %v465, %v463
      %467 = vrot.lane.b32.xlu0 %v345, 120
      %v468 = vpop.permute.xlu0 %467
      %v471 = vsel %vm317, %v466, 0
      %473 = vmatprep.subr.bf16.mxu0 0
      %474 = vmatpush1.bf16.msra.mxu0 %v468
      %475 = vmatprep.subr.bf16.mxu0 0
      %476 = vmatpush1.bf16.msra.mxu0 0
      %477 = vmatprep.subr.bf16.mxu0 0
      %478 = vmatpush1.bf16.msra.mxu0 0
      %479 = vmatprep.subr.bf16.mxu0 0
      %480 = vmatpush1.bf16.msra.mxu0 0
      %481 = vmatprep.subr.bf16.mxu0 0
      %482 = vmatpush1.bf16.msra.mxu0 0
      %483 = vmatprep.subr.bf16.mxu0 0
      %484 = vmatpush1.bf16.msra.mxu0 0
      %485 = vmatprep.subr.bf16.mxu0 0
      %486 = vmatpush1.bf16.msra.mxu0 0
      %487 = vmatprep.subr.bf16.mxu0 0
      %488 = vmatpush1.bf16.msra.mxu0 0
      %489 = vmatprep.subr.bf16.mxu0 0
      %490 = vmatpush1.bf16.msra.mxu0 0
      %491 = vmatprep.subr.bf16.mxu0 0
      %492 = vmatpush1.bf16.msra.mxu0 0
      %493 = vmatprep.subr.bf16.mxu0 0
      %494 = vmatpush1.bf16.msra.mxu0 0
      %495 = vmatprep.subr.bf16.mxu0 0
      %496 = vmatpush1.bf16.msra.mxu0 0
      %497 = vmatprep.subr.bf16.mxu0 0
      %498 = vmatpush1.bf16.msra.mxu0 0
      %499 = vmatprep.subr.bf16.mxu0 0
      %500 = vmatpush1.bf16.msra.mxu0 0
      %501 = vmatprep.subr.bf16.mxu0 0
      %502 = vmatpush1.bf16.msra.mxu0 0
      %503 = vmatprep.subr.bf16.mxu0 0
      %504 = vmatpush1.bf16.msra.mxu0 0
      %505 = vmatprep.mubr.bf16.mxu0 0
      %506 = vmatmul.mubr.bf16.gmra.mrb[0].mxu0 %v471
      %v507 = vpop.f32.mrb[0].mxu0
      %v508 = vadd.f32 0.0, %v507
      %v509 = vpop.f32.mrb[0].mxu0
      %v510 = vpop.f32.mrb[0].mxu0
      %v511 = vadd.f32 0.0, %v510
      %v512 = vpop.f32.mrb[0].mxu0
      %513 = vdwg.mxu0
      %514 = vrot.lane.b32.xlu0 %v261, 112
      %v515 = vpop.permute.xlu0 %514
      %516 = vrot.lane.b32.xlu0 %v266, 112
      %v517 = vpop.permute.xlu0 %516
      %v519 = vsel %vm267, %v515, 0
      %v522 = vsel %vm267, %v517, 0
      %524 = vmatprep.subr.bf16.mxu0 0
      %525 = vmatpush1.bf16.xpose.msra.mxu0 %v522
      %526 = vmatprep.subr.bf16.mxu0 0
      %527 = vmatpush1.bf16.xpose.msra.mxu0 0
      %528 = vmatprep.subr.bf16.mxu0 0
      %529 = vmatpush1.bf16.xpose.msra.mxu0 0
      %530 = vmatprep.subr.bf16.mxu0 0
      %531 = vmatpush1.bf16.xpose.msra.mxu0 0
      %532 = vmatprep.subr.bf16.mxu0 0
      %533 = vmatpush1.bf16.xpose.msra.mxu0 0
      %534 = vmatprep.subr.bf16.mxu0 0
      %535 = vmatpush1.bf16.xpose.msra.mxu0 0
      %536 = vmatprep.subr.bf16.mxu0 0
      %537 = vmatpush1.bf16.xpose.msra.mxu0 0
      %538 = vmatprep.subr.bf16.mxu0 0
      %539 = vmatpush1.bf16.xpose.msra.mxu0 0
      %540 = vmatprep.subr.bf16.mxu0 0
      %541 = vmatpush1.bf16.xpose.msra.mxu0 0
      %542 = vmatprep.subr.bf16.mxu0 0
      %543 = vmatpush1.bf16.xpose.msra.mxu0 0
      %544 = vmatprep.subr.bf16.mxu0 0
      %545 = vmatpush1.bf16.xpose.msra.mxu0 0
      %546 = vmatprep.subr.bf16.mxu0 0
      %547 = vmatpush1.bf16.xpose.msra.mxu0 0
      %548 = vmatprep.subr.bf16.mxu0 0
      %549 = vmatpush1.bf16.xpose.msra.mxu0 0
      %550 = vmatprep.subr.bf16.mxu0 0
      %551 = vmatpush1.bf16.xpose.msra.mxu0 0
      %552 = vmatprep.subr.bf16.mxu0 0
      %553 = vmatpush1.bf16.xpose.msra.mxu0 0
      %554 = vmatprep.subr.bf16.mxu0 0
      %555 = vmatpush1.bf16.xpose.msra.mxu0 0
      %556 = vmatprep.mubr.bf16.mxu0 0
      %557 = vmatmul.mubr.bf16.gmra.mrb[0].mxu0 %v519
      %v558 = vpop.f32.mrb[0].mxu0
      %v559 = vadd.f32 0.0, %v558
      %v560 = vpop.f32.mrb[0].mxu0
      %v561 = vpop.f32.mrb[0].mxu0
      %v562 = vadd.f32 0.0, %v561
      %v563 = vpop.f32.mrb[0].mxu0
      %564 = vdwg.mxu0
      %v565 = vmul.f32 %v559, 0.35355338
      %v566 = vmul.f32 %v562, 0.35355338
      %v567 = vsel %vm317, %v565, -inf
      %568 = vmax.xlane.f32.xlu0 %v567
      %v569 = vpop.xlane.xlu0 %568
      %v570 = vsel %vm317, %v566, -inf
      %571 = vmax.xlane.f32.xlu0 %v570
      %v572 = vpop.xlane.xlu0 %571
      %v573 = vsub.f32 %v565, %v569
      %v574 = vsub.f32 %v566, %v572
      %v575 = vmul.f32 %v573, 1.442695
      %v576 = vpow.pop %v575
      %v577 = vmul.f32 %v574, 1.442695
      %v578 = vpow.pop %v577
      %v579 = vsel %vm317, %v576, 0.0
      %580 = vadd.xlane.f32.xlu0 %v579
      %v581 = vpop.xlane.xlu0 %580
      %v582 = vsel %vm317, %v578, 0.0
      %583 = vadd.xlane.f32.xlu0 %v582
      %v584 = vpop.xlane.xlu0 %583
      %v585 = vrcp.pop %v581
      %v586 = vmul.f32 %v576, %v585
      %v587 = vrcp.pop %v584
      %v588 = vmul.f32 %v578, %v587
      %v589 = vpack.c.bf16 %v588, %v586
      %590 = vrot.lane.b32.xlu0 %v345, 112
      %v591 = vpop.permute.xlu0 %590
      %v594 = vsel %vm317, %v589, 0
      %596 = vmatprep.subr.bf16.mxu0 0
      %597 = vmatpush1.bf16.msra.mxu0 %v591
      %598 = vmatprep.subr.bf16.mxu0 0
      %599 = vmatpush1.bf16.msra.mxu0 0
      %600 = vmatprep.subr.bf16.mxu0 0
      %601 = vmatpush1.bf16.msra.mxu0 0
      %602 = vmatprep.subr.bf16.mxu0 0
      %603 = vmatpush1.bf16.msra.mxu0 0
      %604 = vmatprep.subr.bf16.mxu0 0
      %605 = vmatpush1.bf16.msra.mxu0 0
      %606 = vmatprep.subr.bf16.mxu0 0
      %607 = vmatpush1.bf16.msra.mxu0 0
      %608 = vmatprep.subr.bf16.mxu0 0
      %609 = vmatpush1.bf16.msra.mxu0 0
      %610 = vmatprep.subr.bf16.mxu0 0
      %611 = vmatpush1.bf16.msra.mxu0 0
      %612 = vmatprep.subr.bf16.mxu0 0
      %613 = vmatpush1.bf16.msra.mxu0 0
      %614 = vmatprep.subr.bf16.mxu0 0
      %615 = vmatpush1.bf16.msra.mxu0 0
      %616 = vmatprep.subr.bf16.mxu0 0
      %617 = vmatpush1.bf16.msra.mxu0 0
      %618 = vmatprep.subr.bf16.mxu0 0
      %619 = vmatpush1.bf16.msra.mxu0 0
      %620 = vmatprep.subr.bf16.mxu0 0
      %621 = vmatpush1.bf16.msra.mxu0 0
      %622 = vmatprep.subr.bf16.mxu0 0
      %623 = vmatpush1.bf16.msra.mxu0 0
      %624 = vmatprep.subr.bf16.mxu0 0
      %625 = vmatpush1.bf16.msra.mxu0 0
      %626 = vmatprep.subr.bf16.mxu0 0
      %627 = vmatpush1.bf16.msra.mxu0 0
      %628 = vmatprep.mubr.bf16.mxu0 0
      %629 = vmatmul.mubr.bf16.gmra.mrb[0].mxu0 %v594
      %v630 = vpop.f32.mrb[0].mxu0
      %v631 = vadd.f32 0.0, %v630
      %v632 = vpop.f32.mrb[0].mxu0
      %v633 = vpop.f32.mrb[0].mxu0
      %v634 = vadd.f32 0.0, %v633
      %v635 = vpop.f32.mrb[0].mxu0
      %636 = vdwg.mxu0
      %639 = vrot.lane.b32.xlu0 %v508, 8
      %v640 = vpop.permute.xlu0 %639
      %641 = vrot.lane.b32.xlu0 %v511, 8
      %v642 = vpop.permute.xlu0 %641
      %647 = vrot.lane.b32.xlu0 %v631, 16
      %v648 = vpop.permute.xlu0 %647
      %649 = vrot.lane.b32.xlu0 %v634, 16
      %v650 = vpop.permute.xlu0 %649
      %v653 = vsel %vm267, %v385, %v640
      %v654 = vsel %vm267, %v388, %v642
      %v655 = vsel %vm317, %v653, %v648
      %v656 = vsel %vm317, %v654, %v650
      %v657 = vpack.c.bf16 %v656, %v655
      %v659 = vunpack.c.l.b16 %v657
      %v660 = vunpack.c.h.b16 %v657
      %v661 = vpack.c.b16 %v659, %v659
      %v662 = vpack.c.b16 %v660, %v660
      %vm665 = vcmask 191488
      %666 = vst.msk [vmem:[%s248] sm:$0xf] %vm665, %v661
      %667 = vst.msk [vmem:[%s248 + $0x4] sm:$0xf] %vm665, %v662
      %s668 = smul.u32 2, %s19
      %p669 = scmp.lt.s32.totalorder %s18, 1
      %s670 = scalar_select %p669, %s18, 1
      %p671 = scmp.lt.s32.totalorder %s668, 1
      %s672 = scalar_select %p671, %s668, 1
      %s673 = smul.addr %s670, 2
      %s674 = sadd.s32 %s672, %s673
      %s675 = smul.addr %s674, 4
      %s676 = scalar_lea.vmem %s3, %s675
      // Predicated region
      $region33: #{forward.39} parent=31 // pred_check
        %p677 = pneg %p126
      $region34: #{forward.39} parent=31 // pred_check_branch
        %679 = sbr.rel (%p677) target = $region36
      $region35: #{forward.39} parent=31 // pred_region
        %s680 = smul.u32 2, %s19
      $region36: #{forward.39} parent=31 // pred_fallthru
        _
    $region32: #{forward.39} parent=5 // pred_fallthru
      _
    %p681 = scmp.le.s32.totalorder 2, %s9
    // Predicated region
    $region37: #{forward.39} parent=5 // pred_check
      %p682 = pneg %p681
    $region38: #{forward.39} parent=5 // pred_check_branch
      %684 = sbr.rel (%p682) target = $region40
    $region39: #{forward.39} parent=5 // pred_region
      %s685 = ssub.s32 %s9, 2
      // Predicated region
      $region41: #{forward.39} parent=39 // pred_check
        %p686 = pneg %p132
      $region42: #{forward.39} parent=39 // pred_check_branch
        %688 = sbr.rel (%p686) target = $region44
      $region43: #{forward.39} parent=39 // pred_region
        %s689 = smul.u32 2, %s21
        %p690 = scmp.lt.s32.totalorder %s20, 1
        %s691 = scalar_select %p690, %s20, 1
        %p692 = scmp.lt.s32.totalorder %s689, 1
        %s693 = scalar_select %p692, %s689, 1
        %s694 = smul.addr %s691, 2
        %s695 = sadd.s32 %s693, %s694
        %s696 = smul.addr %s695, 4
        %s697 = scalar_lea.vmem %s3, %s696
      $region44: #{forward.39} parent=39 // pred_fallthru
        _
    $region40: #{forward.39} parent=5 // pred_fallthru
      _
  $region6: #{forward.39} parent=0 // loop_footer
    %s13 = sadd.s32 1, %s9
  $region7: #{forward.39} parent=0 // loop_footer_branch
    %8 = sbr.rel target = $region3
  $region8: #{forward.39} parent=0 // loop_exit
    _

// kernel: forward.40
$region0: #{forward.40}
  #allocation0 [shape = 'u32[]', space=smem, size = 0x4, offset = 0x4, fixed_abs, tag = 'smem constant byte address 0x4 - core index']
  #allocation1 [shape = 'u32[144,128]{1,0:T(1,128)}', space=vmem, size = 0x12000, scoped, tag = 'internal scratch']
  %s0 = inlined_call_operand.vmem [shape: bf16[32,24], index: 0, kind: input, shape index: {}]
  %s1 = inlined_call_operand.vmem [shape: bf16[24,24], index: 1, kind: input, shape index: {}]
  %s2 = inlined_call_operand.vmem [shape: f32[1,24], index: 2, kind: input, shape index: {}]
  %s3 = inlined_call_operand.vmem [shape: f32[32,24], index: 3, kind: input, shape index: {}]
  %s4 = inlined_call_operand.vmem [shape: f32[32,24], index: 4, kind: output, shape index: {}]
  %s5 = sld [smem:[#allocation0]]
  $region26: #{forward.40} parent=0
    _
  %s7 = ssub.s32 1, %s5
  %s8 = scalar_select 0, %s7, %s5
  // Predicated region
  $region2: #{forward.40} parent=0 // pred_check
    _
  $region3: #{forward.40} parent=0 // pred_check_branch
    %10 = sbr.rel (0) target = $region5
  $region4: #{forward.40} parent=0 // pred_region
    _
  $region5: #{forward.40} parent=0 // pred_fallthru
    _
  // Predicated region
  $region6: #{forward.40} parent=0 // pred_check
    _
  $region7: #{forward.40} parent=0 // pred_check_branch
    %12 = sbr.rel (0) target = $region9
  $region8: #{forward.40} parent=0 // pred_region
    _
  $region9: #{forward.40} parent=0 // pred_fallthru
    _
  // Predicated region
  $region10: #{forward.40} parent=0 // pred_check
    _
  $region11: #{forward.40} parent=0 // pred_check_branch
    %14 = sbr.rel (0) target = $region13
  $region12: #{forward.40} parent=0 // pred_region
    _
  $region13: #{forward.40} parent=0 // pred_fallthru
    _
  // Predicated region
  $region14: #{forward.40} parent=0 // pred_check
    _
  $region15: #{forward.40} parent=0 // pred_check_branch
    %16 = sbr.rel (0) target = $region17
  $region16: #{forward.40} parent=0 // pred_region
    _
  $region17: #{forward.40} parent=0 // pred_fallthru
    _
  %v18 = vld [vmem:[%s0] sm:$0xf]
  %v19 = vld [vmem:[%s0 + $0x4] sm:$0xf]
  %v20 = vld [vmem:[%s0 + $0x8] sm:$0xf]
  %v21 = vld [vmem:[%s0 + $0xc] sm:$0xf]
  %v22 = vld [vmem:[%s1] sm:$0xf]
  %v23 = vld [vmem:[%s1 + $0x4] sm:$0xf]
  %v24 = vld [vmem:[%s1 + $0x8] sm:$0xf]
  %v25 = vld [vmem:[%s2] sm:$0x1]
  %v27 = vlaneseq
  %v28 = vshrl.u32 %v27, 7
  %v29 = vsub.s32 0, %v28
  %v30 = vrot.slane %v25, %v29
  %v36 = vunpack.c.l.b16 %v18
  %v37 = vunpack.c.l.b16 %v19
  %v38 = vunpack.c.l.b16 %v20
  %v39 = vunpack.c.l.b16 %v21
  %v40 = vpack.c.b16 %v37, %v36
  %v41 = vpack.c.b16 %v39, %v38
  %v45 = vunpack.c.l.b16 %v22
  %v46 = vunpack.c.l.b16 %v23
  %v47 = vunpack.c.l.b16 %v24
  %v48 = vpack.c.b16 %v46, %v45
  %v49 = vpack.c.b16 %v47, %v47
  %vm51 = vcmask 195584
  %v53 = vsel %vm51, %v40, 0
  %v56 = vsel %vm51, %v41, 0
  %vm58 = vcmask 1043456
  %v60 = vsel %vm58, %v49, 0
  %62 = vmatprep.subr.bf16.mxu0 0
  %63 = vmatpush1.bf16.msra.mxu0 %v48
  %64 = vmatprep.subr.bf16.mxu0 0
  %65 = vmatpush1.bf16.msra.mxu0 %v60
  %66 = vmatprep.subr.bf16.mxu0 0
  %67 = vmatpush1.bf16.msra.mxu0 0
  %68 = vmatprep.subr.bf16.mxu0 0
  %69 = vmatpush1.bf16.msra.mxu0 0
  %70 = vmatprep.subr.bf16.mxu0 0
  %71 = vmatpush1.bf16.msra.mxu0 0
  %72 = vmatprep.subr.bf16.mxu0 0
  %73 = vmatpush1.bf16.msra.mxu0 0
  %74 = vmatprep.subr.bf16.mxu0 0
  %75 = vmatpush1.bf16.msra.mxu0 0
  %76 = vmatprep.subr.bf16.mxu0 0
  %77 = vmatpush1.bf16.msra.mxu0 0
  %78 = vmatprep.subr.bf16.mxu0 0
  %79 = vmatpush1.bf16.msra.mxu0 0
  %80 = vmatprep.subr.bf16.mxu0 0
  %81 = vmatpush1.bf16.msra.mxu0 0
  %82 = vmatprep.subr.bf16.mxu0 0
  %83 = vmatpush1.bf16.msra.mxu0 0
  %84 = vmatprep.subr.bf16.mxu0 0
  %85 = vmatpush1.bf16.msra.mxu0 0
  %86 = vmatprep.subr.bf16.mxu0 0
  %87 = vmatpush1.bf16.msra.mxu0 0
  %88 = vmatprep.subr.bf16.mxu0 0
  %89 = vmatpush1.bf16.msra.mxu0 0
  %90 = vmatprep.subr.bf16.mxu0 0
  %91 = vmatpush1.bf16.msra.mxu0 0
  %92 = vmatprep.subr.bf16.mxu0 0
  %93 = vmatpush1.bf16.msra.mxu0 0
  %94 = vmatprep.mubr.bf16.mxu0 0
  %95 = vmatmul.mubr.bf16.gmra.mrb[0].mxu0 %v53
  %v96 = vpop.f32.mrb[0].mxu0
  %v97 = vadd.f32 %v30, %v96
  %v98 = vpop.f32.mrb[0].mxu0
  %v99 = vpop.f32.mrb[0].mxu0
  %v100 = vadd.f32 %v30, %v99
  %v101 = vpop.f32.mrb[0].mxu0
  %102 = vmatprep.mubr.bf16.mxu0 0
  %103 = vmatmul.mubr.bf16.gmra.mrb[0].mxu0 %v56
  %v104 = vpop.f32.mrb[0].mxu0
  %v105 = vadd.f32 %v30, %v104
  %v106 = vpop.f32.mrb[0].mxu0
  %v107 = vpop.f32.mrb[0].mxu0
  %v108 = vadd.f32 %v30, %v107
  %v109 = vpop.f32.mrb[0].mxu0
  %110 = vdwg.mxu0
  %v111 = vld [vmem:[%s3] sm:$0xff]
  %v112 = vld [vmem:[%s3 + $0x8] sm:$0xff]
  %v113 = vld [vmem:[%s3 + $0x10] sm:$0xff]
  %v114 = vld [vmem:[%s3 + $0x18] sm:$0xff]
  %v115 = vadd.f32 %v97, %v111
  %v116 = vadd.f32 %v100, %v112
  %v117 = vadd.f32 %v105, %v113
  %v118 = vadd.f32 %v108, %v114
  %119 = vst.msk [vmem:[%s4] sm:$0xff] %vm51, %v115
  %120 = vst.msk [vmem:[%s4 + $0x8] sm:$0xff] %vm51, %v116
  %121 = vst.msk [vmem:[%s4 + $0x10] sm:$0xff] %vm51, %v117
  %122 = vst.msk [vmem:[%s4 + $0x18] sm:$0xff] %vm51, %v118
  // Predicated region
  $region18: #{forward.40} parent=0 // pred_check
    _
  $region19: #{forward.40} parent=0 // pred_check_branch
    %124 = sbr.rel (0) target = $region21
  $region20: #{forward.40} parent=0 // pred_region
    _
  $region21: #{forward.40} parent=0 // pred_fallthru
    _
  // Predicated region
  $region22: #{forward.40} parent=0 // pred_check
    _
  $region23: #{forward.40} parent=0 // pred_check_branch
    %126 = sbr.rel (0) target = $region25
  $region24: #{forward.40} parent=0 // pred_region
    _
  $region25: #{forward.40} parent=0 // pred_fallthru
    _

// kernel: forward.41
$region0: #{forward.41}
  #allocation0 [shape = 'u32[]', space=smem, size = 0x4, offset = 0x4, fixed_abs, tag = 'smem constant byte address 0x4 - core index']
  #allocation1 [shape = 'u32[144,128]{1,0:T(1,128)}', space=vmem, size = 0x12000, scoped, tag = 'internal scratch']
  %s0 = inlined_call_operand.vmem [shape: f32[32,24], index: 0, kind: input, shape index: {}]
  %s1 = inlined_call_operand.vmem [shape: f32[1,24], index: 1, kind: input, shape index: {}]
  %s2 = inlined_call_operand.vmem [shape: f32[1,24], index: 2, kind: input, shape index: {}]
  %s3 = inlined_call_operand.vmem [shape: bf16[24,96], index: 3, kind: input, shape index: {}]
  %s4 = inlined_call_operand.vmem [shape: f32[1,96], index: 4, kind: input, shape index: {}]
  %s5 = inlined_call_operand.vmem [shape: bf16[32,96], index: 5, kind: output, shape index: {}]
  %s6 = sld [smem:[#allocation0]]
  $region30: #{forward.41} parent=0
    _
  %s8 = ssub.s32 1, %s6
  %s9 = scalar_select 0, %s8, %s6
  // Predicated region
  $region2: #{forward.41} parent=0 // pred_check
    _
  $region3: #{forward.41} parent=0 // pred_check_branch
    %11 = sbr.rel (0) target = $region5
  $region4: #{forward.41} parent=0 // pred_region
    _
  $region5: #{forward.41} parent=0 // pred_fallthru
    _
  // Predicated region
  $region6: #{forward.41} parent=0 // pred_check
    _
  $region7: #{forward.41} parent=0 // pred_check_branch
    %13 = sbr.rel (0) target = $region9
  $region8: #{forward.41} parent=0 // pred_region
    _
  $region9: #{forward.41} parent=0 // pred_fallthru
    _
  // Predicated region
  $region10: #{forward.41} parent=0 // pred_check
    _
  $region11: #{forward.41} parent=0 // pred_check_branch
    %15 = sbr.rel (0) target = $region13
  $region12: #{forward.41} parent=0 // pred_region
    _
  $region13: #{forward.41} parent=0 // pred_fallthru
    _
  // Predicated region
  $region14: #{forward.41} parent=0 // pred_check
    _
  $region15: #{forward.41} parent=0 // pred_check_branch
    %17 = sbr.rel (0) target = $region17
  $region16: #{forward.41} parent=0 // pred_region
    _
  $region17: #{forward.41} parent=0 // pred_fallthru
    _
  // Predicated region
  $region18: #{forward.41} parent=0 // pred_check
    _
  $region19: #{forward.41} parent=0 // pred_check_branch
    %19 = sbr.rel (0) target = $region21
  $region20: #{forward.41} parent=0 // pred_region
    _
  $region21: #{forward.41} parent=0 // pred_fallthru
    _
  %v21 = vld [vmem:[%s0] sm:$0xff]
  %v22 = vld [vmem:[%s0 + $0x8] sm:$0xff]
  %v23 = vld [vmem:[%s0 + $0x10] sm:$0xff]
  %v24 = vld [vmem:[%s0 + $0x18] sm:$0xff]
  %vm25 = vcmask 195584
  %v26 = vsel %vm25, %v21, 0.0
  %27 = vadd.xlane.f32.xlu0 %v26
  %v28 = vpop.xlane.xlu0 %27
  %v29 = vsel %vm25, %v22, 0.0
  %30 = vadd.xlane.f32.xlu0 %v29
  %v31 = vpop.xlane.xlu0 %30
  %v32 = vsel %vm25, %v23, 0.0
  %33 = vadd.xlane.f32.xlu0 %v32
  %v34 = vpop.xlane.xlu0 %33
  %v35 = vsel %vm25, %v24, 0.0
  %36 = vadd.xlane.f32.xlu0 %v35
  %v37 = vpop.xlane.xlu0 %36
  %v38 = vrcp.pop 24.0
  %v39 = vmul.f32 %v28, %v38
  %v40 = vmul.f32 %v31, %v38
  %v41 = vmul.f32 %v34, %v38
  %v42 = vmul.f32 %v37, %v38
  %v43 = vsub.f32 %v21, %v39
  %v44 = vsub.f32 %v22, %v40
  %v45 = vsub.f32 %v23, %v41
  %v46 = vsub.f32 %v24, %v42
  %v47 = vmul.f32 %v43, %v43
  %v48 = vmul.f32 %v44, %v44
  %v49 = vmul.f32 %v45, %v45
  %v50 = vmul.f32 %v46, %v46
  %v51 = vsel %vm25, %v47, 0.0
  %52 = vadd.xlane.f32.xlu0 %v51
  %v53 = vpop.xlane.xlu0 %52
  %v54 = vsel %vm25, %v48, 0.0
  %55 = vadd.xlane.f32.xlu0 %v54
  %v56 = vpop.xlane.xlu0 %55
  %v57 = vsel %vm25, %v49, 0.0
  %58 = vadd.xlane.f32.xlu0 %v57
  %v59 = vpop.xlane.xlu0 %58
  %v60 = vsel %vm25, %v50, 0.0
  %61 = vadd.xlane.f32.xlu0 %v60
  %v62 = vpop.xlane.xlu0 %61
  %v63 = vmul.f32 %v53, %v38
  %v64 = vmul.f32 %v56, %v38
  %v65 = vmul.f32 %v59, %v38
  %v66 = vmul.f32 %v62, %v38
  %v67 = vadd.f32 %v63, 1e-05
  %v68 = vadd.f32 %v64, 1e-05
  %v69 = vadd.f32 %v65, 1e-05
  %v70 = vadd.f32 %v66, 1e-05
  %v71 = vrsqrt.pop %v67
  %v72 = vrsqrt.pop %v68
  %v73 = vrsqrt.pop %v69
  %v74 = vrsqrt.pop %v70
  %v75 = vmul.f32 %v43, %v71
  %v76 = vmul.f32 %v44, %v72
  %v77 = vmul.f32 %v45, %v73
  %v78 = vmul.f32 %v46, %v74
  %v79 = vld [vmem:[%s1] sm:$0x1]
  %v81 = vlaneseq
  %v82 = vshrl.u32 %v81, 7
  %v83 = vsub.s32 0, %v82
  %v84 = vrot.slane %v79, %v83
  %v86 = vmul.f32 %v75, %v84
  %v87 = vmul.f32 %v76, %v84
  %v88 = vmul.f32 %v77, %v84
  %v89 = vmul.f32 %v78, %v84
  %v90 = vld [vmem:[%s2] sm:$0x1]
  %v92 = vlaneseq
  %v93 = vshrl.u32 %v92, 7
  %v94 = vsub.s32 0, %v93
  %v95 = vrot.slane %v90, %v94
  %v97 = vadd.f32 %v86, %v95
  %v98 = vadd.f32 %v87, %v95
  %v99 = vadd.f32 %v88, %v95
  %v100 = vadd.f32 %v89, %v95
  %v101 = vpack.c.bf16 %v98, %v97
  %v102 = vpack.c.bf16 %v100, %v99
  %v103 = vld [vmem:[%s3] sm:$0xf]
  %v104 = vld [vmem:[%s3 + $0x4] sm:$0xf]
  %v105 = vld [vmem:[%s3 + $0x8] sm:$0xf]
  %v106 = vld [vmem:[%s4] sm:$0x1]
  %v108 = vlaneseq
  %v109 = vshrl.u32 %v108, 7
  %v110 = vsub.s32 0, %v109
  %v111 = vrot.slane %v106, %v110
  %v116 = vunpack.c.l.b16 %v103
  %v117 = vunpack.c.l.b16 %v104
  %v118 = vunpack.c.l.b16 %v105
  %v119 = vpack.c.b16 %v117, %v116
  %v120 = vpack.c.b16 %v118, %v118
  %v123 = vsel %vm25, %v101, 0
  %v126 = vsel %vm25, %v102, 0
  %vm128 = vcmask 1043456
  %v130 = vsel %vm128, %v120, 0
  %132 = vmatprep.subr.bf16.mxu0 0
  %133 = vmatpush1.bf16.msra.mxu0 %v119
  %134 = vmatprep.subr.bf16.mxu0 0
  %135 = vmatpush1.bf16.msra.mxu0 %v130
  %136 = vmatprep.subr.bf16.mxu0 0
  %137 = vmatpush1.bf16.msra.mxu0 0
  %138 = vmatprep.subr.bf16.mxu0 0
  %139 = vmatpush1.bf16.msra.mxu0 0
  %140 = vmatprep.subr.bf16.mxu0 0
  %141 = vmatpush1.bf16.msra.mxu0 0
  %142 = vmatprep.subr.bf16.mxu0 0
  %143 = vmatpush1.bf16.msra.mxu0 0
  %144 = vmatprep.subr.bf16.mxu0 0
  %145 = vmatpush1.bf16.msra.mxu0 0
  %146 = vmatprep.subr.bf16.mxu0 0
  %147 = vmatpush1.bf16.msra.mxu0 0
  %148 = vmatprep.subr.bf16.mxu0 0
  %149 = vmatpush1.bf16.msra.mxu0 0
  %150 = vmatprep.subr.bf16.mxu0 0
  %151 = vmatpush1.bf16.msra.mxu0 0
  %152 = vmatprep.subr.bf16.mxu0 0
  %153 = vmatpush1.bf16.msra.mxu0 0
  %154 = vmatprep.subr.bf16.mxu0 0
  %155 = vmatpush1.bf16.msra.mxu0 0
  %156 = vmatprep.subr.bf16.mxu0 0
  %157 = vmatpush1.bf16.msra.mxu0 0
  %158 = vmatprep.subr.bf16.mxu0 0
  %159 = vmatpush1.bf16.msra.mxu0 0
  %160 = vmatprep.subr.bf16.mxu0 0
  %161 = vmatpush1.bf16.msra.mxu0 0
  %162 = vmatprep.subr.bf16.mxu0 0
  %163 = vmatpush1.bf16.msra.mxu0 0
  %164 = vmatprep.mubr.bf16.mxu0 0
  %165 = vmatmul.mubr.bf16.gmra.mrb[0].mxu0 %v123
  %v166 = vpop.f32.mrb[0].mxu0
  %v167 = vadd.f32 %v111, %v166
  %v168 = vpop.f32.mrb[0].mxu0
  %v169 = vpop.f32.mrb[0].mxu0
  %v170 = vadd.f32 %v111, %v169
  %v171 = vpop.f32.mrb[0].mxu0
  %172 = vmatprep.mubr.bf16.mxu0 0
  %173 = vmatmul.mubr.bf16.gmra.mrb[0].mxu0 %v126
  %v174 = vpop.f32.mrb[0].mxu0
  %v175 = vadd.f32 %v111, %v174
  %v176 = vpop.f32.mrb[0].mxu0
  %v177 = vpop.f32.mrb[0].mxu0
  %v178 = vadd.f32 %v111, %v177
  %v179 = vpop.f32.mrb[0].mxu0
  %180 = vdwg.mxu0
  %v181 = vmul.f32 %v167, 0.5
  %v182 = vmul.f32 %v170, 0.5
  %v183 = vmul.f32 %v175, 0.5
  %v184 = vmul.f32 %v178, 0.5
  %v185 = vmul.f32 %v167, 0.70710677
  %v186 = vmul.f32 %v170, 0.70710677
  %v187 = vmul.f32 %v175, 0.70710677
  %v188 = vmul.f32 %v178, 0.70710677
  %v189 = verf.f32.pop %v185
  %v190 = verf.f32.pop %v186
  %v191 = verf.f32.pop %v187
  %v192 = verf.f32.pop %v188
  %v193 = vadd.f32 %v189, 1.0
  %v194 = vadd.f32 %v190, 1.0
  %v195 = vadd.f32 %v191, 1.0
  %v196 = vadd.f32 %v192, 1.0
  %v197 = vmul.f32 %v181, %v193
  %v198 = vmul.f32 %v182, %v194
  %v199 = vmul.f32 %v183, %v195
  %v200 = vmul.f32 %v184, %v196
  %v201 = vpack.c.bf16 %v198, %v197
  %v202 = vpack.c.bf16 %v200, %v199
  %v205 = vunpack.c.l.b16 %v201
  %v206 = vunpack.c.h.b16 %v201
  %v207 = vunpack.c.l.b16 %v202
  %v208 = vunpack.c.h.b16 %v202
  %v209 = vpack.c.b16 %v205, %v205
  %v210 = vpack.c.b16 %v206, %v206
  %v211 = vpack.c.b16 %v207, %v207
  %v212 = vpack.c.b16 %v208, %v208
  %vm217 = vcmask 781312
  %218 = vst.msk [vmem:[%s5] sm:$0xf] %vm217, %v209
  %219 = vst.msk [vmem:[%s5 + $0x4] sm:$0xf] %vm217, %v210
  %220 = vst.msk [vmem:[%s5 + $0x8] sm:$0xf] %vm217, %v211
  %221 = vst.msk [vmem:[%s5 + $0xc] sm:$0xf] %vm217, %v212
  // Predicated region
  $region22: #{forward.41} parent=0 // pred_check
    _
  $region23: #{forward.41} parent=0 // pred_check_branch
    %223 = sbr.rel (0) target = $region25
  $region24: #{forward.41} parent=0 // pred_region
    _
  $region25: #{forward.41} parent=0 // pred_fallthru
    _
  // Predicated region
  $region26: #{forward.41} parent=0 // pred_check
    _
  $region27: #{forward.41} parent=0 // pred_check_branch
    %225 = sbr.rel (0) target = $region29
  $region28: #{forward.41} parent=0 // pred_region
    _
  $region29: #{forward.41} parent=0 // pred_fallthru
    _

// kernel: forward.42
$region0: #{forward.42}
  #allocation0 [shape = 'u32[]', space=smem, size = 0x4, offset = 0x4, fixed_abs, tag = 'smem constant byte address 0x4 - core index']
  #allocation1 [shape = 'u32[144,128]{1,0:T(1,128)}', space=vmem, size = 0x12000, scoped, tag = 'internal scratch']
  %s0 = inlined_call_operand.vmem [shape: bf16[32,96], index: 0, kind: input, shape index: {}]
  %s1 = inlined_call_operand.vmem [shape: bf16[96,24], index: 1, kind: input, shape index: {}]
  %s2 = inlined_call_operand.vmem [shape: f32[1,24], index: 2, kind: input, shape index: {}]
  %s3 = inlined_call_operand.vmem [shape: f32[32,24], index: 3, kind: input, shape index: {}]
  %s4 = inlined_call_operand.vmem [shape: f32[32,24], index: 4, kind: output, shape index: {}]
  %s5 = sld [smem:[#allocation0]]
  $region26: #{forward.42} parent=0
    _
  %s7 = ssub.s32 1, %s5
  %s8 = scalar_select 0, %s7, %s5
  // Predicated region
  $region2: #{forward.42} parent=0 // pred_check
    _
  $region3: #{forward.42} parent=0 // pred_check_branch
    %10 = sbr.rel (0) target = $region5
  $region4: #{forward.42} parent=0 // pred_region
    _
  $region5: #{forward.42} parent=0 // pred_fallthru
    _
  // Predicated region
  $region6: #{forward.42} parent=0 // pred_check
    _
  $region7: #{forward.42} parent=0 // pred_check_branch
    %12 = sbr.rel (0) target = $region9
  $region8: #{forward.42} parent=0 // pred_region
    _
  $region9: #{forward.42} parent=0 // pred_fallthru
    _
  // Predicated region
  $region10: #{forward.42} parent=0 // pred_check
    _
  $region11: #{forward.42} parent=0 // pred_check_branch
    %14 = sbr.rel (0) target = $region13
  $region12: #{forward.42} parent=0 // pred_region
    _
  $region13: #{forward.42} parent=0 // pred_fallthru
    _
  // Predicated region
  $region14: #{forward.42} parent=0 // pred_check
    _
  $region15: #{forward.42} parent=0 // pred_check_branch
    %16 = sbr.rel (0) target = $region17
  $region16: #{forward.42} parent=0 // pred_region
    _
  $region17: #{forward.42} parent=0 // pred_fallthru
    _
  %v18 = vld [vmem:[%s0] sm:$0xf]
  %v19 = vld [vmem:[%s0 + $0x4] sm:$0xf]
  %v20 = vld [vmem:[%s0 + $0x8] sm:$0xf]
  %v21 = vld [vmem:[%s0 + $0xc] sm:$0xf]
  %v22 = vld [vmem:[%s1] sm:$0xf]
  %v23 = vld [vmem:[%s1 + $0x4] sm:$0xf]
  %v24 = vld [vmem:[%s1 + $0x8] sm:$0xf]
  %v25 = vld [vmem:[%s1 + $0xc] sm:$0xf]
  %v26 = vld [vmem:[%s1 + $0x10] sm:$0xf]
  %v27 = vld [vmem:[%s1 + $0x14] sm:$0xf]
  %v28 = vld [vmem:[%s1 + $0x18] sm:$0xf]
  %v29 = vld [vmem:[%s1 + $0x1c] sm:$0xf]
  %v30 = vld [vmem:[%s1 + $0x20] sm:$0xf]
  %v31 = vld [vmem:[%s1 + $0x24] sm:$0xf]
  %v32 = vld [vmem:[%s1 + $0x28] sm:$0xf]
  %v33 = vld [vmem:[%s1 + $0x2c] sm:$0xf]
  %v34 = vld [vmem:[%s2] sm:$0x1]
  %v36 = vlaneseq
  %v37 = vshrl.u32 %v36, 7
  %v38 = vsub.s32 0, %v37
  %v39 = vrot.slane %v34, %v38
  %v45 = vunpack.c.l.b16 %v18
  %v46 = vunpack.c.l.b16 %v19
  %v47 = vunpack.c.l.b16 %v20
  %v48 = vunpack.c.l.b16 %v21
  %v49 = vpack.c.b16 %v46, %v45
  %v50 = vpack.c.b16 %v48, %v47
  %v63 = vunpack.c.l.b16 %v22
  %v64 = vunpack.c.l.b16 %v23
  %v65 = vunpack.c.l.b16 %v24
  %v66 = vunpack.c.l.b16 %v25
  %v67 = vunpack.c.l.b16 %v26
  %v68 = vunpack.c.l.b16 %v27
  %v69 = vunpack.c.l.b16 %v28
  %v70 = vunpack.c.l.b16 %v29
  %v71 = vunpack.c.l.b16 %v30
  %v72 = vunpack.c.l.b16 %v31
  %v73 = vunpack.c.l.b16 %v32
  %v74 = vunpack.c.l.b16 %v33
  %v75 = vpack.c.b16 %v64, %v63
  %v76 = vpack.c.b16 %v66, %v65
  %v77 = vpack.c.b16 %v68, %v67
  %v78 = vpack.c.b16 %v70, %v69
  %v79 = vpack.c.b16 %v72, %v71
  %v80 = vpack.c.b16 %v74, %v73
  %vm87 = vcmask 785408
  %v89 = vsel %vm87, %v49, 0
  %v92 = vsel %vm87, %v50, 0
  %94 = vmatprep.subr.bf16.mxu0 0
  %95 = vmatpush1.bf16.msra.mxu0 %v75
  %96 = vmatprep.subr.bf16.mxu0 0
  %97 = vmatpush1.bf16.msra.mxu0 %v76
  %98 = vmatprep.subr.bf16.mxu0 0
  %99 = vmatpush1.bf16.msra.mxu0 %v77
  %100 = vmatprep.subr.bf16.mxu0 0
  %101 = vmatpush1.bf16.msra.mxu0 %v78
  %102 = vmatprep.subr.bf16.mxu0 0
  %103 = vmatpush1.bf16.msra.mxu0 %v79
  %104 = vmatprep.subr.bf16.mxu0 0
  %105 = vmatpush1.bf16.msra.mxu0 %v80
  %106 = vmatprep.subr.bf16.mxu0 0
  %107 = vmatpush1.bf16.msra.mxu0 0
  %108 = vmatprep.subr.bf16.mxu0 0
  %109 = vmatpush1.bf16.msra.mxu0 0
  %110 = vmatprep.subr.bf16.mxu0 0
  %111 = vmatpush1.bf16.msra.mxu0 0
  %112 = vmatprep.subr.bf16.mxu0 0
  %113 = vmatpush1.bf16.msra.mxu0 0
  %114 = vmatprep.subr.bf16.mxu0 0
  %115 = vmatpush1.bf16.msra.mxu0 0
  %116 = vmatprep.subr.bf16.mxu0 0
  %117 = vmatpush1.bf16.msra.mxu0 0
  %118 = vmatprep.subr.bf16.mxu0 0
  %119 = vmatpush1.bf16.msra.mxu0 0
  %120 = vmatprep.subr.bf16.mxu0 0
  %121 = vmatpush1.bf16.msra.mxu0 0
  %122 = vmatprep.subr.bf16.mxu0 0
  %123 = vmatpush1.bf16.msra.mxu0 0
  %124 = vmatprep.subr.bf16.mxu0 0
  %125 = vmatpush1.bf16.msra.mxu0 0
  %126 = vmatprep.mubr.bf16.mxu0 0
  %127 = vmatmul.mubr.bf16.gmra.mrb[0].mxu0 %v89
  %v128 = vpop.f32.mrb[0].mxu0
  %v129 = vadd.f32 %v39, %v128
  %v130 = vpop.f32.mrb[0].mxu0
  %v131 = vpop.f32.mrb[0].mxu0
  %v132 = vadd.f32 %v39, %v131
  %v133 = vpop.f32.mrb[0].mxu0
  %134 = vmatprep.mubr.bf16.mxu0 0
  %135 = vmatmul.mubr.bf16.gmra.mrb[0].mxu0 %v92
  %v136 = vpop.f32.mrb[0].mxu0
  %v137 = vadd.f32 %v39, %v136
  %v138 = vpop.f32.mrb[0].mxu0
  %v139 = vpop.f32.mrb[0].mxu0
  %v140 = vadd.f32 %v39, %v139
  %v141 = vpop.f32.mrb[0].mxu0
  %142 = vdwg.mxu0
  %v143 = vld [vmem:[%s3] sm:$0xff]
  %v144 = vld [vmem:[%s3 + $0x8] sm:$0xff]
  %v145 = vld [vmem:[%s3 + $0x10] sm:$0xff]
  %v146 = vld [vmem:[%s3 + $0x18] sm:$0xff]
  %v147 = vadd.f32 %v129, %v143
  %v148 = vadd.f32 %v132, %v144
  %v149 = vadd.f32 %v137, %v145
  %v150 = vadd.f32 %v140, %v146
  %vm151 = vcmask 195584
  %152 = vst.msk [vmem:[%s4] sm:$0xff] %vm151, %v147
  %153 = vst.msk [vmem:[%s4 + $0x8] sm:$0xff] %vm151, %v148
  %154 = vst.msk [vmem:[%s4 + $0x10] sm:$0xff] %vm151, %v149
  %155 = vst.msk [vmem:[%s4 + $0x18] sm:$0xff] %vm151, %v150
  // Predicated region
  $region18: #{forward.42} parent=0 // pred_check
    _
  $region19: #{forward.42} parent=0 // pred_check_branch
    %157 = sbr.rel (0) target = $region21
  $region20: #{forward.42} parent=0 // pred_region
    _
  $region21: #{forward.42} parent=0 // pred_fallthru
    _
  // Predicated region
  $region22: #{forward.42} parent=0 // pred_check
    _
  $region23: #{forward.42} parent=0 // pred_check_branch
    %159 = sbr.rel (0) target = $region25
  $region24: #{forward.42} parent=0 // pred_region
    _
  $region25: #{forward.42} parent=0 // pred_fallthru
    _

// kernel: forward.43
$region0: #{forward.43}
  #allocation0 [shape = 'u32[]', space=smem, size = 0x4, offset = 0x4, fixed_abs, tag = 'smem constant byte address 0x4 - core index']
  #allocation1 [shape = 'u32[144,128]{1,0:T(1,128)}', space=vmem, size = 0x12000, scoped, tag = 'internal scratch']
  %s0 = inlined_call_operand.vmem [shape: f32[8,216], index: 0, kind: input, shape index: {}]
  %s1 = inlined_call_operand.vmem [shape: bf16[216,48], index: 1, kind: input, shape index: {}]
  %s2 = inlined_call_operand.vmem [shape: f32[1,48], index: 2, kind: input, shape index: {}]
  %s3 = inlined_call_operand.vmem [shape: f32[8,48], index: 3, kind: output, shape index: {}]
  %s4 = sld [smem:[#allocation0]]
  $region22: #{forward.43} parent=0
    _
  %s6 = ssub.s32 1, %s4
  %s7 = scalar_select 0, %s6, %s4
  // Predicated region
  $region2: #{forward.43} parent=0 // pred_check
    _
  $region3: #{forward.43} parent=0 // pred_check_branch
    %9 = sbr.rel (0) target = $region5
  $region4: #{forward.43} parent=0 // pred_region
    _
  $region5: #{forward.43} parent=0 // pred_fallthru
    _
  // Predicated region
  $region6: #{forward.43} parent=0 // pred_check
    _
  $region7: #{forward.43} parent=0 // pred_check_branch
    %11 = sbr.rel (0) target = $region9
  $region8: #{forward.43} parent=0 // pred_region
    _
  $region9: #{forward.43} parent=0 // pred_fallthru
    _
  // Predicated region
  $region10: #{forward.43} parent=0 // pred_check
    _
  $region11: #{forward.43} parent=0 // pred_check_branch
    %13 = sbr.rel (0) target = $region13
  $region12: #{forward.43} parent=0 // pred_region
    _
  $region13: #{forward.43} parent=0 // pred_fallthru
    _
  %v15 = vld [vmem:[%s0] sm:$0xff]
  %v16 = vld [vmem:[%s0 + $0x8] sm:$0xff]
  %v17 = vpack.c.bf16 %v15, %v15
  %v18 = vpack.c.bf16 %v16, %v16
  %v19 = vld [vmem:[%s1] sm:$0xf]
  %v20 = vld [vmem:[%s1 + $0x4] sm:$0xf]
  %v21 = vld [vmem:[%s1 + $0x8] sm:$0xf]
  %v22 = vld [vmem:[%s1 + $0xc] sm:$0xf]
  %v23 = vld [vmem:[%s1 + $0x10] sm:$0xf]
  %v24 = vld [vmem:[%s1 + $0x14] sm:$0xf]
  %v25 = vld [vmem:[%s1 + $0x18] sm:$0xf]
  %v26 = vld [vmem:[%s1 + $0x1c] sm:$0xf]
  %v27 = vld [vmem:[%s1 + $0x20] sm:$0xf]
  %v28 = vld [vmem:[%s1 + $0x24] sm:$0xf]
  %v29 = vld [vmem:[%s1 + $0x28] sm:$0xf]
  %v30 = vld [vmem:[%s1 + $0x2c] sm:$0xf]
  %v31 = vld [vmem:[%s1 + $0x30] sm:$0xf]
  %v32 = vld [vmem:[%s1 + $0x34] sm:$0xf]
  %v33 = vld [vmem:[%s1 + $0x38] sm:$0xf]
  %v34 = vld [vmem:[%s1 + $0x3c] sm:$0xf]
  %v35 = vld [vmem:[%s1 + $0x40] sm:$0xf]
  %v36 = vld [vmem:[%s1 + $0x44] sm:$0xf]
  %v37 = vld [vmem:[%s1 + $0x48] sm:$0xf]
  %v38 = vld [vmem:[%s1 + $0x4c] sm:$0xf]
  %v39 = vld [vmem:[%s1 + $0x50] sm:$0xf]
  %v40 = vld [vmem:[%s1 + $0x54] sm:$0xf]
  %v41 = vld [vmem:[%s1 + $0x58] sm:$0xf]
  %v42 = vld [vmem:[%s1 + $0x5c] sm:$0xf]
  %v43 = vld [vmem:[%s1 + $0x60] sm:$0xf]
  %v44 = vld [vmem:[%s1 + $0x64] sm:$0xf]
  %v45 = vld [vmem:[%s1 + $0x68] sm:$0xf]
  %v46 = vld [vmem:[%s2] sm:$0x1]
  %v48 = vlaneseq
  %v49 = vshrl.u32 %v48, 7
  %v50 = vsub.s32 0, %v49
  %v51 = vrot.slane %v46, %v50
  %v80 = vunpack.c.l.b16 %v19
  %v81 = vunpack.c.l.b16 %v20
  %v82 = vunpack.c.l.b16 %v21
  %v83 = vunpack.c.l.b16 %v22
  %v84 = vunpack.c.l.b16 %v23
  %v85 = vunpack.c.l.b16 %v24
  %v86 = vunpack.c.l.b16 %v25
  %v87 = vunpack.c.l.b16 %v26
  %v88 = vunpack.c.l.b16 %v27
  %v89 = vunpack.c.l.b16 %v28
  %v90 = vunpack.c.l.b16 %v29
  %v91 = vunpack.c.l.b16 %v30
  %v92 = vunpack.c.l.b16 %v31
  %v93 = vunpack.c.l.b16 %v32
  %v94 = vunpack.c.l.b16 %v33
  %v95 = vunpack.c.l.b16 %v34
  %v96 = vunpack.c.l.b16 %v35
  %v97 = vunpack.c.l.b16 %v36
  %v98 = vunpack.c.l.b16 %v37
  %v99 = vunpack.c.l.b16 %v38
  %v100 = vunpack.c.l.b16 %v39
  %v101 = vunpack.c.l.b16 %v40
  %v102 = vunpack.c.l.b16 %v41
  %v103 = vunpack.c.l.b16 %v42
  %v104 = vunpack.c.l.b16 %v43
  %v105 = vunpack.c.l.b16 %v44
  %v106 = vunpack.c.l.b16 %v45
  %v107 = vpack.c.b16 %v81, %v80
  %v108 = vpack.c.b16 %v83, %v82
  %v109 = vpack.c.b16 %v85, %v84
  %v110 = vpack.c.b16 %v87, %v86
  %v111 = vpack.c.b16 %v89, %v88
  %v112 = vpack.c.b16 %v91, %v90
  %v113 = vpack.c.b16 %v93, %v92
  %v114 = vpack.c.b16 %v95, %v94
  %v115 = vpack.c.b16 %v97, %v96
  %v116 = vpack.c.b16 %v99, %v98
  %v117 = vpack.c.b16 %v101, %v100
  %v118 = vpack.c.b16 %v103, %v102
  %v119 = vpack.c.b16 %v105, %v104
  %v120 = vpack.c.b16 %v106, %v106
  %vm134 = vcmask 719872
  %v136 = vsel %vm134, %v18, 0
  %vm138 = vcmask 1043456
  %v140 = vsel %vm138, %v120, 0
  %142 = vmatprep.subr.bf16.mxu0 0
  %143 = vmatpush1.bf16.msra.mxu0 %v107
  %144 = vmatprep.subr.bf16.mxu0 0
  %145 = vmatpush1.bf16.msra.mxu0 %v108
  %146 = vmatprep.subr.bf16.mxu0 0
  %147 = vmatpush1.bf16.msra.mxu0 %v109
  %148 = vmatprep.subr.bf16.mxu0 0
  %149 = vmatpush1.bf16.msra.mxu0 %v110
  %150 = vmatprep.subr.bf16.mxu0 0
  %151 = vmatpush1.bf16.msra.mxu0 %v111
  %152 = vmatprep.subr.bf16.mxu0 0
  %153 = vmatpush1.bf16.msra.mxu0 %v112
  %154 = vmatprep.subr.bf16.mxu0 0
  %155 = vmatpush1.bf16.msra.mxu0 %v113
  %156 = vmatprep.subr.bf16.mxu0 0
  %157 = vmatpush1.bf16.msra.mxu0 %v114
  %158 = vmatprep.subr.bf16.mxu0 0
  %159 = vmatpush1.bf16.msra.mxu0 %v115
  %160 = vmatprep.subr.bf16.mxu0 0
  %161 = vmatpush1.bf16.msra.mxu0 %v116
  %162 = vmatprep.subr.bf16.mxu0 0
  %163 = vmatpush1.bf16.msra.mxu0 %v117
  %164 = vmatprep.subr.bf16.mxu0 0
  %165 = vmatpush1.bf16.msra.mxu0 %v118
  %166 = vmatprep.subr.bf16.mxu0 0
  %167 = vmatpush1.bf16.msra.mxu0 %v119
  %168 = vmatprep.subr.bf16.mxu0 0
  %169 = vmatpush1.bf16.msra.mxu0 %v140
  %170 = vmatprep.subr.bf16.mxu0 0
  %171 = vmatpush1.bf16.msra.mxu0 0
  %172 = vmatprep.subr.bf16.mxu0 0
  %173 = vmatpush1.bf16.msra.mxu0 0
  %174 = vmatprep.mubr.bf16.mxu0 %v136
  %175 = vmatmul.mubr.bf16.gmra.mrb[0].mxu0 %v17
  %v176 = vpop.f32.mrb[0].mxu0
  %v177 = vadd.f32 %v51, %v176
  %v178 = vpop.f32.mrb[0].mxu0
  %v179 = vpop.f32.mrb[0].mxu0
  %v180 = vpop.f32.mrb[0].mxu0
  %181 = vdwg.mxu0
  %vm182 = vcmask 392192
  %183 = vst.msk [vmem:[%s3] sm:$0xff] %vm182, %v177
  // Predicated region
  $region14: #{forward.43} parent=0 // pred_check
    _
  $region15: #{forward.43} parent=0 // pred_check_branch
    %185 = sbr.rel (0) target = $region17
  $region16: #{forward.43} parent=0 // pred_region
    _
  $region17: #{forward.43} parent=0 // pred_fallthru
    _
  // Predicated region
  $region18: #{forward.43} parent=0 // pred_check
    _
  $region19: #{forward.43} parent=0 // pred_check_branch
    %187 = sbr.rel (0) target = $region21
  $region20: #{forward.43} parent=0 // pred_region
    _
  $region21: #{forward.43} parent=0 // pred_fallthru
    _

// kernel: forward.44
$region0: #{forward.44}
  #allocation0 [shape = 'u32[]', space=smem, size = 0x4, offset = 0x4, fixed_abs, tag = 'smem constant byte address 0x4 - core index']
  #allocation1 [shape = 'u32[144,128]{1,0:T(1,128)}', space=vmem, size = 0x12000, scoped, tag = 'internal scratch']
  %s0 = inlined_call_operand.vmem [shape: f32[8,48], index: 0, kind: input, shape index: {}]
  %s1 = inlined_call_operand.vmem [shape: f32[1,48], index: 1, kind: input, shape index: {}]
  %s2 = inlined_call_operand.vmem [shape: f32[1,48], index: 2, kind: input, shape index: {}]
  %s3 = inlined_call_operand.vmem [shape: f32[8,48], index: 3, kind: output, shape index: {}]
  %s4 = sld [smem:[#allocation0]]
  $region22: #{forward.44} parent=0
    _
  %s6 = ssub.s32 1, %s4
  %s7 = scalar_select 0, %s6, %s4
  // Predicated region
  $region2: #{forward.44} parent=0 // pred_check
    _
  $region3: #{forward.44} parent=0 // pred_check_branch
    %9 = sbr.rel (0) target = $region5
  $region4: #{forward.44} parent=0 // pred_region
    _
  $region5: #{forward.44} parent=0 // pred_fallthru
    _
  // Predicated region
  $region6: #{forward.44} parent=0 // pred_check
    _
  $region7: #{forward.44} parent=0 // pred_check_branch
    %11 = sbr.rel (0) target = $region9
  $region8: #{forward.44} parent=0 // pred_region
    _
  $region9: #{forward.44} parent=0 // pred_fallthru
    _
  // Predicated region
  $region10: #{forward.44} parent=0 // pred_check
    _
  $region11: #{forward.44} parent=0 // pred_check_branch
    %13 = sbr.rel (0) target = $region13
  $region12: #{forward.44} parent=0 // pred_region
    _
  $region13: #{forward.44} parent=0 // pred_fallthru
    _
  %v14 = vld [vmem:[%s0] sm:$0xff]
  %vm15 = vcmask 392192
  %v16 = vsel %vm15, %v14, 0.0
  %17 = vadd.xlane.f32.xlu0 %v16
  %v18 = vpop.xlane.xlu0 %17
  %v19 = vrcp.pop 48.0
  %v20 = vmul.f32 %v18, %v19
  %v21 = vsub.f32 %v14, %v20
  %v22 = vmul.f32 %v21, %v21
  %v23 = vsel %vm15, %v22, 0.0
  %24 = vadd.xlane.f32.xlu0 %v23
  %v25 = vpop.xlane.xlu0 %24
  %v26 = vmul.f32 %v25, %v19
  %v27 = vadd.f32 %v26, 1e-05
  %v28 = vrsqrt.pop %v27
  %v29 = vmul.f32 %v21, %v28
  %v30 = vld [vmem:[%s1] sm:$0x1]
  %v32 = vlaneseq
  %v33 = vshrl.u32 %v32, 7
  %v34 = vsub.s32 0, %v33
  %v35 = vrot.slane %v30, %v34
  %v37 = vmul.f32 %v29, %v35
  %v38 = vld [vmem:[%s2] sm:$0x1]
  %v40 = vlaneseq
  %v41 = vshrl.u32 %v40, 7
  %v42 = vsub.s32 0, %v41
  %v43 = vrot.slane %v38, %v42
  %v45 = vadd.f32 %v37, %v43
  %46 = vst.msk [vmem:[%s3] sm:$0xff] %vm15, %v45
  // Predicated region
  $region14: #{forward.44} parent=0 // pred_check
    _
  $region15: #{forward.44} parent=0 // pred_check_branch
    %48 = sbr.rel (0) target = $region17
  $region16: #{forward.44} parent=0 // pred_region
    _
  $region17: #{forward.44} parent=0 // pred_fallthru
    _
  // Predicated region
  $region18: #{forward.44} parent=0 // pred_check
    _
  $region19: #{forward.44} parent=0 // pred_check_branch
    %50 = sbr.rel (0) target = $region21
  $region20: #{forward.44} parent=0 // pred_region
    _
  $region21: #{forward.44} parent=0 // pred_fallthru
    _

// kernel: squeeze.40
$region0: #{squeeze.40}
  %s0 = inlined_call_operand.vmem [shape: f32[48,3,3], index: 0, kind: input, shape index: {}]
  %s1 = inlined_call_operand.vmem [shape: f32[48,9], index: 1, kind: output, shape index: {}]
  $region1: #{squeeze.40} parent=0
    #allocation0 [shape = 'u8[12288]{0}', space=vmem, size = 0x3000, scoped, tag = 'scoped mem for input reshape']
    %s3 = sshllo.u32 0, 4
    %s4 = smul.addr 4, 2
    %s5 = scalar_lea.vmem %s0, %s4
    %v6 = vld [vmem:[%s5] sm:%s3]
    %s7 = scalar_lea.vmem [#allocation0], 16
    %8 = vst [vmem:[%s7] sm:%s3] %v6
    %s9 = scalar_lea.vmem %s0, 4
    %v10 = vld [vmem:[%s9] sm:%s3]
    %s11 = scalar_lea.vmem [#allocation0], 8
    %12 = vst [vmem:[%s11] sm:%s3] %v10
    %v13 = vld [vmem:[%s0] sm:%s3]
    %14 = vst [vmem:[#allocation0] sm:%s3] %v13
    %v15 = vld [vmem:[#allocation0] sm:$0x7]
    %vm16 = vcmask 392192
    %17 = vst.msk [vmem:[%s1] sm:$0x7] %vm16, %v15
    %s18 = scalar_lea.vmem [#allocation0], 8
    %v19 = vld [vmem:[%s18] sm:$0x7]
    %vm20 = vcmask 392192
    %s21 = scalar_lea.vmem %s1, 3
    %22 = vst.msk [vmem:[%s21] sm:$0x7] %vm20, %v19
    %s23 = scalar_lea.vmem [#allocation0], 16
    %v24 = vld [vmem:[%s23] sm:$0x7]
    %vm25 = vcmask 392192
    %s26 = scalar_lea.vmem %s1, 6
    %27 = vst.msk [vmem:[%s26] sm:$0x7] %vm25, %v24

// kernel: forward.45
$region0: #{forward.45}
  #allocation0 [shape = 'u32[]', space=smem, size = 0x4, offset = 0x4, fixed_abs, tag = 'smem constant byte address 0x4 - core index']
  #allocation1 [shape = 'u32[144,128]{1,0:T(1,128)}', space=vmem, size = 0x12000, scoped, tag = 'internal scratch']
  %s0 = inlined_call_operand.vmem [shape: f32[16,48], index: 0, kind: input, shape index: {}]
  %s1 = inlined_call_operand.vmem [shape: f32[1,48], index: 1, kind: input, shape index: {}]
  %s2 = inlined_call_operand.vmem [shape: f32[1,48], index: 2, kind: input, shape index: {}]
  %s3 = inlined_call_operand.vmem [shape: bf16[16,48], index: 3, kind: output, shape index: {}]
  %s4 = sld [smem:[#allocation0]]
  $region22: #{forward.45} parent=0
    _
  %s6 = ssub.s32 1, %s4
  %s7 = scalar_select 0, %s6, %s4
  // Predicated region
  $region2: #{forward.45} parent=0 // pred_check
    _
  $region3: #{forward.45} parent=0 // pred_check_branch
    %9 = sbr.rel (0) target = $region5
  $region4: #{forward.45} parent=0 // pred_region
    _
  $region5: #{forward.45} parent=0 // pred_fallthru
    _
  // Predicated region
  $region6: #{forward.45} parent=0 // pred_check
    _
  $region7: #{forward.45} parent=0 // pred_check_branch
    %11 = sbr.rel (0) target = $region9
  $region8: #{forward.45} parent=0 // pred_region
    _
  $region9: #{forward.45} parent=0 // pred_fallthru
    _
  // Predicated region
  $region10: #{forward.45} parent=0 // pred_check
    _
  $region11: #{forward.45} parent=0 // pred_check_branch
    %13 = sbr.rel (0) target = $region13
  $region12: #{forward.45} parent=0 // pred_region
    _
  $region13: #{forward.45} parent=0 // pred_fallthru
    _
  %v14 = vld [vmem:[%s0] sm:$0xff]
  %v15 = vld [vmem:[%s0 + $0x8] sm:$0xff]
  %vm16 = vcmask 392192
  %v17 = vsel %vm16, %v14, 0.0
  %18 = vadd.xlane.f32.xlu0 %v17
  %v19 = vpop.xlane.xlu0 %18
  %v20 = vsel %vm16, %v15, 0.0
  %21 = vadd.xlane.f32.xlu0 %v20
  %v22 = vpop.xlane.xlu0 %21
  %v23 = vrcp.pop 48.0
  %v24 = vmul.f32 %v19, %v23
  %v25 = vmul.f32 %v22, %v23
  %v26 = vsub.f32 %v14, %v24
  %v27 = vsub.f32 %v15, %v25
  %v28 = vmul.f32 %v26, %v26
  %v29 = vmul.f32 %v27, %v27
  %v30 = vsel %vm16, %v28, 0.0
  %31 = vadd.xlane.f32.xlu0 %v30
  %v32 = vpop.xlane.xlu0 %31
  %v33 = vsel %vm16, %v29, 0.0
  %34 = vadd.xlane.f32.xlu0 %v33
  %v35 = vpop.xlane.xlu0 %34
  %v36 = vmul.f32 %v32, %v23
  %v37 = vmul.f32 %v35, %v23
  %v38 = vadd.f32 %v36, 1e-05
  %v39 = vadd.f32 %v37, 1e-05
  %v40 = vrsqrt.pop %v38
  %v41 = vrsqrt.pop %v39
  %v42 = vmul.f32 %v26, %v40
  %v43 = vmul.f32 %v27, %v41
  %v44 = vld [vmem:[%s1] sm:$0x1]
  %v46 = vlaneseq
  %v47 = vshrl.u32 %v46, 7
  %v48 = vsub.s32 0, %v47
  %v49 = vrot.slane %v44, %v48
  %v51 = vmul.f32 %v42, %v49
  %v52 = vmul.f32 %v43, %v49
  %v53 = vld [vmem:[%s2] sm:$0x1]
  %v55 = vlaneseq
  %v56 = vshrl.u32 %v55, 7
  %v57 = vsub.s32 0, %v56
  %v58 = vrot.slane %v53, %v57
  %v60 = vadd.f32 %v51, %v58
  %v61 = vadd.f32 %v52, %v58
  %v62 = vpack.c.bf16 %v61, %v60
  %v64 = vunpack.c.l.b16 %v62
  %v65 = vunpack.c.h.b16 %v62
  %v66 = vpack.c.b16 %v64, %v64
  %v67 = vpack.c.b16 %v65, %v65
  %vm70 = vcmask 388096
  %71 = vst.msk [vmem:[%s3] sm:$0xf] %vm70, %v66
  %72 = vst.msk [vmem:[%s3 + $0x4] sm:$0xf] %vm70, %v67
  // Predicated region
  $region14: #{forward.45} parent=0 // pred_check
    _
  $region15: #{forward.45} parent=0 // pred_check_branch
    %74 = sbr.rel (0) target = $region17
  $region16: #{forward.45} parent=0 // pred_region
    _
  $region17: #{forward.45} parent=0 // pred_fallthru
    _
  // Predicated region
  $region18: #{forward.45} parent=0 // pred_check
    _
  $region19: #{forward.45} parent=0 // pred_check_branch
    %76 = sbr.rel (0) target = $region21
  $region20: #{forward.45} parent=0 // pred_region
    _
  $region21: #{forward.45} parent=0 // pred_fallthru
    _

// kernel: forward.46
$region0: #{forward.46}
  #allocation0 [shape = 'u32[]', space=smem, size = 0x4, offset = 0x4, fixed_abs, tag = 'smem constant byte address 0x4 - core index']
  #allocation1 [shape = 'u32[144,128]{1,0:T(1,128)}', space=vmem, size = 0x12000, scoped, tag = 'internal scratch']
  %s0 = inlined_call_operand.vmem [shape: bf16[8,432], index: 0, kind: input, shape index: {}]
  %s1 = inlined_call_operand.vmem [shape: bf16[432,144], index: 1, kind: input, shape index: {}]
  %s2 = inlined_call_operand.vmem [shape: f32[1,144], index: 2, kind: input, shape index: {}]
  %s3 = inlined_call_operand.vmem [shape: bf16[8,144], index: 3, kind: output, shape index: {}]
  %s4 = sld [smem:[#allocation0]]
  $region22: #{forward.46} parent=0
    _
  %s6 = ssub.s32 1, %s4
  %s7 = scalar_select 0, %s6, %s4
  // Predicated region
  $region2: #{forward.46} parent=0 // pred_check
    _
  $region3: #{forward.46} parent=0 // pred_check_branch
    %9 = sbr.rel (0) target = $region5
  $region4: #{forward.46} parent=0 // pred_region
    _
  $region5: #{forward.46} parent=0 // pred_fallthru
    _
  // Predicated region
  $region6: #{forward.46} parent=0 // pred_check
    _
  $region7: #{forward.46} parent=0 // pred_check_branch
    %11 = sbr.rel (0) target = $region9
  $region8: #{forward.46} parent=0 // pred_region
    _
  $region9: #{forward.46} parent=0 // pred_fallthru
    _
  // Predicated region
  $region10: #{forward.46} parent=0 // pred_check
    _
  $region11: #{forward.46} parent=0 // pred_check_branch
    %13 = sbr.rel (0) target = $region13
  $region12: #{forward.46} parent=0 // pred_region
    _
  $region13: #{forward.46} parent=0 // pred_fallthru
    _
  %v15 = vld [vmem:[%s0] sm:$0xff]
  %v16 = vld [vmem:[%s0 + $0x8] sm:$0xff]
  %v17 = vld [vmem:[%s1] sm:$0xff]
  %v18 = vld [vmem:[%s1 + $0x8] sm:$0xff]
  %v19 = vld [vmem:[%s1 + $0x10] sm:$0xff]
  %v20 = vld [vmem:[%s1 + $0x18] sm:$0xff]
  %v21 = vld [vmem:[%s1 + $0x20] sm:$0xff]
  %v22 = vld [vmem:[%s1 + $0x28] sm:$0xff]
  %v23 = vld [vmem:[%s1 + $0x30] sm:$0xff]
  %v24 = vld [vmem:[%s1 + $0x38] sm:$0xff]
  %v25 = vld [vmem:[%s1 + $0x40] sm:$0xff]
  %v26 = vld [vmem:[%s1 + $0x48] sm:$0xff]
  %v27 = vld [vmem:[%s1 + $0x50] sm:$0xff]
  %v28 = vld [vmem:[%s1 + $0x58] sm:$0xff]
  %v29 = vld [vmem:[%s1 + $0x60] sm:$0xff]
  %v30 = vld [vmem:[%s1 + $0x68] sm:$0xff]
  %v31 = vld [vmem:[%s1 + $0x70] sm:$0xff]
  %v32 = vld [vmem:[%s1 + $0x78] sm:$0xff]
  %v33 = vld [vmem:[%s1 + $0x80] sm:$0xff]
  %v34 = vld [vmem:[%s1 + $0x88] sm:$0xff]
  %v35 = vld [vmem:[%s1 + $0x90] sm:$0xff]
  %v36 = vld [vmem:[%s1 + $0x98] sm:$0xff]
  %v37 = vld [vmem:[%s1 + $0xa0] sm:$0xff]
  %v38 = vld [vmem:[%s1 + $0xa8] sm:$0xff]
  %v39 = vld [vmem:[%s1 + $0xb0] sm:$0xff]
  %v40 = vld [vmem:[%s1 + $0xb8] sm:$0xff]
  %v41 = vld [vmem:[%s1 + $0xc0] sm:$0xff]
  %v42 = vld [vmem:[%s1 + $0xc8] sm:$0xff]
  %v43 = vld [vmem:[%s1 + $0xd0] sm:$0xff]
  %v44 = vld [vmem:[%s1 + $0xd8] sm:$0xff]
  %v45 = vld [vmem:[%s1 + $0xe0] sm:$0xff]
  %v46 = vld [vmem:[%s1 + $0xe8] sm:$0xff]
  %v47 = vld [vmem:[%s1 + $0xf0] sm:$0xff]
  %v48 = vld [vmem:[%s1 + $0xf8] sm:$0xff]
  %v49 = vld [vmem:[%s1 + $0x100] sm:$0xff]
  %v50 = vld [vmem:[%s1 + $0x108] sm:$0xff]
  %v51 = vld [vmem:[%s1 + $0x110] sm:$0xff]
  %v52 = vld [vmem:[%s1 + $0x118] sm:$0xff]
  %v53 = vld [vmem:[%s1 + $0x120] sm:$0xff]
  %v54 = vld [vmem:[%s1 + $0x128] sm:$0xff]
  %v55 = vld [vmem:[%s1 + $0x130] sm:$0xff]
  %v56 = vld [vmem:[%s1 + $0x138] sm:$0xff]
  %v57 = vld [vmem:[%s1 + $0x140] sm:$0xff]
  %v58 = vld [vmem:[%s1 + $0x148] sm:$0xff]
  %v59 = vld [vmem:[%s1 + $0x150] sm:$0xff]
  %v60 = vld [vmem:[%s1 + $0x158] sm:$0xff]
  %v61 = vld [vmem:[%s1 + $0x160] sm:$0xff]
  %v62 = vld [vmem:[%s1 + $0x168] sm:$0xff]
  %v63 = vld [vmem:[%s1 + $0x170] sm:$0xff]
  %v64 = vld [vmem:[%s1 + $0x178] sm:$0xff]
  %v65 = vld [vmem:[%s1 + $0x180] sm:$0xff]
  %v66 = vld [vmem:[%s1 + $0x188] sm:$0xff]
  %v67 = vld [vmem:[%s1 + $0x190] sm:$0xff]
  %v68 = vld [vmem:[%s1 + $0x198] sm:$0xff]
  %v69 = vld [vmem:[%s1 + $0x1a0] sm:$0xff]
  %v70 = vld [vmem:[%s1 + $0x1a8] sm:$0xff]
  %v71 = vld [vmem:[%s2] sm:$0x3]
  %v73 = vlaneseq
  %v74 = vshrl.u32 %v73, 7
  %v75 = vsub.s32 0, %v74
  %v76 = vrot.slane %v71, %v75
  %v77 = vlaneseq
  %v78 = vshrl.u32 %v77, 7
  %v79 = vsub.s32 1, %v78
  %v80 = vrot.slane %v71, %v79
  %v85 = vunpack.c.l.b16 %v15
  %v86 = vunpack.c.h.b16 %v15
  %v87 = vunpack.c.l.b16 %v16
  %v88 = vunpack.c.h.b16 %v16
  %v89 = vpack.c.b16 %v85, %v85
  %v90 = vpack.c.b16 %v86, %v86
  %v91 = vpack.c.b16 %v87, %v87
  %v92 = vpack.c.b16 %v88, %v88
  %v150 = vunpack.c.l.b16 %v17
  %v151 = vunpack.c.h.b16 %v17
  %v152 = vunpack.c.l.b16 %v18
  %v153 = vunpack.c.h.b16 %v18
  %v154 = vunpack.c.l.b16 %v19
  %v155 = vunpack.c.h.b16 %v19
  %v156 = vunpack.c.l.b16 %v20
  %v157 = vunpack.c.h.b16 %v20
  %v158 = vunpack.c.l.b16 %v21
  %v159 = vunpack.c.h.b16 %v21
  %v160 = vunpack.c.l.b16 %v22
  %v161 = vunpack.c.h.b16 %v22
  %v162 = vunpack.c.l.b16 %v23
  %v163 = vunpack.c.h.b16 %v23
  %v164 = vunpack.c.l.b16 %v24
  %v165 = vunpack.c.h.b16 %v24
  %v166 = vunpack.c.l.b16 %v25
  %v167 = vunpack.c.h.b16 %v25
  %v168 = vunpack.c.l.b16 %v26
  %v169 = vunpack.c.h.b16 %v26
  %v170 = vunpack.c.l.b16 %v27
  %v171 = vunpack.c.h.b16 %v27
  %v172 = vunpack.c.l.b16 %v28
  %v173 = vunpack.c.h.b16 %v28
  %v174 = vunpack.c.l.b16 %v29
  %v175 = vunpack.c.h.b16 %v29
  %v176 = vunpack.c.l.b16 %v30
  %v177 = vunpack.c.h.b16 %v30
  %v178 = vunpack.c.l.b16 %v31
  %v179 = vunpack.c.h.b16 %v31
  %v180 = vunpack.c.l.b16 %v32
  %v181 = vunpack.c.h.b16 %v32
  %v182 = vunpack.c.l.b16 %v33
  %v183 = vunpack.c.h.b16 %v33
  %v184 = vunpack.c.l.b16 %v34
  %v185 = vunpack.c.h.b16 %v34
  %v186 = vunpack.c.l.b16 %v35
  %v187 = vunpack.c.h.b16 %v35
  %v188 = vunpack.c.l.b16 %v36
  %v189 = vunpack.c.h.b16 %v36
  %v190 = vunpack.c.l.b16 %v37
  %v191 = vunpack.c.h.b16 %v37
  %v192 = vunpack.c.l.b16 %v38
  %v193 = vunpack.c.h.b16 %v38
  %v194 = vunpack.c.l.b16 %v39
  %v195 = vunpack.c.h.b16 %v39
  %v196 = vunpack.c.l.b16 %v40
  %v197 = vunpack.c.h.b16 %v40
  %v198 = vunpack.c.l.b16 %v41
  %v199 = vunpack.c.h.b16 %v41
  %v200 = vunpack.c.l.b16 %v42
  %v201 = vunpack.c.h.b16 %v42
  %v202 = vunpack.c.l.b16 %v43
  %v203 = vunpack.c.h.b16 %v43
  %v204 = vunpack.c.l.b16 %v44
  %v205 = vunpack.c.h.b16 %v44
  %v206 = vunpack.c.l.b16 %v45
  %v207 = vunpack.c.h.b16 %v45
  %v208 = vunpack.c.l.b16 %v46
  %v209 = vunpack.c.h.b16 %v46
  %v210 = vunpack.c.l.b16 %v47
  %v211 = vunpack.c.h.b16 %v47
  %v212 = vunpack.c.l.b16 %v48
  %v213 = vunpack.c.h.b16 %v48
  %v214 = vunpack.c.l.b16 %v49
  %v215 = vunpack.c.h.b16 %v49
  %v216 = vunpack.c.l.b16 %v50
  %v217 = vunpack.c.h.b16 %v50
  %v218 = vunpack.c.l.b16 %v51
  %v219 = vunpack.c.h.b16 %v51
  %v220 = vunpack.c.l.b16 %v52
  %v221 = vunpack.c.h.b16 %v52
  %v222 = vunpack.c.l.b16 %v53
  %v223 = vunpack.c.h.b16 %v53
  %v224 = vunpack.c.l.b16 %v54
  %v225 = vunpack.c.h.b16 %v54
  %v226 = vunpack.c.l.b16 %v55
  %v227 = vunpack.c.h.b16 %v55
  %v228 = vunpack.c.l.b16 %v56
  %v229 = vunpack.c.h.b16 %v56
  %v230 = vunpack.c.l.b16 %v57
  %v231 = vunpack.c.h.b16 %v57
  %v232 = vunpack.c.l.b16 %v58
  %v233 = vunpack.c.h.b16 %v58
  %v234 = vunpack.c.l.b16 %v59
  %v235 = vunpack.c.h.b16 %v59
  %v236 = vunpack.c.l.b16 %v60
  %v237 = vunpack.c.h.b16 %v60
  %v238 = vunpack.c.l.b16 %v61
  %v239 = vunpack.c.h.b16 %v61
  %v240 = vunpack.c.l.b16 %v62
  %v241 = vunpack.c.h.b16 %v62
  %v242 = vunpack.c.l.b16 %v63
  %v243 = vunpack.c.h.b16 %v63
  %v244 = vunpack.c.l.b16 %v64
  %v245 = vunpack.c.h.b16 %v64
  %v246 = vunpack.c.l.b16 %v65
  %v247 = vunpack.c.h.b16 %v65
  %v248 = vunpack.c.l.b16 %v66
  %v249 = vunpack.c.h.b16 %v66
  %v250 = vunpack.c.l.b16 %v67
  %v251 = vunpack.c.h.b16 %v67
  %v252 = vunpack.c.l.b16 %v68
  %v253 = vunpack.c.h.b16 %v68
  %v254 = vunpack.c.l.b16 %v69
  %v255 = vunpack.c.h.b16 %v69
  %v256 = vunpack.c.l.b16 %v70
  %v257 = vunpack.c.h.b16 %v70
  %v258 = vpack.c.b16 %v152, %v150
  %v259 = vpack.c.b16 %v153, %v151
  %v260 = vpack.c.b16 %v156, %v154
  %v261 = vpack.c.b16 %v157, %v155
  %v262 = vpack.c.b16 %v160, %v158
  %v263 = vpack.c.b16 %v161, %v159
  %v264 = vpack.c.b16 %v164, %v162
  %v265 = vpack.c.b16 %v165, %v163
  %v266 = vpack.c.b16 %v168, %v166
  %v267 = vpack.c.b16 %v169, %v167
  %v268 = vpack.c.b16 %v172, %v170
  %v269 = vpack.c.b16 %v173, %v171
  %v270 = vpack.c.b16 %v176, %v174
  %v271 = vpack.c.b16 %v177, %v175
  %v272 = vpack.c.b16 %v180, %v178
  %v273 = vpack.c.b16 %v181, %v179
  %v274 = vpack.c.b16 %v184, %v182
  %v275 = vpack.c.b16 %v185, %v183
  %v276 = vpack.c.b16 %v188, %v186
  %v277 = vpack.c.b16 %v189, %v187
  %v278 = vpack.c.b16 %v192, %v190
  %v279 = vpack.c.b16 %v193, %v191
  %v280 = vpack.c.b16 %v196, %v194
  %v281 = vpack.c.b16 %v197, %v195
  %v282 = vpack.c.b16 %v200, %v198
  %v283 = vpack.c.b16 %v201, %v199
  %v284 = vpack.c.b16 %v204, %v202
  %v285 = vpack.c.b16 %v205, %v203
  %v286 = vpack.c.b16 %v208, %v206
  %v287 = vpack.c.b16 %v209, %v207
  %v288 = vpack.c.b16 %v212, %v210
  %v289 = vpack.c.b16 %v213, %v211
  %v290 = vpack.c.b16 %v216, %v214
  %v291 = vpack.c.b16 %v217, %v215
  %v292 = vpack.c.b16 %v220, %v218
  %v293 = vpack.c.b16 %v221, %v219
  %v294 = vpack.c.b16 %v224, %v222
  %v295 = vpack.c.b16 %v225, %v223
  %v296 = vpack.c.b16 %v228, %v226
  %v297 = vpack.c.b16 %v229, %v227
  %v298 = vpack.c.b16 %v232, %v230
  %v299 = vpack.c.b16 %v233, %v231
  %v300 = vpack.c.b16 %v236, %v234
  %v301 = vpack.c.b16 %v237, %v235
  %v302 = vpack.c.b16 %v240, %v238
  %v303 = vpack.c.b16 %v241, %v239
  %v304 = vpack.c.b16 %v244, %v242
  %v305 = vpack.c.b16 %v245, %v243
  %v306 = vpack.c.b16 %v248, %v246
  %v307 = vpack.c.b16 %v249, %v247
  %v308 = vpack.c.b16 %v252, %v250
  %v309 = vpack.c.b16 %v253, %v251
  %v310 = vpack.c.b16 %v256, %v254
  %v311 = vpack.c.b16 %v257, %v255
  %vm366 = vcmask 392192
  %v368 = vsel %vm366, %v92, 0
  %370 = vmatprep.subr.bf16.mxu0 %v259
  %371 = vmatpush1.bf16.msra.mxu0 %v258
  %372 = vmatprep.subr.bf16.mxu0 %v261
  %373 = vmatpush1.bf16.msra.mxu0 %v260
  %374 = vmatprep.subr.bf16.mxu0 %v263
  %375 = vmatpush1.bf16.msra.mxu0 %v262
  %376 = vmatprep.subr.bf16.mxu0 %v265
  %377 = vmatpush1.bf16.msra.mxu0 %v264
  %378 = vmatprep.subr.bf16.mxu0 %v267
  %379 = vmatpush1.bf16.msra.mxu0 %v266
  %380 = vmatprep.subr.bf16.mxu0 %v269
  %381 = vmatpush1.bf16.msra.mxu0 %v268
  %382 = vmatprep.subr.bf16.mxu0 %v271
  %383 = vmatpush1.bf16.msra.mxu0 %v270
  %384 = vmatprep.subr.bf16.mxu0 %v273
  %385 = vmatpush1.bf16.msra.mxu0 %v272
  %386 = vmatprep.subr.bf16.mxu0 %v275
  %387 = vmatpush1.bf16.msra.mxu0 %v274
  %388 = vmatprep.subr.bf16.mxu0 %v277
  %389 = vmatpush1.bf16.msra.mxu0 %v276
  %390 = vmatprep.subr.bf16.mxu0 %v279
  %391 = vmatpush1.bf16.msra.mxu0 %v278
  %392 = vmatprep.subr.bf16.mxu0 %v281
  %393 = vmatpush1.bf16.msra.mxu0 %v280
  %394 = vmatprep.subr.bf16.mxu0 %v283
  %395 = vmatpush1.bf16.msra.mxu0 %v282
  %396 = vmatprep.subr.bf16.mxu0 %v285
  %397 = vmatpush1.bf16.msra.mxu0 %v284
  %398 = vmatprep.subr.bf16.mxu0 %v287
  %399 = vmatpush1.bf16.msra.mxu0 %v286
  %400 = vmatprep.subr.bf16.mxu0 %v289
  %401 = vmatpush1.bf16.msra.mxu0 %v288
  %402 = vmatprep.mubr.bf16.mxu0 %v90
  %403 = vmatmul.mubr.bf16.gmra.mrb[0].mxu0 %v89
  %v404 = vpop.f32.mrb[0].mxu0
  %v405 = vadd.f32 %v76, %v404
  %v406 = vpop.f32.mrb[0].mxu0
  %v407 = vadd.f32 %v80, %v406
  %v408 = vpop.f32.mrb[0].mxu0
  %v409 = vpop.f32.mrb[0].mxu0
  %410 = vdwg.mxu0
  %411 = vmatprep.subr.bf16.mxu0 %v291
  %412 = vmatpush1.bf16.msra.mxu0 %v290
  %413 = vmatprep.subr.bf16.mxu0 %v293
  %414 = vmatpush1.bf16.msra.mxu0 %v292
  %415 = vmatprep.subr.bf16.mxu0 %v295
  %416 = vmatpush1.bf16.msra.mxu0 %v294
  %417 = vmatprep.subr.bf16.mxu0 %v297
  %418 = vmatpush1.bf16.msra.mxu0 %v296
  %419 = vmatprep.subr.bf16.mxu0 %v299
  %420 = vmatpush1.bf16.msra.mxu0 %v298
  %421 = vmatprep.subr.bf16.mxu0 %v301
  %422 = vmatpush1.bf16.msra.mxu0 %v300
  %423 = vmatprep.subr.bf16.mxu0 %v303
  %424 = vmatpush1.bf16.msra.mxu0 %v302
  %425 = vmatprep.subr.bf16.mxu0 %v305
  %426 = vmatpush1.bf16.msra.mxu0 %v304
  %427 = vmatprep.subr.bf16.mxu0 %v307
  %428 = vmatpush1.bf16.msra.mxu0 %v306
  %429 = vmatprep.subr.bf16.mxu0 %v309
  %430 = vmatpush1.bf16.msra.mxu0 %v308
  %431 = vmatprep.subr.bf16.mxu0 %v311
  %432 = vmatpush1.bf16.msra.mxu0 %v310
  %433 = vmatprep.subr.bf16.mxu0 0
  %434 = vmatpush1.bf16.msra.mxu0 0
  %435 = vmatprep.subr.bf16.mxu0 0
  %436 = vmatpush1.bf16.msra.mxu0 0
  %437 = vmatprep.subr.bf16.mxu0 0
  %438 = vmatpush1.bf16.msra.mxu0 0
  %439 = vmatprep.subr.bf16.mxu0 0
  %440 = vmatpush1.bf16.msra.mxu0 0
  %441 = vmatprep.subr.bf16.mxu0 0
  %442 = vmatpush1.bf16.msra.mxu0 0
  %443 = vmatprep.mubr.bf16.mxu0 %v368
  %444 = vmatmul.mubr.bf16.gmra.mrb[0].mxu0 %v91
  %v445 = vpop.f32.mrb[0].mxu0
  %v446 = vadd.f32 %v405, %v445
  %v447 = vpop.f32.mrb[0].mxu0
  %v448 = vadd.f32 %v407, %v447
  %v449 = vpop.f32.mrb[0].mxu0
  %v450 = vpop.f32.mrb[0].mxu0
  %451 = vdwg.mxu0
  %v452 = vpack.c.bf16 %v446, %v446
  %v453 = vpack.c.bf16 %v448, %v448
  %v456 = vunpack.c.l.b16 %v452
  %v457 = vunpack.c.l.b16 %v453
  %v458 = vpack.c.b16 %v457, %v456
  %vm460 = vcmask 1043456
  %vm461 = vcmask 130052
  %vm462 = vmor %vm461, %vm460
  %463 = vst.msk [vmem:[%s3] sm:$0xff] %vm462, %v458
  // Predicated region
  $region14: #{forward.46} parent=0 // pred_check
    _
  $region15: #{forward.46} parent=0 // pred_check_branch
    %465 = sbr.rel (0) target = $region17
  $region16: #{forward.46} parent=0 // pred_region
    _
  $region17: #{forward.46} parent=0 // pred_fallthru
    _
  // Predicated region
  $region18: #{forward.46} parent=0 // pred_check
    _
  $region19: #{forward.46} parent=0 // pred_check_branch
    %467 = sbr.rel (0) target = $region21
  $region20: #{forward.46} parent=0 // pred_region
    _
  $region21: #{forward.46} parent=0 // pred_fallthru
    _

// kernel: forward.48
$region0: #{forward.48}
  #allocation0 [shape = 'u32[]', space=smem, size = 0x4, offset = 0x4, fixed_abs, tag = 'smem constant byte address 0x4 - core index']
  #allocation1 [shape = 'u32[144,128]{1,0:T(1,128)}', space=vmem, size = 0x12000, scoped, tag = 'internal scratch']
  %s0 = inlined_call_operand.vmem [shape: bf16[16,48], index: 0, kind: input, shape index: {}]
  %s1 = inlined_call_operand.vmem [shape: bf16[48,48], index: 1, kind: input, shape index: {}]
  %s2 = inlined_call_operand.vmem [shape: f32[1,48], index: 2, kind: input, shape index: {}]
  %s3 = inlined_call_operand.vmem [shape: f32[16,48], index: 3, kind: input, shape index: {}]
  %s4 = inlined_call_operand.vmem [shape: f32[16,48], index: 4, kind: output, shape index: {}]
  %s5 = sld [smem:[#allocation0]]
  $region26: #{forward.48} parent=0
    _
  %s7 = ssub.s32 1, %s5
  %s8 = scalar_select 0, %s7, %s5
  // Predicated region
  $region2: #{forward.48} parent=0 // pred_check
    _
  $region3: #{forward.48} parent=0 // pred_check_branch
    %10 = sbr.rel (0) target = $region5
  $region4: #{forward.48} parent=0 // pred_region
    _
  $region5: #{forward.48} parent=0 // pred_fallthru
    _
  // Predicated region
  $region6: #{forward.48} parent=0 // pred_check
    _
  $region7: #{forward.48} parent=0 // pred_check_branch
    %12 = sbr.rel (0) target = $region9
  $region8: #{forward.48} parent=0 // pred_region
    _
  $region9: #{forward.48} parent=0 // pred_fallthru
    _
  // Predicated region
  $region10: #{forward.48} parent=0 // pred_check
    _
  $region11: #{forward.48} parent=0 // pred_check_branch
    %14 = sbr.rel (0) target = $region13
  $region12: #{forward.48} parent=0 // pred_region
    _
  $region13: #{forward.48} parent=0 // pred_fallthru
    _
  // Predicated region
  $region14: #{forward.48} parent=0 // pred_check
    _
  $region15: #{forward.48} parent=0 // pred_check_branch
    %16 = sbr.rel (0) target = $region17
  $region16: #{forward.48} parent=0 // pred_region
    _
  $region17: #{forward.48} parent=0 // pred_fallthru
    _
  %v18 = vld [vmem:[%s0] sm:$0xf]
  %v19 = vld [vmem:[%s0 + $0x4] sm:$0xf]
  %v20 = vld [vmem:[%s1] sm:$0xf]
  %v21 = vld [vmem:[%s1 + $0x4] sm:$0xf]
  %v22 = vld [vmem:[%s1 + $0x8] sm:$0xf]
  %v23 = vld [vmem:[%s1 + $0xc] sm:$0xf]
  %v24 = vld [vmem:[%s1 + $0x10] sm:$0xf]
  %v25 = vld [vmem:[%s1 + $0x14] sm:$0xf]
  %v26 = vld [vmem:[%s2] sm:$0x1]
  %v28 = vlaneseq
  %v29 = vshrl.u32 %v28, 7
  %v30 = vsub.s32 0, %v29
  %v31 = vrot.slane %v26, %v30
  %v35 = vunpack.c.l.b16 %v18
  %v36 = vunpack.c.l.b16 %v19
  %v37 = vpack.c.b16 %v36, %v35
  %v44 = vunpack.c.l.b16 %v20
  %v45 = vunpack.c.l.b16 %v21
  %v46 = vunpack.c.l.b16 %v22
  %v47 = vunpack.c.l.b16 %v23
  %v48 = vunpack.c.l.b16 %v24
  %v49 = vunpack.c.l.b16 %v25
  %v50 = vpack.c.b16 %v45, %v44
  %v51 = vpack.c.b16 %v47, %v46
  %v52 = vpack.c.b16 %v49, %v48
  %vm56 = vcmask 392192
  %v58 = vsel %vm56, %v37, 0
  %60 = vmatprep.subr.bf16.mxu0 0
  %61 = vmatpush1.bf16.msra.mxu0 %v50
  %62 = vmatprep.subr.bf16.mxu0 0
  %63 = vmatpush1.bf16.msra.mxu0 %v51
  %64 = vmatprep.subr.bf16.mxu0 0
  %65 = vmatpush1.bf16.msra.mxu0 %v52
  %66 = vmatprep.subr.bf16.mxu0 0
  %67 = vmatpush1.bf16.msra.mxu0 0
  %68 = vmatprep.subr.bf16.mxu0 0
  %69 = vmatpush1.bf16.msra.mxu0 0
  %70 = vmatprep.subr.bf16.mxu0 0
  %71 = vmatpush1.bf16.msra.mxu0 0
  %72 = vmatprep.subr.bf16.mxu0 0
  %73 = vmatpush1.bf16.msra.mxu0 0
  %74 = vmatprep.subr.bf16.mxu0 0
  %75 = vmatpush1.bf16.msra.mxu0 0
  %76 = vmatprep.subr.bf16.mxu0 0
  %77 = vmatpush1.bf16.msra.mxu0 0
  %78 = vmatprep.subr.bf16.mxu0 0
  %79 = vmatpush1.bf16.msra.mxu0 0
  %80 = vmatprep.subr.bf16.mxu0 0
  %81 = vmatpush1.bf16.msra.mxu0 0
  %82 = vmatprep.subr.bf16.mxu0 0
  %83 = vmatpush1.bf16.msra.mxu0 0
  %84 = vmatprep.subr.bf16.mxu0 0
  %85 = vmatpush1.bf16.msra.mxu0 0
  %86 = vmatprep.subr.bf16.mxu0 0
  %87 = vmatpush1.bf16.msra.mxu0 0
  %88 = vmatprep.subr.bf16.mxu0 0
  %89 = vmatpush1.bf16.msra.mxu0 0
  %90 = vmatprep.subr.bf16.mxu0 0
  %91 = vmatpush1.bf16.msra.mxu0 0
  %92 = vmatprep.mubr.bf16.mxu0 0
  %93 = vmatmul.mubr.bf16.gmra.mrb[0].mxu0 %v58
  %v94 = vpop.f32.mrb[0].mxu0
  %v95 = vadd.f32 %v31, %v94
  %v96 = vpop.f32.mrb[0].mxu0
  %v97 = vpop.f32.mrb[0].mxu0
  %v98 = vadd.f32 %v31, %v97
  %v99 = vpop.f32.mrb[0].mxu0
  %100 = vdwg.mxu0
  %v101 = vld [vmem:[%s3] sm:$0xff]
  %v102 = vld [vmem:[%s3 + $0x8] sm:$0xff]
  %v103 = vadd.f32 %v95, %v101
  %v104 = vadd.f32 %v98, %v102
  %105 = vst.msk [vmem:[%s4] sm:$0xff] %vm56, %v103
  %106 = vst.msk [vmem:[%s4 + $0x8] sm:$0xff] %vm56, %v104
  // Predicated region
  $region18: #{forward.48} parent=0 // pred_check
    _
  $region19: #{forward.48} parent=0 // pred_check_branch
    %108 = sbr.rel (0) target = $region21
  $region20: #{forward.48} parent=0 // pred_region
    _
  $region21: #{forward.48} parent=0 // pred_fallthru
    _
  // Predicated region
  $region22: #{forward.48} parent=0 // pred_check
    _
  $region23: #{forward.48} parent=0 // pred_check_branch
    %110 = sbr.rel (0) target = $region25
  $region24: #{forward.48} parent=0 // pred_region
    _
  $region25: #{forward.48} parent=0 // pred_fallthru
    _

// kernel: forward.47
$region0: #{forward.47}
  #allocation0 [shape = 'u32[]', space=smem, size = 0x4, offset = 0x4, fixed_abs, tag = 'smem constant byte address 0x4 - core index']
  #allocation1 [shape = 'u32[144,128]{1,0:T(1,128)}', space=vmem, size = 0x12000, scoped, tag = 'internal scratch']
  %s0 = inlined_call_operand.vmem [shape: bf16[2,8,48], index: 0, kind: input, shape index: {}]
  %s1 = inlined_call_operand.vmem [shape: bf16[2,5,48], index: 1, kind: input, shape index: {}]
  %s2 = inlined_call_operand.vmem [shape: bf16[2,5,48], index: 2, kind: input, shape index: {}]
  %s3 = inlined_call_operand.vmem [shape: bf16[2,8,48], index: 3, kind: output, shape index: {}]
  %s4 = sld [smem:[#allocation0]]
  $region45: #{forward.47} parent=0
    _
  %s6 = ssub.s32 1, %s4
  %s7 = scalar_select 0, %s6, %s4
  loop: start=0, step=1, limit=4
  $region2: #{forward.47} parent=0 // loop_pre_header
    _
  $region3: #{forward.47} parent=0 // loop_header
    %s9 = sphi 0, %s13
    %p10 = scmp.ge.s32.totalorder %s9, 4
    %s16 = sphi 0, %s28
    %s17 = sphi 0, %s24
    %s18 = sphi 0, %s16
    %s19 = sphi 0, %s17
    %s20 = sphi 0, %s18
    %s21 = sphi 0, %s19
    %s33 = sphi 0, %s35
    %s36 = sphi 0, %s33
    %s37 = sphi 0, %s36
    %s53 = sphi 0, %s37
    %s59 = sphi 0, %s61
    %s62 = sphi 0, %s59
    %s63 = sphi 0, %s62
    %s79 = sphi 0, %s63
    %s85 = sphi 0, %s87
    %s88 = sphi 0, %s85
    %s89 = sphi 0, %s88
    %s105 = sphi 0, %s89
    %s113 = sphi 0, %s115
    %s116 = sphi 0, %s113
    %s117 = sphi 0, %s116
    %s133 = sphi 0, %s117
  $region4: #{forward.47} parent=0 // loop_header_branch
    %12 = sbr.rel (%p10) target = $region8
  $region5: #{forward.47} parent=0 // loop_body
    %s14 = ssub.s32 %s9, 1
    %s15 = ssub.s32 %s9, 2
    %s22 = sadd.s32 1, %s17
    %p23 = scmp.ge.s32.totalorder %s22, 1
    %s24 = scalar_select %p23, 0, %s22
    %s25 = sadd.s32 1, %s16
    %s26 = scalar_select %p23, %s25, %s16
    %p27 = scmp.ge.s32.totalorder %s26, 2
    %s28 = scalar_select %p27, 0, %s26
    %s29 = ssub.s32 %s16, %s28
    %s30 = ssub.s32 %s17, %s24
    %s31 = sor.u32 %s29, %s30
    %p32 = scmp.eq.s32.totalorder %s31, 0
    %s34 = sadd.s32 %s33, 1
    %s35 = scalar_select %p32, %s33, %s34
    %p38 = pneg %p32
    %p39 = scmp.eq.s32.totalorder %s9, 1
    %p40 = por %p38, %p39
    %p41 = scmp.ne.s32.totalorder %s33, %s36
    %p42 = scmp.eq.s32.totalorder %s9, 0
    %p43 = por %p41, %p42
    %p44 = scmp.ne.s32.totalorder %s33, %s36
    %p45 = scmp.eq.s32.totalorder %s14, 1
    %p46 = por %p44, %p45
    %p47 = scmp.ne.s32.totalorder %s36, %s37
    %p48 = scmp.eq.s32.totalorder %s14, 0
    %p49 = por %p47, %p48
    %p50 = scmp.ne.s32.totalorder %s36, %s37
    %p51 = scmp.eq.s32.totalorder %s15, 1
    %p52 = por %p50, %p51
    %p54 = scmp.ne.s32.totalorder %s37, %s53
    %p55 = scmp.eq.s32.totalorder %s15, 0
    %p56 = por %p54, %p55
    %s57 = ssub.s32 %s16, %s28
    %p58 = scmp.eq.s32.totalorder %s57, 0
    %s60 = sadd.s32 %s59, 1
    %s61 = scalar_select %p58, %s59, %s60
    %p64 = pneg %p58
    %p65 = scmp.eq.s32.totalorder %s9, 1
    %p66 = por %p64, %p65
    %p67 = scmp.ne.s32.totalorder %s59, %s62
    %p68 = scmp.eq.s32.totalorder %s9, 0
    %p69 = por %p67, %p68
    %p70 = scmp.ne.s32.totalorder %s59, %s62
    %p71 = scmp.eq.s32.totalorder %s14, 1
    %p72 = por %p70, %p71
    %p73 = scmp.ne.s32.totalorder %s62, %s63
    %p74 = scmp.eq.s32.totalorder %s14, 0
    %p75 = por %p73, %p74
    %p76 = scmp.ne.s32.totalorder %s62, %s63
    %p77 = scmp.eq.s32.totalorder %s15, 1
    %p78 = por %p76, %p77
    %p80 = scmp.ne.s32.totalorder %s63, %s79
    %p81 = scmp.eq.s32.totalorder %s15, 0
    %p82 = por %p80, %p81
    %s83 = ssub.s32 %s16, %s28
    %p84 = scmp.eq.s32.totalorder %s83, 0
    %s86 = sadd.s32 %s85, 1
    %s87 = scalar_select %p84, %s85, %s86
    %p90 = pneg %p84
    %p91 = scmp.eq.s32.totalorder %s9, 1
    %p92 = por %p90, %p91
    %p93 = scmp.ne.s32.totalorder %s85, %s88
    %p94 = scmp.eq.s32.totalorder %s9, 0
    %p95 = por %p93, %p94
    %p96 = scmp.ne.s32.totalorder %s85, %s88
    %p97 = scmp.eq.s32.totalorder %s14, 1
    %p98 = por %p96, %p97
    %p99 = scmp.ne.s32.totalorder %s88, %s89
    %p100 = scmp.eq.s32.totalorder %s14, 0
    %p101 = por %p99, %p100
    %p102 = scmp.ne.s32.totalorder %s88, %s89
    %p103 = scmp.eq.s32.totalorder %s15, 1
    %p104 = por %p102, %p103
    %p106 = scmp.ne.s32.totalorder %s89, %s105
    %p107 = scmp.eq.s32.totalorder %s15, 0
    %p108 = por %p106, %p107
    %s109 = ssub.s32 %s16, %s28
    %s110 = ssub.s32 %s17, %s24
    %s111 = sor.u32 %s109, %s110
    %p112 = scmp.eq.s32.totalorder %s111, 0
    %s114 = sadd.s32 %s113, 1
    %s115 = scalar_select %p112, %s113, %s114
    %p118 = pneg %p112
    %p119 = scmp.eq.s32.totalorder %s9, 1
    %p120 = por %p118, %p119
    %p121 = scmp.ne.s32.totalorder %s113, %s116
    %p122 = scmp.eq.s32.totalorder %s9, 0
    %p123 = por %p121, %p122
    %p124 = scmp.ne.s32.totalorder %s113, %s116
    %p125 = scmp.eq.s32.totalorder %s14, 1
    %p126 = por %p124, %p125
    %p127 = scmp.ne.s32.totalorder %s116, %s117
    %p128 = scmp.eq.s32.totalorder %s14, 0
    %p129 = por %p127, %p128
    %p130 = scmp.ne.s32.totalorder %s116, %s117
    %p131 = scmp.eq.s32.totalorder %s15, 1
    %p132 = por %p130, %p131
    %p134 = scmp.ne.s32.totalorder %s117, %s133
    %p135 = scmp.eq.s32.totalorder %s15, 0
    %p136 = por %p134, %p135
    %p137 = scmp.le.s32.totalorder 1, %s9
    %p138 = scmp.lt.s32.totalorder %s9, 3
    %p139 = pnand %p137, %p138
    %p140 = pneg %p139
    // Predicated region
    $region9: #{forward.47} parent=5 // pred_check
      _
    $region10: #{forward.47} parent=5 // pred_check_branch
      %142 = sbr.rel (%p139) target = $region12
    $region11: #{forward.47} parent=5 // pred_region
      %s143 = ssub.s32 %s9, 1
    $region12: #{forward.47} parent=5 // pred_fallthru
      _
    %p144 = scmp.lt.s32.totalorder %s9, 2
    // Predicated region
    $region13: #{forward.47} parent=5 // pred_check
      %p145 = pneg %p144
    $region14: #{forward.47} parent=5 // pred_check_branch
      %147 = sbr.rel (%p145) target = $region16
    $region15: #{forward.47} parent=5 // pred_region
      // Predicated region
      $region17: #{forward.47} parent=15 // pred_check
        %p148 = pneg %p43
      $region18: #{forward.47} parent=15 // pred_check_branch
        %150 = sbr.rel (%p148) target = $region20
      $region19: #{forward.47} parent=15 // pred_region
        %p151 = scmp.lt.s32.totalorder %s16, 1
        %s152 = scalar_select %p151, %s16, 1
        %p153 = scmp.lt.s32.totalorder %s17, 0
        %s154 = scalar_select %p153, %s17, 0
        %s155 = sadd.s32 %s154, %s152
        %s156 = smul.addr %s155, 4
        %s157 = scalar_lea.vmem %s0, %s156
      $region20: #{forward.47} parent=15 // pred_fallthru
        _
      // Predicated region
      $region21: #{forward.47} parent=15 // pred_check
        %p158 = pneg %p69
      $region22: #{forward.47} parent=15 // pred_check_branch
        %160 = sbr.rel (%p158) target = $region24
      $region23: #{forward.47} parent=15 // pred_region
        %p161 = scmp.lt.s32.totalorder %s16, 1
        %s162 = scalar_select %p161, %s16, 1
        %s163 = smul.addr %s162, 4
        %s164 = scalar_lea.vmem %s1, %s163
      $region24: #{forward.47} parent=15 // pred_fallthru
        _
      // Predicated region
      $region25: #{forward.47} parent=15 // pred_check
        %p165 = pneg %p95
      $region26: #{forward.47} parent=15 // pred_check_branch
        %167 = sbr.rel (%p165) target = $region28
      $region27: #{forward.47} parent=15 // pred_region
        %p168 = scmp.lt.s32.totalorder %s16, 1
        %s169 = scalar_select %p168, %s16, 1
        %s170 = smul.addr %s169, 4
        %s171 = scalar_lea.vmem %s2, %s170
      $region28: #{forward.47} parent=15 // pred_fallthru
        _
    $region16: #{forward.47} parent=5 // pred_fallthru
      _
    %p172 = scmp.le.s32.totalorder 1, %s9
    %p173 = scmp.lt.s32.totalorder %s9, 3
    %p174 = pnand %p172, %p173
    %p175 = pneg %p174
    // Predicated region
    $region29: #{forward.47} parent=5 // pred_check
      _
    $region30: #{forward.47} parent=5 // pred_check_branch
      %177 = sbr.rel (%p174) target = $region32
    $region31: #{forward.47} parent=5 // pred_region
      %s178 = ssub.s32 %s9, 1
      %p179 = scmp.lt.s32.totalorder %s18, 1
      %s180 = scalar_select %p179, %s18, 1
      %p181 = scmp.lt.s32.totalorder %s19, 0
      %s182 = scalar_select %p181, %s19, 0
      %s183 = sadd.s32 %s182, %s180
      %s184 = smul.addr %s183, 4
      %s185 = scalar_lea.vmem %s0, %s184
      %p186 = pneg %p49
      %p187 = pneg %p46
      %p188 = scmp.lt.s32.totalorder %s18, 1
      %s189 = scalar_select %p188, %s18, 1
      %s190 = smul.addr %s189, 4
      %s191 = scalar_lea.vmem %s1, %s190
      %p192 = pneg %p75
      %p193 = pneg %p72
      %p194 = scmp.lt.s32.totalorder %s18, 1
      %s195 = scalar_select %p194, %s18, 1
      %s196 = smul.addr %s195, 4
      %s197 = scalar_lea.vmem %s2, %s196
      %p198 = pneg %p101
      %p199 = pneg %p98
      %p200 = pneg %p129
      %p201 = pneg %p126
      %p202 = scmp.lt.s32.totalorder %s18, 1
      %s203 = scalar_select %p202, %s18, 1
      %p204 = scmp.lt.s32.totalorder %s19, 0
      %s205 = scalar_select %p204, %s19, 0
      %s206 = sadd.s32 %s205, %s203
      %s207 = smul.addr %s206, 4
      %s208 = scalar_lea.vmem %s3, %s207
      %p209 = scmp.lt.s32.totalorder %s18, 1
      %s210 = scalar_select %p209, %s18, 1
      %p211 = scmp.lt.s32.totalorder %s19, 0
      %s212 = scalar_select %p211, %s19, 0
      %s213 = sadd.s32 %s212, %s210
      %s214 = smul.addr %s213, 4
      %s215 = scalar_lea.vmem %s0, %s214
      %p216 = scmp.lt.s32.totalorder %s18, 1
      %s217 = scalar_select %p216, %s18, 1
      %s218 = smul.addr %s217, 4
      %s219 = scalar_lea.vmem %s1, %s218
      %p220 = scmp.lt.s32.totalorder %s18, 1
      %s221 = scalar_select %p220, %s18, 1
      %s222 = smul.addr %s221, 4
      %s223 = scalar_lea.vmem %s2, %s222
      %p224 = scmp.lt.s32.totalorder %s18, 1
      %s225 = scalar_select %p224, %s18, 1
      %p226 = scmp.lt.s32.totalorder %s19, 0
      %s227 = scalar_select %p226, %s19, 0
      %s228 = sadd.s32 %s227, %s225
      %s229 = smul.addr %s228, 4
      %s230 = scalar_lea.vmem %s3, %s229
      %v232 = vld [vmem:[%s215] sm:$0xf]
      %v233 = vld [vmem:[%s219] sm:$0x7]
      %v234 = vld [vmem:[%s223] sm:$0x7]
      %vm235 = vcmask 64512
      %v237 = vsel %vm235, %v232, 0
      %v240 = vsel %vm235, %v233, 0
      %242 = vmatprep.subr.bf16.mxu0 0
      %243 = vmatpush1.bf16.xpose.msra.mxu0 %v240
      %244 = vmatprep.subr.bf16.mxu0 0
      %245 = vmatpush1.bf16.xpose.msra.mxu0 0
      %246 = vmatprep.subr.bf16.mxu0 0
      %247 = vmatpush1.bf16.xpose.msra.mxu0 0
      %248 = vmatprep.subr.bf16.mxu0 0
      %249 = vmatpush1.bf16.xpose.msra.mxu0 0
      %250 = vmatprep.subr.bf16.mxu0 0
      %251 = vmatpush1.bf16.xpose.msra.mxu0 0
      %252 = vmatprep.subr.bf16.mxu0 0
      %253 = vmatpush1.bf16.xpose.msra.mxu0 0
      %254 = vmatprep.subr.bf16.mxu0 0
      %255 = vmatpush1.bf16.xpose.msra.mxu0 0
      %256 = vmatprep.subr.bf16.mxu0 0
      %257 = vmatpush1.bf16.xpose.msra.mxu0 0
      %258 = vmatprep.subr.bf16.mxu0 0
      %259 = vmatpush1.bf16.xpose.msra.mxu0 0
      %260 = vmatprep.subr.bf16.mxu0 0
      %261 = vmatpush1.bf16.xpose.msra.mxu0 0
      %262 = vmatprep.subr.bf16.mxu0 0
      %263 = vmatpush1.bf16.xpose.msra.mxu0 0
      %264 = vmatprep.subr.bf16.mxu0 0
      %265 = vmatpush1.bf16.xpose.msra.mxu0 0
      %266 = vmatprep.subr.bf16.mxu0 0
      %267 = vmatpush1.bf16.xpose.msra.mxu0 0
      %268 = vmatprep.subr.bf16.mxu0 0
      %269 = vmatpush1.bf16.xpose.msra.mxu0 0
      %270 = vmatprep.subr.bf16.mxu0 0
      %271 = vmatpush1.bf16.xpose.msra.mxu0 0
      %272 = vmatprep.subr.bf16.mxu0 0
      %273 = vmatpush1.bf16.xpose.msra.mxu0 0
      %274 = vmatprep.mubr.bf16.mxu0 0
      %275 = vmatmul.mubr.bf16.gmra.mrb[0].mxu0 %v237
      %v276 = vpop.f32.mrb[0].mxu0
      %v277 = vadd.f32 0.0, %v276
      %v278 = vpop.f32.mrb[0].mxu0
      %v279 = vpop.f32.mrb[0].mxu0
      %v280 = vpop.f32.mrb[0].mxu0
      %281 = vdwg.mxu0
      %v282 = vmul.f32 %v277, 0.35355338
      %vm283 = vcmask 39936
      %v284 = vsel %vm283, %v282, -inf
      %285 = vmax.xlane.f32.xlu0 %v284
      %v286 = vpop.xlane.xlu0 %285
      %v287 = vsub.f32 %v282, %v286
      %v288 = vmul.f32 %v287, 1.442695
      %v289 = vpow.pop %v288
      %v290 = vsel %vm283, %v289, 0.0
      %291 = vadd.xlane.f32.xlu0 %v290
      %v292 = vpop.xlane.xlu0 %291
      %v293 = vrcp.pop %v292
      %v294 = vmul.f32 %v289, %v293
      %v295 = vpack.c.bf16 %v294, %v294
      %v297 = vsel %vm283, %v295, 0
      %vm299 = vcmask 1041408
      %vm300 = vcmask 1042432
      %v301 = vsel %vm299, 4294967295, 65535
      %v302 = vsel %vm300, %v301, 0
      %v304 = vand.u32 %v234, %v302
      %306 = vmatprep.subr.bf16.mxu0 0
      %307 = vmatpush1.bf16.msra.mxu0 %v304
      %308 = vmatprep.subr.bf16.mxu0 0
      %309 = vmatpush1.bf16.msra.mxu0 0
      %310 = vmatprep.subr.bf16.mxu0 0
      %311 = vmatpush1.bf16.msra.mxu0 0
      %312 = vmatprep.subr.bf16.mxu0 0
      %313 = vmatpush1.bf16.msra.mxu0 0
      %314 = vmatprep.subr.bf16.mxu0 0
      %315 = vmatpush1.bf16.msra.mxu0 0
      %316 = vmatprep.subr.bf16.mxu0 0
      %317 = vmatpush1.bf16.msra.mxu0 0
      %318 = vmatprep.subr.bf16.mxu0 0
      %319 = vmatpush1.bf16.msra.mxu0 0
      %320 = vmatprep.subr.bf16.mxu0 0
      %321 = vmatpush1.bf16.msra.mxu0 0
      %322 = vmatprep.subr.bf16.mxu0 0
      %323 = vmatpush1.bf16.msra.mxu0 0
      %324 = vmatprep.subr.bf16.mxu0 0
      %325 = vmatpush1.bf16.msra.mxu0 0
      %326 = vmatprep.subr.bf16.mxu0 0
      %327 = vmatpush1.bf16.msra.mxu0 0
      %328 = vmatprep.subr.bf16.mxu0 0
      %329 = vmatpush1.bf16.msra.mxu0 0
      %330 = vmatprep.subr.bf16.mxu0 0
      %331 = vmatpush1.bf16.msra.mxu0 0
      %332 = vmatprep.subr.bf16.mxu0 0
      %333 = vmatpush1.bf16.msra.mxu0 0
      %334 = vmatprep.subr.bf16.mxu0 0
      %335 = vmatpush1.bf16.msra.mxu0 0
      %336 = vmatprep.subr.bf16.mxu0 0
      %337 = vmatpush1.bf16.msra.mxu0 0
      %338 = vmatprep.mubr.bf16.mxu0 0
      %339 = vmatmul.mubr.bf16.gmra.mrb[0].mxu0 %v297
      %v340 = vpop.f32.mrb[0].mxu0
      %v341 = vadd.f32 0.0, %v340
      %v342 = vpop.f32.mrb[0].mxu0
      %v343 = vpop.f32.mrb[0].mxu0
      %v344 = vpop.f32.mrb[0].mxu0
      %345 = vdwg.mxu0
      %v347 = vunpack.c.l.b16 %v232
      %v348 = vpack.c.b16 %v347, %v347
      %349 = vrot.lane.b32.xlu0 %v348, 120
      %v350 = vpop.permute.xlu0 %349
      %v352 = vunpack.c.l.b16 %v233
      %v353 = vpack.c.b16 %v352, %v352
      %354 = vrot.lane.b32.xlu0 %v353, 120
      %v355 = vpop.permute.xlu0 %354
      %v357 = vsel %vm235, %v350, 0
      %v360 = vsel %vm235, %v355, 0
      %362 = vmatprep.subr.bf16.mxu0 0
      %363 = vmatpush1.bf16.xpose.msra.mxu0 %v360
      %364 = vmatprep.subr.bf16.mxu0 0
      %365 = vmatpush1.bf16.xpose.msra.mxu0 0
      %366 = vmatprep.subr.bf16.mxu0 0
      %367 = vmatpush1.bf16.xpose.msra.mxu0 0
      %368 = vmatprep.subr.bf16.mxu0 0
      %369 = vmatpush1.bf16.xpose.msra.mxu0 0
      %370 = vmatprep.subr.bf16.mxu0 0
      %371 = vmatpush1.bf16.xpose.msra.mxu0 0
      %372 = vmatprep.subr.bf16.mxu0 0
      %373 = vmatpush1.bf16.xpose.msra.mxu0 0
      %374 = vmatprep.subr.bf16.mxu0 0
      %375 = vmatpush1.bf16.xpose.msra.mxu0 0
      %376 = vmatprep.subr.bf16.mxu0 0
      %377 = vmatpush1.bf16.xpose.msra.mxu0 0
      %378 = vmatprep.subr.bf16.mxu0 0
      %379 = vmatpush1.bf16.xpose.msra.mxu0 0
      %380 = vmatprep.subr.bf16.mxu0 0
      %381 = vmatpush1.bf16.xpose.msra.mxu0 0
      %382 = vmatprep.subr.bf16.mxu0 0
      %383 = vmatpush1.bf16.xpose.msra.mxu0 0
      %384 = vmatprep.subr.bf16.mxu0 0
      %385 = vmatpush1.bf16.xpose.msra.mxu0 0
      %386 = vmatprep.subr.bf16.mxu0 0
      %387 = vmatpush1.bf16.xpose.msra.mxu0 0
      %388 = vmatprep.subr.bf16.mxu0 0
      %389 = vmatpush1.bf16.xpose.msra.mxu0 0
      %390 = vmatprep.subr.bf16.mxu0 0
      %391 = vmatpush1.bf16.xpose.msra.mxu0 0
      %392 = vmatprep.subr.bf16.mxu0 0
      %393 = vmatpush1.bf16.xpose.msra.mxu0 0
      %394 = vmatprep.mubr.bf16.mxu0 0
      %395 = vmatmul.mubr.bf16.gmra.mrb[0].mxu0 %v357
      %v396 = vpop.f32.mrb[0].mxu0
      %v397 = vadd.f32 0.0, %v396
      %v398 = vpop.f32.mrb[0].mxu0
      %v399 = vpop.f32.mrb[0].mxu0
      %v400 = vpop.f32.mrb[0].mxu0
      %401 = vdwg.mxu0
      %v402 = vmul.f32 %v397, 0.35355338
      %v403 = vsel %vm283, %v402, -inf
      %404 = vmax.xlane.f32.xlu0 %v403
      %v405 = vpop.xlane.xlu0 %404
      %v406 = vsub.f32 %v402, %v405
      %v407 = vmul.f32 %v406, 1.442695
      %v408 = vpow.pop %v407
      %v409 = vsel %vm283, %v408, 0.0
      %410 = vadd.xlane.f32.xlu0 %v409
      %v411 = vpop.xlane.xlu0 %410
      %v412 = vrcp.pop %v411
      %v413 = vmul.f32 %v408, %v412
      %v414 = vpack.c.bf16 %v413, %v413
      %v416 = vunpack.c.l.b16 %v234
      %v417 = vpack.c.b16 %v416, %v416
      %418 = vrot.lane.b32.xlu0 %v417, 120
      %v419 = vpop.permute.xlu0 %418
      %v421 = vsel %vm283, %v414, 0
      %v424 = vand.u32 %v419, %v302
      %426 = vmatprep.subr.bf16.mxu0 0
      %427 = vmatpush1.bf16.msra.mxu0 %v424
      %428 = vmatprep.subr.bf16.mxu0 0
      %429 = vmatpush1.bf16.msra.mxu0 0
      %430 = vmatprep.subr.bf16.mxu0 0
      %431 = vmatpush1.bf16.msra.mxu0 0
      %432 = vmatprep.subr.bf16.mxu0 0
      %433 = vmatpush1.bf16.msra.mxu0 0
      %434 = vmatprep.subr.bf16.mxu0 0
      %435 = vmatpush1.bf16.msra.mxu0 0
      %436 = vmatprep.subr.bf16.mxu0 0
      %437 = vmatpush1.bf16.msra.mxu0 0
      %438 = vmatprep.subr.bf16.mxu0 0
      %439 = vmatpush1.bf16.msra.mxu0 0
      %440 = vmatprep.subr.bf16.mxu0 0
      %441 = vmatpush1.bf16.msra.mxu0 0
      %442 = vmatprep.subr.bf16.mxu0 0
      %443 = vmatpush1.bf16.msra.mxu0 0
      %444 = vmatprep.subr.bf16.mxu0 0
      %445 = vmatpush1.bf16.msra.mxu0 0
      %446 = vmatprep.subr.bf16.mxu0 0
      %447 = vmatpush1.bf16.msra.mxu0 0
      %448 = vmatprep.subr.bf16.mxu0 0
      %449 = vmatpush1.bf16.msra.mxu0 0
      %450 = vmatprep.subr.bf16.mxu0 0
      %451 = vmatpush1.bf16.msra.mxu0 0
      %452 = vmatprep.subr.bf16.mxu0 0
      %453 = vmatpush1.bf16.msra.mxu0 0
      %454 = vmatprep.subr.bf16.mxu0 0
      %455 = vmatpush1.bf16.msra.mxu0 0
      %456 = vmatprep.subr.bf16.mxu0 0
      %457 = vmatpush1.bf16.msra.mxu0 0
      %458 = vmatprep.mubr.bf16.mxu0 0
      %459 = vmatmul.mubr.bf16.gmra.mrb[0].mxu0 %v421
      %v460 = vpop.f32.mrb[0].mxu0
      %v461 = vadd.f32 0.0, %v460
      %v462 = vpop.f32.mrb[0].mxu0
      %v463 = vpop.f32.mrb[0].mxu0
      %v464 = vpop.f32.mrb[0].mxu0
      %465 = vdwg.mxu0
      %466 = vrot.lane.b32.xlu0 %v348, 112
      %v467 = vpop.permute.xlu0 %466
      %468 = vrot.lane.b32.xlu0 %v353, 112
      %v469 = vpop.permute.xlu0 %468
      %v471 = vsel %vm235, %v467, 0
      %v474 = vsel %vm235, %v469, 0
      %476 = vmatprep.subr.bf16.mxu0 0
      %477 = vmatpush1.bf16.xpose.msra.mxu0 %v474
      %478 = vmatprep.subr.bf16.mxu0 0
      %479 = vmatpush1.bf16.xpose.msra.mxu0 0
      %480 = vmatprep.subr.bf16.mxu0 0
      %481 = vmatpush1.bf16.xpose.msra.mxu0 0
      %482 = vmatprep.subr.bf16.mxu0 0
      %483 = vmatpush1.bf16.xpose.msra.mxu0 0
      %484 = vmatprep.subr.bf16.mxu0 0
      %485 = vmatpush1.bf16.xpose.msra.mxu0 0
      %486 = vmatprep.subr.bf16.mxu0 0
      %487 = vmatpush1.bf16.xpose.msra.mxu0 0
      %488 = vmatprep.subr.bf16.mxu0 0
      %489 = vmatpush1.bf16.xpose.msra.mxu0 0
      %490 = vmatprep.subr.bf16.mxu0 0
      %491 = vmatpush1.bf16.xpose.msra.mxu0 0
      %492 = vmatprep.subr.bf16.mxu0 0
      %493 = vmatpush1.bf16.xpose.msra.mxu0 0
      %494 = vmatprep.subr.bf16.mxu0 0
      %495 = vmatpush1.bf16.xpose.msra.mxu0 0
      %496 = vmatprep.subr.bf16.mxu0 0
      %497 = vmatpush1.bf16.xpose.msra.mxu0 0
      %498 = vmatprep.subr.bf16.mxu0 0
      %499 = vmatpush1.bf16.xpose.msra.mxu0 0
      %500 = vmatprep.subr.bf16.mxu0 0
      %501 = vmatpush1.bf16.xpose.msra.mxu0 0
      %502 = vmatprep.subr.bf16.mxu0 0
      %503 = vmatpush1.bf16.xpose.msra.mxu0 0
      %504 = vmatprep.subr.bf16.mxu0 0
      %505 = vmatpush1.bf16.xpose.msra.mxu0 0
      %506 = vmatprep.subr.bf16.mxu0 0
      %507 = vmatpush1.bf16.xpose.msra.mxu0 0
      %508 = vmatprep.mubr.bf16.mxu0 0
      %509 = vmatmul.mubr.bf16.gmra.mrb[0].mxu0 %v471
      %v510 = vpop.f32.mrb[0].mxu0
      %v511 = vadd.f32 0.0, %v510
      %v512 = vpop.f32.mrb[0].mxu0
      %v513 = vpop.f32.mrb[0].mxu0
      %v514 = vpop.f32.mrb[0].mxu0
      %515 = vdwg.mxu0
      %v516 = vmul.f32 %v511, 0.35355338
      %v517 = vsel %vm283, %v516, -inf
      %518 = vmax.xlane.f32.xlu0 %v517
      %v519 = vpop.xlane.xlu0 %518
      %v520 = vsub.f32 %v516, %v519
      %v521 = vmul.f32 %v520, 1.442695
      %v522 = vpow.pop %v521
      %v523 = vsel %vm283, %v522, 0.0
      %524 = vadd.xlane.f32.xlu0 %v523
      %v525 = vpop.xlane.xlu0 %524
      %v526 = vrcp.pop %v525
      %v527 = vmul.f32 %v522, %v526
      %v528 = vpack.c.bf16 %v527, %v527
      %529 = vrot.lane.b32.xlu0 %v417, 112
      %v530 = vpop.permute.xlu0 %529
      %v532 = vsel %vm283, %v528, 0
      %v535 = vand.u32 %v530, %v302
      %537 = vmatprep.subr.bf16.mxu0 0
      %538 = vmatpush1.bf16.msra.mxu0 %v535
      %539 = vmatprep.subr.bf16.mxu0 0
      %540 = vmatpush1.bf16.msra.mxu0 0
      %541 = vmatprep.subr.bf16.mxu0 0
      %542 = vmatpush1.bf16.msra.mxu0 0
      %543 = vmatprep.subr.bf16.mxu0 0
      %544 = vmatpush1.bf16.msra.mxu0 0
      %545 = vmatprep.subr.bf16.mxu0 0
      %546 = vmatpush1.bf16.msra.mxu0 0
      %547 = vmatprep.subr.bf16.mxu0 0
      %548 = vmatpush1.bf16.msra.mxu0 0
      %549 = vmatprep.subr.bf16.mxu0 0
      %550 = vmatpush1.bf16.msra.mxu0 0
      %551 = vmatprep.subr.bf16.mxu0 0
      %552 = vmatpush1.bf16.msra.mxu0 0
      %553 = vmatprep.subr.bf16.mxu0 0
      %554 = vmatpush1.bf16.msra.mxu0 0
      %555 = vmatprep.subr.bf16.mxu0 0
      %556 = vmatpush1.bf16.msra.mxu0 0
      %557 = vmatprep.subr.bf16.mxu0 0
      %558 = vmatpush1.bf16.msra.mxu0 0
      %559 = vmatprep.subr.bf16.mxu0 0
      %560 = vmatpush1.bf16.msra.mxu0 0
      %561 = vmatprep.subr.bf16.mxu0 0
      %562 = vmatpush1.bf16.msra.mxu0 0
      %563 = vmatprep.subr.bf16.mxu0 0
      %564 = vmatpush1.bf16.msra.mxu0 0
      %565 = vmatprep.subr.bf16.mxu0 0
      %566 = vmatpush1.bf16.msra.mxu0 0
      %567 = vmatprep.subr.bf16.mxu0 0
      %568 = vmatpush1.bf16.msra.mxu0 0
      %569 = vmatprep.mubr.bf16.mxu0 0
      %570 = vmatmul.mubr.bf16.gmra.mrb[0].mxu0 %v532
      %v571 = vpop.f32.mrb[0].mxu0
      %v572 = vadd.f32 0.0, %v571
      %v573 = vpop.f32.mrb[0].mxu0
      %v574 = vpop.f32.mrb[0].mxu0
      %v575 = vpop.f32.mrb[0].mxu0
      %576 = vdwg.mxu0
      %577 = vrot.lane.b32.xlu0 %v348, 104
      %v578 = vpop.permute.xlu0 %577
      %579 = vrot.lane.b32.xlu0 %v353, 104
      %v580 = vpop.permute.xlu0 %579
      %v582 = vsel %vm235, %v578, 0
      %v585 = vsel %vm235, %v580, 0
      %587 = vmatprep.subr.bf16.mxu0 0
      %588 = vmatpush1.bf16.xpose.msra.mxu0 %v585
      %589 = vmatprep.subr.bf16.mxu0 0
      %590 = vmatpush1.bf16.xpose.msra.mxu0 0
      %591 = vmatprep.subr.bf16.mxu0 0
      %592 = vmatpush1.bf16.xpose.msra.mxu0 0
      %593 = vmatprep.subr.bf16.mxu0 0
      %594 = vmatpush1.bf16.xpose.msra.mxu0 0
      %595 = vmatprep.subr.bf16.mxu0 0
      %596 = vmatpush1.bf16.xpose.msra.mxu0 0
      %597 = vmatprep.subr.bf16.mxu0 0
      %598 = vmatpush1.bf16.xpose.msra.mxu0 0
      %599 = vmatprep.subr.bf16.mxu0 0
      %600 = vmatpush1.bf16.xpose.msra.mxu0 0
      %601 = vmatprep.subr.bf16.mxu0 0
      %602 = vmatpush1.bf16.xpose.msra.mxu0 0
      %603 = vmatprep.subr.bf16.mxu0 0
      %604 = vmatpush1.bf16.xpose.msra.mxu0 0
      %605 = vmatprep.subr.bf16.mxu0 0
      %606 = vmatpush1.bf16.xpose.msra.mxu0 0
      %607 = vmatprep.subr.bf16.mxu0 0
      %608 = vmatpush1.bf16.xpose.msra.mxu0 0
      %609 = vmatprep.subr.bf16.mxu0 0
      %610 = vmatpush1.bf16.xpose.msra.mxu0 0
      %611 = vmatprep.subr.bf16.mxu0 0
      %612 = vmatpush1.bf16.xpose.msra.mxu0 0
      %613 = vmatprep.subr.bf16.mxu0 0
      %614 = vmatpush1.bf16.xpose.msra.mxu0 0
      %615 = vmatprep.subr.bf16.mxu0 0
      %616 = vmatpush1.bf16.xpose.msra.mxu0 0
      %617 = vmatprep.subr.bf16.mxu0 0
      %618 = vmatpush1.bf16.xpose.msra.mxu0 0
      %619 = vmatprep.mubr.bf16.mxu0 0
      %620 = vmatmul.mubr.bf16.gmra.mrb[0].mxu0 %v582
      %v621 = vpop.f32.mrb[0].mxu0
      %v622 = vadd.f32 0.0, %v621
      %v623 = vpop.f32.mrb[0].mxu0
      %v624 = vpop.f32.mrb[0].mxu0
      %v625 = vpop.f32.mrb[0].mxu0
      %626 = vdwg.mxu0
      %v627 = vmul.f32 %v622, 0.35355338
      %v628 = vsel %vm283, %v627, -inf
      %629 = vmax.xlane.f32.xlu0 %v628
      %v630 = vpop.xlane.xlu0 %629
      %v631 = vsub.f32 %v627, %v630
      %v632 = vmul.f32 %v631, 1.442695
      %v633 = vpow.pop %v632
      %v634 = vsel %vm283, %v633, 0.0
      %635 = vadd.xlane.f32.xlu0 %v634
      %v636 = vpop.xlane.xlu0 %635
      %v637 = vrcp.pop %v636
      %v638 = vmul.f32 %v633, %v637
      %v639 = vpack.c.bf16 %v638, %v638
      %640 = vrot.lane.b32.xlu0 %v417, 104
      %v641 = vpop.permute.xlu0 %640
      %v643 = vsel %vm283, %v639, 0
      %v646 = vand.u32 %v641, %v302
      %648 = vmatprep.subr.bf16.mxu0 0
      %649 = vmatpush1.bf16.msra.mxu0 %v646
      %650 = vmatprep.subr.bf16.mxu0 0
      %651 = vmatpush1.bf16.msra.mxu0 0
      %652 = vmatprep.subr.bf16.mxu0 0
      %653 = vmatpush1.bf16.msra.mxu0 0
      %654 = vmatprep.subr.bf16.mxu0 0
      %655 = vmatpush1.bf16.msra.mxu0 0
      %656 = vmatprep.subr.bf16.mxu0 0
      %657 = vmatpush1.bf16.msra.mxu0 0
      %658 = vmatprep.subr.bf16.mxu0 0
      %659 = vmatpush1.bf16.msra.mxu0 0
      %660 = vmatprep.subr.bf16.mxu0 0
      %661 = vmatpush1.bf16.msra.mxu0 0
      %662 = vmatprep.subr.bf16.mxu0 0
      %663 = vmatpush1.bf16.msra.mxu0 0
      %664 = vmatprep.subr.bf16.mxu0 0
      %665 = vmatpush1.bf16.msra.mxu0 0
      %666 = vmatprep.subr.bf16.mxu0 0
      %667 = vmatpush1.bf16.msra.mxu0 0
      %668 = vmatprep.subr.bf16.mxu0 0
      %669 = vmatpush1.bf16.msra.mxu0 0
      %670 = vmatprep.subr.bf16.mxu0 0
      %671 = vmatpush1.bf16.msra.mxu0 0
      %672 = vmatprep.subr.bf16.mxu0 0
      %673 = vmatpush1.bf16.msra.mxu0 0
      %674 = vmatprep.subr.bf16.mxu0 0
      %675 = vmatpush1.bf16.msra.mxu0 0
      %676 = vmatprep.subr.bf16.mxu0 0
      %677 = vmatpush1.bf16.msra.mxu0 0
      %678 = vmatprep.subr.bf16.mxu0 0
      %679 = vmatpush1.bf16.msra.mxu0 0
      %680 = vmatprep.mubr.bf16.mxu0 0
      %681 = vmatmul.mubr.bf16.gmra.mrb[0].mxu0 %v643
      %v682 = vpop.f32.mrb[0].mxu0
      %v683 = vadd.f32 0.0, %v682
      %v684 = vpop.f32.mrb[0].mxu0
      %v685 = vpop.f32.mrb[0].mxu0
      %v686 = vpop.f32.mrb[0].mxu0
      %687 = vdwg.mxu0
      %688 = vrot.lane.b32.xlu0 %v348, 96
      %v689 = vpop.permute.xlu0 %688
      %690 = vrot.lane.b32.xlu0 %v353, 96
      %v691 = vpop.permute.xlu0 %690
      %v693 = vsel %vm235, %v689, 0
      %v696 = vsel %vm235, %v691, 0
      %698 = vmatprep.subr.bf16.mxu0 0
      %699 = vmatpush1.bf16.xpose.msra.mxu0 %v696
      %700 = vmatprep.subr.bf16.mxu0 0
      %701 = vmatpush1.bf16.xpose.msra.mxu0 0
      %702 = vmatprep.subr.bf16.mxu0 0
      %703 = vmatpush1.bf16.xpose.msra.mxu0 0
      %704 = vmatprep.subr.bf16.mxu0 0
      %705 = vmatpush1.bf16.xpose.msra.mxu0 0
      %706 = vmatprep.subr.bf16.mxu0 0
      %707 = vmatpush1.bf16.xpose.msra.mxu0 0
      %708 = vmatprep.subr.bf16.mxu0 0
      %709 = vmatpush1.bf16.xpose.msra.mxu0 0
      %710 = vmatprep.subr.bf16.mxu0 0
      %711 = vmatpush1.bf16.xpose.msra.mxu0 0
      %712 = vmatprep.subr.bf16.mxu0 0
      %713 = vmatpush1.bf16.xpose.msra.mxu0 0
      %714 = vmatprep.subr.bf16.mxu0 0
      %715 = vmatpush1.bf16.xpose.msra.mxu0 0
      %716 = vmatprep.subr.bf16.mxu0 0
      %717 = vmatpush1.bf16.xpose.msra.mxu0 0
      %718 = vmatprep.subr.bf16.mxu0 0
      %719 = vmatpush1.bf16.xpose.msra.mxu0 0
      %720 = vmatprep.subr.bf16.mxu0 0
      %721 = vmatpush1.bf16.xpose.msra.mxu0 0
      %722 = vmatprep.subr.bf16.mxu0 0
      %723 = vmatpush1.bf16.xpose.msra.mxu0 0
      %724 = vmatprep.subr.bf16.mxu0 0
      %725 = vmatpush1.bf16.xpose.msra.mxu0 0
      %726 = vmatprep.subr.bf16.mxu0 0
      %727 = vmatpush1.bf16.xpose.msra.mxu0 0
      %728 = vmatprep.subr.bf16.mxu0 0
      %729 = vmatpush1.bf16.xpose.msra.mxu0 0
      %730 = vmatprep.mubr.bf16.mxu0 0
      %731 = vmatmul.mubr.bf16.gmra.mrb[0].mxu0 %v693
      %v732 = vpop.f32.mrb[0].mxu0
      %v733 = vadd.f32 0.0, %v732
      %v734 = vpop.f32.mrb[0].mxu0
      %v735 = vpop.f32.mrb[0].mxu0
      %v736 = vpop.f32.mrb[0].mxu0
      %737 = vdwg.mxu0
      %v738 = vmul.f32 %v733, 0.35355338
      %v739 = vsel %vm283, %v738, -inf
      %740 = vmax.xlane.f32.xlu0 %v739
      %v741 = vpop.xlane.xlu0 %740
      %v742 = vsub.f32 %v738, %v741
      %v743 = vmul.f32 %v742, 1.442695
      %v744 = vpow.pop %v743
      %v745 = vsel %vm283, %v744, 0.0
      %746 = vadd.xlane.f32.xlu0 %v745
      %v747 = vpop.xlane.xlu0 %746
      %v748 = vrcp.pop %v747
      %v749 = vmul.f32 %v744, %v748
      %v750 = vpack.c.bf16 %v749, %v749
      %751 = vrot.lane.b32.xlu0 %v417, 96
      %v752 = vpop.permute.xlu0 %751
      %v754 = vsel %vm283, %v750, 0
      %v757 = vand.u32 %v752, %v302
      %759 = vmatprep.subr.bf16.mxu0 0
      %760 = vmatpush1.bf16.msra.mxu0 %v757
      %761 = vmatprep.subr.bf16.mxu0 0
      %762 = vmatpush1.bf16.msra.mxu0 0
      %763 = vmatprep.subr.bf16.mxu0 0
      %764 = vmatpush1.bf16.msra.mxu0 0
      %765 = vmatprep.subr.bf16.mxu0 0
      %766 = vmatpush1.bf16.msra.mxu0 0
      %767 = vmatprep.subr.bf16.mxu0 0
      %768 = vmatpush1.bf16.msra.mxu0 0
      %769 = vmatprep.subr.bf16.mxu0 0
      %770 = vmatpush1.bf16.msra.mxu0 0
      %771 = vmatprep.subr.bf16.mxu0 0
      %772 = vmatpush1.bf16.msra.mxu0 0
      %773 = vmatprep.subr.bf16.mxu0 0
      %774 = vmatpush1.bf16.msra.mxu0 0
      %775 = vmatprep.subr.bf16.mxu0 0
      %776 = vmatpush1.bf16.msra.mxu0 0
      %777 = vmatprep.subr.bf16.mxu0 0
      %778 = vmatpush1.bf16.msra.mxu0 0
      %779 = vmatprep.subr.bf16.mxu0 0
      %780 = vmatpush1.bf16.msra.mxu0 0
      %781 = vmatprep.subr.bf16.mxu0 0
      %782 = vmatpush1.bf16.msra.mxu0 0
      %783 = vmatprep.subr.bf16.mxu0 0
      %784 = vmatpush1.bf16.msra.mxu0 0
      %785 = vmatprep.subr.bf16.mxu0 0
      %786 = vmatpush1.bf16.msra.mxu0 0
      %787 = vmatprep.subr.bf16.mxu0 0
      %788 = vmatpush1.bf16.msra.mxu0 0
      %789 = vmatprep.subr.bf16.mxu0 0
      %790 = vmatpush1.bf16.msra.mxu0 0
      %791 = vmatprep.mubr.bf16.mxu0 0
      %792 = vmatmul.mubr.bf16.gmra.mrb[0].mxu0 %v754
      %v793 = vpop.f32.mrb[0].mxu0
      %v794 = vadd.f32 0.0, %v793
      %v795 = vpop.f32.mrb[0].mxu0
      %v796 = vpop.f32.mrb[0].mxu0
      %v797 = vpop.f32.mrb[0].mxu0
      %798 = vdwg.mxu0
      %799 = vrot.lane.b32.xlu0 %v348, 88
      %v800 = vpop.permute.xlu0 %799
      %801 = vrot.lane.b32.xlu0 %v353, 88
      %v802 = vpop.permute.xlu0 %801
      %v804 = vsel %vm235, %v800, 0
      %v807 = vsel %vm235, %v802, 0
      %809 = vmatprep.subr.bf16.mxu0 0
      %810 = vmatpush1.bf16.xpose.msra.mxu0 %v807
      %811 = vmatprep.subr.bf16.mxu0 0
      %812 = vmatpush1.bf16.xpose.msra.mxu0 0
      %813 = vmatprep.subr.bf16.mxu0 0
      %814 = vmatpush1.bf16.xpose.msra.mxu0 0
      %815 = vmatprep.subr.bf16.mxu0 0
      %816 = vmatpush1.bf16.xpose.msra.mxu0 0
      %817 = vmatprep.subr.bf16.mxu0 0
      %818 = vmatpush1.bf16.xpose.msra.mxu0 0
      %819 = vmatprep.subr.bf16.mxu0 0
      %820 = vmatpush1.bf16.xpose.msra.mxu0 0
      %821 = vmatprep.subr.bf16.mxu0 0
      %822 = vmatpush1.bf16.xpose.msra.mxu0 0
      %823 = vmatprep.subr.bf16.mxu0 0
      %824 = vmatpush1.bf16.xpose.msra.mxu0 0
      %825 = vmatprep.subr.bf16.mxu0 0
      %826 = vmatpush1.bf16.xpose.msra.mxu0 0
      %827 = vmatprep.subr.bf16.mxu0 0
      %828 = vmatpush1.bf16.xpose.msra.mxu0 0
      %829 = vmatprep.subr.bf16.mxu0 0
      %830 = vmatpush1.bf16.xpose.msra.mxu0 0
      %831 = vmatprep.subr.bf16.mxu0 0
      %832 = vmatpush1.bf16.xpose.msra.mxu0 0
      %833 = vmatprep.subr.bf16.mxu0 0
      %834 = vmatpush1.bf16.xpose.msra.mxu0 0
      %835 = vmatprep.subr.bf16.mxu0 0
      %836 = vmatpush1.bf16.xpose.msra.mxu0 0
      %837 = vmatprep.subr.bf16.mxu0 0
      %838 = vmatpush1.bf16.xpose.msra.mxu0 0
      %839 = vmatprep.subr.bf16.mxu0 0
      %840 = vmatpush1.bf16.xpose.msra.mxu0 0
      %841 = vmatprep.mubr.bf16.mxu0 0
      %842 = vmatmul.mubr.bf16.gmra.mrb[0].mxu0 %v804
      %v843 = vpop.f32.mrb[0].mxu0
      %v844 = vadd.f32 0.0, %v843
      %v845 = vpop.f32.mrb[0].mxu0
      %v846 = vpop.f32.mrb[0].mxu0
      %v847 = vpop.f32.mrb[0].mxu0
      %848 = vdwg.mxu0
      %v849 = vmul.f32 %v844, 0.35355338
      %v850 = vsel %vm283, %v849, -inf
      %851 = vmax.xlane.f32.xlu0 %v850
      %v852 = vpop.xlane.xlu0 %851
      %v853 = vsub.f32 %v849, %v852
      %v854 = vmul.f32 %v853, 1.442695
      %v855 = vpow.pop %v854
      %v856 = vsel %vm283, %v855, 0.0
      %857 = vadd.xlane.f32.xlu0 %v856
      %v858 = vpop.xlane.xlu0 %857
      %v859 = vrcp.pop %v858
      %v860 = vmul.f32 %v855, %v859
      %v861 = vpack.c.bf16 %v860, %v860
      %862 = vrot.lane.b32.xlu0 %v417, 88
      %v863 = vpop.permute.xlu0 %862
      %v865 = vsel %vm283, %v861, 0
      %v868 = vand.u32 %v863, %v302
      %870 = vmatprep.subr.bf16.mxu0 0
      %871 = vmatpush1.bf16.msra.mxu0 %v868
      %872 = vmatprep.subr.bf16.mxu0 0
      %873 = vmatpush1.bf16.msra.mxu0 0
      %874 = vmatprep.subr.bf16.mxu0 0
      %875 = vmatpush1.bf16.msra.mxu0 0
      %876 = vmatprep.subr.bf16.mxu0 0
      %877 = vmatpush1.bf16.msra.mxu0 0
      %878 = vmatprep.subr.bf16.mxu0 0
      %879 = vmatpush1.bf16.msra.mxu0 0
      %880 = vmatprep.subr.bf16.mxu0 0
      %881 = vmatpush1.bf16.msra.mxu0 0
      %882 = vmatprep.subr.bf16.mxu0 0
      %883 = vmatpush1.bf16.msra.mxu0 0
      %884 = vmatprep.subr.bf16.mxu0 0
      %885 = vmatpush1.bf16.msra.mxu0 0
      %886 = vmatprep.subr.bf16.mxu0 0
      %887 = vmatpush1.bf16.msra.mxu0 0
      %888 = vmatprep.subr.bf16.mxu0 0
      %889 = vmatpush1.bf16.msra.mxu0 0
      %890 = vmatprep.subr.bf16.mxu0 0
      %891 = vmatpush1.bf16.msra.mxu0 0
      %892 = vmatprep.subr.bf16.mxu0 0
      %893 = vmatpush1.bf16.msra.mxu0 0
      %894 = vmatprep.subr.bf16.mxu0 0
      %895 = vmatpush1.bf16.msra.mxu0 0
      %896 = vmatprep.subr.bf16.mxu0 0
      %897 = vmatpush1.bf16.msra.mxu0 0
      %898 = vmatprep.subr.bf16.mxu0 0
      %899 = vmatpush1.bf16.msra.mxu0 0
      %900 = vmatprep.subr.bf16.mxu0 0
      %901 = vmatpush1.bf16.msra.mxu0 0
      %902 = vmatprep.mubr.bf16.mxu0 0
      %903 = vmatmul.mubr.bf16.gmra.mrb[0].mxu0 %v865
      %v904 = vpop.f32.mrb[0].mxu0
      %v905 = vadd.f32 0.0, %v904
      %v906 = vpop.f32.mrb[0].mxu0
      %v907 = vpop.f32.mrb[0].mxu0
      %v908 = vpop.f32.mrb[0].mxu0
      %909 = vdwg.mxu0
      %911 = vrot.lane.b32.xlu0 %v461, 8
      %v912 = vpop.permute.xlu0 %911
      %915 = vrot.lane.b32.xlu0 %v572, 16
      %v916 = vpop.permute.xlu0 %915
      %919 = vrot.lane.b32.xlu0 %v683, 24
      %v920 = vpop.permute.xlu0 %919
      %923 = vrot.lane.b32.xlu0 %v794, 32
      %v924 = vpop.permute.xlu0 %923
      %927 = vrot.lane.b32.xlu0 %v905, 40
      %v928 = vpop.permute.xlu0 %927
      %v930 = vsel %vm235, %v341, %v912
      %vm931 = vcmask 130048
      %v932 = vsel %vm931, %v930, %v916
      %vm933 = vcmask 195584
      %v934 = vsel %vm933, %v932, %v920
      %vm935 = vcmask 261120
      %v936 = vsel %vm935, %v934, %v924
      %vm937 = vcmask 326656
      %v938 = vsel %vm937, %v936, %v928
      %v939 = vpack.c.bf16 %v938, %v938
      %vm940 = vcmask 388096
      %941 = vst.msk [vmem:[%s230] sm:$0xf] %vm940, %v939
      %p942 = scmp.lt.s32.totalorder %s18, 1
      %s943 = scalar_select %p942, %s18, 1
      %p944 = scmp.lt.s32.totalorder %s19, 0
      %s945 = scalar_select %p944, %s19, 0
      %s946 = sadd.s32 %s945, %s943
      %s947 = smul.addr %s946, 4
      %s948 = scalar_lea.vmem %s3, %s947
      // Predicated region
      $region33: #{forward.47} parent=31 // pred_check
        %p949 = pneg %p126
      $region34: #{forward.47} parent=31 // pred_check_branch
        %951 = sbr.rel (%p949) target = $region36
      $region35: #{forward.47} parent=31 // pred_region
        _
      $region36: #{forward.47} parent=31 // pred_fallthru
        _
    $region32: #{forward.47} parent=5 // pred_fallthru
      _
    %p952 = scmp.le.s32.totalorder 2, %s9
    // Predicated region
    $region37: #{forward.47} parent=5 // pred_check
      %p953 = pneg %p952
    $region38: #{forward.47} parent=5 // pred_check_branch
      %955 = sbr.rel (%p953) target = $region40
    $region39: #{forward.47} parent=5 // pred_region
      %s956 = ssub.s32 %s9, 2
      // Predicated region
      $region41: #{forward.47} parent=39 // pred_check
        %p957 = pneg %p132
      $region42: #{forward.47} parent=39 // pred_check_branch
        %959 = sbr.rel (%p957) target = $region44
      $region43: #{forward.47} parent=39 // pred_region
        %p960 = scmp.lt.s32.totalorder %s20, 1
        %s961 = scalar_select %p960, %s20, 1
        %p962 = scmp.lt.s32.totalorder %s21, 0
        %s963 = scalar_select %p962, %s21, 0
        %s964 = sadd.s32 %s963, %s961
        %s965 = smul.addr %s964, 4
        %s966 = scalar_lea.vmem %s3, %s965
      $region44: #{forward.47} parent=39 // pred_fallthru
        _
    $region40: #{forward.47} parent=5 // pred_fallthru
      _
  $region6: #{forward.47} parent=0 // loop_footer
    %s13 = sadd.s32 1, %s9
  $region7: #{forward.47} parent=0 // loop_footer_branch
    %8 = sbr.rel target = $region3
  $region8: #{forward.47} parent=0 // loop_exit
    _

// kernel: forward.49
$region0: #{forward.49}
  #allocation0 [shape = 'u32[]', space=smem, size = 0x4, offset = 0x4, fixed_abs, tag = 'smem constant byte address 0x4 - core index']
  #allocation1 [shape = 'u32[144,128]{1,0:T(1,128)}', space=vmem, size = 0x12000, scoped, tag = 'internal scratch']
  %s0 = inlined_call_operand.vmem [shape: f32[16,48], index: 0, kind: input, shape index: {}]
  %s1 = inlined_call_operand.vmem [shape: f32[1,48], index: 1, kind: input, shape index: {}]
  %s2 = inlined_call_operand.vmem [shape: f32[1,48], index: 2, kind: input, shape index: {}]
  %s3 = inlined_call_operand.vmem [shape: bf16[48,192], index: 3, kind: input, shape index: {}]
  %s4 = inlined_call_operand.vmem [shape: f32[1,192], index: 4, kind: input, shape index: {}]
  %s5 = inlined_call_operand.vmem [shape: bf16[16,192], index: 5, kind: output, shape index: {}]
  %s6 = sld [smem:[#allocation0]]
  $region30: #{forward.49} parent=0
    _
  %s8 = ssub.s32 1, %s6
  %s9 = scalar_select 0, %s8, %s6
  // Predicated region
  $region2: #{forward.49} parent=0 // pred_check
    _
  $region3: #{forward.49} parent=0 // pred_check_branch
    %11 = sbr.rel (0) target = $region5
  $region4: #{forward.49} parent=0 // pred_region
    _
  $region5: #{forward.49} parent=0 // pred_fallthru
    _
  // Predicated region
  $region6: #{forward.49} parent=0 // pred_check
    _
  $region7: #{forward.49} parent=0 // pred_check_branch
    %13 = sbr.rel (0) target = $region9
  $region8: #{forward.49} parent=0 // pred_region
    _
  $region9: #{forward.49} parent=0 // pred_fallthru
    _
  // Predicated region
  $region10: #{forward.49} parent=0 // pred_check
    _
  $region11: #{forward.49} parent=0 // pred_check_branch
    %15 = sbr.rel (0) target = $region13
  $region12: #{forward.49} parent=0 // pred_region
    _
  $region13: #{forward.49} parent=0 // pred_fallthru
    _
  // Predicated region
  $region14: #{forward.49} parent=0 // pred_check
    _
  $region15: #{forward.49} parent=0 // pred_check_branch
    %17 = sbr.rel (0) target = $region17
  $region16: #{forward.49} parent=0 // pred_region
    _
  $region17: #{forward.49} parent=0 // pred_fallthru
    _
  // Predicated region
  $region18: #{forward.49} parent=0 // pred_check
    _
  $region19: #{forward.49} parent=0 // pred_check_branch
    %19 = sbr.rel (0) target = $region21
  $region20: #{forward.49} parent=0 // pred_region
    _
  $region21: #{forward.49} parent=0 // pred_fallthru
    _
  %v21 = vld [vmem:[%s0] sm:$0xff]
  %v22 = vld [vmem:[%s0 + $0x8] sm:$0xff]
  %vm23 = vcmask 392192
  %v24 = vsel %vm23, %v21, 0.0
  %25 = vadd.xlane.f32.xlu0 %v24
  %v26 = vpop.xlane.xlu0 %25
  %v27 = vsel %vm23, %v22, 0.0
  %28 = vadd.xlane.f32.xlu0 %v27
  %v29 = vpop.xlane.xlu0 %28
  %v30 = vrcp.pop 48.0
  %v31 = vmul.f32 %v26, %v30
  %v32 = vmul.f32 %v29, %v30
  %v33 = vsub.f32 %v21, %v31
  %v34 = vsub.f32 %v22, %v32
  %v35 = vmul.f32 %v33, %v33
  %v36 = vmul.f32 %v34, %v34
  %v37 = vsel %vm23, %v35, 0.0
  %38 = vadd.xlane.f32.xlu0 %v37
  %v39 = vpop.xlane.xlu0 %38
  %v40 = vsel %vm23, %v36, 0.0
  %41 = vadd.xlane.f32.xlu0 %v40
  %v42 = vpop.xlane.xlu0 %41
  %v43 = vmul.f32 %v39, %v30
  %v44 = vmul.f32 %v42, %v30
  %v45 = vadd.f32 %v43, 1e-05
  %v46 = vadd.f32 %v44, 1e-05
  %v47 = vrsqrt.pop %v45
  %v48 = vrsqrt.pop %v46
  %v49 = vmul.f32 %v33, %v47
  %v50 = vmul.f32 %v34, %v48
  %v51 = vld [vmem:[%s1] sm:$0x1]
  %v53 = vlaneseq
  %v54 = vshrl.u32 %v53, 7
  %v55 = vsub.s32 0, %v54
  %v56 = vrot.slane %v51, %v55
  %v58 = vmul.f32 %v49, %v56
  %v59 = vmul.f32 %v50, %v56
  %v60 = vld [vmem:[%s2] sm:$0x1]
  %v62 = vlaneseq
  %v63 = vshrl.u32 %v62, 7
  %v64 = vsub.s32 0, %v63
  %v65 = vrot.slane %v60, %v64
  %v67 = vadd.f32 %v58, %v65
  %v68 = vadd.f32 %v59, %v65
  %v69 = vpack.c.bf16 %v68, %v67
  %v70 = vld [vmem:[%s3] sm:$0xff]
  %v71 = vld [vmem:[%s3 + $0x8] sm:$0xff]
  %v72 = vld [vmem:[%s3 + $0x10] sm:$0xff]
  %v73 = vld [vmem:[%s3 + $0x18] sm:$0xff]
  %v74 = vld [vmem:[%s3 + $0x20] sm:$0xff]
  %v75 = vld [vmem:[%s3 + $0x28] sm:$0xff]
  %v76 = vld [vmem:[%s4] sm:$0x3]
  %v78 = vlaneseq
  %v79 = vshrl.u32 %v78, 7
  %v80 = vsub.s32 0, %v79
  %v81 = vrot.slane %v76, %v80
  %v82 = vlaneseq
  %v83 = vshrl.u32 %v82, 7
  %v84 = vsub.s32 1, %v83
  %v85 = vrot.slane %v76, %v84
  %v94 = vunpack.c.l.b16 %v70
  %v95 = vunpack.c.h.b16 %v70
  %v96 = vunpack.c.l.b16 %v71
  %v97 = vunpack.c.h.b16 %v71
  %v98 = vunpack.c.l.b16 %v72
  %v99 = vunpack.c.h.b16 %v72
  %v100 = vunpack.c.l.b16 %v73
  %v101 = vunpack.c.h.b16 %v73
  %v102 = vunpack.c.l.b16 %v74
  %v103 = vunpack.c.h.b16 %v74
  %v104 = vunpack.c.l.b16 %v75
  %v105 = vunpack.c.h.b16 %v75
  %v106 = vpack.c.b16 %v96, %v94
  %v107 = vpack.c.b16 %v97, %v95
  %v108 = vpack.c.b16 %v100, %v98
  %v109 = vpack.c.b16 %v101, %v99
  %v110 = vpack.c.b16 %v104, %v102
  %v111 = vpack.c.b16 %v105, %v103
  %v119 = vsel %vm23, %v69, 0
  %121 = vmatprep.subr.bf16.mxu0 %v107
  %122 = vmatpush1.bf16.msra.mxu0 %v106
  %123 = vmatprep.subr.bf16.mxu0 %v109
  %124 = vmatpush1.bf16.msra.mxu0 %v108
  %125 = vmatprep.subr.bf16.mxu0 %v111
  %126 = vmatpush1.bf16.msra.mxu0 %v110
  %127 = vmatprep.subr.bf16.mxu0 0
  %128 = vmatpush1.bf16.msra.mxu0 0
  %129 = vmatprep.subr.bf16.mxu0 0
  %130 = vmatpush1.bf16.msra.mxu0 0
  %131 = vmatprep.subr.bf16.mxu0 0
  %132 = vmatpush1.bf16.msra.mxu0 0
  %133 = vmatprep.subr.bf16.mxu0 0
  %134 = vmatpush1.bf16.msra.mxu0 0
  %135 = vmatprep.subr.bf16.mxu0 0
  %136 = vmatpush1.bf16.msra.mxu0 0
  %137 = vmatprep.subr.bf16.mxu0 0
  %138 = vmatpush1.bf16.msra.mxu0 0
  %139 = vmatprep.subr.bf16.mxu0 0
  %140 = vmatpush1.bf16.msra.mxu0 0
  %141 = vmatprep.subr.bf16.mxu0 0
  %142 = vmatpush1.bf16.msra.mxu0 0
  %143 = vmatprep.subr.bf16.mxu0 0
  %144 = vmatpush1.bf16.msra.mxu0 0
  %145 = vmatprep.subr.bf16.mxu0 0
  %146 = vmatpush1.bf16.msra.mxu0 0
  %147 = vmatprep.subr.bf16.mxu0 0
  %148 = vmatpush1.bf16.msra.mxu0 0
  %149 = vmatprep.subr.bf16.mxu0 0
  %150 = vmatpush1.bf16.msra.mxu0 0
  %151 = vmatprep.subr.bf16.mxu0 0
  %152 = vmatpush1.bf16.msra.mxu0 0
  %153 = vmatprep.mubr.bf16.mxu0 0
  %154 = vmatmul.mubr.bf16.gmra.mrb[0].mxu0 %v119
  %v155 = vpop.f32.mrb[0].mxu0
  %v156 = vadd.f32 %v81, %v155
  %v157 = vpop.f32.mrb[0].mxu0
  %v158 = vadd.f32 %v85, %v157
  %v159 = vpop.f32.mrb[0].mxu0
  %v160 = vadd.f32 %v81, %v159
  %v161 = vpop.f32.mrb[0].mxu0
  %v162 = vadd.f32 %v85, %v161
  %163 = vdwg.mxu0
  %v164 = vmul.f32 %v156, 0.5
  %v165 = vmul.f32 %v158, 0.5
  %v166 = vmul.f32 %v160, 0.5
  %v167 = vmul.f32 %v162, 0.5
  %v168 = vmul.f32 %v156, 0.70710677
  %v169 = vmul.f32 %v158, 0.70710677
  %v170 = vmul.f32 %v160, 0.70710677
  %v171 = vmul.f32 %v162, 0.70710677
  %v172 = verf.f32.pop %v168
  %v173 = verf.f32.pop %v169
  %v174 = verf.f32.pop %v170
  %v175 = verf.f32.pop %v171
  %v176 = vadd.f32 %v172, 1.0
  %v177 = vadd.f32 %v173, 1.0
  %v178 = vadd.f32 %v174, 1.0
  %v179 = vadd.f32 %v175, 1.0
  %v180 = vmul.f32 %v164, %v176
  %v181 = vmul.f32 %v165, %v177
  %v182 = vmul.f32 %v166, %v178
  %v183 = vmul.f32 %v167, %v179
  %v184 = vpack.c.bf16 %v182, %v180
  %v185 = vpack.c.bf16 %v183, %v181
  %v188 = vunpack.c.l.b16 %v184
  %v189 = vunpack.c.l.b16 %v185
  %v190 = vunpack.c.h.b16 %v184
  %v191 = vunpack.c.h.b16 %v185
  %v192 = vpack.c.b16 %v189, %v188
  %v193 = vpack.c.b16 %v191, %v190
  %vm196 = vcmask 1043456
  %vm197 = vcmask 523268
  %vm198 = vmor %vm197, %vm196
  %199 = vst.msk [vmem:[%s5] sm:$0xff] %vm198, %v192
  %200 = vst.msk [vmem:[%s5 + $0x8] sm:$0xff] %vm198, %v193
  // Predicated region
  $region22: #{forward.49} parent=0 // pred_check
    _
  $region23: #{forward.49} parent=0 // pred_check_branch
    %202 = sbr.rel (0) target = $region25
  $region24: #{forward.49} parent=0 // pred_region
    _
  $region25: #{forward.49} parent=0 // pred_fallthru
    _
  // Predicated region
  $region26: #{forward.49} parent=0 // pred_check
    _
  $region27: #{forward.49} parent=0 // pred_check_branch
    %204 = sbr.rel (0) target = $region29
  $region28: #{forward.49} parent=0 // pred_region
    _
  $region29: #{forward.49} parent=0 // pred_fallthru
    _

// kernel: forward.50
$region0: #{forward.50}
  #allocation0 [shape = 'u32[]', space=smem, size = 0x4, offset = 0x4, fixed_abs, tag = 'smem constant byte address 0x4 - core index']
  #allocation1 [shape = 'u32[144,128]{1,0:T(1,128)}', space=vmem, size = 0x12000, scoped, tag = 'internal scratch']
  %s0 = inlined_call_operand.vmem [shape: bf16[16,192], index: 0, kind: input, shape index: {}]
  %s1 = inlined_call_operand.vmem [shape: bf16[192,48], index: 1, kind: input, shape index: {}]
  %s2 = inlined_call_operand.vmem [shape: f32[1,48], index: 2, kind: input, shape index: {}]
  %s3 = inlined_call_operand.vmem [shape: f32[16,48], index: 3, kind: input, shape index: {}]
  %s4 = inlined_call_operand.vmem [shape: f32[16,48], index: 4, kind: output, shape index: {}]
  %s5 = sld [smem:[#allocation0]]
  $region26: #{forward.50} parent=0
    _
  %s7 = ssub.s32 1, %s5
  %s8 = scalar_select 0, %s7, %s5
  // Predicated region
  $region2: #{forward.50} parent=0 // pred_check
    _
  $region3: #{forward.50} parent=0 // pred_check_branch
    %10 = sbr.rel (0) target = $region5
  $region4: #{forward.50} parent=0 // pred_region
    _
  $region5: #{forward.50} parent=0 // pred_fallthru
    _
  // Predicated region
  $region6: #{forward.50} parent=0 // pred_check
    _
  $region7: #{forward.50} parent=0 // pred_check_branch
    %12 = sbr.rel (0) target = $region9
  $region8: #{forward.50} parent=0 // pred_region
    _
  $region9: #{forward.50} parent=0 // pred_fallthru
    _
  // Predicated region
  $region10: #{forward.50} parent=0 // pred_check
    _
  $region11: #{forward.50} parent=0 // pred_check_branch
    %14 = sbr.rel (0) target = $region13
  $region12: #{forward.50} parent=0 // pred_region
    _
  $region13: #{forward.50} parent=0 // pred_fallthru
    _
  // Predicated region
  $region14: #{forward.50} parent=0 // pred_check
    _
  $region15: #{forward.50} parent=0 // pred_check_branch
    %16 = sbr.rel (0) target = $region17
  $region16: #{forward.50} parent=0 // pred_region
    _
  $region17: #{forward.50} parent=0 // pred_fallthru
    _
  %v18 = vld [vmem:[%s0] sm:$0xff]
  %v19 = vld [vmem:[%s0 + $0x8] sm:$0xff]
  %v20 = vld [vmem:[%s1] sm:$0xf]
  %v21 = vld [vmem:[%s1 + $0x4] sm:$0xf]
  %v22 = vld [vmem:[%s1 + $0x8] sm:$0xf]
  %v23 = vld [vmem:[%s1 + $0xc] sm:$0xf]
  %v24 = vld [vmem:[%s1 + $0x10] sm:$0xf]
  %v25 = vld [vmem:[%s1 + $0x14] sm:$0xf]
  %v26 = vld [vmem:[%s1 + $0x18] sm:$0xf]
  %v27 = vld [vmem:[%s1 + $0x1c] sm:$0xf]
  %v28 = vld [vmem:[%s1 + $0x20] sm:$0xf]
  %v29 = vld [vmem:[%s1 + $0x24] sm:$0xf]
  %v30 = vld [vmem:[%s1 + $0x28] sm:$0xf]
  %v31 = vld [vmem:[%s1 + $0x2c] sm:$0xf]
  %v32 = vld [vmem:[%s1 + $0x30] sm:$0xf]
  %v33 = vld [vmem:[%s1 + $0x34] sm:$0xf]
  %v34 = vld [vmem:[%s1 + $0x38] sm:$0xf]
  %v35 = vld [vmem:[%s1 + $0x3c] sm:$0xf]
  %v36 = vld [vmem:[%s1 + $0x40] sm:$0xf]
  %v37 = vld [vmem:[%s1 + $0x44] sm:$0xf]
  %v38 = vld [vmem:[%s1 + $0x48] sm:$0xf]
  %v39 = vld [vmem:[%s1 + $0x4c] sm:$0xf]
  %v40 = vld [vmem:[%s1 + $0x50] sm:$0xf]
  %v41 = vld [vmem:[%s1 + $0x54] sm:$0xf]
  %v42 = vld [vmem:[%s1 + $0x58] sm:$0xf]
  %v43 = vld [vmem:[%s1 + $0x5c] sm:$0xf]
  %v44 = vld [vmem:[%s2] sm:$0x1]
  %v46 = vlaneseq
  %v47 = vshrl.u32 %v46, 7
  %v48 = vsub.s32 0, %v47
  %v49 = vrot.slane %v44, %v48
  %v53 = vunpack.c.l.b16 %v18
  %v54 = vunpack.c.h.b16 %v18
  %v55 = vunpack.c.l.b16 %v19
  %v56 = vunpack.c.h.b16 %v19
  %v57 = vpack.c.b16 %v55, %v53
  %v58 = vpack.c.b16 %v56, %v54
  %v84 = vunpack.c.l.b16 %v20
  %v85 = vunpack.c.l.b16 %v21
  %v86 = vunpack.c.l.b16 %v22
  %v87 = vunpack.c.l.b16 %v23
  %v88 = vunpack.c.l.b16 %v24
  %v89 = vunpack.c.l.b16 %v25
  %v90 = vunpack.c.l.b16 %v26
  %v91 = vunpack.c.l.b16 %v27
  %v92 = vunpack.c.l.b16 %v28
  %v93 = vunpack.c.l.b16 %v29
  %v94 = vunpack.c.l.b16 %v30
  %v95 = vunpack.c.l.b16 %v31
  %v96 = vunpack.c.l.b16 %v32
  %v97 = vunpack.c.l.b16 %v33
  %v98 = vunpack.c.l.b16 %v34
  %v99 = vunpack.c.l.b16 %v35
  %v100 = vunpack.c.l.b16 %v36
  %v101 = vunpack.c.l.b16 %v37
  %v102 = vunpack.c.l.b16 %v38
  %v103 = vunpack.c.l.b16 %v39
  %v104 = vunpack.c.l.b16 %v40
  %v105 = vunpack.c.l.b16 %v41
  %v106 = vunpack.c.l.b16 %v42
  %v107 = vunpack.c.l.b16 %v43
  %v108 = vpack.c.b16 %v85, %v84
  %v109 = vpack.c.b16 %v87, %v86
  %v110 = vpack.c.b16 %v89, %v88
  %v111 = vpack.c.b16 %v91, %v90
  %v112 = vpack.c.b16 %v93, %v92
  %v113 = vpack.c.b16 %v95, %v94
  %v114 = vpack.c.b16 %v97, %v96
  %v115 = vpack.c.b16 %v99, %v98
  %v116 = vpack.c.b16 %v101, %v100
  %v117 = vpack.c.b16 %v103, %v102
  %v118 = vpack.c.b16 %v105, %v104
  %v119 = vpack.c.b16 %v107, %v106
  %vm132 = vcmask 523264
  %v134 = vsel %vm132, %v58, 0
  %136 = vmatprep.subr.bf16.mxu0 0
  %137 = vmatpush1.bf16.msra.mxu0 %v108
  %138 = vmatprep.subr.bf16.mxu0 0
  %139 = vmatpush1.bf16.msra.mxu0 %v109
  %140 = vmatprep.subr.bf16.mxu0 0
  %141 = vmatpush1.bf16.msra.mxu0 %v110
  %142 = vmatprep.subr.bf16.mxu0 0
  %143 = vmatpush1.bf16.msra.mxu0 %v111
  %144 = vmatprep.subr.bf16.mxu0 0
  %145 = vmatpush1.bf16.msra.mxu0 %v112
  %146 = vmatprep.subr.bf16.mxu0 0
  %147 = vmatpush1.bf16.msra.mxu0 %v113
  %148 = vmatprep.subr.bf16.mxu0 0
  %149 = vmatpush1.bf16.msra.mxu0 %v114
  %150 = vmatprep.subr.bf16.mxu0 0
  %151 = vmatpush1.bf16.msra.mxu0 %v115
  %152 = vmatprep.subr.bf16.mxu0 0
  %153 = vmatpush1.bf16.msra.mxu0 %v116
  %154 = vmatprep.subr.bf16.mxu0 0
  %155 = vmatpush1.bf16.msra.mxu0 %v117
  %156 = vmatprep.subr.bf16.mxu0 0
  %157 = vmatpush1.bf16.msra.mxu0 %v118
  %158 = vmatprep.subr.bf16.mxu0 0
  %159 = vmatpush1.bf16.msra.mxu0 %v119
  %160 = vmatprep.subr.bf16.mxu0 0
  %161 = vmatpush1.bf16.msra.mxu0 0
  %162 = vmatprep.subr.bf16.mxu0 0
  %163 = vmatpush1.bf16.msra.mxu0 0
  %164 = vmatprep.subr.bf16.mxu0 0
  %165 = vmatpush1.bf16.msra.mxu0 0
  %166 = vmatprep.subr.bf16.mxu0 0
  %167 = vmatpush1.bf16.msra.mxu0 0
  %168 = vmatprep.mubr.bf16.mxu0 %v134
  %169 = vmatmul.mubr.bf16.gmra.mrb[0].mxu0 %v57
  %v170 = vpop.f32.mrb[0].mxu0
  %v171 = vadd.f32 %v49, %v170
  %v172 = vpop.f32.mrb[0].mxu0
  %v173 = vpop.f32.mrb[0].mxu0
  %v174 = vadd.f32 %v49, %v173
  %v175 = vpop.f32.mrb[0].mxu0
  %176 = vdwg.mxu0
  %v177 = vld [vmem:[%s3] sm:$0xff]
  %v178 = vld [vmem:[%s3 + $0x8] sm:$0xff]
  %v179 = vadd.f32 %v171, %v177
  %v180 = vadd.f32 %v174, %v178
  %vm181 = vcmask 392192
  %182 = vst.msk [vmem:[%s4] sm:$0xff] %vm181, %v179
  %183 = vst.msk [vmem:[%s4 + $0x8] sm:$0xff] %vm181, %v180
  // Predicated region
  $region18: #{forward.50} parent=0 // pred_check
    _
  $region19: #{forward.50} parent=0 // pred_check_branch
    %185 = sbr.rel (0) target = $region21
  $region20: #{forward.50} parent=0 // pred_region
    _
  $region21: #{forward.50} parent=0 // pred_fallthru
    _
  // Predicated region
  $region22: #{forward.50} parent=0 // pred_check
    _
  $region23: #{forward.50} parent=0 // pred_check_branch
    %187 = sbr.rel (0) target = $region25
  $region24: #{forward.50} parent=0 // pred_region
    _
  $region25: #{forward.50} parent=0 // pred_fallthru
    _

// kernel: forward.57
$region0: #{forward.57}
  #allocation0 [shape = 'u32[]', space=smem, size = 0x4, offset = 0x4, fixed_abs, tag = 'smem constant byte address 0x4 - core index']
  #allocation1 [shape = 'u32[144,128]{1,0:T(1,128)}', space=vmem, size = 0x12000, scoped, tag = 'internal scratch']
  %s0 = inlined_call_operand.vmem [shape: f32[8,48], index: 0, kind: input, shape index: {}]
  %s1 = inlined_call_operand.vmem [shape: f32[1,48], index: 1, kind: input, shape index: {}]
  %s2 = inlined_call_operand.vmem [shape: f32[1,48], index: 2, kind: input, shape index: {}]
  %s3 = inlined_call_operand.vmem [shape: bf16[48,10], index: 3, kind: input, shape index: {}]
  %s4 = inlined_call_operand.vmem [shape: f32[1,10], index: 4, kind: input, shape index: {}]
  %s5 = inlined_call_operand.vmem [shape: f32[8,10], index: 5, kind: output, shape index: {}]
  %s6 = sld [smem:[#allocation0]]
  $region30: #{forward.57} parent=0
    _
  %s8 = ssub.s32 1, %s6
  %s9 = scalar_select 0, %s8, %s6
  // Predicated region
  $region2: #{forward.57} parent=0 // pred_check
    _
  $region3: #{forward.57} parent=0 // pred_check_branch
    %11 = sbr.rel (0) target = $region5
  $region4: #{forward.57} parent=0 // pred_region
    _
  $region5: #{forward.57} parent=0 // pred_fallthru
    _
  // Predicated region
  $region6: #{forward.57} parent=0 // pred_check
    _
  $region7: #{forward.57} parent=0 // pred_check_branch
    %13 = sbr.rel (0) target = $region9
  $region8: #{forward.57} parent=0 // pred_region
    _
  $region9: #{forward.57} parent=0 // pred_fallthru
    _
  // Predicated region
  $region10: #{forward.57} parent=0 // pred_check
    _
  $region11: #{forward.57} parent=0 // pred_check_branch
    %15 = sbr.rel (0) target = $region13
  $region12: #{forward.57} parent=0 // pred_region
    _
  $region13: #{forward.57} parent=0 // pred_fallthru
    _
  // Predicated region
  $region14: #{forward.57} parent=0 // pred_check
    _
  $region15: #{forward.57} parent=0 // pred_check_branch
    %17 = sbr.rel (0) target = $region17
  $region16: #{forward.57} parent=0 // pred_region
    _
  $region17: #{forward.57} parent=0 // pred_fallthru
    _
  // Predicated region
  $region18: #{forward.57} parent=0 // pred_check
    _
  $region19: #{forward.57} parent=0 // pred_check_branch
    %19 = sbr.rel (0) target = $region21
  $region20: #{forward.57} parent=0 // pred_region
    _
  $region21: #{forward.57} parent=0 // pred_fallthru
    _
  %v21 = vld [vmem:[%s0] sm:$0xff]
  %vm22 = vcmask 392192
  %v23 = vsel %vm22, %v21, 0.0
  %24 = vadd.xlane.f32.xlu0 %v23
  %v25 = vpop.xlane.xlu0 %24
  %v26 = vrcp.pop 48.0
  %v27 = vmul.f32 %v25, %v26
  %v28 = vsub.f32 %v21, %v27
  %v29 = vmul.f32 %v28, %v28
  %v30 = vsel %vm22, %v29, 0.0
  %31 = vadd.xlane.f32.xlu0 %v30
  %v32 = vpop.xlane.xlu0 %31
  %v33 = vmul.f32 %v32, %v26
  %v34 = vadd.f32 %v33, 1e-05
  %v35 = vrsqrt.pop %v34
  %v36 = vmul.f32 %v28, %v35
  %v37 = vld [vmem:[%s1] sm:$0x1]
  %v39 = vlaneseq
  %v40 = vshrl.u32 %v39, 7
  %v41 = vsub.s32 0, %v40
  %v42 = vrot.slane %v37, %v41
  %v44 = vmul.f32 %v36, %v42
  %v45 = vld [vmem:[%s2] sm:$0x1]
  %v47 = vlaneseq
  %v48 = vshrl.u32 %v47, 7
  %v49 = vsub.s32 0, %v48
  %v50 = vrot.slane %v45, %v49
  %v52 = vadd.f32 %v44, %v50
  %v53 = vpack.c.bf16 %v52, %v52
  %v54 = vld [vmem:[%s3] sm:$0xf]
  %v55 = vld [vmem:[%s3 + $0x4] sm:$0xf]
  %v56 = vld [vmem:[%s3 + $0x8] sm:$0xf]
  %v57 = vld [vmem:[%s3 + $0xc] sm:$0xf]
  %v58 = vld [vmem:[%s3 + $0x10] sm:$0xf]
  %v59 = vld [vmem:[%s3 + $0x14] sm:$0xf]
  %v60 = vld [vmem:[%s4] sm:$0x1]
  %v62 = vlaneseq
  %v63 = vshrl.u32 %v62, 7
  %v64 = vsub.s32 0, %v63
  %v65 = vrot.slane %v60, %v64
  %v73 = vunpack.c.l.b16 %v54
  %v74 = vunpack.c.l.b16 %v55
  %v75 = vunpack.c.l.b16 %v56
  %v76 = vunpack.c.l.b16 %v57
  %v77 = vunpack.c.l.b16 %v58
  %v78 = vunpack.c.l.b16 %v59
  %v79 = vpack.c.b16 %v74, %v73
  %v80 = vpack.c.b16 %v76, %v75
  %v81 = vpack.c.b16 %v78, %v77
  %v86 = vsel %vm22, %v53, 0
  %88 = vmatprep.subr.bf16.mxu0 0
  %89 = vmatpush1.bf16.msra.mxu0 %v79
  %90 = vmatprep.subr.bf16.mxu0 0
  %91 = vmatpush1.bf16.msra.mxu0 %v80
  %92 = vmatprep.subr.bf16.mxu0 0
  %93 = vmatpush1.bf16.msra.mxu0 %v81
  %94 = vmatprep.subr.bf16.mxu0 0
  %95 = vmatpush1.bf16.msra.mxu0 0
  %96 = vmatprep.subr.bf16.mxu0 0
  %97 = vmatpush1.bf16.msra.mxu0 0
  %98 = vmatprep.subr.bf16.mxu0 0
  %99 = vmatpush1.bf16.msra.mxu0 0
  %100 = vmatprep.subr.bf16.mxu0 0
  %101 = vmatpush1.bf16.msra.mxu0 0
  %102 = vmatprep.subr.bf16.mxu0 0
  %103 = vmatpush1.bf16.msra.mxu0 0
  %104 = vmatprep.subr.bf16.mxu0 0
  %105 = vmatpush1.bf16.msra.mxu0 0
  %106 = vmatprep.subr.bf16.mxu0 0
  %107 = vmatpush1.bf16.msra.mxu0 0
  %108 = vmatprep.subr.bf16.mxu0 0
  %109 = vmatpush1.bf16.msra.mxu0 0
  %110 = vmatprep.subr.bf16.mxu0 0
  %111 = vmatpush1.bf16.msra.mxu0 0
  %112 = vmatprep.subr.bf16.mxu0 0
  %113 = vmatpush1.bf16.msra.mxu0 0
  %114 = vmatprep.subr.bf16.mxu0 0
  %115 = vmatpush1.bf16.msra.mxu0 0
  %116 = vmatprep.subr.bf16.mxu0 0
  %117 = vmatpush1.bf16.msra.mxu0 0
  %118 = vmatprep.subr.bf16.mxu0 0
  %119 = vmatpush1.bf16.msra.mxu0 0
  %120 = vmatprep.mubr.bf16.mxu0 0
  %121 = vmatmul.mubr.bf16.gmra.mrb[0].mxu0 %v86
  %v122 = vpop.f32.mrb[0].mxu0
  %v123 = vadd.f32 %v65, %v122
  %v124 = vpop.f32.mrb[0].mxu0
  %v125 = vpop.f32.mrb[0].mxu0
  %v126 = vpop.f32.mrb[0].mxu0
  %127 = vdwg.mxu0
  %vm128 = vcmask 80896
  %129 = vst.msk [vmem:[%s5] sm:$0xff] %vm128, %v123
  // Predicated region
  $region22: #{forward.57} parent=0 // pred_check
    _
  $region23: #{forward.57} parent=0 // pred_check_branch
    %131 = sbr.rel (0) target = $region25
  $region24: #{forward.57} parent=0 // pred_region
    _
  $region25: #{forward.57} parent=0 // pred_fallthru
    _
  // Predicated region
  $region26: #{forward.57} parent=0 // pred_check
    _
  $region27: #{forward.57} parent=0 // pred_check_branch
    %133 = sbr.rel (0) target = $region29
  $region28: #{forward.57} parent=0 // pred_region
    _
  $region29: #{forward.57} parent=0 // pred_fallthru
    _

</llo_original>
